<compile_context>
chip_gen: v7x
topology: tpu7x:2x2x1
jax: 0.10.0
libtpu: 0.0.40
codegen_flags: <defaults>
</compile_context>

<pallas_src>
import functools

import jax
import jax.numpy as jnp
from jax.experimental import pallas as pl
from jax.experimental.pallas import tpu as pltpu


_HEAD_IN = 514        # 512 node embedding + 2 cond features
_COND_PAD = 16        # cond features padded to a bf16 sublane tile (contraction dim of w1c)
_HEAD_OUT_PAD = 128   # final Linear(512, 1) padded to a lane-dense 128-column slab
_VMEM_LIMIT = 48 << 20


# ---------------------------------------------------------------------------
# Fused Pallas kernel: gcn_norm + 4x GCNConv + extract + MLP head
# ---------------------------------------------------------------------------

def _il_net_gcn_kernel(idx_ref,                       # SMEM scalar prefetch: (B,) int32
                       x_ref, a_ref, cond_ref,
                       gw1, gb1, gw2, gb2, gw3, gb3, gw4, gb4,
                       hw1a, hw1c, hb1, hw2, hb2, hw3, hb3,
                       o_ref, *, n_graphs):
    n = a_ref.shape[0]
    b_pad = o_ref.shape[0]

    # ---- gcn_norm fused in-kernel (self-loops already present in A) ----
    a = a_ref[...]                                           # (N, N) f32
    deg = jnp.sum(a, axis=1, keepdims=True)                  # (N, 1), >= 1 (self-loops)
    dinv = jax.lax.rsqrt(deg)                                # D^{-1/2}
    a_bf = a.astype(jnp.bfloat16)

    # ---- 4x GCNConv: h <- relu(dinv * (A @ (dinv * (h W))) + b) ----
    h = x_ref[...].astype(jnp.bfloat16)
    for w_ref, b_ref in ((gw1, gb1), (gw2, gb2), (gw3, gb3), (gw4, gb4)):
        xw = jnp.dot(h, w_ref[...], preferred_element_type=jnp.float32)   # MXU
        xw = (xw * dinv).astype(jnp.bfloat16)                             # right D^{-1/2}
        agg = jnp.dot(a_bf, xw, preferred_element_type=jnp.float32)       # MXU
        h = jnp.maximum(agg * dinv + b_ref[...], 0.0).astype(jnp.bfloat16)
        # TODO(synk): self.dropout after each GCN layer is identity (inference mode).

    # ---- extract(): last node of each graph via a one-hot MXU gather ----
    rows = jax.lax.broadcasted_iota(jnp.int32, (b_pad, n), 0)
    cols = jax.lax.broadcasted_iota(jnp.int32, (b_pad, n), 1)
    target = jnp.full((b_pad, n), -1, jnp.int32)
    for b in range(n_graphs):                                # static, tiny
        target = jnp.where(rows == b, idx_ref[b], target)
    sel = (cols == target).astype(jnp.bfloat16)              # (B_pad, N) one-hot rows
    g = jnp.dot(sel, h, preferred_element_type=jnp.float32)  # (B_pad, 512)

    # ---- l5 head: Linear+BN(folded)+ReLU, Linear+BN(folded)+ReLU, Linear ----
    cond = cond_ref[...].astype(jnp.bfloat16)                # (B_pad, 16), zero-padded
    z = (jnp.dot(g.astype(jnp.bfloat16), hw1a[...], preferred_element_type=jnp.float32)
         + jnp.dot(cond, hw1c[...], preferred_element_type=jnp.float32)
         + hb1[...])
    h1 = jnp.maximum(z, 0.0).astype(jnp.bfloat16)
    z = jnp.dot(h1, hw2[...], preferred_element_type=jnp.float32) + hb2[...]
    h2 = jnp.maximum(z, 0.0).astype(jnp.bfloat16)
    o_ref[...] = jnp.dot(h2, hw3[...], preferred_element_type=jnp.float32) + hb3[...]


def _full_spec(shape):
    nd = len(shape)
    # index_map receives (grid_i, scalar_prefetch_ref)
    return pl.BlockSpec(shape, lambda i, idx, _nd=nd: (0,) * _nd)


def il_net_gcn_forward(x, a_dense, last_node_idx, cond, params):
    """Single fused pallas_call for the whole forward pass."""
    B = int(last_node_idx.shape[0])
    b_pad = max(8, -(-B // 8) * 8)                           # sublane-aligned batch rows
    cond_pad = jnp.pad(cond.astype(jnp.float32),
                       ((0, b_pad - B), (0, _COND_PAD - cond.shape[1])))

    p5 = params['l5']
    args = (last_node_idx.astype(jnp.int32),                 # scalar prefetch -> SMEM
            x, a_dense, cond_pad,
            params['l1']['w'], params['l1']['b'],
            params['l2']['w'], params['l2']['b'],
            params['l3']['w'], params['l3']['b'],
            params['l4']['w'], params['l4']['b'],
            p5['w1a'], p5['w1c'], p5['b1'],
            p5['w2'], p5['b2'], p5['w3'], p5['b3'])
    in_specs = [_full_spec(a.shape) for a in args[1:]]

    out = pl.pallas_call(
        functools.partial(_il_net_gcn_kernel, n_graphs=B),
        out_shape=jax.ShapeDtypeStruct((b_pad, _HEAD_OUT_PAD), jnp.float32),
        grid_spec=pltpu.PrefetchScalarGridSpec(
            num_scalar_prefetch=1,
            grid=(1,),
            in_specs=in_specs,
            out_specs=_full_spec((b_pad, _HEAD_OUT_PAD))),
        compiler_params=pltpu.CompilerParams(
            dimension_semantics=("arbitrary",),
            vmem_limit_bytes=_VMEM_LIMIT),
    )(*args)
    return out[:B, :1]                                       # real (B, 1) slice


# ---------------------------------------------------------------------------
# Deterministic parameter init (synthetic; matches module shapes, BN folded)
# ---------------------------------------------------------------------------

def _glorot(key, fin, fout):
    lim = (6.0 / (fin + fout)) ** 0.5
    return jax.random.uniform(key, (fin, fout), jnp.float32, -lim, lim)


def init_gcn_params(key, fin, fout):
    return dict(w=_glorot(key, fin, fout).astype(jnp.bfloat16),
                b=jnp.zeros((1, fout), jnp.float32))


def init_head_params(key, eps=1e-5):
    ks = jax.random.split(key, 11)
    w1 = _glorot(ks[0], _HEAD_IN, 1024)
    b1 = jnp.zeros((1024,), jnp.float32)
    w2 = _glorot(ks[1], 1024, 512)
    b2 = jnp.zeros((512,), jnp.float32)
    w3 = _glorot(ks[2], 512, 1)
    b3 = jnp.zeros((1,), jnp.float32)
    # BatchNorm1d running stats / affine (inference) — non-trivial to exercise folding.
    g1 = 1.0 + 0.1 * jax.random.normal(ks[3], (1024,))
    be1 = 0.1 * jax.random.normal(ks[4], (1024,))
    m1 = 0.1 * jax.random.normal(ks[5], (1024,))
    v1 = jnp.abs(1.0 + 0.1 * jax.random.normal(ks[6], (1024,)))
    g2 = 1.0 + 0.1 * jax.random.normal(ks[7], (512,))
    be2 = 0.1 * jax.random.normal(ks[8], (512,))
    m2 = 0.1 * jax.random.normal(ks[9], (512,))
    v2 = jnp.abs(1.0 + 0.1 * jax.random.normal(ks[10], (512,)))

    # Fold BN (inference affine) into the preceding Linear: w' = w*s, b' = (b-m)*s + beta
    s1 = g1 * jax.lax.rsqrt(v1 + eps)
    w1f, b1f = w1 * s1[None, :], (b1 - m1) * s1 + be1
    s2 = g2 * jax.lax.rsqrt(v2 + eps)
    w2f, b2f = w2 * s2[None, :], (b2 - m2) * s2 + be2

    # Split W1 into node-embedding part (512 rows) and zero-padded cond part (2 -> 16 rows).
    w1a = w1f[:512]
    w1c = jnp.pad(w1f[512:], ((0, _COND_PAD - 2), (0, 0)))
    # Lane-dense final Linear: real output in column 0.
    w3p = jnp.pad(w3, ((0, 0), (0, _HEAD_OUT_PAD - 1)))
    b3p = jnp.pad(b3, (0, _HEAD_OUT_PAD - 1)).reshape(1, -1)
    return dict(
        w1a=w1a.astype(jnp.bfloat16), w1c=w1c.astype(jnp.bfloat16), b1=b1f.reshape(1, -1),
        w2=w2f.astype(jnp.bfloat16), b2=b2f.reshape(1, -1),
        w3=w3p.astype(jnp.bfloat16), b3=b3p)


# ---------------------------------------------------------------------------
# Main
# ---------------------------------------------------------------------------

if __name__ == "__main__":
    key = jax.random.PRNGKey(0)
    n_features = 32          # args['n_features']
    nodes_per_graph = 8
    num_graphs = 2
    N = nodes_per_graph * num_graphs

    k_x, k_c, k_e, k_p = jax.random.split(key, 4)
    x = jax.random.normal(k_x, (N, n_features), jnp.float32)        # data_i.x
    cond = jax.random.normal(k_c, (num_graphs, 2), jnp.float32)     # cond (512 + 2 = 514)

    # edge_index: bidirectional chain per graph; edge_weight = sum(edge_attr, dim=1)
    src_l, dst_l = [], []
    for g in range(num_graphs):
        base = g * nodes_per_graph
        for k in range(nodes_per_graph - 1):
            a_, b_ = base + k, base + k + 1
            src_l += [a_, b_]
            dst_l += [b_, a_]
    src = jnp.array(src_l, jnp.int32)
    dst = jnp.array(dst_l, jnp.int32)
    edge_attr = jax.random.uniform(k_e, (src.shape[0], 3), jnp.float32)
    edge_weight = jnp.sum(edge_attr, axis=1)

    # dense weighted adjacency A[dst, src] with self loops of weight 1.0
    a_dense = jnp.zeros((N, N), jnp.float32).at[dst, src].add(edge_weight)
    a_dense = a_dense + jnp.eye(N, dtype=jnp.float32)

    # batch = [0]*8 + [1]*8 -> extract() picks the last node of each graph
    last_node_idx = jnp.array(
        [(g + 1) * nodes_per_graph - 1 for g in range(num_graphs)], jnp.int32)

    keys = jax.random.split(k_p, 5)
    params = {
        'l1': init_gcn_params(keys[0], n_features, 512),
        'l2': init_gcn_params(keys[1], 512, 1024),
        'l3': init_gcn_params(keys[2], 1024, 1024),
        'l4': init_gcn_params(keys[3], 1024, 512),
        'l5': init_head_params(keys[4]),
    }

    out = jax.jit(il_net_gcn_forward)(x, a_dense, last_node_idx, cond, params)
    jax.block_until_ready(out)
    assert out.shape == (num_graphs, 1) and out.dtype == jnp.float32
    print("KERNEL_OK")
</pallas_src>

<mosaic_0001>
module attributes {stable_mosaic.version = 11 : i64} {
  func.func @_il_net_gcn_kernel(%arg0: i32, %arg1: memref<2xi32, #tpu.memory_space<smem>>, %arg2: memref<16x32xf32, #tpu.memory_space<vmem>>, %arg3: memref<16x16xf32, #tpu.memory_space<vmem>>, %arg4: memref<8x16xf32, #tpu.memory_space<vmem>>, %arg5: memref<32x512xbf16, #tpu.memory_space<vmem>>, %arg6: memref<1x512xf32, #tpu.memory_space<vmem>>, %arg7: memref<512x1024xbf16, #tpu.memory_space<vmem>>, %arg8: memref<1x1024xf32, #tpu.memory_space<vmem>>, %arg9: memref<1024x1024xbf16, #tpu.memory_space<vmem>>, %arg10: memref<1x1024xf32, #tpu.memory_space<vmem>>, %arg11: memref<1024x512xbf16, #tpu.memory_space<vmem>>, %arg12: memref<1x512xf32, #tpu.memory_space<vmem>>, %arg13: memref<512x1024xbf16, #tpu.memory_space<vmem>>, %arg14: memref<16x1024xbf16, #tpu.memory_space<vmem>>, %arg15: memref<1x1024xf32, #tpu.memory_space<vmem>>, %arg16: memref<1024x512xbf16, #tpu.memory_space<vmem>>, %arg17: memref<1x512xf32, #tpu.memory_space<vmem>>, %arg18: memref<512x128xbf16, #tpu.memory_space<vmem>>, %arg19: memref<1x128xf32, #tpu.memory_space<vmem>>, %arg20: memref<8x128xf32, #tpu.memory_space<vmem>>) attributes {dimension_semantics = [#tpu.dimension_semantics<arbitrary>], iteration_bounds = array<i64: 1>, scalar_prefetch = 1 : i64, scratch_operands = 0 : i64, tpu.core_type = #tpu.core_type<tc>, window_params = [{pipeline_mode = #tpu.pipeline_mode<synchronous>, transform_indices = @transform_0, window_bounds = array<i64: 16, 32>}, {pipeline_mode = #tpu.pipeline_mode<synchronous>, transform_indices = @transform_1, window_bounds = array<i64: 16, 16>}, {pipeline_mode = #tpu.pipeline_mode<synchronous>, transform_indices = @transform_2, window_bounds = array<i64: 8, 16>}, {pipeline_mode = #tpu.pipeline_mode<synchronous>, transform_indices = @transform_3, window_bounds = array<i64: 32, 512>}, {pipeline_mode = #tpu.pipeline_mode<synchronous>, transform_indices = @transform_4, window_bounds = array<i64: 1, 512>}, {pipeline_mode = #tpu.pipeline_mode<synchronous>, transform_indices = @transform_5, window_bounds = array<i64: 512, 1024>}, {pipeline_mode = #tpu.pipeline_mode<synchronous>, transform_indices = @transform_6, window_bounds = array<i64: 1, 1024>}, {pipeline_mode = #tpu.pipeline_mode<synchronous>, transform_indices = @transform_7, window_bounds = array<i64: 1024, 1024>}, {pipeline_mode = #tpu.pipeline_mode<synchronous>, transform_indices = @transform_8, window_bounds = array<i64: 1, 1024>}, {pipeline_mode = #tpu.pipeline_mode<synchronous>, transform_indices = @transform_9, window_bounds = array<i64: 1024, 512>}, {pipeline_mode = #tpu.pipeline_mode<synchronous>, transform_indices = @transform_10, window_bounds = array<i64: 1, 512>}, {pipeline_mode = #tpu.pipeline_mode<synchronous>, transform_indices = @transform_11, window_bounds = array<i64: 512, 1024>}, {pipeline_mode = #tpu.pipeline_mode<synchronous>, transform_indices = @transform_12, window_bounds = array<i64: 16, 1024>}, {pipeline_mode = #tpu.pipeline_mode<synchronous>, transform_indices = @transform_13, window_bounds = array<i64: 1, 1024>}, {pipeline_mode = #tpu.pipeline_mode<synchronous>, transform_indices = @transform_14, window_bounds = array<i64: 1024, 512>}, {pipeline_mode = #tpu.pipeline_mode<synchronous>, transform_indices = @transform_15, window_bounds = array<i64: 1, 512>}, {pipeline_mode = #tpu.pipeline_mode<synchronous>, transform_indices = @transform_16, window_bounds = array<i64: 512, 128>}, {pipeline_mode = #tpu.pipeline_mode<synchronous>, transform_indices = @transform_17, window_bounds = array<i64: 1, 128>}, {pipeline_mode = #tpu.pipeline_mode<synchronous>, transform_indices = @transform_18, window_bounds = array<i64: 8, 128>}]} {
    %c0 = arith.constant 0 : index
    %c0_0 = arith.constant 0 : index
    %0 = vector.load %arg3[%c0, %c0_0] : memref<16x16xf32, #tpu.memory_space<vmem>>, vector<16x16xf32>
    %cst = arith.constant dense<0.000000e+00> : vector<16xf32>
    %1 = vector.multi_reduction <add>, %0, %cst [1] : vector<16x16xf32> to vector<16xf32>
    %2 = vector.shape_cast %1 : vector<16xf32> to vector<16x1xf32>
    %3 = math.rsqrt %2 : vector<16x1xf32>
    %4 = arith.truncf %0 : vector<16x16xf32> to vector<16x16xbf16>
    %c0_1 = arith.constant 0 : index
    %c0_2 = arith.constant 0 : index
    %5 = vector.load %arg2[%c0_1, %c0_2] : memref<16x32xf32, #tpu.memory_space<vmem>>, vector<16x32xf32>
    %6 = arith.truncf %5 : vector<16x32xf32> to vector<16x32xbf16>
    %c0_3 = arith.constant 0 : index
    %c0_4 = arith.constant 0 : index
    %7 = vector.load %arg5[%c0_3, %c0_4] : memref<32x512xbf16, #tpu.memory_space<vmem>>, vector<32x512xbf16>
    %cst_5 = arith.constant dense<0.000000e+00> : vector<16x512xf32>
    %8 = tpu.matmul %6, %7, %cst_5 {dimension_numbers = #tpu.dot_dimension_numbers<[1], [0], [0], [1], [0, 0, 1, 1], [], []>} : vector<16x32xbf16>, vector<32x512xbf16>, vector<16x512xf32> -> vector<16x512xf32>
    %9 = vector.broadcast %3 : vector<16x1xf32> to vector<16x512xf32>
    %10 = arith.mulf %8, %9 : vector<16x512xf32>
    %11 = arith.truncf %10 : vector<16x512xf32> to vector<16x512xbf16>
    %cst_6 = arith.constant dense<0.000000e+00> : vector<16x512xf32>
    %12 = tpu.matmul %4, %11, %cst_6 {dimension_numbers = #tpu.dot_dimension_numbers<[1], [0], [0], [1], [0, 0, 1, 1], [], []>} : vector<16x16xbf16>, vector<16x512xbf16>, vector<16x512xf32> -> vector<16x512xf32>
    %13 = vector.broadcast %3 : vector<16x1xf32> to vector<16x512xf32>
    %14 = arith.mulf %12, %13 : vector<16x512xf32>
    %c0_7 = arith.constant 0 : index
    %c0_8 = arith.constant 0 : index
    %15 = vector.load %arg6[%c0_7, %c0_8] : memref<1x512xf32, #tpu.memory_space<vmem>>, vector<1x512xf32>
    %16 = vector.broadcast %15 : vector<1x512xf32> to vector<16x512xf32>
    %17 = arith.addf %14, %16 : vector<16x512xf32>
    %cst_9 = arith.constant 0.000000e+00 : f32
    %18 = vector.broadcast %cst_9 : f32 to vector<16x512xf32>
    %19 = arith.maximumf %17, %18 : vector<16x512xf32>
    %20 = arith.truncf %19 : vector<16x512xf32> to vector<16x512xbf16>
    %c0_10 = arith.constant 0 : index
    %c0_11 = arith.constant 0 : index
    %21 = vector.load %arg7[%c0_10, %c0_11] : memref<512x1024xbf16, #tpu.memory_space<vmem>>, vector<512x1024xbf16>
    %cst_12 = arith.constant dense<0.000000e+00> : vector<16x1024xf32>
    %22 = tpu.matmul %20, %21, %cst_12 {dimension_numbers = #tpu.dot_dimension_numbers<[1], [0], [0], [1], [0, 0, 1, 1], [], []>} : vector<16x512xbf16>, vector<512x1024xbf16>, vector<16x1024xf32> -> vector<16x1024xf32>
    %23 = vector.broadcast %3 : vector<16x1xf32> to vector<16x1024xf32>
    %24 = arith.mulf %22, %23 : vector<16x1024xf32>
    %25 = arith.truncf %24 : vector<16x1024xf32> to vector<16x1024xbf16>
    %cst_13 = arith.constant dense<0.000000e+00> : vector<16x1024xf32>
    %26 = tpu.matmul %4, %25, %cst_13 {dimension_numbers = #tpu.dot_dimension_numbers<[1], [0], [0], [1], [0, 0, 1, 1], [], []>} : vector<16x16xbf16>, vector<16x1024xbf16>, vector<16x1024xf32> -> vector<16x1024xf32>
    %27 = vector.broadcast %3 : vector<16x1xf32> to vector<16x1024xf32>
    %28 = arith.mulf %26, %27 : vector<16x1024xf32>
    %c0_14 = arith.constant 0 : index
    %c0_15 = arith.constant 0 : index
    %29 = vector.load %arg8[%c0_14, %c0_15] : memref<1x1024xf32, #tpu.memory_space<vmem>>, vector<1x1024xf32>
    %30 = vector.broadcast %29 : vector<1x1024xf32> to vector<16x1024xf32>
    %31 = arith.addf %28, %30 : vector<16x1024xf32>
    %cst_16 = arith.constant 0.000000e+00 : f32
    %32 = vector.broadcast %cst_16 : f32 to vector<16x1024xf32>
    %33 = arith.maximumf %31, %32 : vector<16x1024xf32>
    %34 = arith.truncf %33 : vector<16x1024xf32> to vector<16x1024xbf16>
    %c0_17 = arith.constant 0 : index
    %c0_18 = arith.constant 0 : index
    %35 = vector.load %arg9[%c0_17, %c0_18] : memref<1024x1024xbf16, #tpu.memory_space<vmem>>, vector<1024x1024xbf16>
    %cst_19 = arith.constant dense<0.000000e+00> : vector<16x1024xf32>
    %36 = tpu.matmul %34, %35, %cst_19 {dimension_numbers = #tpu.dot_dimension_numbers<[1], [0], [0], [1], [0, 0, 1, 1], [], []>} : vector<16x1024xbf16>, vector<1024x1024xbf16>, vector<16x1024xf32> -> vector<16x1024xf32>
    %37 = vector.broadcast %3 : vector<16x1xf32> to vector<16x1024xf32>
    %38 = arith.mulf %36, %37 : vector<16x1024xf32>
    %39 = arith.truncf %38 : vector<16x1024xf32> to vector<16x1024xbf16>
    %cst_20 = arith.constant dense<0.000000e+00> : vector<16x1024xf32>
    %40 = tpu.matmul %4, %39, %cst_20 {dimension_numbers = #tpu.dot_dimension_numbers<[1], [0], [0], [1], [0, 0, 1, 1], [], []>} : vector<16x16xbf16>, vector<16x1024xbf16>, vector<16x1024xf32> -> vector<16x1024xf32>
    %41 = vector.broadcast %3 : vector<16x1xf32> to vector<16x1024xf32>
    %42 = arith.mulf %40, %41 : vector<16x1024xf32>
    %c0_21 = arith.constant 0 : index
    %c0_22 = arith.constant 0 : index
    %43 = vector.load %arg10[%c0_21, %c0_22] : memref<1x1024xf32, #tpu.memory_space<vmem>>, vector<1x1024xf32>
    %44 = vector.broadcast %43 : vector<1x1024xf32> to vector<16x1024xf32>
    %45 = arith.addf %42, %44 : vector<16x1024xf32>
    %cst_23 = arith.constant 0.000000e+00 : f32
    %46 = vector.broadcast %cst_23 : f32 to vector<16x1024xf32>
    %47 = arith.maximumf %45, %46 : vector<16x1024xf32>
    %48 = arith.truncf %47 : vector<16x1024xf32> to vector<16x1024xbf16>
    %c0_24 = arith.constant 0 : index
    %c0_25 = arith.constant 0 : index
    %49 = vector.load %arg11[%c0_24, %c0_25] : memref<1024x512xbf16, #tpu.memory_space<vmem>>, vector<1024x512xbf16>
    %cst_26 = arith.constant dense<0.000000e+00> : vector<16x512xf32>
    %50 = tpu.matmul %48, %49, %cst_26 {dimension_numbers = #tpu.dot_dimension_numbers<[1], [0], [0], [1], [0, 0, 1, 1], [], []>} : vector<16x1024xbf16>, vector<1024x512xbf16>, vector<16x512xf32> -> vector<16x512xf32>
    %51 = vector.broadcast %3 : vector<16x1xf32> to vector<16x512xf32>
    %52 = arith.mulf %50, %51 : vector<16x512xf32>
    %53 = arith.truncf %52 : vector<16x512xf32> to vector<16x512xbf16>
    %cst_27 = arith.constant dense<0.000000e+00> : vector<16x512xf32>
    %54 = tpu.matmul %4, %53, %cst_27 {dimension_numbers = #tpu.dot_dimension_numbers<[1], [0], [0], [1], [0, 0, 1, 1], [], []>} : vector<16x16xbf16>, vector<16x512xbf16>, vector<16x512xf32> -> vector<16x512xf32>
    %55 = vector.broadcast %3 : vector<16x1xf32> to vector<16x512xf32>
    %56 = arith.mulf %54, %55 : vector<16x512xf32>
    %c0_28 = arith.constant 0 : index
    %c0_29 = arith.constant 0 : index
    %57 = vector.load %arg12[%c0_28, %c0_29] : memref<1x512xf32, #tpu.memory_space<vmem>>, vector<1x512xf32>
    %58 = vector.broadcast %57 : vector<1x512xf32> to vector<16x512xf32>
    %59 = arith.addf %56, %58 : vector<16x512xf32>
    %cst_30 = arith.constant 0.000000e+00 : f32
    %60 = vector.broadcast %cst_30 : f32 to vector<16x512xf32>
    %61 = arith.maximumf %59, %60 : vector<16x512xf32>
    %62 = arith.truncf %61 : vector<16x512xf32> to vector<16x512xbf16>
    %63 = tpu.iota {dimensions = array<i32: 0>} : vector<8x16xi32>
    %64 = tpu.iota {dimensions = array<i32: 1>} : vector<8x16xi32>
    %c-1_i32 = arith.constant -1 : i32
    %65 = vector.broadcast %c-1_i32 : i32 to vector<8x16xi32>
    %c0_i32 = arith.constant 0 : i32
    %66 = vector.broadcast %c0_i32 : i32 to vector<8x16xi32>
    %67 = arith.cmpi eq, %63, %66 : vector<8x16xi32>
    %c0_31 = arith.constant 0 : index
    %68 = memref.load %arg1[%c0_31] : memref<2xi32, #tpu.memory_space<smem>>
    %69 = vector.broadcast %68 : i32 to vector<8x16xi32>
    %70 = arith.select %67, %69, %65 : vector<8x16xi1>, vector<8x16xi32>
    %c1_i32 = arith.constant 1 : i32
    %71 = vector.broadcast %c1_i32 : i32 to vector<8x16xi32>
    %72 = arith.cmpi eq, %63, %71 : vector<8x16xi32>
    %c1 = arith.constant 1 : index
    %73 = memref.load %arg1[%c1] : memref<2xi32, #tpu.memory_space<smem>>
    %74 = vector.broadcast %73 : i32 to vector<8x16xi32>
    %75 = arith.select %72, %74, %70 : vector<8x16xi1>, vector<8x16xi32>
    %76 = arith.cmpi eq, %64, %75 : vector<8x16xi32>
    %77 = arith.extui %76 : vector<8x16xi1> to vector<8x16xi32>
    %78 = arith.sitofp %77 : vector<8x16xi32> to vector<8x16xf32>
    %79 = arith.truncf %78 : vector<8x16xf32> to vector<8x16xbf16>
    %cst_32 = arith.constant dense<0.000000e+00> : vector<8x512xf32>
    %80 = tpu.matmul %79, %62, %cst_32 {dimension_numbers = #tpu.dot_dimension_numbers<[1], [0], [0], [1], [0, 0, 1, 1], [], []>} : vector<8x16xbf16>, vector<16x512xbf16>, vector<8x512xf32> -> vector<8x512xf32>
    %c0_33 = arith.constant 0 : index
    %c0_34 = arith.constant 0 : index
    %81 = vector.load %arg4[%c0_33, %c0_34] : memref<8x16xf32, #tpu.memory_space<vmem>>, vector<8x16xf32>
    %82 = arith.truncf %81 : vector<8x16xf32> to vector<8x16xbf16>
    %83 = arith.truncf %80 : vector<8x512xf32> to vector<8x512xbf16>
    %c0_35 = arith.constant 0 : index
    %c0_36 = arith.constant 0 : index
    %84 = vector.load %arg13[%c0_35, %c0_36] : memref<512x1024xbf16, #tpu.memory_space<vmem>>, vector<512x1024xbf16>
    %cst_37 = arith.constant dense<0.000000e+00> : vector<8x1024xf32>
    %85 = tpu.matmul %83, %84, %cst_37 {dimension_numbers = #tpu.dot_dimension_numbers<[1], [0], [0], [1], [0, 0, 1, 1], [], []>} : vector<8x512xbf16>, vector<512x1024xbf16>, vector<8x1024xf32> -> vector<8x1024xf32>
    %c0_38 = arith.constant 0 : index
    %c0_39 = arith.constant 0 : index
    %86 = vector.load %arg14[%c0_38, %c0_39] : memref<16x1024xbf16, #tpu.memory_space<vmem>>, vector<16x1024xbf16>
    %cst_40 = arith.constant dense<0.000000e+00> : vector<8x1024xf32>
    %87 = tpu.matmul %82, %86, %cst_40 {dimension_numbers = #tpu.dot_dimension_numbers<[1], [0], [0], [1], [0, 0, 1, 1], [], []>} : vector<8x16xbf16>, vector<16x1024xbf16>, vector<8x1024xf32> -> vector<8x1024xf32>
    %88 = arith.addf %85, %87 : vector<8x1024xf32>
    %c0_41 = arith.constant 0 : index
    %c0_42 = arith.constant 0 : index
    %89 = vector.load %arg15[%c0_41, %c0_42] : memref<1x1024xf32, #tpu.memory_space<vmem>>, vector<1x1024xf32>
    %90 = vector.broadcast %89 : vector<1x1024xf32> to vector<8x1024xf32>
    %91 = arith.addf %88, %90 : vector<8x1024xf32>
    %cst_43 = arith.constant 0.000000e+00 : f32
    %92 = vector.broadcast %cst_43 : f32 to vector<8x1024xf32>
    %93 = arith.maximumf %91, %92 : vector<8x1024xf32>
    %94 = arith.truncf %93 : vector<8x1024xf32> to vector<8x1024xbf16>
    %c0_44 = arith.constant 0 : index
    %c0_45 = arith.constant 0 : index
    %95 = vector.load %arg16[%c0_44, %c0_45] : memref<1024x512xbf16, #tpu.memory_space<vmem>>, vector<1024x512xbf16>
    %cst_46 = arith.constant dense<0.000000e+00> : vector<8x512xf32>
    %96 = tpu.matmul %94, %95, %cst_46 {dimension_numbers = #tpu.dot_dimension_numbers<[1], [0], [0], [1], [0, 0, 1, 1], [], []>} : vector<8x1024xbf16>, vector<1024x512xbf16>, vector<8x512xf32> -> vector<8x512xf32>
    %c0_47 = arith.constant 0 : index
    %c0_48 = arith.constant 0 : index
    %97 = vector.load %arg17[%c0_47, %c0_48] : memref<1x512xf32, #tpu.memory_space<vmem>>, vector<1x512xf32>
    %98 = vector.broadcast %97 : vector<1x512xf32> to vector<8x512xf32>
    %99 = arith.addf %96, %98 : vector<8x512xf32>
    %cst_49 = arith.constant 0.000000e+00 : f32
    %100 = vector.broadcast %cst_49 : f32 to vector<8x512xf32>
    %101 = arith.maximumf %99, %100 : vector<8x512xf32>
    %102 = arith.truncf %101 : vector<8x512xf32> to vector<8x512xbf16>
    %c0_50 = arith.constant 0 : index
    %c0_51 = arith.constant 0 : index
    %103 = vector.load %arg18[%c0_50, %c0_51] : memref<512x128xbf16, #tpu.memory_space<vmem>>, vector<512x128xbf16>
    %cst_52 = arith.constant dense<0.000000e+00> : vector<8x128xf32>
    %104 = tpu.matmul %102, %103, %cst_52 {dimension_numbers = #tpu.dot_dimension_numbers<[1], [0], [0], [1], [0, 0, 1, 1], [], []>} : vector<8x512xbf16>, vector<512x128xbf16>, vector<8x128xf32> -> vector<8x128xf32>
    %c0_53 = arith.constant 0 : index
    %c0_54 = arith.constant 0 : index
    %105 = vector.load %arg19[%c0_53, %c0_54] : memref<1x128xf32, #tpu.memory_space<vmem>>, vector<1x128xf32>
    %106 = vector.broadcast %105 : vector<1x128xf32> to vector<8x128xf32>
    %107 = arith.addf %104, %106 : vector<8x128xf32>
    %c0_55 = arith.constant 0 : index
    %c0_56 = arith.constant 0 : index
    %108 = vector.load %arg20[%c0_55, %c0_56] : memref<8x128xf32, #tpu.memory_space<vmem>>, vector<8x128xf32>
    tpu.vector_store %arg20[%c0_55, %c0_56], %107 {strides = array<i32>} : memref<8x128xf32, #tpu.memory_space<vmem>>, vector<8x128xf32>,
    return
  }
  func.func @transform_0(%arg0: i32, %arg1: memref<2xi32, #tpu.memory_space<smem>>) -> (i32, i32) {
    %c0_i32 = arith.constant 0 : i32
    %c0_i32_0 = arith.constant 0 : i32
    %c0_i32_1 = arith.constant 0 : i32
    return %c0_i32, %c0_i32_0 : i32, i32
  }
  func.func @transform_1(%arg0: i32, %arg1: memref<2xi32, #tpu.memory_space<smem>>) -> (i32, i32) {
    %c0_i32 = arith.constant 0 : i32
    %c0_i32_0 = arith.constant 0 : i32
    %c0_i32_1 = arith.constant 0 : i32
    return %c0_i32, %c0_i32_0 : i32, i32
  }
  func.func @transform_2(%arg0: i32, %arg1: memref<2xi32, #tpu.memory_space<smem>>) -> (i32, i32) {
    %c0_i32 = arith.constant 0 : i32
    %c0_i32_0 = arith.constant 0 : i32
    %c0_i32_1 = arith.constant 0 : i32
    return %c0_i32, %c0_i32_0 : i32, i32
  }
  func.func @transform_3(%arg0: i32, %arg1: memref<2xi32, #tpu.memory_space<smem>>) -> (i32, i32) {
    %c0_i32 = arith.constant 0 : i32
    %c0_i32_0 = arith.constant 0 : i32
    %c0_i32_1 = arith.constant 0 : i32
    return %c0_i32, %c0_i32_0 : i32, i32
  }
  func.func @transform_4(%arg0: i32, %arg1: memref<2xi32, #tpu.memory_space<smem>>) -> (i32, i32) {
    %c0_i32 = arith.constant 0 : i32
    %c0_i32_0 = arith.constant 0 : i32
    %c0_i32_1 = arith.constant 0 : i32
    return %c0_i32, %c0_i32_0 : i32, i32
  }
  func.func @transform_5(%arg0: i32, %arg1: memref<2xi32, #tpu.memory_space<smem>>) -> (i32, i32) {
    %c0_i32 = arith.constant 0 : i32
    %c0_i32_0 = arith.constant 0 : i32
    %c0_i32_1 = arith.constant 0 : i32
    return %c0_i32, %c0_i32_0 : i32, i32
  }
  func.func @transform_6(%arg0: i32, %arg1: memref<2xi32, #tpu.memory_space<smem>>) -> (i32, i32) {
    %c0_i32 = arith.constant 0 : i32
    %c0_i32_0 = arith.constant 0 : i32
    %c0_i32_1 = arith.constant 0 : i32
    return %c0_i32, %c0_i32_0 : i32, i32
  }
  func.func @transform_7(%arg0: i32, %arg1: memref<2xi32, #tpu.memory_space<smem>>) -> (i32, i32) {
    %c0_i32 = arith.constant 0 : i32
    %c0_i32_0 = arith.constant 0 : i32
    %c0_i32_1 = arith.constant 0 : i32
    return %c0_i32, %c0_i32_0 : i32, i32
  }
  func.func @transform_8(%arg0: i32, %arg1: memref<2xi32, #tpu.memory_space<smem>>) -> (i32, i32) {
    %c0_i32 = arith.constant 0 : i32
    %c0_i32_0 = arith.constant 0 : i32
    %c0_i32_1 = arith.constant 0 : i32
    return %c0_i32, %c0_i32_0 : i32, i32
  }
  func.func @transform_9(%arg0: i32, %arg1: memref<2xi32, #tpu.memory_space<smem>>) -> (i32, i32) {
    %c0_i32 = arith.constant 0 : i32
    %c0_i32_0 = arith.constant 0 : i32
    %c0_i32_1 = arith.constant 0 : i32
    return %c0_i32, %c0_i32_0 : i32, i32
  }
  func.func @transform_10(%arg0: i32, %arg1: memref<2xi32, #tpu.memory_space<smem>>) -> (i32, i32) {
    %c0_i32 = arith.constant 0 : i32
    %c0_i32_0 = arith.constant 0 : i32
    %c0_i32_1 = arith.constant 0 : i32
    return %c0_i32, %c0_i32_0 : i32, i32
  }
  func.func @transform_11(%arg0: i32, %arg1: memref<2xi32, #tpu.memory_space<smem>>) -> (i32, i32) {
    %c0_i32 = arith.constant 0 : i32
    %c0_i32_0 = arith.constant 0 : i32
    %c0_i32_1 = arith.constant 0 : i32
    return %c0_i32, %c0_i32_0 : i32, i32
  }
  func.func @transform_12(%arg0: i32, %arg1: memref<2xi32, #tpu.memory_space<smem>>) -> (i32, i32) {
    %c0_i32 = arith.constant 0 : i32
    %c0_i32_0 = arith.constant 0 : i32
    %c0_i32_1 = arith.constant 0 : i32
    return %c0_i32, %c0_i32_0 : i32, i32
  }
  func.func @transform_13(%arg0: i32, %arg1: memref<2xi32, #tpu.memory_space<smem>>) -> (i32, i32) {
    %c0_i32 = arith.constant 0 : i32
    %c0_i32_0 = arith.constant 0 : i32
    %c0_i32_1 = arith.constant 0 : i32
    return %c0_i32, %c0_i32_0 : i32, i32
  }
  func.func @transform_14(%arg0: i32, %arg1: memref<2xi32, #tpu.memory_space<smem>>) -> (i32, i32) {
    %c0_i32 = arith.constant 0 : i32
    %c0_i32_0 = arith.constant 0 : i32
    %c0_i32_1 = arith.constant 0 : i32
    return %c0_i32, %c0_i32_0 : i32, i32
  }
  func.func @transform_15(%arg0: i32, %arg1: memref<2xi32, #tpu.memory_space<smem>>) -> (i32, i32) {
    %c0_i32 = arith.constant 0 : i32
    %c0_i32_0 = arith.constant 0 : i32
    %c0_i32_1 = arith.constant 0 : i32
    return %c0_i32, %c0_i32_0 : i32, i32
  }
  func.func @transform_16(%arg0: i32, %arg1: memref<2xi32, #tpu.memory_space<smem>>) -> (i32, i32) {
    %c0_i32 = arith.constant 0 : i32
    %c0_i32_0 = arith.constant 0 : i32
    %c0_i32_1 = arith.constant 0 : i32
    return %c0_i32, %c0_i32_0 : i32, i32
  }
  func.func @transform_17(%arg0: i32, %arg1: memref<2xi32, #tpu.memory_space<smem>>) -> (i32, i32) {
    %c0_i32 = arith.constant 0 : i32
    %c0_i32_0 = arith.constant 0 : i32
    %c0_i32_1 = arith.constant 0 : i32
    return %c0_i32, %c0_i32_0 : i32, i32
  }
  func.func @transform_18(%arg0: i32, %arg1: memref<2xi32, #tpu.memory_space<smem>>) -> (i32, i32) {
    %c0_i32 = arith.constant 0 : i32
    %c0_i32_0 = arith.constant 0 : i32
    %c0_i32_1 = arith.constant 0 : i32
    return %c0_i32, %c0_i32_0 : i32, i32
  }
}

</mosaic_0001>

<llo_original>
// kernel: il_net_gcn_forward.1
$region0: #{il_net_gcn_forward.1}
  #allocation0 [shape = 'u32[]', space=smem, size = 0x4, offset = 0x4, fixed_abs, tag = 'smem constant byte address 0x4 - core index']
  #allocation1 [shape = 'u32[144,128]{1,0:T(1,128)}', space=vmem, size = 0x12000, scoped, tag = 'internal scratch']
  #allocation2 [shape = 's32[1]{0}', space=sflag, size = 0x4, scoped, tag = 'scoped memory for il_net_gcn_forward.1']
  #allocation3 [shape = 'u8[512]{0}', space=smem, size = 0x200, scoped, tag = 'prefetched SMEM operand 0']
  %s0 = inlined_call_operand.hbm [shape: s32[2], index: 0, kind: input, shape index: {}]
  %s1 = inlined_call_operand.hbm [shape: f32[16,32], index: 1, kind: input, shape index: {}]
  %s2 = inlined_call_operand.hbm [shape: f32[16,16], index: 2, kind: input, shape index: {}]
  %s3 = inlined_call_operand.vmem [shape: f32[8,16], index: 3, kind: input, shape index: {}]
  %s4 = inlined_call_operand.hbm [shape: bf16[32,512], index: 4, kind: input, shape index: {}]
  %s5 = inlined_call_operand.hbm [shape: f32[1,512], index: 5, kind: input, shape index: {}]
  %s6 = inlined_call_operand.hbm [shape: bf16[512,1024], index: 6, kind: input, shape index: {}]
  %s7 = inlined_call_operand.hbm [shape: f32[1,1024], index: 7, kind: input, shape index: {}]
  %s8 = inlined_call_operand.hbm [shape: bf16[1024,1024], index: 8, kind: input, shape index: {}]
  %s9 = inlined_call_operand.hbm [shape: f32[1,1024], index: 9, kind: input, shape index: {}]
  %s10 = inlined_call_operand.hbm [shape: bf16[1024,512], index: 10, kind: input, shape index: {}]
  %s11 = inlined_call_operand.hbm [shape: f32[1,512], index: 11, kind: input, shape index: {}]
  %s12 = inlined_call_operand.hbm [shape: bf16[512,1024], index: 12, kind: input, shape index: {}]
  %s13 = inlined_call_operand.hbm [shape: bf16[16,1024], index: 13, kind: input, shape index: {}]
  %s14 = inlined_call_operand.hbm [shape: f32[1,1024], index: 14, kind: input, shape index: {}]
  %s15 = inlined_call_operand.hbm [shape: bf16[1024,512], index: 15, kind: input, shape index: {}]
  %s16 = inlined_call_operand.hbm [shape: f32[1,512], index: 16, kind: input, shape index: {}]
  %s17 = inlined_call_operand.hbm [shape: bf16[512,128], index: 17, kind: input, shape index: {}]
  %s18 = inlined_call_operand.hbm [shape: f32[1,128], index: 18, kind: input, shape index: {}]
  %s19 = inlined_call_operand.vmem [shape: f32[8,128], index: 19, kind: output, shape index: {}]
  %s20 = sld [smem:[#allocation0]]
  $region150: #{il_net_gcn_forward.1} parent=0
    _
  %s22 = ssub.s32 1, %s20
  %s23 = scalar_select 0, %s22, %s20
  %25 = dma.hbm_to_smem %s0, 16, [#allocation3], [#allocation2]
  %26 = dma.done [#allocation2], 16
  %27 = sfence
  $region1: #{il_net_gcn_forward.1} parent=0
    #allocation4 [shape = 'u8[8192]{0}', space=vmem, size = 0x2000, scoped, tag = 'input window, operand 1, single buffered']
    #allocation5 [shape = 's32[1]{0}', space=sflag, size = 0x4, scoped, tag = 'scoped memory for il_net_gcn_forward.1']
    #allocation6 [shape = 'u8[8192]{0}', space=vmem, size = 0x2000, scoped, tag = 'input window, operand 2, single buffered']
    #allocation7 [shape = 's32[1]{0}', space=sflag, size = 0x4, scoped, tag = 'scoped memory for il_net_gcn_forward.1']
    #allocation8 [shape = 'u8[32768]{0}', space=vmem, size = 0x8000, scoped, tag = 'input window, operand 4, single buffered']
    #allocation9 [shape = 'u8[2048]{0}', space=vmem, size = 0x800, scoped, tag = 'input window, operand 5, single buffered']
    #allocation10 [shape = 's32[1]{0}', space=sflag, size = 0x4, scoped, tag = 'scoped memory for il_net_gcn_forward.1']
    #allocation11 [shape = 'u8[1048576]{0}', space=vmem, size = 0x100000, scoped, tag = 'input window, operand 6, single buffered']
    #allocation12 [shape = 'u8[4096]{0}', space=vmem, size = 0x1000, scoped, tag = 'input window, operand 7, single buffered']
    #allocation13 [shape = 's32[1]{0}', space=sflag, size = 0x4, scoped, tag = 'scoped memory for il_net_gcn_forward.1']
    #allocation14 [shape = 'u8[2097152]{0}', space=vmem, size = 0x200000, scoped, tag = 'input window, operand 8, single buffered']
    #allocation15 [shape = 'u8[4096]{0}', space=vmem, size = 0x1000, scoped, tag = 'input window, operand 9, single buffered']
    #allocation16 [shape = 's32[1]{0}', space=sflag, size = 0x4, scoped, tag = 'scoped memory for il_net_gcn_forward.1']
    #allocation17 [shape = 'u8[1048576]{0}', space=vmem, size = 0x100000, scoped, tag = 'input window, operand 10, single buffered']
    #allocation18 [shape = 'u8[2048]{0}', space=vmem, size = 0x800, scoped, tag = 'input window, operand 11, single buffered']
    #allocation19 [shape = 's32[1]{0}', space=sflag, size = 0x4, scoped, tag = 'scoped memory for il_net_gcn_forward.1']
    #allocation20 [shape = 'u8[1048576]{0}', space=vmem, size = 0x100000, scoped, tag = 'input window, operand 12, single buffered']
    #allocation21 [shape = 'u8[32768]{0}', space=vmem, size = 0x8000, scoped, tag = 'input window, operand 13, single buffered']
    #allocation22 [shape = 's32[1]{0}', space=sflag, size = 0x4, scoped, tag = 'scoped memory for il_net_gcn_forward.1']
    #allocation23 [shape = 'u8[4096]{0}', space=vmem, size = 0x1000, scoped, tag = 'input window, operand 14, single buffered']
    #allocation24 [shape = 'u8[1048576]{0}', space=vmem, size = 0x100000, scoped, tag = 'input window, operand 15, single buffered']
    #allocation25 [shape = 's32[1]{0}', space=sflag, size = 0x4, scoped, tag = 'scoped memory for il_net_gcn_forward.1']
    #allocation26 [shape = 'u8[2048]{0}', space=vmem, size = 0x800, scoped, tag = 'input window, operand 16, single buffered']
    #allocation27 [shape = 'u8[131072]{0}', space=vmem, size = 0x20000, scoped, tag = 'input window, operand 17, single buffered']
    #allocation28 [shape = 's32[1]{0}', space=sflag, size = 0x4, scoped, tag = 'scoped memory for il_net_gcn_forward.1']
    #allocation29 [shape = 'u8[512]{0}', space=vmem, size = 0x400, scoped, tag = 'input window, operand 18, single buffered']
    %28 = vsyncpa [#allocation5], 0
    %29 = vsyncpa [#allocation7], 0
    %30 = vsyncpa [#allocation10], 0
    %31 = vsyncpa [#allocation13], 0
    %32 = vsyncpa [#allocation16], 0
    %33 = vsyncpa [#allocation19], 0
    %34 = vsyncpa [#allocation22], 0
    %35 = vsyncpa [#allocation25], 0
    %36 = vsyncpa [#allocation28], 0
    // Predicated region
    $region2: #{il_net_gcn_forward.1} parent=1 // pred_check
      _
    $region3: #{il_net_gcn_forward.1} parent=1 // pred_check_branch
      %38 = sbr.rel (0) target = $region5
    $region4: #{il_net_gcn_forward.1} parent=1 // pred_region
      %s40 = ssub.s32 256, 256
      %41 = vsyncadd [#allocation5], %s40
      %s42 = sshll.u32 [#allocation4], 4
      %s43 = int_to_ptr.vmem [resolvable:$true] %s42
      %48 = dma.hbm_to_vmem [thread:$0]  %s1, 256, %s43, [#allocation5], 128, 128, 8
    $region5: #{il_net_gcn_forward.1} parent=1 // pred_fallthru
      _
    // Predicated region
    $region6: #{il_net_gcn_forward.1} parent=1 // pred_check
      _
    $region7: #{il_net_gcn_forward.1} parent=1 // pred_check_branch
      %50 = sbr.rel (0) target = $region9
    $region8: #{il_net_gcn_forward.1} parent=1 // pred_region
      %s52 = ssub.s32 256, 256
      %53 = vsyncadd [#allocation7], %s52
      %s54 = sshll.u32 [#allocation6], 4
      %s55 = int_to_ptr.vmem [resolvable:$true] %s54
      %60 = dma.hbm_to_vmem [thread:$0]  %s2, 256, %s55, [#allocation7], 128, 128, 8
    $region9: #{il_net_gcn_forward.1} parent=1 // pred_fallthru
      _
    // Predicated region
    $region10: #{il_net_gcn_forward.1} parent=1 // pred_check
      _
    $region11: #{il_net_gcn_forward.1} parent=1 // pred_check_branch
      %62 = sbr.rel (0) target = $region13
    $region12: #{il_net_gcn_forward.1} parent=1 // pred_region
      _
    $region13: #{il_net_gcn_forward.1} parent=1 // pred_fallthru
      _
    // Predicated region
    $region14: #{il_net_gcn_forward.1} parent=1 // pred_check
      _
    $region15: #{il_net_gcn_forward.1} parent=1 // pred_check_branch
      %64 = sbr.rel (0) target = $region17
    $region16: #{il_net_gcn_forward.1} parent=1 // pred_region
      %s66 = ssub.s32 1024, 1024
      %67 = vsyncadd [#allocation7], %s66
      %s68 = sshll.u32 [#allocation8], 4
      %s69 = int_to_ptr.vmem [resolvable:$true] %s68
      %74 = dma.hbm_to_vmem [thread:$0]  %s4, 1024, %s69, [#allocation7], 256, 256, 16
    $region17: #{il_net_gcn_forward.1} parent=1 // pred_fallthru
      _
    // Predicated region
    $region18: #{il_net_gcn_forward.1} parent=1 // pred_check
      _
    $region19: #{il_net_gcn_forward.1} parent=1 // pred_check_branch
      %76 = sbr.rel (0) target = $region21
    $region20: #{il_net_gcn_forward.1} parent=1 // pred_region
      %s78 = ssub.s32 64, 64
      %79 = vsyncadd [#allocation10], %s78
      %s81 = sshll.u32 [#allocation9], 4
      %s82 = int_to_ptr.vmem [resolvable:$true] %s81
      %84 = dma.hbm_to_vmem [thread:$0]  %s5, 64, %s82, [#allocation10]
    $region21: #{il_net_gcn_forward.1} parent=1 // pred_fallthru
      _
    // Predicated region
    $region22: #{il_net_gcn_forward.1} parent=1 // pred_check
      _
    $region23: #{il_net_gcn_forward.1} parent=1 // pred_check_branch
      %86 = sbr.rel (0) target = $region25
    $region24: #{il_net_gcn_forward.1} parent=1 // pred_region
      %s88 = ssub.s32 32768, 32768
      %89 = vsyncadd [#allocation10], %s88
      %s90 = sshll.u32 [#allocation11], 4
      %s91 = int_to_ptr.vmem [resolvable:$true] %s90
      %96 = dma.hbm_to_vmem [thread:$0]  %s6, 32768, %s91, [#allocation10], 512, 512, 32
    $region25: #{il_net_gcn_forward.1} parent=1 // pred_fallthru
      _
    // Predicated region
    $region26: #{il_net_gcn_forward.1} parent=1 // pred_check
      _
    $region27: #{il_net_gcn_forward.1} parent=1 // pred_check_branch
      %98 = sbr.rel (0) target = $region29
    $region28: #{il_net_gcn_forward.1} parent=1 // pred_region
      %s100 = ssub.s32 128, 128
      %101 = vsyncadd [#allocation13], %s100
      %s103 = sshll.u32 [#allocation12], 4
      %s104 = int_to_ptr.vmem [resolvable:$true] %s103
      %106 = dma.hbm_to_vmem [thread:$0]  %s7, 128, %s104, [#allocation13]
    $region29: #{il_net_gcn_forward.1} parent=1 // pred_fallthru
      _
    // Predicated region
    $region30: #{il_net_gcn_forward.1} parent=1 // pred_check
      _
    $region31: #{il_net_gcn_forward.1} parent=1 // pred_check_branch
      %108 = sbr.rel (0) target = $region33
    $region32: #{il_net_gcn_forward.1} parent=1 // pred_region
      %s110 = ssub.s32 65536, 65536
      %111 = vsyncadd [#allocation13], %s110
      %s112 = sshll.u32 [#allocation14], 4
      %s113 = int_to_ptr.vmem [resolvable:$true] %s112
      %118 = dma.hbm_to_vmem [thread:$0]  %s8, 65536, %s113, [#allocation13], 512, 512, 32
    $region33: #{il_net_gcn_forward.1} parent=1 // pred_fallthru
      _
    // Predicated region
    $region34: #{il_net_gcn_forward.1} parent=1 // pred_check
      _
    $region35: #{il_net_gcn_forward.1} parent=1 // pred_check_branch
      %120 = sbr.rel (0) target = $region37
    $region36: #{il_net_gcn_forward.1} parent=1 // pred_region
      %s122 = ssub.s32 128, 128
      %123 = vsyncadd [#allocation16], %s122
      %s125 = sshll.u32 [#allocation15], 4
      %s126 = int_to_ptr.vmem [resolvable:$true] %s125
      %128 = dma.hbm_to_vmem [thread:$0]  %s9, 128, %s126, [#allocation16]
    $region37: #{il_net_gcn_forward.1} parent=1 // pred_fallthru
      _
    // Predicated region
    $region38: #{il_net_gcn_forward.1} parent=1 // pred_check
      _
    $region39: #{il_net_gcn_forward.1} parent=1 // pred_check_branch
      %130 = sbr.rel (0) target = $region41
    $region40: #{il_net_gcn_forward.1} parent=1 // pred_region
      %s132 = ssub.s32 32768, 32768
      %133 = vsyncadd [#allocation16], %s132
      %s134 = sshll.u32 [#allocation17], 4
      %s135 = int_to_ptr.vmem [resolvable:$true] %s134
      %140 = dma.hbm_to_vmem [thread:$0]  %s10, 32768, %s135, [#allocation16], 256, 256, 16
    $region41: #{il_net_gcn_forward.1} parent=1 // pred_fallthru
      _
    // Predicated region
    $region42: #{il_net_gcn_forward.1} parent=1 // pred_check
      _
    $region43: #{il_net_gcn_forward.1} parent=1 // pred_check_branch
      %142 = sbr.rel (0) target = $region45
    $region44: #{il_net_gcn_forward.1} parent=1 // pred_region
      %s144 = ssub.s32 64, 64
      %145 = vsyncadd [#allocation19], %s144
      %s147 = sshll.u32 [#allocation18], 4
      %s148 = int_to_ptr.vmem [resolvable:$true] %s147
      %150 = dma.hbm_to_vmem [thread:$0]  %s11, 64, %s148, [#allocation19]
    $region45: #{il_net_gcn_forward.1} parent=1 // pred_fallthru
      _
    // Predicated region
    $region46: #{il_net_gcn_forward.1} parent=1 // pred_check
      _
    $region47: #{il_net_gcn_forward.1} parent=1 // pred_check_branch
      %152 = sbr.rel (0) target = $region49
    $region48: #{il_net_gcn_forward.1} parent=1 // pred_region
      %s154 = ssub.s32 32768, 32768
      %155 = vsyncadd [#allocation19], %s154
      %s156 = sshll.u32 [#allocation20], 4
      %s157 = int_to_ptr.vmem [resolvable:$true] %s156
      %162 = dma.hbm_to_vmem [thread:$0]  %s12, 32768, %s157, [#allocation19], 512, 512, 32
    $region49: #{il_net_gcn_forward.1} parent=1 // pred_fallthru
      _
    // Predicated region
    $region50: #{il_net_gcn_forward.1} parent=1 // pred_check
      _
    $region51: #{il_net_gcn_forward.1} parent=1 // pred_check_branch
      %164 = sbr.rel (0) target = $region53
    $region52: #{il_net_gcn_forward.1} parent=1 // pred_region
      %s166 = ssub.s32 1024, 1024
      %167 = vsyncadd [#allocation22], %s166
      %s168 = sshll.u32 [#allocation21], 4
      %s169 = int_to_ptr.vmem [resolvable:$true] %s168
      %174 = dma.hbm_to_vmem [thread:$0]  %s13, 1024, %s169, [#allocation22], 512, 512, 32
    $region53: #{il_net_gcn_forward.1} parent=1 // pred_fallthru
      _
    // Predicated region
    $region54: #{il_net_gcn_forward.1} parent=1 // pred_check
      _
    $region55: #{il_net_gcn_forward.1} parent=1 // pred_check_branch
      %176 = sbr.rel (0) target = $region57
    $region56: #{il_net_gcn_forward.1} parent=1 // pred_region
      %s178 = ssub.s32 128, 128
      %179 = vsyncadd [#allocation22], %s178
      %s181 = sshll.u32 [#allocation23], 4
      %s182 = int_to_ptr.vmem [resolvable:$true] %s181
      %184 = dma.hbm_to_vmem [thread:$0]  %s14, 128, %s182, [#allocation22]
    $region57: #{il_net_gcn_forward.1} parent=1 // pred_fallthru
      _
    // Predicated region
    $region58: #{il_net_gcn_forward.1} parent=1 // pred_check
      _
    $region59: #{il_net_gcn_forward.1} parent=1 // pred_check_branch
      %186 = sbr.rel (0) target = $region61
    $region60: #{il_net_gcn_forward.1} parent=1 // pred_region
      %s188 = ssub.s32 32768, 32768
      %189 = vsyncadd [#allocation25], %s188
      %s190 = sshll.u32 [#allocation24], 4
      %s191 = int_to_ptr.vmem [resolvable:$true] %s190
      %196 = dma.hbm_to_vmem [thread:$0]  %s15, 32768, %s191, [#allocation25], 256, 256, 16
    $region61: #{il_net_gcn_forward.1} parent=1 // pred_fallthru
      _
    // Predicated region
    $region62: #{il_net_gcn_forward.1} parent=1 // pred_check
      _
    $region63: #{il_net_gcn_forward.1} parent=1 // pred_check_branch
      %198 = sbr.rel (0) target = $region65
    $region64: #{il_net_gcn_forward.1} parent=1 // pred_region
      %s200 = ssub.s32 64, 64
      %201 = vsyncadd [#allocation25], %s200
      %s203 = sshll.u32 [#allocation26], 4
      %s204 = int_to_ptr.vmem [resolvable:$true] %s203
      %206 = dma.hbm_to_vmem [thread:$0]  %s16, 64, %s204, [#allocation25]
    $region65: #{il_net_gcn_forward.1} parent=1 // pred_fallthru
      _
    // Predicated region
    $region66: #{il_net_gcn_forward.1} parent=1 // pred_check
      _
    $region67: #{il_net_gcn_forward.1} parent=1 // pred_check_branch
      %208 = sbr.rel (0) target = $region69
    $region68: #{il_net_gcn_forward.1} parent=1 // pred_region
      %s210 = ssub.s32 4096, 4096
      %211 = vsyncadd [#allocation28], %s210
      %s212 = sshll.u32 [#allocation27], 4
      %s213 = int_to_ptr.vmem [resolvable:$true] %s212
      %218 = dma.hbm_to_vmem [thread:$0]  %s17, 4096, %s213, [#allocation28], 64, 64, 4
    $region69: #{il_net_gcn_forward.1} parent=1 // pred_fallthru
      _
    // Predicated region
    $region70: #{il_net_gcn_forward.1} parent=1 // pred_check
      _
    $region71: #{il_net_gcn_forward.1} parent=1 // pred_check_branch
      %220 = sbr.rel (0) target = $region73
    $region72: #{il_net_gcn_forward.1} parent=1 // pred_region
      %s222 = ssub.s32 16, 16
      %223 = vsyncadd [#allocation28], %s222
      %s225 = sshll.u32 [#allocation29], 4
      %s226 = int_to_ptr.vmem [resolvable:$true] %s225
      %228 = dma.hbm_to_vmem [thread:$0]  %s18, 16, %s226, [#allocation28]
    $region73: #{il_net_gcn_forward.1} parent=1 // pred_fallthru
      _
    // Predicated region
    $region74: #{il_net_gcn_forward.1} parent=1 // pred_check
      _
    $region75: #{il_net_gcn_forward.1} parent=1 // pred_check_branch
      %230 = sbr.rel (0) target = $region77
    $region76: #{il_net_gcn_forward.1} parent=1 // pred_region
      %231 = dma.done [#allocation5], 256
    $region77: #{il_net_gcn_forward.1} parent=1 // pred_fallthru
      _
    // Predicated region
    $region78: #{il_net_gcn_forward.1} parent=1 // pred_check
      _
    $region79: #{il_net_gcn_forward.1} parent=1 // pred_check_branch
      %233 = sbr.rel (0) target = $region81
    $region80: #{il_net_gcn_forward.1} parent=1 // pred_region
      %234 = dma.done [#allocation7], 256
    $region81: #{il_net_gcn_forward.1} parent=1 // pred_fallthru
      _
    // Predicated region
    $region82: #{il_net_gcn_forward.1} parent=1 // pred_check
      _
    $region83: #{il_net_gcn_forward.1} parent=1 // pred_check_branch
      %236 = sbr.rel (0) target = $region85
    $region84: #{il_net_gcn_forward.1} parent=1 // pred_region
      %237 = dma.done [#allocation7], 1024
    $region85: #{il_net_gcn_forward.1} parent=1 // pred_fallthru
      _
    // Predicated region
    $region86: #{il_net_gcn_forward.1} parent=1 // pred_check
      _
    $region87: #{il_net_gcn_forward.1} parent=1 // pred_check_branch
      %239 = sbr.rel (0) target = $region89
    $region88: #{il_net_gcn_forward.1} parent=1 // pred_region
      %240 = dma.done [#allocation10], 64
    $region89: #{il_net_gcn_forward.1} parent=1 // pred_fallthru
      _
    // Predicated region
    $region90: #{il_net_gcn_forward.1} parent=1 // pred_check
      _
    $region91: #{il_net_gcn_forward.1} parent=1 // pred_check_branch
      %242 = sbr.rel (0) target = $region93
    $region92: #{il_net_gcn_forward.1} parent=1 // pred_region
      %243 = dma.done [#allocation10], 32768
    $region93: #{il_net_gcn_forward.1} parent=1 // pred_fallthru
      _
    // Predicated region
    $region94: #{il_net_gcn_forward.1} parent=1 // pred_check
      _
    $region95: #{il_net_gcn_forward.1} parent=1 // pred_check_branch
      %245 = sbr.rel (0) target = $region97
    $region96: #{il_net_gcn_forward.1} parent=1 // pred_region
      %246 = dma.done [#allocation13], 128
    $region97: #{il_net_gcn_forward.1} parent=1 // pred_fallthru
      _
    // Predicated region
    $region98: #{il_net_gcn_forward.1} parent=1 // pred_check
      _
    $region99: #{il_net_gcn_forward.1} parent=1 // pred_check_branch
      %248 = sbr.rel (0) target = $region101
    $region100: #{il_net_gcn_forward.1} parent=1 // pred_region
      %249 = dma.done [#allocation13], 65536
    $region101: #{il_net_gcn_forward.1} parent=1 // pred_fallthru
      _
    // Predicated region
    $region102: #{il_net_gcn_forward.1} parent=1 // pred_check
      _
    $region103: #{il_net_gcn_forward.1} parent=1 // pred_check_branch
      %251 = sbr.rel (0) target = $region105
    $region104: #{il_net_gcn_forward.1} parent=1 // pred_region
      %252 = dma.done [#allocation16], 128
    $region105: #{il_net_gcn_forward.1} parent=1 // pred_fallthru
      _
    // Predicated region
    $region106: #{il_net_gcn_forward.1} parent=1 // pred_check
      _
    $region107: #{il_net_gcn_forward.1} parent=1 // pred_check_branch
      %254 = sbr.rel (0) target = $region109
    $region108: #{il_net_gcn_forward.1} parent=1 // pred_region
      %255 = dma.done [#allocation16], 32768
    $region109: #{il_net_gcn_forward.1} parent=1 // pred_fallthru
      _
    // Predicated region
    $region110: #{il_net_gcn_forward.1} parent=1 // pred_check
      _
    $region111: #{il_net_gcn_forward.1} parent=1 // pred_check_branch
      %257 = sbr.rel (0) target = $region113
    $region112: #{il_net_gcn_forward.1} parent=1 // pred_region
      %258 = dma.done [#allocation19], 64
    $region113: #{il_net_gcn_forward.1} parent=1 // pred_fallthru
      _
    // Predicated region
    $region114: #{il_net_gcn_forward.1} parent=1 // pred_check
      _
    $region115: #{il_net_gcn_forward.1} parent=1 // pred_check_branch
      %260 = sbr.rel (0) target = $region117
    $region116: #{il_net_gcn_forward.1} parent=1 // pred_region
      %261 = dma.done [#allocation19], 32768
    $region117: #{il_net_gcn_forward.1} parent=1 // pred_fallthru
      _
    // Predicated region
    $region118: #{il_net_gcn_forward.1} parent=1 // pred_check
      _
    $region119: #{il_net_gcn_forward.1} parent=1 // pred_check_branch
      %263 = sbr.rel (0) target = $region121
    $region120: #{il_net_gcn_forward.1} parent=1 // pred_region
      %264 = dma.done [#allocation22], 1024
    $region121: #{il_net_gcn_forward.1} parent=1 // pred_fallthru
      _
    // Predicated region
    $region122: #{il_net_gcn_forward.1} parent=1 // pred_check
      _
    $region123: #{il_net_gcn_forward.1} parent=1 // pred_check_branch
      %266 = sbr.rel (0) target = $region125
    $region124: #{il_net_gcn_forward.1} parent=1 // pred_region
      %267 = dma.done [#allocation22], 128
    $region125: #{il_net_gcn_forward.1} parent=1 // pred_fallthru
      _
    // Predicated region
    $region126: #{il_net_gcn_forward.1} parent=1 // pred_check
      _
    $region127: #{il_net_gcn_forward.1} parent=1 // pred_check_branch
      %269 = sbr.rel (0) target = $region129
    $region128: #{il_net_gcn_forward.1} parent=1 // pred_region
      %270 = dma.done [#allocation25], 32768
    $region129: #{il_net_gcn_forward.1} parent=1 // pred_fallthru
      _
    // Predicated region
    $region130: #{il_net_gcn_forward.1} parent=1 // pred_check
      _
    $region131: #{il_net_gcn_forward.1} parent=1 // pred_check_branch
      %272 = sbr.rel (0) target = $region133
    $region132: #{il_net_gcn_forward.1} parent=1 // pred_region
      %273 = dma.done [#allocation25], 64
    $region133: #{il_net_gcn_forward.1} parent=1 // pred_fallthru
      _
    // Predicated region
    $region134: #{il_net_gcn_forward.1} parent=1 // pred_check
      _
    $region135: #{il_net_gcn_forward.1} parent=1 // pred_check_branch
      %275 = sbr.rel (0) target = $region137
    $region136: #{il_net_gcn_forward.1} parent=1 // pred_region
      %276 = dma.done [#allocation28], 4096
    $region137: #{il_net_gcn_forward.1} parent=1 // pred_fallthru
      _
    // Predicated region
    $region138: #{il_net_gcn_forward.1} parent=1 // pred_check
      _
    $region139: #{il_net_gcn_forward.1} parent=1 // pred_check_branch
      %278 = sbr.rel (0) target = $region141
    $region140: #{il_net_gcn_forward.1} parent=1 // pred_region
      %279 = dma.done [#allocation28], 16
    $region141: #{il_net_gcn_forward.1} parent=1 // pred_fallthru
      _
    %v281 = vld [vmem:[#allocation6] sm:$0xff]
    %v282 = vld [vmem:[#allocation6 + $0x8] sm:$0xff]
    %vm283 = vcmask 130048
    %v284 = vsel %vm283, %v281, 0.0
    %285 = vadd.xlane.f32.xlu0 %v284
    %v286 = vpop.xlane.xlu0 %285
    %v287 = vsel %vm283, %v282, 0.0
    %288 = vadd.xlane.f32.xlu0 %v287
    %v289 = vpop.xlane.xlu0 %288
    %v290 = vrsqrt.pop %v286
    %v291 = vrsqrt.pop %v289
    %v292 = vpack.c.bf16 %v282, %v281
    %v293 = vld [vmem:[#allocation4] sm:$0xff]
    %v294 = vld [vmem:[#allocation4 + $0x8] sm:$0xff]
    %v295 = vpack.c.bf16 %v294, %v293
    %v296 = vld [vmem:[#allocation8] sm:$0xff]
    %v297 = vld [vmem:[#allocation8 + $0x8] sm:$0xff]
    %v298 = vld [vmem:[#allocation8 + $0x10] sm:$0xff]
    %v299 = vld [vmem:[#allocation8 + $0x18] sm:$0xff]
    %v300 = vld [vmem:[#allocation8 + $0x20] sm:$0xff]
    %v301 = vld [vmem:[#allocation8 + $0x28] sm:$0xff]
    %v302 = vld [vmem:[#allocation8 + $0x30] sm:$0xff]
    %v303 = vld [vmem:[#allocation8 + $0x38] sm:$0xff]
    %v312 = vunpack.c.l.b16 %v296
    %v313 = vunpack.c.h.b16 %v296
    %v314 = vunpack.c.l.b16 %v297
    %v315 = vunpack.c.h.b16 %v297
    %v316 = vunpack.c.l.b16 %v298
    %v317 = vunpack.c.h.b16 %v298
    %v318 = vunpack.c.l.b16 %v299
    %v319 = vunpack.c.h.b16 %v299
    %v320 = vunpack.c.l.b16 %v300
    %v321 = vunpack.c.h.b16 %v300
    %v322 = vunpack.c.l.b16 %v301
    %v323 = vunpack.c.h.b16 %v301
    %v324 = vunpack.c.l.b16 %v302
    %v325 = vunpack.c.h.b16 %v302
    %v326 = vunpack.c.l.b16 %v303
    %v327 = vunpack.c.h.b16 %v303
    %v328 = vpack.c.b16 %v316, %v312
    %v329 = vpack.c.b16 %v317, %v313
    %v330 = vpack.c.b16 %v318, %v314
    %v331 = vpack.c.b16 %v319, %v315
    %v332 = vpack.c.b16 %v324, %v320
    %v333 = vpack.c.b16 %v325, %v321
    %v334 = vpack.c.b16 %v326, %v322
    %v335 = vpack.c.b16 %v327, %v323
    %vm344 = vcmask 261120
    %v346 = vsel %vm344, %v295, 0
    %348 = vmatprep.subr.bf16.mxu0 %v329
    %349 = vmatpush1.bf16.msra.mxu0 %v328
    %350 = vmatprep.subr.bf16.mxu0 %v333
    %351 = vmatpush1.bf16.msra.mxu0 %v332
    %352 = vmatprep.subr.bf16.mxu0 0
    %353 = vmatpush1.bf16.msra.mxu0 0
    %354 = vmatprep.subr.bf16.mxu0 0
    %355 = vmatpush1.bf16.msra.mxu0 0
    %356 = vmatprep.subr.bf16.mxu0 0
    %357 = vmatpush1.bf16.msra.mxu0 0
    %358 = vmatprep.subr.bf16.mxu0 0
    %359 = vmatpush1.bf16.msra.mxu0 0
    %360 = vmatprep.subr.bf16.mxu0 0
    %361 = vmatpush1.bf16.msra.mxu0 0
    %362 = vmatprep.subr.bf16.mxu0 0
    %363 = vmatpush1.bf16.msra.mxu0 0
    %364 = vmatprep.subr.bf16.mxu0 0
    %365 = vmatpush1.bf16.msra.mxu0 0
    %366 = vmatprep.subr.bf16.mxu0 0
    %367 = vmatpush1.bf16.msra.mxu0 0
    %368 = vmatprep.subr.bf16.mxu0 0
    %369 = vmatpush1.bf16.msra.mxu0 0
    %370 = vmatprep.subr.bf16.mxu0 0
    %371 = vmatpush1.bf16.msra.mxu0 0
    %372 = vmatprep.subr.bf16.mxu0 0
    %373 = vmatpush1.bf16.msra.mxu0 0
    %374 = vmatprep.subr.bf16.mxu0 0
    %375 = vmatpush1.bf16.msra.mxu0 0
    %376 = vmatprep.subr.bf16.mxu0 0
    %377 = vmatpush1.bf16.msra.mxu0 0
    %378 = vmatprep.subr.bf16.mxu0 0
    %379 = vmatpush1.bf16.msra.mxu0 0
    %380 = vmatprep.mubr.bf16.mxu0 0
    %381 = vmatmul.mubr.bf16.gmra.mrb[0].mxu0 %v346
    %v382 = vpop.f32.mrb[0].mxu0
    %v383 = vadd.f32 0.0, %v382
    %v384 = vpop.f32.mrb[0].mxu0
    %v385 = vadd.f32 0.0, %v384
    %v386 = vpop.f32.mrb[0].mxu0
    %v387 = vadd.f32 0.0, %v386
    %v388 = vpop.f32.mrb[0].mxu0
    %v389 = vadd.f32 0.0, %v388
    %390 = vdwg.mxu0
    %391 = vmatprep.subr.bf16.mxu0 %v331
    %392 = vmatpush1.bf16.msra.mxu0 %v330
    %393 = vmatprep.subr.bf16.mxu0 %v335
    %394 = vmatpush1.bf16.msra.mxu0 %v334
    %395 = vmatprep.subr.bf16.mxu0 0
    %396 = vmatpush1.bf16.msra.mxu0 0
    %397 = vmatprep.subr.bf16.mxu0 0
    %398 = vmatpush1.bf16.msra.mxu0 0
    %399 = vmatprep.subr.bf16.mxu0 0
    %400 = vmatpush1.bf16.msra.mxu0 0
    %401 = vmatprep.subr.bf16.mxu0 0
    %402 = vmatpush1.bf16.msra.mxu0 0
    %403 = vmatprep.subr.bf16.mxu0 0
    %404 = vmatpush1.bf16.msra.mxu0 0
    %405 = vmatprep.subr.bf16.mxu0 0
    %406 = vmatpush1.bf16.msra.mxu0 0
    %407 = vmatprep.subr.bf16.mxu0 0
    %408 = vmatpush1.bf16.msra.mxu0 0
    %409 = vmatprep.subr.bf16.mxu0 0
    %410 = vmatpush1.bf16.msra.mxu0 0
    %411 = vmatprep.subr.bf16.mxu0 0
    %412 = vmatpush1.bf16.msra.mxu0 0
    %413 = vmatprep.subr.bf16.mxu0 0
    %414 = vmatpush1.bf16.msra.mxu0 0
    %415 = vmatprep.subr.bf16.mxu0 0
    %416 = vmatpush1.bf16.msra.mxu0 0
    %417 = vmatprep.subr.bf16.mxu0 0
    %418 = vmatpush1.bf16.msra.mxu0 0
    %419 = vmatprep.subr.bf16.mxu0 0
    %420 = vmatpush1.bf16.msra.mxu0 0
    %421 = vmatprep.subr.bf16.mxu0 0
    %422 = vmatpush1.bf16.msra.mxu0 0
    %423 = vmatprep.mubr.bf16.mxu0 0
    %424 = vmatmul.mubr.bf16.gmra.mrb[0].mxu0 %v346
    %v425 = vpop.f32.mrb[0].mxu0
    %v426 = vadd.f32 0.0, %v425
    %v427 = vpop.f32.mrb[0].mxu0
    %v428 = vadd.f32 0.0, %v427
    %v429 = vpop.f32.mrb[0].mxu0
    %v430 = vadd.f32 0.0, %v429
    %v431 = vpop.f32.mrb[0].mxu0
    %v432 = vadd.f32 0.0, %v431
    %433 = vdwg.mxu0
    %v434 = vmul.f32 %v383, %v290
    %v435 = vmul.f32 %v385, %v290
    %v436 = vmul.f32 %v426, %v290
    %v437 = vmul.f32 %v428, %v290
    %v438 = vmul.f32 %v387, %v291
    %v439 = vmul.f32 %v389, %v291
    %v440 = vmul.f32 %v430, %v291
    %v441 = vmul.f32 %v432, %v291
    %v442 = vpack.c.bf16 %v438, %v434
    %v443 = vpack.c.bf16 %v439, %v435
    %v444 = vpack.c.bf16 %v440, %v436
    %v445 = vpack.c.bf16 %v441, %v437
    %v447 = vsel %vm283, %v292, 0
    %449 = vmatprep.subr.bf16.mxu0 %v443
    %450 = vmatpush1.bf16.msra.mxu0 %v442
    %451 = vmatprep.subr.bf16.mxu0 0
    %452 = vmatpush1.bf16.msra.mxu0 0
    %453 = vmatprep.subr.bf16.mxu0 0
    %454 = vmatpush1.bf16.msra.mxu0 0
    %455 = vmatprep.subr.bf16.mxu0 0
    %456 = vmatpush1.bf16.msra.mxu0 0
    %457 = vmatprep.subr.bf16.mxu0 0
    %458 = vmatpush1.bf16.msra.mxu0 0
    %459 = vmatprep.subr.bf16.mxu0 0
    %460 = vmatpush1.bf16.msra.mxu0 0
    %461 = vmatprep.subr.bf16.mxu0 0
    %462 = vmatpush1.bf16.msra.mxu0 0
    %463 = vmatprep.subr.bf16.mxu0 0
    %464 = vmatpush1.bf16.msra.mxu0 0
    %465 = vmatprep.subr.bf16.mxu0 0
    %466 = vmatpush1.bf16.msra.mxu0 0
    %467 = vmatprep.subr.bf16.mxu0 0
    %468 = vmatpush1.bf16.msra.mxu0 0
    %469 = vmatprep.subr.bf16.mxu0 0
    %470 = vmatpush1.bf16.msra.mxu0 0
    %471 = vmatprep.subr.bf16.mxu0 0
    %472 = vmatpush1.bf16.msra.mxu0 0
    %473 = vmatprep.subr.bf16.mxu0 0
    %474 = vmatpush1.bf16.msra.mxu0 0
    %475 = vmatprep.subr.bf16.mxu0 0
    %476 = vmatpush1.bf16.msra.mxu0 0
    %477 = vmatprep.subr.bf16.mxu0 0
    %478 = vmatpush1.bf16.msra.mxu0 0
    %479 = vmatprep.subr.bf16.mxu0 0
    %480 = vmatpush1.bf16.msra.mxu0 0
    %481 = vmatprep.mubr.bf16.mxu0 0
    %482 = vmatmul.mubr.bf16.gmra.mrb[0].mxu0 %v447
    %v483 = vpop.f32.mrb[0].mxu0
    %v484 = vadd.f32 0.0, %v483
    %v485 = vpop.f32.mrb[0].mxu0
    %v486 = vadd.f32 0.0, %v485
    %v487 = vpop.f32.mrb[0].mxu0
    %v488 = vadd.f32 0.0, %v487
    %v489 = vpop.f32.mrb[0].mxu0
    %v490 = vadd.f32 0.0, %v489
    %491 = vdwg.mxu0
    %492 = vmatprep.subr.bf16.mxu0 %v445
    %493 = vmatpush1.bf16.msra.mxu0 %v444
    %494 = vmatprep.subr.bf16.mxu0 0
    %495 = vmatpush1.bf16.msra.mxu0 0
    %496 = vmatprep.subr.bf16.mxu0 0
    %497 = vmatpush1.bf16.msra.mxu0 0
    %498 = vmatprep.subr.bf16.mxu0 0
    %499 = vmatpush1.bf16.msra.mxu0 0
    %500 = vmatprep.subr.bf16.mxu0 0
    %501 = vmatpush1.bf16.msra.mxu0 0
    %502 = vmatprep.subr.bf16.mxu0 0
    %503 = vmatpush1.bf16.msra.mxu0 0
    %504 = vmatprep.subr.bf16.mxu0 0
    %505 = vmatpush1.bf16.msra.mxu0 0
    %506 = vmatprep.subr.bf16.mxu0 0
    %507 = vmatpush1.bf16.msra.mxu0 0
    %508 = vmatprep.subr.bf16.mxu0 0
    %509 = vmatpush1.bf16.msra.mxu0 0
    %510 = vmatprep.subr.bf16.mxu0 0
    %511 = vmatpush1.bf16.msra.mxu0 0
    %512 = vmatprep.subr.bf16.mxu0 0
    %513 = vmatpush1.bf16.msra.mxu0 0
    %514 = vmatprep.subr.bf16.mxu0 0
    %515 = vmatpush1.bf16.msra.mxu0 0
    %516 = vmatprep.subr.bf16.mxu0 0
    %517 = vmatpush1.bf16.msra.mxu0 0
    %518 = vmatprep.subr.bf16.mxu0 0
    %519 = vmatpush1.bf16.msra.mxu0 0
    %520 = vmatprep.subr.bf16.mxu0 0
    %521 = vmatpush1.bf16.msra.mxu0 0
    %522 = vmatprep.subr.bf16.mxu0 0
    %523 = vmatpush1.bf16.msra.mxu0 0
    %524 = vmatprep.mubr.bf16.mxu0 0
    %525 = vmatmul.mubr.bf16.gmra.mrb[0].mxu0 %v447
    %v526 = vpop.f32.mrb[0].mxu0
    %v527 = vadd.f32 0.0, %v526
    %v528 = vpop.f32.mrb[0].mxu0
    %v529 = vadd.f32 0.0, %v528
    %v530 = vpop.f32.mrb[0].mxu0
    %v531 = vadd.f32 0.0, %v530
    %v532 = vpop.f32.mrb[0].mxu0
    %v533 = vadd.f32 0.0, %v532
    %534 = vdwg.mxu0
    %v535 = vmul.f32 %v484, %v290
    %v536 = vmul.f32 %v486, %v290
    %v537 = vmul.f32 %v527, %v290
    %v538 = vmul.f32 %v529, %v290
    %v539 = vmul.f32 %v488, %v291
    %v540 = vmul.f32 %v490, %v291
    %v541 = vmul.f32 %v531, %v291
    %v542 = vmul.f32 %v533, %v291
    %v543 = vld [vmem:[#allocation9] sm:$0xf]
    %v545 = vlaneseq
    %v546 = vshrl.u32 %v545, 7
    %v547 = vsub.s32 0, %v546
    %v548 = vrot.slane %v543, %v547
    %v549 = vlaneseq
    %v550 = vshrl.u32 %v549, 7
    %v551 = vsub.s32 1, %v550
    %v552 = vrot.slane %v543, %v551
    %v553 = vlaneseq
    %v554 = vshrl.u32 %v553, 7
    %v555 = vsub.s32 2, %v554
    %v556 = vrot.slane %v543, %v555
    %v557 = vlaneseq
    %v558 = vshrl.u32 %v557, 7
    %v559 = vsub.s32 3, %v558
    %v560 = vrot.slane %v543, %v559
    %v565 = vadd.f32 %v535, %v548
    %v566 = vadd.f32 %v536, %v552
    %v567 = vadd.f32 %v537, %v556
    %v568 = vadd.f32 %v538, %v560
    %v569 = vadd.f32 %v539, %v548
    %v570 = vadd.f32 %v540, %v552
    %v571 = vadd.f32 %v541, %v556
    %v572 = vadd.f32 %v542, %v560
    %v573 = vmax.f32 %v565, 0.0
    %v574 = vmax.f32 %v566, 0.0
    %v575 = vmax.f32 %v567, 0.0
    %v576 = vmax.f32 %v568, 0.0
    %v577 = vmax.f32 %v569, 0.0
    %v578 = vmax.f32 %v570, 0.0
    %v579 = vmax.f32 %v571, 0.0
    %v580 = vmax.f32 %v572, 0.0
    %v581 = vpack.c.bf16 %v577, %v573
    %v582 = vpack.c.bf16 %v578, %v574
    %v583 = vpack.c.bf16 %v579, %v575
    %v584 = vpack.c.bf16 %v580, %v576
    %v585 = vld [vmem:[#allocation11] sm:$0xff]
    %v586 = vld [vmem:[#allocation11 + $0x8] sm:$0xff]
    %v587 = vld [vmem:[#allocation11 + $0x10] sm:$0xff]
    %v588 = vld [vmem:[#allocation11 + $0x18] sm:$0xff]
    %v589 = vld [vmem:[#allocation11 + $0x20] sm:$0xff]
    %v590 = vld [vmem:[#allocation11 + $0x28] sm:$0xff]
    %v591 = vld [vmem:[#allocation11 + $0x30] sm:$0xff]
    %v592 = vld [vmem:[#allocation11 + $0x38] sm:$0xff]
    %v593 = vld [vmem:[#allocation11 + $0x40] sm:$0xff]
    %v594 = vld [vmem:[#allocation11 + $0x48] sm:$0xff]
    %v595 = vld [vmem:[#allocation11 + $0x50] sm:$0xff]
    %v596 = vld [vmem:[#allocation11 + $0x58] sm:$0xff]
    %v597 = vld [vmem:[#allocation11 + $0x60] sm:$0xff]
    %v598 = vld [vmem:[#allocation11 + $0x68] sm:$0xff]
    %v599 = vld [vmem:[#allocation11 + $0x70] sm:$0xff]
    %v600 = vld [vmem:[#allocation11 + $0x78] sm:$0xff]
    %v601 = vld [vmem:[#allocation11 + $0x80] sm:$0xff]
    %v602 = vld [vmem:[#allocation11 + $0x88] sm:$0xff]
    %v603 = vld [vmem:[#allocation11 + $0x90] sm:$0xff]
    %v604 = vld [vmem:[#allocation11 + $0x98] sm:$0xff]
    %v605 = vld [vmem:[#allocation11 + $0xa0] sm:$0xff]
    %v606 = vld [vmem:[#allocation11 + $0xa8] sm:$0xff]
    %v607 = vld [vmem:[#allocation11 + $0xb0] sm:$0xff]
    %v608 = vld [vmem:[#allocation11 + $0xb8] sm:$0xff]
    %v609 = vld [vmem:[#allocation11 + $0xc0] sm:$0xff]
    %v610 = vld [vmem:[#allocation11 + $0xc8] sm:$0xff]
    %v611 = vld [vmem:[#allocation11 + $0xd0] sm:$0xff]
    %v612 = vld [vmem:[#allocation11 + $0xd8] sm:$0xff]
    %v613 = vld [vmem:[#allocation11 + $0xe0] sm:$0xff]
    %v614 = vld [vmem:[#allocation11 + $0xe8] sm:$0xff]
    %v615 = vld [vmem:[#allocation11 + $0xf0] sm:$0xff]
    %v616 = vld [vmem:[#allocation11 + $0xf8] sm:$0xff]
    %v617 = vld [vmem:[#allocation11 + $0x100] sm:$0xff]
    %v618 = vld [vmem:[#allocation11 + $0x108] sm:$0xff]
    %v619 = vld [vmem:[#allocation11 + $0x110] sm:$0xff]
    %v620 = vld [vmem:[#allocation11 + $0x118] sm:$0xff]
    %v621 = vld [vmem:[#allocation11 + $0x120] sm:$0xff]
    %v622 = vld [vmem:[#allocation11 + $0x128] sm:$0xff]
    %v623 = vld [vmem:[#allocation11 + $0x130] sm:$0xff]
    %v624 = vld [vmem:[#allocation11 + $0x138] sm:$0xff]
    %v625 = vld [vmem:[#allocation11 + $0x140] sm:$0xff]
    %v626 = vld [vmem:[#allocation11 + $0x148] sm:$0xff]
    %v627 = vld [vmem:[#allocation11 + $0x150] sm:$0xff]
    %v628 = vld [vmem:[#allocation11 + $0x158] sm:$0xff]
    %v629 = vld [vmem:[#allocation11 + $0x160] sm:$0xff]
    %v630 = vld [vmem:[#allocation11 + $0x168] sm:$0xff]
    %v631 = vld [vmem:[#allocation11 + $0x170] sm:$0xff]
    %v632 = vld [vmem:[#allocation11 + $0x178] sm:$0xff]
    %v633 = vld [vmem:[#allocation11 + $0x180] sm:$0xff]
    %v634 = vld [vmem:[#allocation11 + $0x188] sm:$0xff]
    %v635 = vld [vmem:[#allocation11 + $0x190] sm:$0xff]
    %v636 = vld [vmem:[#allocation11 + $0x198] sm:$0xff]
    %v637 = vld [vmem:[#allocation11 + $0x1a0] sm:$0xff]
    %v638 = vld [vmem:[#allocation11 + $0x1a8] sm:$0xff]
    %v639 = vld [vmem:[#allocation11 + $0x1b0] sm:$0xff]
    %v640 = vld [vmem:[#allocation11 + $0x1b8] sm:$0xff]
    %v641 = vld [vmem:[#allocation11 + $0x1c0] sm:$0xff]
    %v642 = vld [vmem:[#allocation11 + $0x1c8] sm:$0xff]
    %v643 = vld [vmem:[#allocation11 + $0x1d0] sm:$0xff]
    %v644 = vld [vmem:[#allocation11 + $0x1d8] sm:$0xff]
    %v645 = vld [vmem:[#allocation11 + $0x1e0] sm:$0xff]
    %v646 = vld [vmem:[#allocation11 + $0x1e8] sm:$0xff]
    %v647 = vld [vmem:[#allocation11 + $0x1f0] sm:$0xff]
    %v648 = vld [vmem:[#allocation11 + $0x1f8] sm:$0xff]
    %v649 = vld [vmem:[#allocation11 + $0x200] sm:$0xff]
    %v650 = vld [vmem:[#allocation11 + $0x208] sm:$0xff]
    %v651 = vld [vmem:[#allocation11 + $0x210] sm:$0xff]
    %v652 = vld [vmem:[#allocation11 + $0x218] sm:$0xff]
    %v653 = vld [vmem:[#allocation11 + $0x220] sm:$0xff]
    %v654 = vld [vmem:[#allocation11 + $0x228] sm:$0xff]
    %v655 = vld [vmem:[#allocation11 + $0x230] sm:$0xff]
    %v656 = vld [vmem:[#allocation11 + $0x238] sm:$0xff]
    %v657 = vld [vmem:[#allocation11 + $0x240] sm:$0xff]
    %v658 = vld [vmem:[#allocation11 + $0x248] sm:$0xff]
    %v659 = vld [vmem:[#allocation11 + $0x250] sm:$0xff]
    %v660 = vld [vmem:[#allocation11 + $0x258] sm:$0xff]
    %v661 = vld [vmem:[#allocation11 + $0x260] sm:$0xff]
    %v662 = vld [vmem:[#allocation11 + $0x268] sm:$0xff]
    %v663 = vld [vmem:[#allocation11 + $0x270] sm:$0xff]
    %v664 = vld [vmem:[#allocation11 + $0x278] sm:$0xff]
    %v665 = vld [vmem:[#allocation11 + $0x280] sm:$0xff]
    %v666 = vld [vmem:[#allocation11 + $0x288] sm:$0xff]
    %v667 = vld [vmem:[#allocation11 + $0x290] sm:$0xff]
    %v668 = vld [vmem:[#allocation11 + $0x298] sm:$0xff]
    %v669 = vld [vmem:[#allocation11 + $0x2a0] sm:$0xff]
    %v670 = vld [vmem:[#allocation11 + $0x2a8] sm:$0xff]
    %v671 = vld [vmem:[#allocation11 + $0x2b0] sm:$0xff]
    %v672 = vld [vmem:[#allocation11 + $0x2b8] sm:$0xff]
    %v673 = vld [vmem:[#allocation11 + $0x2c0] sm:$0xff]
    %v674 = vld [vmem:[#allocation11 + $0x2c8] sm:$0xff]
    %v675 = vld [vmem:[#allocation11 + $0x2d0] sm:$0xff]
    %v676 = vld [vmem:[#allocation11 + $0x2d8] sm:$0xff]
    %v677 = vld [vmem:[#allocation11 + $0x2e0] sm:$0xff]
    %v678 = vld [vmem:[#allocation11 + $0x2e8] sm:$0xff]
    %v679 = vld [vmem:[#allocation11 + $0x2f0] sm:$0xff]
    %v680 = vld [vmem:[#allocation11 + $0x2f8] sm:$0xff]
    %v681 = vld [vmem:[#allocation11 + $0x300] sm:$0xff]
    %v682 = vld [vmem:[#allocation11 + $0x308] sm:$0xff]
    %v683 = vld [vmem:[#allocation11 + $0x310] sm:$0xff]
    %v684 = vld [vmem:[#allocation11 + $0x318] sm:$0xff]
    %v685 = vld [vmem:[#allocation11 + $0x320] sm:$0xff]
    %v686 = vld [vmem:[#allocation11 + $0x328] sm:$0xff]
    %v687 = vld [vmem:[#allocation11 + $0x330] sm:$0xff]
    %v688 = vld [vmem:[#allocation11 + $0x338] sm:$0xff]
    %v689 = vld [vmem:[#allocation11 + $0x340] sm:$0xff]
    %v690 = vld [vmem:[#allocation11 + $0x348] sm:$0xff]
    %v691 = vld [vmem:[#allocation11 + $0x350] sm:$0xff]
    %v692 = vld [vmem:[#allocation11 + $0x358] sm:$0xff]
    %v693 = vld [vmem:[#allocation11 + $0x360] sm:$0xff]
    %v694 = vld [vmem:[#allocation11 + $0x368] sm:$0xff]
    %v695 = vld [vmem:[#allocation11 + $0x370] sm:$0xff]
    %v696 = vld [vmem:[#allocation11 + $0x378] sm:$0xff]
    %v697 = vld [vmem:[#allocation11 + $0x380] sm:$0xff]
    %v698 = vld [vmem:[#allocation11 + $0x388] sm:$0xff]
    %v699 = vld [vmem:[#allocation11 + $0x390] sm:$0xff]
    %v700 = vld [vmem:[#allocation11 + $0x398] sm:$0xff]
    %v701 = vld [vmem:[#allocation11 + $0x3a0] sm:$0xff]
    %v702 = vld [vmem:[#allocation11 + $0x3a8] sm:$0xff]
    %v703 = vld [vmem:[#allocation11 + $0x3b0] sm:$0xff]
    %v704 = vld [vmem:[#allocation11 + $0x3b8] sm:$0xff]
    %v705 = vld [vmem:[#allocation11 + $0x3c0] sm:$0xff]
    %v706 = vld [vmem:[#allocation11 + $0x3c8] sm:$0xff]
    %v707 = vld [vmem:[#allocation11 + $0x3d0] sm:$0xff]
    %v708 = vld [vmem:[#allocation11 + $0x3d8] sm:$0xff]
    %v709 = vld [vmem:[#allocation11 + $0x3e0] sm:$0xff]
    %v710 = vld [vmem:[#allocation11 + $0x3e8] sm:$0xff]
    %v711 = vld [vmem:[#allocation11 + $0x3f0] sm:$0xff]
    %v712 = vld [vmem:[#allocation11 + $0x3f8] sm:$0xff]
    %v713 = vld [vmem:[#allocation11 + $0x400] sm:$0xff]
    %v714 = vld [vmem:[#allocation11 + $0x408] sm:$0xff]
    %v715 = vld [vmem:[#allocation11 + $0x410] sm:$0xff]
    %v716 = vld [vmem:[#allocation11 + $0x418] sm:$0xff]
    %v717 = vld [vmem:[#allocation11 + $0x420] sm:$0xff]
    %v718 = vld [vmem:[#allocation11 + $0x428] sm:$0xff]
    %v719 = vld [vmem:[#allocation11 + $0x430] sm:$0xff]
    %v720 = vld [vmem:[#allocation11 + $0x438] sm:$0xff]
    %v721 = vld [vmem:[#allocation11 + $0x440] sm:$0xff]
    %v722 = vld [vmem:[#allocation11 + $0x448] sm:$0xff]
    %v723 = vld [vmem:[#allocation11 + $0x450] sm:$0xff]
    %v724 = vld [vmem:[#allocation11 + $0x458] sm:$0xff]
    %v725 = vld [vmem:[#allocation11 + $0x460] sm:$0xff]
    %v726 = vld [vmem:[#allocation11 + $0x468] sm:$0xff]
    %v727 = vld [vmem:[#allocation11 + $0x470] sm:$0xff]
    %v728 = vld [vmem:[#allocation11 + $0x478] sm:$0xff]
    %v729 = vld [vmem:[#allocation11 + $0x480] sm:$0xff]
    %v730 = vld [vmem:[#allocation11 + $0x488] sm:$0xff]
    %v731 = vld [vmem:[#allocation11 + $0x490] sm:$0xff]
    %v732 = vld [vmem:[#allocation11 + $0x498] sm:$0xff]
    %v733 = vld [vmem:[#allocation11 + $0x4a0] sm:$0xff]
    %v734 = vld [vmem:[#allocation11 + $0x4a8] sm:$0xff]
    %v735 = vld [vmem:[#allocation11 + $0x4b0] sm:$0xff]
    %v736 = vld [vmem:[#allocation11 + $0x4b8] sm:$0xff]
    %v737 = vld [vmem:[#allocation11 + $0x4c0] sm:$0xff]
    %v738 = vld [vmem:[#allocation11 + $0x4c8] sm:$0xff]
    %v739 = vld [vmem:[#allocation11 + $0x4d0] sm:$0xff]
    %v740 = vld [vmem:[#allocation11 + $0x4d8] sm:$0xff]
    %v741 = vld [vmem:[#allocation11 + $0x4e0] sm:$0xff]
    %v742 = vld [vmem:[#allocation11 + $0x4e8] sm:$0xff]
    %v743 = vld [vmem:[#allocation11 + $0x4f0] sm:$0xff]
    %v744 = vld [vmem:[#allocation11 + $0x4f8] sm:$0xff]
    %v745 = vld [vmem:[#allocation11 + $0x500] sm:$0xff]
    %v746 = vld [vmem:[#allocation11 + $0x508] sm:$0xff]
    %v747 = vld [vmem:[#allocation11 + $0x510] sm:$0xff]
    %v748 = vld [vmem:[#allocation11 + $0x518] sm:$0xff]
    %v749 = vld [vmem:[#allocation11 + $0x520] sm:$0xff]
    %v750 = vld [vmem:[#allocation11 + $0x528] sm:$0xff]
    %v751 = vld [vmem:[#allocation11 + $0x530] sm:$0xff]
    %v752 = vld [vmem:[#allocation11 + $0x538] sm:$0xff]
    %v753 = vld [vmem:[#allocation11 + $0x540] sm:$0xff]
    %v754 = vld [vmem:[#allocation11 + $0x548] sm:$0xff]
    %v755 = vld [vmem:[#allocation11 + $0x550] sm:$0xff]
    %v756 = vld [vmem:[#allocation11 + $0x558] sm:$0xff]
    %v757 = vld [vmem:[#allocation11 + $0x560] sm:$0xff]
    %v758 = vld [vmem:[#allocation11 + $0x568] sm:$0xff]
    %v759 = vld [vmem:[#allocation11 + $0x570] sm:$0xff]
    %v760 = vld [vmem:[#allocation11 + $0x578] sm:$0xff]
    %v761 = vld [vmem:[#allocation11 + $0x580] sm:$0xff]
    %v762 = vld [vmem:[#allocation11 + $0x588] sm:$0xff]
    %v763 = vld [vmem:[#allocation11 + $0x590] sm:$0xff]
    %v764 = vld [vmem:[#allocation11 + $0x598] sm:$0xff]
    %v765 = vld [vmem:[#allocation11 + $0x5a0] sm:$0xff]
    %v766 = vld [vmem:[#allocation11 + $0x5a8] sm:$0xff]
    %v767 = vld [vmem:[#allocation11 + $0x5b0] sm:$0xff]
    %v768 = vld [vmem:[#allocation11 + $0x5b8] sm:$0xff]
    %v769 = vld [vmem:[#allocation11 + $0x5c0] sm:$0xff]
    %v770 = vld [vmem:[#allocation11 + $0x5c8] sm:$0xff]
    %v771 = vld [vmem:[#allocation11 + $0x5d0] sm:$0xff]
    %v772 = vld [vmem:[#allocation11 + $0x5d8] sm:$0xff]
    %v773 = vld [vmem:[#allocation11 + $0x5e0] sm:$0xff]
    %v774 = vld [vmem:[#allocation11 + $0x5e8] sm:$0xff]
    %v775 = vld [vmem:[#allocation11 + $0x5f0] sm:$0xff]
    %v776 = vld [vmem:[#allocation11 + $0x5f8] sm:$0xff]
    %v777 = vld [vmem:[#allocation11 + $0x600] sm:$0xff]
    %v778 = vld [vmem:[#allocation11 + $0x608] sm:$0xff]
    %v779 = vld [vmem:[#allocation11 + $0x610] sm:$0xff]
    %v780 = vld [vmem:[#allocation11 + $0x618] sm:$0xff]
    %v781 = vld [vmem:[#allocation11 + $0x620] sm:$0xff]
    %v782 = vld [vmem:[#allocation11 + $0x628] sm:$0xff]
    %v783 = vld [vmem:[#allocation11 + $0x630] sm:$0xff]
    %v784 = vld [vmem:[#allocation11 + $0x638] sm:$0xff]
    %v785 = vld [vmem:[#allocation11 + $0x640] sm:$0xff]
    %v786 = vld [vmem:[#allocation11 + $0x648] sm:$0xff]
    %v787 = vld [vmem:[#allocation11 + $0x650] sm:$0xff]
    %v788 = vld [vmem:[#allocation11 + $0x658] sm:$0xff]
    %v789 = vld [vmem:[#allocation11 + $0x660] sm:$0xff]
    %v790 = vld [vmem:[#allocation11 + $0x668] sm:$0xff]
    %v791 = vld [vmem:[#allocation11 + $0x670] sm:$0xff]
    %v792 = vld [vmem:[#allocation11 + $0x678] sm:$0xff]
    %v793 = vld [vmem:[#allocation11 + $0x680] sm:$0xff]
    %v794 = vld [vmem:[#allocation11 + $0x688] sm:$0xff]
    %v795 = vld [vmem:[#allocation11 + $0x690] sm:$0xff]
    %v796 = vld [vmem:[#allocation11 + $0x698] sm:$0xff]
    %v797 = vld [vmem:[#allocation11 + $0x6a0] sm:$0xff]
    %v798 = vld [vmem:[#allocation11 + $0x6a8] sm:$0xff]
    %v799 = vld [vmem:[#allocation11 + $0x6b0] sm:$0xff]
    %v800 = vld [vmem:[#allocation11 + $0x6b8] sm:$0xff]
    %v801 = vld [vmem:[#allocation11 + $0x6c0] sm:$0xff]
    %v802 = vld [vmem:[#allocation11 + $0x6c8] sm:$0xff]
    %v803 = vld [vmem:[#allocation11 + $0x6d0] sm:$0xff]
    %v804 = vld [vmem:[#allocation11 + $0x6d8] sm:$0xff]
    %v805 = vld [vmem:[#allocation11 + $0x6e0] sm:$0xff]
    %v806 = vld [vmem:[#allocation11 + $0x6e8] sm:$0xff]
    %v807 = vld [vmem:[#allocation11 + $0x6f0] sm:$0xff]
    %v808 = vld [vmem:[#allocation11 + $0x6f8] sm:$0xff]
    %v809 = vld [vmem:[#allocation11 + $0x700] sm:$0xff]
    %v810 = vld [vmem:[#allocation11 + $0x708] sm:$0xff]
    %v811 = vld [vmem:[#allocation11 + $0x710] sm:$0xff]
    %v812 = vld [vmem:[#allocation11 + $0x718] sm:$0xff]
    %v813 = vld [vmem:[#allocation11 + $0x720] sm:$0xff]
    %v814 = vld [vmem:[#allocation11 + $0x728] sm:$0xff]
    %v815 = vld [vmem:[#allocation11 + $0x730] sm:$0xff]
    %v816 = vld [vmem:[#allocation11 + $0x738] sm:$0xff]
    %v817 = vld [vmem:[#allocation11 + $0x740] sm:$0xff]
    %v818 = vld [vmem:[#allocation11 + $0x748] sm:$0xff]
    %v819 = vld [vmem:[#allocation11 + $0x750] sm:$0xff]
    %v820 = vld [vmem:[#allocation11 + $0x758] sm:$0xff]
    %v821 = vld [vmem:[#allocation11 + $0x760] sm:$0xff]
    %v822 = vld [vmem:[#allocation11 + $0x768] sm:$0xff]
    %v823 = vld [vmem:[#allocation11 + $0x770] sm:$0xff]
    %v824 = vld [vmem:[#allocation11 + $0x778] sm:$0xff]
    %v825 = vld [vmem:[#allocation11 + $0x780] sm:$0xff]
    %v826 = vld [vmem:[#allocation11 + $0x788] sm:$0xff]
    %v827 = vld [vmem:[#allocation11 + $0x790] sm:$0xff]
    %v828 = vld [vmem:[#allocation11 + $0x798] sm:$0xff]
    %v829 = vld [vmem:[#allocation11 + $0x7a0] sm:$0xff]
    %v830 = vld [vmem:[#allocation11 + $0x7a8] sm:$0xff]
    %v831 = vld [vmem:[#allocation11 + $0x7b0] sm:$0xff]
    %v832 = vld [vmem:[#allocation11 + $0x7b8] sm:$0xff]
    %v833 = vld [vmem:[#allocation11 + $0x7c0] sm:$0xff]
    %v834 = vld [vmem:[#allocation11 + $0x7c8] sm:$0xff]
    %v835 = vld [vmem:[#allocation11 + $0x7d0] sm:$0xff]
    %v836 = vld [vmem:[#allocation11 + $0x7d8] sm:$0xff]
    %v837 = vld [vmem:[#allocation11 + $0x7e0] sm:$0xff]
    %v838 = vld [vmem:[#allocation11 + $0x7e8] sm:$0xff]
    %v839 = vld [vmem:[#allocation11 + $0x7f0] sm:$0xff]
    %v840 = vld [vmem:[#allocation11 + $0x7f8] sm:$0xff]
    %v1097 = vunpack.c.l.b16 %v585
    %v1098 = vunpack.c.h.b16 %v585
    %v1099 = vunpack.c.l.b16 %v586
    %v1100 = vunpack.c.h.b16 %v586
    %v1101 = vunpack.c.l.b16 %v587
    %v1102 = vunpack.c.h.b16 %v587
    %v1103 = vunpack.c.l.b16 %v588
    %v1104 = vunpack.c.h.b16 %v588
    %v1105 = vunpack.c.l.b16 %v589
    %v1106 = vunpack.c.h.b16 %v589
    %v1107 = vunpack.c.l.b16 %v590
    %v1108 = vunpack.c.h.b16 %v590
    %v1109 = vunpack.c.l.b16 %v591
    %v1110 = vunpack.c.h.b16 %v591
    %v1111 = vunpack.c.l.b16 %v592
    %v1112 = vunpack.c.h.b16 %v592
    %v1113 = vunpack.c.l.b16 %v593
    %v1114 = vunpack.c.h.b16 %v593
    %v1115 = vunpack.c.l.b16 %v594
    %v1116 = vunpack.c.h.b16 %v594
    %v1117 = vunpack.c.l.b16 %v595
    %v1118 = vunpack.c.h.b16 %v595
    %v1119 = vunpack.c.l.b16 %v596
    %v1120 = vunpack.c.h.b16 %v596
    %v1121 = vunpack.c.l.b16 %v597
    %v1122 = vunpack.c.h.b16 %v597
    %v1123 = vunpack.c.l.b16 %v598
    %v1124 = vunpack.c.h.b16 %v598
    %v1125 = vunpack.c.l.b16 %v599
    %v1126 = vunpack.c.h.b16 %v599
    %v1127 = vunpack.c.l.b16 %v600
    %v1128 = vunpack.c.h.b16 %v600
    %v1129 = vunpack.c.l.b16 %v601
    %v1130 = vunpack.c.h.b16 %v601
    %v1131 = vunpack.c.l.b16 %v602
    %v1132 = vunpack.c.h.b16 %v602
    %v1133 = vunpack.c.l.b16 %v603
    %v1134 = vunpack.c.h.b16 %v603
    %v1135 = vunpack.c.l.b16 %v604
    %v1136 = vunpack.c.h.b16 %v604
    %v1137 = vunpack.c.l.b16 %v605
    %v1138 = vunpack.c.h.b16 %v605
    %v1139 = vunpack.c.l.b16 %v606
    %v1140 = vunpack.c.h.b16 %v606
    %v1141 = vunpack.c.l.b16 %v607
    %v1142 = vunpack.c.h.b16 %v607
    %v1143 = vunpack.c.l.b16 %v608
    %v1144 = vunpack.c.h.b16 %v608
    %v1145 = vunpack.c.l.b16 %v609
    %v1146 = vunpack.c.h.b16 %v609
    %v1147 = vunpack.c.l.b16 %v610
    %v1148 = vunpack.c.h.b16 %v610
    %v1149 = vunpack.c.l.b16 %v611
    %v1150 = vunpack.c.h.b16 %v611
    %v1151 = vunpack.c.l.b16 %v612
    %v1152 = vunpack.c.h.b16 %v612
    %v1153 = vunpack.c.l.b16 %v613
    %v1154 = vunpack.c.h.b16 %v613
    %v1155 = vunpack.c.l.b16 %v614
    %v1156 = vunpack.c.h.b16 %v614
    %v1157 = vunpack.c.l.b16 %v615
    %v1158 = vunpack.c.h.b16 %v615
    %v1159 = vunpack.c.l.b16 %v616
    %v1160 = vunpack.c.h.b16 %v616
    %v1161 = vunpack.c.l.b16 %v617
    %v1162 = vunpack.c.h.b16 %v617
    %v1163 = vunpack.c.l.b16 %v618
    %v1164 = vunpack.c.h.b16 %v618
    %v1165 = vunpack.c.l.b16 %v619
    %v1166 = vunpack.c.h.b16 %v619
    %v1167 = vunpack.c.l.b16 %v620
    %v1168 = vunpack.c.h.b16 %v620
    %v1169 = vunpack.c.l.b16 %v621
    %v1170 = vunpack.c.h.b16 %v621
    %v1171 = vunpack.c.l.b16 %v622
    %v1172 = vunpack.c.h.b16 %v622
    %v1173 = vunpack.c.l.b16 %v623
    %v1174 = vunpack.c.h.b16 %v623
    %v1175 = vunpack.c.l.b16 %v624
    %v1176 = vunpack.c.h.b16 %v624
    %v1177 = vunpack.c.l.b16 %v625
    %v1178 = vunpack.c.h.b16 %v625
    %v1179 = vunpack.c.l.b16 %v626
    %v1180 = vunpack.c.h.b16 %v626
    %v1181 = vunpack.c.l.b16 %v627
    %v1182 = vunpack.c.h.b16 %v627
    %v1183 = vunpack.c.l.b16 %v628
    %v1184 = vunpack.c.h.b16 %v628
    %v1185 = vunpack.c.l.b16 %v629
    %v1186 = vunpack.c.h.b16 %v629
    %v1187 = vunpack.c.l.b16 %v630
    %v1188 = vunpack.c.h.b16 %v630
    %v1189 = vunpack.c.l.b16 %v631
    %v1190 = vunpack.c.h.b16 %v631
    %v1191 = vunpack.c.l.b16 %v632
    %v1192 = vunpack.c.h.b16 %v632
    %v1193 = vunpack.c.l.b16 %v633
    %v1194 = vunpack.c.h.b16 %v633
    %v1195 = vunpack.c.l.b16 %v634
    %v1196 = vunpack.c.h.b16 %v634
    %v1197 = vunpack.c.l.b16 %v635
    %v1198 = vunpack.c.h.b16 %v635
    %v1199 = vunpack.c.l.b16 %v636
    %v1200 = vunpack.c.h.b16 %v636
    %v1201 = vunpack.c.l.b16 %v637
    %v1202 = vunpack.c.h.b16 %v637
    %v1203 = vunpack.c.l.b16 %v638
    %v1204 = vunpack.c.h.b16 %v638
    %v1205 = vunpack.c.l.b16 %v639
    %v1206 = vunpack.c.h.b16 %v639
    %v1207 = vunpack.c.l.b16 %v640
    %v1208 = vunpack.c.h.b16 %v640
    %v1209 = vunpack.c.l.b16 %v641
    %v1210 = vunpack.c.h.b16 %v641
    %v1211 = vunpack.c.l.b16 %v642
    %v1212 = vunpack.c.h.b16 %v642
    %v1213 = vunpack.c.l.b16 %v643
    %v1214 = vunpack.c.h.b16 %v643
    %v1215 = vunpack.c.l.b16 %v644
    %v1216 = vunpack.c.h.b16 %v644
    %v1217 = vunpack.c.l.b16 %v645
    %v1218 = vunpack.c.h.b16 %v645
    %v1219 = vunpack.c.l.b16 %v646
    %v1220 = vunpack.c.h.b16 %v646
    %v1221 = vunpack.c.l.b16 %v647
    %v1222 = vunpack.c.h.b16 %v647
    %v1223 = vunpack.c.l.b16 %v648
    %v1224 = vunpack.c.h.b16 %v648
    %v1225 = vunpack.c.l.b16 %v649
    %v1226 = vunpack.c.h.b16 %v649
    %v1227 = vunpack.c.l.b16 %v650
    %v1228 = vunpack.c.h.b16 %v650
    %v1229 = vunpack.c.l.b16 %v651
    %v1230 = vunpack.c.h.b16 %v651
    %v1231 = vunpack.c.l.b16 %v652
    %v1232 = vunpack.c.h.b16 %v652
    %v1233 = vunpack.c.l.b16 %v653
    %v1234 = vunpack.c.h.b16 %v653
    %v1235 = vunpack.c.l.b16 %v654
    %v1236 = vunpack.c.h.b16 %v654
    %v1237 = vunpack.c.l.b16 %v655
    %v1238 = vunpack.c.h.b16 %v655
    %v1239 = vunpack.c.l.b16 %v656
    %v1240 = vunpack.c.h.b16 %v656
    %v1241 = vunpack.c.l.b16 %v657
    %v1242 = vunpack.c.h.b16 %v657
    %v1243 = vunpack.c.l.b16 %v658
    %v1244 = vunpack.c.h.b16 %v658
    %v1245 = vunpack.c.l.b16 %v659
    %v1246 = vunpack.c.h.b16 %v659
    %v1247 = vunpack.c.l.b16 %v660
    %v1248 = vunpack.c.h.b16 %v660
    %v1249 = vunpack.c.l.b16 %v661
    %v1250 = vunpack.c.h.b16 %v661
    %v1251 = vunpack.c.l.b16 %v662
    %v1252 = vunpack.c.h.b16 %v662
    %v1253 = vunpack.c.l.b16 %v663
    %v1254 = vunpack.c.h.b16 %v663
    %v1255 = vunpack.c.l.b16 %v664
    %v1256 = vunpack.c.h.b16 %v664
    %v1257 = vunpack.c.l.b16 %v665
    %v1258 = vunpack.c.h.b16 %v665
    %v1259 = vunpack.c.l.b16 %v666
    %v1260 = vunpack.c.h.b16 %v666
    %v1261 = vunpack.c.l.b16 %v667
    %v1262 = vunpack.c.h.b16 %v667
    %v1263 = vunpack.c.l.b16 %v668
    %v1264 = vunpack.c.h.b16 %v668
    %v1265 = vunpack.c.l.b16 %v669
    %v1266 = vunpack.c.h.b16 %v669
    %v1267 = vunpack.c.l.b16 %v670
    %v1268 = vunpack.c.h.b16 %v670
    %v1269 = vunpack.c.l.b16 %v671
    %v1270 = vunpack.c.h.b16 %v671
    %v1271 = vunpack.c.l.b16 %v672
    %v1272 = vunpack.c.h.b16 %v672
    %v1273 = vunpack.c.l.b16 %v673
    %v1274 = vunpack.c.h.b16 %v673
    %v1275 = vunpack.c.l.b16 %v674
    %v1276 = vunpack.c.h.b16 %v674
    %v1277 = vunpack.c.l.b16 %v675
    %v1278 = vunpack.c.h.b16 %v675
    %v1279 = vunpack.c.l.b16 %v676
    %v1280 = vunpack.c.h.b16 %v676
    %v1281 = vunpack.c.l.b16 %v677
    %v1282 = vunpack.c.h.b16 %v677
    %v1283 = vunpack.c.l.b16 %v678
    %v1284 = vunpack.c.h.b16 %v678
    %v1285 = vunpack.c.l.b16 %v679
    %v1286 = vunpack.c.h.b16 %v679
    %v1287 = vunpack.c.l.b16 %v680
    %v1288 = vunpack.c.h.b16 %v680
    %v1289 = vunpack.c.l.b16 %v681
    %v1290 = vunpack.c.h.b16 %v681
    %v1291 = vunpack.c.l.b16 %v682
    %v1292 = vunpack.c.h.b16 %v682
    %v1293 = vunpack.c.l.b16 %v683
    %v1294 = vunpack.c.h.b16 %v683
    %v1295 = vunpack.c.l.b16 %v684
    %v1296 = vunpack.c.h.b16 %v684
    %v1297 = vunpack.c.l.b16 %v685
    %v1298 = vunpack.c.h.b16 %v685
    %v1299 = vunpack.c.l.b16 %v686
    %v1300 = vunpack.c.h.b16 %v686
    %v1301 = vunpack.c.l.b16 %v687
    %v1302 = vunpack.c.h.b16 %v687
    %v1303 = vunpack.c.l.b16 %v688
    %v1304 = vunpack.c.h.b16 %v688
    %v1305 = vunpack.c.l.b16 %v689
    %v1306 = vunpack.c.h.b16 %v689
    %v1307 = vunpack.c.l.b16 %v690
    %v1308 = vunpack.c.h.b16 %v690
    %v1309 = vunpack.c.l.b16 %v691
    %v1310 = vunpack.c.h.b16 %v691
    %v1311 = vunpack.c.l.b16 %v692
    %v1312 = vunpack.c.h.b16 %v692
    %v1313 = vunpack.c.l.b16 %v693
    %v1314 = vunpack.c.h.b16 %v693
    %v1315 = vunpack.c.l.b16 %v694
    %v1316 = vunpack.c.h.b16 %v694
    %v1317 = vunpack.c.l.b16 %v695
    %v1318 = vunpack.c.h.b16 %v695
    %v1319 = vunpack.c.l.b16 %v696
    %v1320 = vunpack.c.h.b16 %v696
    %v1321 = vunpack.c.l.b16 %v697
    %v1322 = vunpack.c.h.b16 %v697
    %v1323 = vunpack.c.l.b16 %v698
    %v1324 = vunpack.c.h.b16 %v698
    %v1325 = vunpack.c.l.b16 %v699
    %v1326 = vunpack.c.h.b16 %v699
    %v1327 = vunpack.c.l.b16 %v700
    %v1328 = vunpack.c.h.b16 %v700
    %v1329 = vunpack.c.l.b16 %v701
    %v1330 = vunpack.c.h.b16 %v701
    %v1331 = vunpack.c.l.b16 %v702
    %v1332 = vunpack.c.h.b16 %v702
    %v1333 = vunpack.c.l.b16 %v703
    %v1334 = vunpack.c.h.b16 %v703
    %v1335 = vunpack.c.l.b16 %v704
    %v1336 = vunpack.c.h.b16 %v704
    %v1337 = vunpack.c.l.b16 %v705
    %v1338 = vunpack.c.h.b16 %v705
    %v1339 = vunpack.c.l.b16 %v706
    %v1340 = vunpack.c.h.b16 %v706
    %v1341 = vunpack.c.l.b16 %v707
    %v1342 = vunpack.c.h.b16 %v707
    %v1343 = vunpack.c.l.b16 %v708
    %v1344 = vunpack.c.h.b16 %v708
    %v1345 = vunpack.c.l.b16 %v709
    %v1346 = vunpack.c.h.b16 %v709
    %v1347 = vunpack.c.l.b16 %v710
    %v1348 = vunpack.c.h.b16 %v710
    %v1349 = vunpack.c.l.b16 %v711
    %v1350 = vunpack.c.h.b16 %v711
    %v1351 = vunpack.c.l.b16 %v712
    %v1352 = vunpack.c.h.b16 %v712
    %v1353 = vunpack.c.l.b16 %v713
    %v1354 = vunpack.c.h.b16 %v713
    %v1355 = vunpack.c.l.b16 %v714
    %v1356 = vunpack.c.h.b16 %v714
    %v1357 = vunpack.c.l.b16 %v715
    %v1358 = vunpack.c.h.b16 %v715
    %v1359 = vunpack.c.l.b16 %v716
    %v1360 = vunpack.c.h.b16 %v716
    %v1361 = vunpack.c.l.b16 %v717
    %v1362 = vunpack.c.h.b16 %v717
    %v1363 = vunpack.c.l.b16 %v718
    %v1364 = vunpack.c.h.b16 %v718
    %v1365 = vunpack.c.l.b16 %v719
    %v1366 = vunpack.c.h.b16 %v719
    %v1367 = vunpack.c.l.b16 %v720
    %v1368 = vunpack.c.h.b16 %v720
    %v1369 = vunpack.c.l.b16 %v721
    %v1370 = vunpack.c.h.b16 %v721
    %v1371 = vunpack.c.l.b16 %v722
    %v1372 = vunpack.c.h.b16 %v722
    %v1373 = vunpack.c.l.b16 %v723
    %v1374 = vunpack.c.h.b16 %v723
    %v1375 = vunpack.c.l.b16 %v724
    %v1376 = vunpack.c.h.b16 %v724
    %v1377 = vunpack.c.l.b16 %v725
    %v1378 = vunpack.c.h.b16 %v725
    %v1379 = vunpack.c.l.b16 %v726
    %v1380 = vunpack.c.h.b16 %v726
    %v1381 = vunpack.c.l.b16 %v727
    %v1382 = vunpack.c.h.b16 %v727
    %v1383 = vunpack.c.l.b16 %v728
    %v1384 = vunpack.c.h.b16 %v728
    %v1385 = vunpack.c.l.b16 %v729
    %v1386 = vunpack.c.h.b16 %v729
    %v1387 = vunpack.c.l.b16 %v730
    %v1388 = vunpack.c.h.b16 %v730
    %v1389 = vunpack.c.l.b16 %v731
    %v1390 = vunpack.c.h.b16 %v731
    %v1391 = vunpack.c.l.b16 %v732
    %v1392 = vunpack.c.h.b16 %v732
    %v1393 = vunpack.c.l.b16 %v733
    %v1394 = vunpack.c.h.b16 %v733
    %v1395 = vunpack.c.l.b16 %v734
    %v1396 = vunpack.c.h.b16 %v734
    %v1397 = vunpack.c.l.b16 %v735
    %v1398 = vunpack.c.h.b16 %v735
    %v1399 = vunpack.c.l.b16 %v736
    %v1400 = vunpack.c.h.b16 %v736
    %v1401 = vunpack.c.l.b16 %v737
    %v1402 = vunpack.c.h.b16 %v737
    %v1403 = vunpack.c.l.b16 %v738
    %v1404 = vunpack.c.h.b16 %v738
    %v1405 = vunpack.c.l.b16 %v739
    %v1406 = vunpack.c.h.b16 %v739
    %v1407 = vunpack.c.l.b16 %v740
    %v1408 = vunpack.c.h.b16 %v740
    %v1409 = vunpack.c.l.b16 %v741
    %v1410 = vunpack.c.h.b16 %v741
    %v1411 = vunpack.c.l.b16 %v742
    %v1412 = vunpack.c.h.b16 %v742
    %v1413 = vunpack.c.l.b16 %v743
    %v1414 = vunpack.c.h.b16 %v743
    %v1415 = vunpack.c.l.b16 %v744
    %v1416 = vunpack.c.h.b16 %v744
    %v1417 = vunpack.c.l.b16 %v745
    %v1418 = vunpack.c.h.b16 %v745
    %v1419 = vunpack.c.l.b16 %v746
    %v1420 = vunpack.c.h.b16 %v746
    %v1421 = vunpack.c.l.b16 %v747
    %v1422 = vunpack.c.h.b16 %v747
    %v1423 = vunpack.c.l.b16 %v748
    %v1424 = vunpack.c.h.b16 %v748
    %v1425 = vunpack.c.l.b16 %v749
    %v1426 = vunpack.c.h.b16 %v749
    %v1427 = vunpack.c.l.b16 %v750
    %v1428 = vunpack.c.h.b16 %v750
    %v1429 = vunpack.c.l.b16 %v751
    %v1430 = vunpack.c.h.b16 %v751
    %v1431 = vunpack.c.l.b16 %v752
    %v1432 = vunpack.c.h.b16 %v752
    %v1433 = vunpack.c.l.b16 %v753
    %v1434 = vunpack.c.h.b16 %v753
    %v1435 = vunpack.c.l.b16 %v754
    %v1436 = vunpack.c.h.b16 %v754
    %v1437 = vunpack.c.l.b16 %v755
    %v1438 = vunpack.c.h.b16 %v755
    %v1439 = vunpack.c.l.b16 %v756
    %v1440 = vunpack.c.h.b16 %v756
    %v1441 = vunpack.c.l.b16 %v757
    %v1442 = vunpack.c.h.b16 %v757
    %v1443 = vunpack.c.l.b16 %v758
    %v1444 = vunpack.c.h.b16 %v758
    %v1445 = vunpack.c.l.b16 %v759
    %v1446 = vunpack.c.h.b16 %v759
    %v1447 = vunpack.c.l.b16 %v760
    %v1448 = vunpack.c.h.b16 %v760
    %v1449 = vunpack.c.l.b16 %v761
    %v1450 = vunpack.c.h.b16 %v761
    %v1451 = vunpack.c.l.b16 %v762
    %v1452 = vunpack.c.h.b16 %v762
    %v1453 = vunpack.c.l.b16 %v763
    %v1454 = vunpack.c.h.b16 %v763
    %v1455 = vunpack.c.l.b16 %v764
    %v1456 = vunpack.c.h.b16 %v764
    %v1457 = vunpack.c.l.b16 %v765
    %v1458 = vunpack.c.h.b16 %v765
    %v1459 = vunpack.c.l.b16 %v766
    %v1460 = vunpack.c.h.b16 %v766
    %v1461 = vunpack.c.l.b16 %v767
    %v1462 = vunpack.c.h.b16 %v767
    %v1463 = vunpack.c.l.b16 %v768
    %v1464 = vunpack.c.h.b16 %v768
    %v1465 = vunpack.c.l.b16 %v769
    %v1466 = vunpack.c.h.b16 %v769
    %v1467 = vunpack.c.l.b16 %v770
    %v1468 = vunpack.c.h.b16 %v770
    %v1469 = vunpack.c.l.b16 %v771
    %v1470 = vunpack.c.h.b16 %v771
    %v1471 = vunpack.c.l.b16 %v772
    %v1472 = vunpack.c.h.b16 %v772
    %v1473 = vunpack.c.l.b16 %v773
    %v1474 = vunpack.c.h.b16 %v773
    %v1475 = vunpack.c.l.b16 %v774
    %v1476 = vunpack.c.h.b16 %v774
    %v1477 = vunpack.c.l.b16 %v775
    %v1478 = vunpack.c.h.b16 %v775
    %v1479 = vunpack.c.l.b16 %v776
    %v1480 = vunpack.c.h.b16 %v776
    %v1481 = vunpack.c.l.b16 %v777
    %v1482 = vunpack.c.h.b16 %v777
    %v1483 = vunpack.c.l.b16 %v778
    %v1484 = vunpack.c.h.b16 %v778
    %v1485 = vunpack.c.l.b16 %v779
    %v1486 = vunpack.c.h.b16 %v779
    %v1487 = vunpack.c.l.b16 %v780
    %v1488 = vunpack.c.h.b16 %v780
    %v1489 = vunpack.c.l.b16 %v781
    %v1490 = vunpack.c.h.b16 %v781
    %v1491 = vunpack.c.l.b16 %v782
    %v1492 = vunpack.c.h.b16 %v782
    %v1493 = vunpack.c.l.b16 %v783
    %v1494 = vunpack.c.h.b16 %v783
    %v1495 = vunpack.c.l.b16 %v784
    %v1496 = vunpack.c.h.b16 %v784
    %v1497 = vunpack.c.l.b16 %v785
    %v1498 = vunpack.c.h.b16 %v785
    %v1499 = vunpack.c.l.b16 %v786
    %v1500 = vunpack.c.h.b16 %v786
    %v1501 = vunpack.c.l.b16 %v787
    %v1502 = vunpack.c.h.b16 %v787
    %v1503 = vunpack.c.l.b16 %v788
    %v1504 = vunpack.c.h.b16 %v788
    %v1505 = vunpack.c.l.b16 %v789
    %v1506 = vunpack.c.h.b16 %v789
    %v1507 = vunpack.c.l.b16 %v790
    %v1508 = vunpack.c.h.b16 %v790
    %v1509 = vunpack.c.l.b16 %v791
    %v1510 = vunpack.c.h.b16 %v791
    %v1511 = vunpack.c.l.b16 %v792
    %v1512 = vunpack.c.h.b16 %v792
    %v1513 = vunpack.c.l.b16 %v793
    %v1514 = vunpack.c.h.b16 %v793
    %v1515 = vunpack.c.l.b16 %v794
    %v1516 = vunpack.c.h.b16 %v794
    %v1517 = vunpack.c.l.b16 %v795
    %v1518 = vunpack.c.h.b16 %v795
    %v1519 = vunpack.c.l.b16 %v796
    %v1520 = vunpack.c.h.b16 %v796
    %v1521 = vunpack.c.l.b16 %v797
    %v1522 = vunpack.c.h.b16 %v797
    %v1523 = vunpack.c.l.b16 %v798
    %v1524 = vunpack.c.h.b16 %v798
    %v1525 = vunpack.c.l.b16 %v799
    %v1526 = vunpack.c.h.b16 %v799
    %v1527 = vunpack.c.l.b16 %v800
    %v1528 = vunpack.c.h.b16 %v800
    %v1529 = vunpack.c.l.b16 %v801
    %v1530 = vunpack.c.h.b16 %v801
    %v1531 = vunpack.c.l.b16 %v802
    %v1532 = vunpack.c.h.b16 %v802
    %v1533 = vunpack.c.l.b16 %v803
    %v1534 = vunpack.c.h.b16 %v803
    %v1535 = vunpack.c.l.b16 %v804
    %v1536 = vunpack.c.h.b16 %v804
    %v1537 = vunpack.c.l.b16 %v805
    %v1538 = vunpack.c.h.b16 %v805
    %v1539 = vunpack.c.l.b16 %v806
    %v1540 = vunpack.c.h.b16 %v806
    %v1541 = vunpack.c.l.b16 %v807
    %v1542 = vunpack.c.h.b16 %v807
    %v1543 = vunpack.c.l.b16 %v808
    %v1544 = vunpack.c.h.b16 %v808
    %v1545 = vunpack.c.l.b16 %v809
    %v1546 = vunpack.c.h.b16 %v809
    %v1547 = vunpack.c.l.b16 %v810
    %v1548 = vunpack.c.h.b16 %v810
    %v1549 = vunpack.c.l.b16 %v811
    %v1550 = vunpack.c.h.b16 %v811
    %v1551 = vunpack.c.l.b16 %v812
    %v1552 = vunpack.c.h.b16 %v812
    %v1553 = vunpack.c.l.b16 %v813
    %v1554 = vunpack.c.h.b16 %v813
    %v1555 = vunpack.c.l.b16 %v814
    %v1556 = vunpack.c.h.b16 %v814
    %v1557 = vunpack.c.l.b16 %v815
    %v1558 = vunpack.c.h.b16 %v815
    %v1559 = vunpack.c.l.b16 %v816
    %v1560 = vunpack.c.h.b16 %v816
    %v1561 = vunpack.c.l.b16 %v817
    %v1562 = vunpack.c.h.b16 %v817
    %v1563 = vunpack.c.l.b16 %v818
    %v1564 = vunpack.c.h.b16 %v818
    %v1565 = vunpack.c.l.b16 %v819
    %v1566 = vunpack.c.h.b16 %v819
    %v1567 = vunpack.c.l.b16 %v820
    %v1568 = vunpack.c.h.b16 %v820
    %v1569 = vunpack.c.l.b16 %v821
    %v1570 = vunpack.c.h.b16 %v821
    %v1571 = vunpack.c.l.b16 %v822
    %v1572 = vunpack.c.h.b16 %v822
    %v1573 = vunpack.c.l.b16 %v823
    %v1574 = vunpack.c.h.b16 %v823
    %v1575 = vunpack.c.l.b16 %v824
    %v1576 = vunpack.c.h.b16 %v824
    %v1577 = vunpack.c.l.b16 %v825
    %v1578 = vunpack.c.h.b16 %v825
    %v1579 = vunpack.c.l.b16 %v826
    %v1580 = vunpack.c.h.b16 %v826
    %v1581 = vunpack.c.l.b16 %v827
    %v1582 = vunpack.c.h.b16 %v827
    %v1583 = vunpack.c.l.b16 %v828
    %v1584 = vunpack.c.h.b16 %v828
    %v1585 = vunpack.c.l.b16 %v829
    %v1586 = vunpack.c.h.b16 %v829
    %v1587 = vunpack.c.l.b16 %v830
    %v1588 = vunpack.c.h.b16 %v830
    %v1589 = vunpack.c.l.b16 %v831
    %v1590 = vunpack.c.h.b16 %v831
    %v1591 = vunpack.c.l.b16 %v832
    %v1592 = vunpack.c.h.b16 %v832
    %v1593 = vunpack.c.l.b16 %v833
    %v1594 = vunpack.c.h.b16 %v833
    %v1595 = vunpack.c.l.b16 %v834
    %v1596 = vunpack.c.h.b16 %v834
    %v1597 = vunpack.c.l.b16 %v835
    %v1598 = vunpack.c.h.b16 %v835
    %v1599 = vunpack.c.l.b16 %v836
    %v1600 = vunpack.c.h.b16 %v836
    %v1601 = vunpack.c.l.b16 %v837
    %v1602 = vunpack.c.h.b16 %v837
    %v1603 = vunpack.c.l.b16 %v838
    %v1604 = vunpack.c.h.b16 %v838
    %v1605 = vunpack.c.l.b16 %v839
    %v1606 = vunpack.c.h.b16 %v839
    %v1607 = vunpack.c.l.b16 %v840
    %v1608 = vunpack.c.h.b16 %v840
    %v1609 = vpack.c.b16 %v1105, %v1097
    %v1610 = vpack.c.b16 %v1106, %v1098
    %v1611 = vpack.c.b16 %v1107, %v1099
    %v1612 = vpack.c.b16 %v1108, %v1100
    %v1613 = vpack.c.b16 %v1109, %v1101
    %v1614 = vpack.c.b16 %v1110, %v1102
    %v1615 = vpack.c.b16 %v1111, %v1103
    %v1616 = vpack.c.b16 %v1112, %v1104
    %v1617 = vpack.c.b16 %v1121, %v1113
    %v1618 = vpack.c.b16 %v1122, %v1114
    %v1619 = vpack.c.b16 %v1123, %v1115
    %v1620 = vpack.c.b16 %v1124, %v1116
    %v1621 = vpack.c.b16 %v1125, %v1117
    %v1622 = vpack.c.b16 %v1126, %v1118
    %v1623 = vpack.c.b16 %v1127, %v1119
    %v1624 = vpack.c.b16 %v1128, %v1120
    %v1625 = vpack.c.b16 %v1137, %v1129
    %v1626 = vpack.c.b16 %v1138, %v1130
    %v1627 = vpack.c.b16 %v1139, %v1131
    %v1628 = vpack.c.b16 %v1140, %v1132
    %v1629 = vpack.c.b16 %v1141, %v1133
    %v1630 = vpack.c.b16 %v1142, %v1134
    %v1631 = vpack.c.b16 %v1143, %v1135
    %v1632 = vpack.c.b16 %v1144, %v1136
    %v1633 = vpack.c.b16 %v1153, %v1145
    %v1634 = vpack.c.b16 %v1154, %v1146
    %v1635 = vpack.c.b16 %v1155, %v1147
    %v1636 = vpack.c.b16 %v1156, %v1148
    %v1637 = vpack.c.b16 %v1157, %v1149
    %v1638 = vpack.c.b16 %v1158, %v1150
    %v1639 = vpack.c.b16 %v1159, %v1151
    %v1640 = vpack.c.b16 %v1160, %v1152
    %v1641 = vpack.c.b16 %v1169, %v1161
    %v1642 = vpack.c.b16 %v1170, %v1162
    %v1643 = vpack.c.b16 %v1171, %v1163
    %v1644 = vpack.c.b16 %v1172, %v1164
    %v1645 = vpack.c.b16 %v1173, %v1165
    %v1646 = vpack.c.b16 %v1174, %v1166
    %v1647 = vpack.c.b16 %v1175, %v1167
    %v1648 = vpack.c.b16 %v1176, %v1168
    %v1649 = vpack.c.b16 %v1185, %v1177
    %v1650 = vpack.c.b16 %v1186, %v1178
    %v1651 = vpack.c.b16 %v1187, %v1179
    %v1652 = vpack.c.b16 %v1188, %v1180
    %v1653 = vpack.c.b16 %v1189, %v1181
    %v1654 = vpack.c.b16 %v1190, %v1182
    %v1655 = vpack.c.b16 %v1191, %v1183
    %v1656 = vpack.c.b16 %v1192, %v1184
    %v1657 = vpack.c.b16 %v1201, %v1193
    %v1658 = vpack.c.b16 %v1202, %v1194
    %v1659 = vpack.c.b16 %v1203, %v1195
    %v1660 = vpack.c.b16 %v1204, %v1196
    %v1661 = vpack.c.b16 %v1205, %v1197
    %v1662 = vpack.c.b16 %v1206, %v1198
    %v1663 = vpack.c.b16 %v1207, %v1199
    %v1664 = vpack.c.b16 %v1208, %v1200
    %v1665 = vpack.c.b16 %v1217, %v1209
    %v1666 = vpack.c.b16 %v1218, %v1210
    %v1667 = vpack.c.b16 %v1219, %v1211
    %v1668 = vpack.c.b16 %v1220, %v1212
    %v1669 = vpack.c.b16 %v1221, %v1213
    %v1670 = vpack.c.b16 %v1222, %v1214
    %v1671 = vpack.c.b16 %v1223, %v1215
    %v1672 = vpack.c.b16 %v1224, %v1216
    %v1673 = vpack.c.b16 %v1233, %v1225
    %v1674 = vpack.c.b16 %v1234, %v1226
    %v1675 = vpack.c.b16 %v1235, %v1227
    %v1676 = vpack.c.b16 %v1236, %v1228
    %v1677 = vpack.c.b16 %v1237, %v1229
    %v1678 = vpack.c.b16 %v1238, %v1230
    %v1679 = vpack.c.b16 %v1239, %v1231
    %v1680 = vpack.c.b16 %v1240, %v1232
    %v1681 = vpack.c.b16 %v1249, %v1241
    %v1682 = vpack.c.b16 %v1250, %v1242
    %v1683 = vpack.c.b16 %v1251, %v1243
    %v1684 = vpack.c.b16 %v1252, %v1244
    %v1685 = vpack.c.b16 %v1253, %v1245
    %v1686 = vpack.c.b16 %v1254, %v1246
    %v1687 = vpack.c.b16 %v1255, %v1247
    %v1688 = vpack.c.b16 %v1256, %v1248
    %v1689 = vpack.c.b16 %v1265, %v1257
    %v1690 = vpack.c.b16 %v1266, %v1258
    %v1691 = vpack.c.b16 %v1267, %v1259
    %v1692 = vpack.c.b16 %v1268, %v1260
    %v1693 = vpack.c.b16 %v1269, %v1261
    %v1694 = vpack.c.b16 %v1270, %v1262
    %v1695 = vpack.c.b16 %v1271, %v1263
    %v1696 = vpack.c.b16 %v1272, %v1264
    %v1697 = vpack.c.b16 %v1281, %v1273
    %v1698 = vpack.c.b16 %v1282, %v1274
    %v1699 = vpack.c.b16 %v1283, %v1275
    %v1700 = vpack.c.b16 %v1284, %v1276
    %v1701 = vpack.c.b16 %v1285, %v1277
    %v1702 = vpack.c.b16 %v1286, %v1278
    %v1703 = vpack.c.b16 %v1287, %v1279
    %v1704 = vpack.c.b16 %v1288, %v1280
    %v1705 = vpack.c.b16 %v1297, %v1289
    %v1706 = vpack.c.b16 %v1298, %v1290
    %v1707 = vpack.c.b16 %v1299, %v1291
    %v1708 = vpack.c.b16 %v1300, %v1292
    %v1709 = vpack.c.b16 %v1301, %v1293
    %v1710 = vpack.c.b16 %v1302, %v1294
    %v1711 = vpack.c.b16 %v1303, %v1295
    %v1712 = vpack.c.b16 %v1304, %v1296
    %v1713 = vpack.c.b16 %v1313, %v1305
    %v1714 = vpack.c.b16 %v1314, %v1306
    %v1715 = vpack.c.b16 %v1315, %v1307
    %v1716 = vpack.c.b16 %v1316, %v1308
    %v1717 = vpack.c.b16 %v1317, %v1309
    %v1718 = vpack.c.b16 %v1318, %v1310
    %v1719 = vpack.c.b16 %v1319, %v1311
    %v1720 = vpack.c.b16 %v1320, %v1312
    %v1721 = vpack.c.b16 %v1329, %v1321
    %v1722 = vpack.c.b16 %v1330, %v1322
    %v1723 = vpack.c.b16 %v1331, %v1323
    %v1724 = vpack.c.b16 %v1332, %v1324
    %v1725 = vpack.c.b16 %v1333, %v1325
    %v1726 = vpack.c.b16 %v1334, %v1326
    %v1727 = vpack.c.b16 %v1335, %v1327
    %v1728 = vpack.c.b16 %v1336, %v1328
    %v1729 = vpack.c.b16 %v1345, %v1337
    %v1730 = vpack.c.b16 %v1346, %v1338
    %v1731 = vpack.c.b16 %v1347, %v1339
    %v1732 = vpack.c.b16 %v1348, %v1340
    %v1733 = vpack.c.b16 %v1349, %v1341
    %v1734 = vpack.c.b16 %v1350, %v1342
    %v1735 = vpack.c.b16 %v1351, %v1343
    %v1736 = vpack.c.b16 %v1352, %v1344
    %v1737 = vpack.c.b16 %v1361, %v1353
    %v1738 = vpack.c.b16 %v1362, %v1354
    %v1739 = vpack.c.b16 %v1363, %v1355
    %v1740 = vpack.c.b16 %v1364, %v1356
    %v1741 = vpack.c.b16 %v1365, %v1357
    %v1742 = vpack.c.b16 %v1366, %v1358
    %v1743 = vpack.c.b16 %v1367, %v1359
    %v1744 = vpack.c.b16 %v1368, %v1360
    %v1745 = vpack.c.b16 %v1377, %v1369
    %v1746 = vpack.c.b16 %v1378, %v1370
    %v1747 = vpack.c.b16 %v1379, %v1371
    %v1748 = vpack.c.b16 %v1380, %v1372
    %v1749 = vpack.c.b16 %v1381, %v1373
    %v1750 = vpack.c.b16 %v1382, %v1374
    %v1751 = vpack.c.b16 %v1383, %v1375
    %v1752 = vpack.c.b16 %v1384, %v1376
    %v1753 = vpack.c.b16 %v1393, %v1385
    %v1754 = vpack.c.b16 %v1394, %v1386
    %v1755 = vpack.c.b16 %v1395, %v1387
    %v1756 = vpack.c.b16 %v1396, %v1388
    %v1757 = vpack.c.b16 %v1397, %v1389
    %v1758 = vpack.c.b16 %v1398, %v1390
    %v1759 = vpack.c.b16 %v1399, %v1391
    %v1760 = vpack.c.b16 %v1400, %v1392
    %v1761 = vpack.c.b16 %v1409, %v1401
    %v1762 = vpack.c.b16 %v1410, %v1402
    %v1763 = vpack.c.b16 %v1411, %v1403
    %v1764 = vpack.c.b16 %v1412, %v1404
    %v1765 = vpack.c.b16 %v1413, %v1405
    %v1766 = vpack.c.b16 %v1414, %v1406
    %v1767 = vpack.c.b16 %v1415, %v1407
    %v1768 = vpack.c.b16 %v1416, %v1408
    %v1769 = vpack.c.b16 %v1425, %v1417
    %v1770 = vpack.c.b16 %v1426, %v1418
    %v1771 = vpack.c.b16 %v1427, %v1419
    %v1772 = vpack.c.b16 %v1428, %v1420
    %v1773 = vpack.c.b16 %v1429, %v1421
    %v1774 = vpack.c.b16 %v1430, %v1422
    %v1775 = vpack.c.b16 %v1431, %v1423
    %v1776 = vpack.c.b16 %v1432, %v1424
    %v1777 = vpack.c.b16 %v1441, %v1433
    %v1778 = vpack.c.b16 %v1442, %v1434
    %v1779 = vpack.c.b16 %v1443, %v1435
    %v1780 = vpack.c.b16 %v1444, %v1436
    %v1781 = vpack.c.b16 %v1445, %v1437
    %v1782 = vpack.c.b16 %v1446, %v1438
    %v1783 = vpack.c.b16 %v1447, %v1439
    %v1784 = vpack.c.b16 %v1448, %v1440
    %v1785 = vpack.c.b16 %v1457, %v1449
    %v1786 = vpack.c.b16 %v1458, %v1450
    %v1787 = vpack.c.b16 %v1459, %v1451
    %v1788 = vpack.c.b16 %v1460, %v1452
    %v1789 = vpack.c.b16 %v1461, %v1453
    %v1790 = vpack.c.b16 %v1462, %v1454
    %v1791 = vpack.c.b16 %v1463, %v1455
    %v1792 = vpack.c.b16 %v1464, %v1456
    %v1793 = vpack.c.b16 %v1473, %v1465
    %v1794 = vpack.c.b16 %v1474, %v1466
    %v1795 = vpack.c.b16 %v1475, %v1467
    %v1796 = vpack.c.b16 %v1476, %v1468
    %v1797 = vpack.c.b16 %v1477, %v1469
    %v1798 = vpack.c.b16 %v1478, %v1470
    %v1799 = vpack.c.b16 %v1479, %v1471
    %v1800 = vpack.c.b16 %v1480, %v1472
    %v1801 = vpack.c.b16 %v1489, %v1481
    %v1802 = vpack.c.b16 %v1490, %v1482
    %v1803 = vpack.c.b16 %v1491, %v1483
    %v1804 = vpack.c.b16 %v1492, %v1484
    %v1805 = vpack.c.b16 %v1493, %v1485
    %v1806 = vpack.c.b16 %v1494, %v1486
    %v1807 = vpack.c.b16 %v1495, %v1487
    %v1808 = vpack.c.b16 %v1496, %v1488
    %v1809 = vpack.c.b16 %v1505, %v1497
    %v1810 = vpack.c.b16 %v1506, %v1498
    %v1811 = vpack.c.b16 %v1507, %v1499
    %v1812 = vpack.c.b16 %v1508, %v1500
    %v1813 = vpack.c.b16 %v1509, %v1501
    %v1814 = vpack.c.b16 %v1510, %v1502
    %v1815 = vpack.c.b16 %v1511, %v1503
    %v1816 = vpack.c.b16 %v1512, %v1504
    %v1817 = vpack.c.b16 %v1521, %v1513
    %v1818 = vpack.c.b16 %v1522, %v1514
    %v1819 = vpack.c.b16 %v1523, %v1515
    %v1820 = vpack.c.b16 %v1524, %v1516
    %v1821 = vpack.c.b16 %v1525, %v1517
    %v1822 = vpack.c.b16 %v1526, %v1518
    %v1823 = vpack.c.b16 %v1527, %v1519
    %v1824 = vpack.c.b16 %v1528, %v1520
    %v1825 = vpack.c.b16 %v1537, %v1529
    %v1826 = vpack.c.b16 %v1538, %v1530
    %v1827 = vpack.c.b16 %v1539, %v1531
    %v1828 = vpack.c.b16 %v1540, %v1532
    %v1829 = vpack.c.b16 %v1541, %v1533
    %v1830 = vpack.c.b16 %v1542, %v1534
    %v1831 = vpack.c.b16 %v1543, %v1535
    %v1832 = vpack.c.b16 %v1544, %v1536
    %v1833 = vpack.c.b16 %v1553, %v1545
    %v1834 = vpack.c.b16 %v1554, %v1546
    %v1835 = vpack.c.b16 %v1555, %v1547
    %v1836 = vpack.c.b16 %v1556, %v1548
    %v1837 = vpack.c.b16 %v1557, %v1549
    %v1838 = vpack.c.b16 %v1558, %v1550
    %v1839 = vpack.c.b16 %v1559, %v1551
    %v1840 = vpack.c.b16 %v1560, %v1552
    %v1841 = vpack.c.b16 %v1569, %v1561
    %v1842 = vpack.c.b16 %v1570, %v1562
    %v1843 = vpack.c.b16 %v1571, %v1563
    %v1844 = vpack.c.b16 %v1572, %v1564
    %v1845 = vpack.c.b16 %v1573, %v1565
    %v1846 = vpack.c.b16 %v1574, %v1566
    %v1847 = vpack.c.b16 %v1575, %v1567
    %v1848 = vpack.c.b16 %v1576, %v1568
    %v1849 = vpack.c.b16 %v1585, %v1577
    %v1850 = vpack.c.b16 %v1586, %v1578
    %v1851 = vpack.c.b16 %v1587, %v1579
    %v1852 = vpack.c.b16 %v1588, %v1580
    %v1853 = vpack.c.b16 %v1589, %v1581
    %v1854 = vpack.c.b16 %v1590, %v1582
    %v1855 = vpack.c.b16 %v1591, %v1583
    %v1856 = vpack.c.b16 %v1592, %v1584
    %v1857 = vpack.c.b16 %v1601, %v1593
    %v1858 = vpack.c.b16 %v1602, %v1594
    %v1859 = vpack.c.b16 %v1603, %v1595
    %v1860 = vpack.c.b16 %v1604, %v1596
    %v1861 = vpack.c.b16 %v1605, %v1597
    %v1862 = vpack.c.b16 %v1606, %v1598
    %v1863 = vpack.c.b16 %v1607, %v1599
    %v1864 = vpack.c.b16 %v1608, %v1600
    %2121 = vmatprep.subr.bf16.mxu0 %v1610
    %2122 = vmatpush1.bf16.msra.mxu0 %v1609
    %2123 = vmatprep.subr.bf16.mxu0 %v1618
    %2124 = vmatpush1.bf16.msra.mxu0 %v1617
    %2125 = vmatprep.subr.bf16.mxu0 %v1626
    %2126 = vmatpush1.bf16.msra.mxu0 %v1625
    %2127 = vmatprep.subr.bf16.mxu0 %v1634
    %2128 = vmatpush1.bf16.msra.mxu0 %v1633
    %2129 = vmatprep.subr.bf16.mxu0 %v1642
    %2130 = vmatpush1.bf16.msra.mxu0 %v1641
    %2131 = vmatprep.subr.bf16.mxu0 %v1650
    %2132 = vmatpush1.bf16.msra.mxu0 %v1649
    %2133 = vmatprep.subr.bf16.mxu0 %v1658
    %2134 = vmatpush1.bf16.msra.mxu0 %v1657
    %2135 = vmatprep.subr.bf16.mxu0 %v1666
    %2136 = vmatpush1.bf16.msra.mxu0 %v1665
    %2137 = vmatprep.subr.bf16.mxu0 %v1674
    %2138 = vmatpush1.bf16.msra.mxu0 %v1673
    %2139 = vmatprep.subr.bf16.mxu0 %v1682
    %2140 = vmatpush1.bf16.msra.mxu0 %v1681
    %2141 = vmatprep.subr.bf16.mxu0 %v1690
    %2142 = vmatpush1.bf16.msra.mxu0 %v1689
    %2143 = vmatprep.subr.bf16.mxu0 %v1698
    %2144 = vmatpush1.bf16.msra.mxu0 %v1697
    %2145 = vmatprep.subr.bf16.mxu0 %v1706
    %2146 = vmatpush1.bf16.msra.mxu0 %v1705
    %2147 = vmatprep.subr.bf16.mxu0 %v1714
    %2148 = vmatpush1.bf16.msra.mxu0 %v1713
    %2149 = vmatprep.subr.bf16.mxu0 %v1722
    %2150 = vmatpush1.bf16.msra.mxu0 %v1721
    %2151 = vmatprep.subr.bf16.mxu0 %v1730
    %2152 = vmatpush1.bf16.msra.mxu0 %v1729
    %2153 = vmatprep.mubr.bf16.mxu0 %v582
    %2154 = vmatmul.mubr.bf16.gmra.mrb[0].mxu0 %v581
    %v2155 = vpop.f32.mrb[0].mxu0
    %v2156 = vadd.f32 0.0, %v2155
    %v2157 = vpop.f32.mrb[0].mxu0
    %v2158 = vadd.f32 0.0, %v2157
    %v2159 = vpop.f32.mrb[0].mxu0
    %v2160 = vadd.f32 0.0, %v2159
    %v2161 = vpop.f32.mrb[0].mxu0
    %v2162 = vadd.f32 0.0, %v2161
    %2163 = vdwg.mxu0
    %2164 = vmatprep.subr.bf16.mxu0 %v1738
    %2165 = vmatpush1.bf16.msra.mxu0 %v1737
    %2166 = vmatprep.subr.bf16.mxu0 %v1746
    %2167 = vmatpush1.bf16.msra.mxu0 %v1745
    %2168 = vmatprep.subr.bf16.mxu0 %v1754
    %2169 = vmatpush1.bf16.msra.mxu0 %v1753
    %2170 = vmatprep.subr.bf16.mxu0 %v1762
    %2171 = vmatpush1.bf16.msra.mxu0 %v1761
    %2172 = vmatprep.subr.bf16.mxu0 %v1770
    %2173 = vmatpush1.bf16.msra.mxu0 %v1769
    %2174 = vmatprep.subr.bf16.mxu0 %v1778
    %2175 = vmatpush1.bf16.msra.mxu0 %v1777
    %2176 = vmatprep.subr.bf16.mxu0 %v1786
    %2177 = vmatpush1.bf16.msra.mxu0 %v1785
    %2178 = vmatprep.subr.bf16.mxu0 %v1794
    %2179 = vmatpush1.bf16.msra.mxu0 %v1793
    %2180 = vmatprep.subr.bf16.mxu0 %v1802
    %2181 = vmatpush1.bf16.msra.mxu0 %v1801
    %2182 = vmatprep.subr.bf16.mxu0 %v1810
    %2183 = vmatpush1.bf16.msra.mxu0 %v1809
    %2184 = vmatprep.subr.bf16.mxu0 %v1818
    %2185 = vmatpush1.bf16.msra.mxu0 %v1817
    %2186 = vmatprep.subr.bf16.mxu0 %v1826
    %2187 = vmatpush1.bf16.msra.mxu0 %v1825
    %2188 = vmatprep.subr.bf16.mxu0 %v1834
    %2189 = vmatpush1.bf16.msra.mxu0 %v1833
    %2190 = vmatprep.subr.bf16.mxu0 %v1842
    %2191 = vmatpush1.bf16.msra.mxu0 %v1841
    %2192 = vmatprep.subr.bf16.mxu0 %v1850
    %2193 = vmatpush1.bf16.msra.mxu0 %v1849
    %2194 = vmatprep.subr.bf16.mxu0 %v1858
    %2195 = vmatpush1.bf16.msra.mxu0 %v1857
    %2196 = vmatprep.mubr.bf16.mxu0 %v584
    %2197 = vmatmul.mubr.bf16.gmra.mrb[0].mxu0 %v583
    %v2198 = vpop.f32.mrb[0].mxu0
    %v2199 = vadd.f32 %v2156, %v2198
    %v2200 = vpop.f32.mrb[0].mxu0
    %v2201 = vadd.f32 %v2158, %v2200
    %v2202 = vpop.f32.mrb[0].mxu0
    %v2203 = vadd.f32 %v2160, %v2202
    %v2204 = vpop.f32.mrb[0].mxu0
    %v2205 = vadd.f32 %v2162, %v2204
    %2206 = vdwg.mxu0
    %2207 = vmatprep.subr.bf16.mxu0 %v1612
    %2208 = vmatpush1.bf16.msra.mxu0 %v1611
    %2209 = vmatprep.subr.bf16.mxu0 %v1620
    %2210 = vmatpush1.bf16.msra.mxu0 %v1619
    %2211 = vmatprep.subr.bf16.mxu0 %v1628
    %2212 = vmatpush1.bf16.msra.mxu0 %v1627
    %2213 = vmatprep.subr.bf16.mxu0 %v1636
    %2214 = vmatpush1.bf16.msra.mxu0 %v1635
    %2215 = vmatprep.subr.bf16.mxu0 %v1644
    %2216 = vmatpush1.bf16.msra.mxu0 %v1643
    %2217 = vmatprep.subr.bf16.mxu0 %v1652
    %2218 = vmatpush1.bf16.msra.mxu0 %v1651
    %2219 = vmatprep.subr.bf16.mxu0 %v1660
    %2220 = vmatpush1.bf16.msra.mxu0 %v1659
    %2221 = vmatprep.subr.bf16.mxu0 %v1668
    %2222 = vmatpush1.bf16.msra.mxu0 %v1667
    %2223 = vmatprep.subr.bf16.mxu0 %v1676
    %2224 = vmatpush1.bf16.msra.mxu0 %v1675
    %2225 = vmatprep.subr.bf16.mxu0 %v1684
    %2226 = vmatpush1.bf16.msra.mxu0 %v1683
    %2227 = vmatprep.subr.bf16.mxu0 %v1692
    %2228 = vmatpush1.bf16.msra.mxu0 %v1691
    %2229 = vmatprep.subr.bf16.mxu0 %v1700
    %2230 = vmatpush1.bf16.msra.mxu0 %v1699
    %2231 = vmatprep.subr.bf16.mxu0 %v1708
    %2232 = vmatpush1.bf16.msra.mxu0 %v1707
    %2233 = vmatprep.subr.bf16.mxu0 %v1716
    %2234 = vmatpush1.bf16.msra.mxu0 %v1715
    %2235 = vmatprep.subr.bf16.mxu0 %v1724
    %2236 = vmatpush1.bf16.msra.mxu0 %v1723
    %2237 = vmatprep.subr.bf16.mxu0 %v1732
    %2238 = vmatpush1.bf16.msra.mxu0 %v1731
    %2239 = vmatprep.mubr.bf16.mxu0 %v582
    %2240 = vmatmul.mubr.bf16.gmra.mrb[0].mxu0 %v581
    %v2241 = vpop.f32.mrb[0].mxu0
    %v2242 = vadd.f32 0.0, %v2241
    %v2243 = vpop.f32.mrb[0].mxu0
    %v2244 = vadd.f32 0.0, %v2243
    %v2245 = vpop.f32.mrb[0].mxu0
    %v2246 = vadd.f32 0.0, %v2245
    %v2247 = vpop.f32.mrb[0].mxu0
    %v2248 = vadd.f32 0.0, %v2247
    %2249 = vdwg.mxu0
    %2250 = vmatprep.subr.bf16.mxu0 %v1740
    %2251 = vmatpush1.bf16.msra.mxu0 %v1739
    %2252 = vmatprep.subr.bf16.mxu0 %v1748
    %2253 = vmatpush1.bf16.msra.mxu0 %v1747
    %2254 = vmatprep.subr.bf16.mxu0 %v1756
    %2255 = vmatpush1.bf16.msra.mxu0 %v1755
    %2256 = vmatprep.subr.bf16.mxu0 %v1764
    %2257 = vmatpush1.bf16.msra.mxu0 %v1763
    %2258 = vmatprep.subr.bf16.mxu0 %v1772
    %2259 = vmatpush1.bf16.msra.mxu0 %v1771
    %2260 = vmatprep.subr.bf16.mxu0 %v1780
    %2261 = vmatpush1.bf16.msra.mxu0 %v1779
    %2262 = vmatprep.subr.bf16.mxu0 %v1788
    %2263 = vmatpush1.bf16.msra.mxu0 %v1787
    %2264 = vmatprep.subr.bf16.mxu0 %v1796
    %2265 = vmatpush1.bf16.msra.mxu0 %v1795
    %2266 = vmatprep.subr.bf16.mxu0 %v1804
    %2267 = vmatpush1.bf16.msra.mxu0 %v1803
    %2268 = vmatprep.subr.bf16.mxu0 %v1812
    %2269 = vmatpush1.bf16.msra.mxu0 %v1811
    %2270 = vmatprep.subr.bf16.mxu0 %v1820
    %2271 = vmatpush1.bf16.msra.mxu0 %v1819
    %2272 = vmatprep.subr.bf16.mxu0 %v1828
    %2273 = vmatpush1.bf16.msra.mxu0 %v1827
    %2274 = vmatprep.subr.bf16.mxu0 %v1836
    %2275 = vmatpush1.bf16.msra.mxu0 %v1835
    %2276 = vmatprep.subr.bf16.mxu0 %v1844
    %2277 = vmatpush1.bf16.msra.mxu0 %v1843
    %2278 = vmatprep.subr.bf16.mxu0 %v1852
    %2279 = vmatpush1.bf16.msra.mxu0 %v1851
    %2280 = vmatprep.subr.bf16.mxu0 %v1860
    %2281 = vmatpush1.bf16.msra.mxu0 %v1859
    %2282 = vmatprep.mubr.bf16.mxu0 %v584
    %2283 = vmatmul.mubr.bf16.gmra.mrb[0].mxu0 %v583
    %v2284 = vpop.f32.mrb[0].mxu0
    %v2285 = vadd.f32 %v2242, %v2284
    %v2286 = vpop.f32.mrb[0].mxu0
    %v2287 = vadd.f32 %v2244, %v2286
    %v2288 = vpop.f32.mrb[0].mxu0
    %v2289 = vadd.f32 %v2246, %v2288
    %v2290 = vpop.f32.mrb[0].mxu0
    %v2291 = vadd.f32 %v2248, %v2290
    %2292 = vdwg.mxu0
    %2293 = vmatprep.subr.bf16.mxu0 %v1614
    %2294 = vmatpush1.bf16.msra.mxu0 %v1613
    %2295 = vmatprep.subr.bf16.mxu0 %v1622
    %2296 = vmatpush1.bf16.msra.mxu0 %v1621
    %2297 = vmatprep.subr.bf16.mxu0 %v1630
    %2298 = vmatpush1.bf16.msra.mxu0 %v1629
    %2299 = vmatprep.subr.bf16.mxu0 %v1638
    %2300 = vmatpush1.bf16.msra.mxu0 %v1637
    %2301 = vmatprep.subr.bf16.mxu0 %v1646
    %2302 = vmatpush1.bf16.msra.mxu0 %v1645
    %2303 = vmatprep.subr.bf16.mxu0 %v1654
    %2304 = vmatpush1.bf16.msra.mxu0 %v1653
    %2305 = vmatprep.subr.bf16.mxu0 %v1662
    %2306 = vmatpush1.bf16.msra.mxu0 %v1661
    %2307 = vmatprep.subr.bf16.mxu0 %v1670
    %2308 = vmatpush1.bf16.msra.mxu0 %v1669
    %2309 = vmatprep.subr.bf16.mxu0 %v1678
    %2310 = vmatpush1.bf16.msra.mxu0 %v1677
    %2311 = vmatprep.subr.bf16.mxu0 %v1686
    %2312 = vmatpush1.bf16.msra.mxu0 %v1685
    %2313 = vmatprep.subr.bf16.mxu0 %v1694
    %2314 = vmatpush1.bf16.msra.mxu0 %v1693
    %2315 = vmatprep.subr.bf16.mxu0 %v1702
    %2316 = vmatpush1.bf16.msra.mxu0 %v1701
    %2317 = vmatprep.subr.bf16.mxu0 %v1710
    %2318 = vmatpush1.bf16.msra.mxu0 %v1709
    %2319 = vmatprep.subr.bf16.mxu0 %v1718
    %2320 = vmatpush1.bf16.msra.mxu0 %v1717
    %2321 = vmatprep.subr.bf16.mxu0 %v1726
    %2322 = vmatpush1.bf16.msra.mxu0 %v1725
    %2323 = vmatprep.subr.bf16.mxu0 %v1734
    %2324 = vmatpush1.bf16.msra.mxu0 %v1733
    %2325 = vmatprep.mubr.bf16.mxu0 %v582
    %2326 = vmatmul.mubr.bf16.gmra.mrb[0].mxu0 %v581
    %v2327 = vpop.f32.mrb[0].mxu0
    %v2328 = vadd.f32 0.0, %v2327
    %v2329 = vpop.f32.mrb[0].mxu0
    %v2330 = vadd.f32 0.0, %v2329
    %v2331 = vpop.f32.mrb[0].mxu0
    %v2332 = vadd.f32 0.0, %v2331
    %v2333 = vpop.f32.mrb[0].mxu0
    %v2334 = vadd.f32 0.0, %v2333
    %2335 = vdwg.mxu0
    %2336 = vmatprep.subr.bf16.mxu0 %v1742
    %2337 = vmatpush1.bf16.msra.mxu0 %v1741
    %2338 = vmatprep.subr.bf16.mxu0 %v1750
    %2339 = vmatpush1.bf16.msra.mxu0 %v1749
    %2340 = vmatprep.subr.bf16.mxu0 %v1758
    %2341 = vmatpush1.bf16.msra.mxu0 %v1757
    %2342 = vmatprep.subr.bf16.mxu0 %v1766
    %2343 = vmatpush1.bf16.msra.mxu0 %v1765
    %2344 = vmatprep.subr.bf16.mxu0 %v1774
    %2345 = vmatpush1.bf16.msra.mxu0 %v1773
    %2346 = vmatprep.subr.bf16.mxu0 %v1782
    %2347 = vmatpush1.bf16.msra.mxu0 %v1781
    %2348 = vmatprep.subr.bf16.mxu0 %v1790
    %2349 = vmatpush1.bf16.msra.mxu0 %v1789
    %2350 = vmatprep.subr.bf16.mxu0 %v1798
    %2351 = vmatpush1.bf16.msra.mxu0 %v1797
    %2352 = vmatprep.subr.bf16.mxu0 %v1806
    %2353 = vmatpush1.bf16.msra.mxu0 %v1805
    %2354 = vmatprep.subr.bf16.mxu0 %v1814
    %2355 = vmatpush1.bf16.msra.mxu0 %v1813
    %2356 = vmatprep.subr.bf16.mxu0 %v1822
    %2357 = vmatpush1.bf16.msra.mxu0 %v1821
    %2358 = vmatprep.subr.bf16.mxu0 %v1830
    %2359 = vmatpush1.bf16.msra.mxu0 %v1829
    %2360 = vmatprep.subr.bf16.mxu0 %v1838
    %2361 = vmatpush1.bf16.msra.mxu0 %v1837
    %2362 = vmatprep.subr.bf16.mxu0 %v1846
    %2363 = vmatpush1.bf16.msra.mxu0 %v1845
    %2364 = vmatprep.subr.bf16.mxu0 %v1854
    %2365 = vmatpush1.bf16.msra.mxu0 %v1853
    %2366 = vmatprep.subr.bf16.mxu0 %v1862
    %2367 = vmatpush1.bf16.msra.mxu0 %v1861
    %2368 = vmatprep.mubr.bf16.mxu0 %v584
    %2369 = vmatmul.mubr.bf16.gmra.mrb[0].mxu0 %v583
    %v2370 = vpop.f32.mrb[0].mxu0
    %v2371 = vadd.f32 %v2328, %v2370
    %v2372 = vpop.f32.mrb[0].mxu0
    %v2373 = vadd.f32 %v2330, %v2372
    %v2374 = vpop.f32.mrb[0].mxu0
    %v2375 = vadd.f32 %v2332, %v2374
    %v2376 = vpop.f32.mrb[0].mxu0
    %v2377 = vadd.f32 %v2334, %v2376
    %2378 = vdwg.mxu0
    %2379 = vmatprep.subr.bf16.mxu0 %v1616
    %2380 = vmatpush1.bf16.msra.mxu0 %v1615
    %2381 = vmatprep.subr.bf16.mxu0 %v1624
    %2382 = vmatpush1.bf16.msra.mxu0 %v1623
    %2383 = vmatprep.subr.bf16.mxu0 %v1632
    %2384 = vmatpush1.bf16.msra.mxu0 %v1631
    %2385 = vmatprep.subr.bf16.mxu0 %v1640
    %2386 = vmatpush1.bf16.msra.mxu0 %v1639
    %2387 = vmatprep.subr.bf16.mxu0 %v1648
    %2388 = vmatpush1.bf16.msra.mxu0 %v1647
    %2389 = vmatprep.subr.bf16.mxu0 %v1656
    %2390 = vmatpush1.bf16.msra.mxu0 %v1655
    %2391 = vmatprep.subr.bf16.mxu0 %v1664
    %2392 = vmatpush1.bf16.msra.mxu0 %v1663
    %2393 = vmatprep.subr.bf16.mxu0 %v1672
    %2394 = vmatpush1.bf16.msra.mxu0 %v1671
    %2395 = vmatprep.subr.bf16.mxu0 %v1680
    %2396 = vmatpush1.bf16.msra.mxu0 %v1679
    %2397 = vmatprep.subr.bf16.mxu0 %v1688
    %2398 = vmatpush1.bf16.msra.mxu0 %v1687
    %2399 = vmatprep.subr.bf16.mxu0 %v1696
    %2400 = vmatpush1.bf16.msra.mxu0 %v1695
    %2401 = vmatprep.subr.bf16.mxu0 %v1704
    %2402 = vmatpush1.bf16.msra.mxu0 %v1703
    %2403 = vmatprep.subr.bf16.mxu0 %v1712
    %2404 = vmatpush1.bf16.msra.mxu0 %v1711
    %2405 = vmatprep.subr.bf16.mxu0 %v1720
    %2406 = vmatpush1.bf16.msra.mxu0 %v1719
    %2407 = vmatprep.subr.bf16.mxu0 %v1728
    %2408 = vmatpush1.bf16.msra.mxu0 %v1727
    %2409 = vmatprep.subr.bf16.mxu0 %v1736
    %2410 = vmatpush1.bf16.msra.mxu0 %v1735
    %2411 = vmatprep.mubr.bf16.mxu0 %v582
    %2412 = vmatmul.mubr.bf16.gmra.mrb[0].mxu0 %v581
    %v2413 = vpop.f32.mrb[0].mxu0
    %v2414 = vadd.f32 0.0, %v2413
    %v2415 = vpop.f32.mrb[0].mxu0
    %v2416 = vadd.f32 0.0, %v2415
    %v2417 = vpop.f32.mrb[0].mxu0
    %v2418 = vadd.f32 0.0, %v2417
    %v2419 = vpop.f32.mrb[0].mxu0
    %v2420 = vadd.f32 0.0, %v2419
    %2421 = vdwg.mxu0
    %2422 = vmatprep.subr.bf16.mxu0 %v1744
    %2423 = vmatpush1.bf16.msra.mxu0 %v1743
    %2424 = vmatprep.subr.bf16.mxu0 %v1752
    %2425 = vmatpush1.bf16.msra.mxu0 %v1751
    %2426 = vmatprep.subr.bf16.mxu0 %v1760
    %2427 = vmatpush1.bf16.msra.mxu0 %v1759
    %2428 = vmatprep.subr.bf16.mxu0 %v1768
    %2429 = vmatpush1.bf16.msra.mxu0 %v1767
    %2430 = vmatprep.subr.bf16.mxu0 %v1776
    %2431 = vmatpush1.bf16.msra.mxu0 %v1775
    %2432 = vmatprep.subr.bf16.mxu0 %v1784
    %2433 = vmatpush1.bf16.msra.mxu0 %v1783
    %2434 = vmatprep.subr.bf16.mxu0 %v1792
    %2435 = vmatpush1.bf16.msra.mxu0 %v1791
    %2436 = vmatprep.subr.bf16.mxu0 %v1800
    %2437 = vmatpush1.bf16.msra.mxu0 %v1799
    %2438 = vmatprep.subr.bf16.mxu0 %v1808
    %2439 = vmatpush1.bf16.msra.mxu0 %v1807
    %2440 = vmatprep.subr.bf16.mxu0 %v1816
    %2441 = vmatpush1.bf16.msra.mxu0 %v1815
    %2442 = vmatprep.subr.bf16.mxu0 %v1824
    %2443 = vmatpush1.bf16.msra.mxu0 %v1823
    %2444 = vmatprep.subr.bf16.mxu0 %v1832
    %2445 = vmatpush1.bf16.msra.mxu0 %v1831
    %2446 = vmatprep.subr.bf16.mxu0 %v1840
    %2447 = vmatpush1.bf16.msra.mxu0 %v1839
    %2448 = vmatprep.subr.bf16.mxu0 %v1848
    %2449 = vmatpush1.bf16.msra.mxu0 %v1847
    %2450 = vmatprep.subr.bf16.mxu0 %v1856
    %2451 = vmatpush1.bf16.msra.mxu0 %v1855
    %2452 = vmatprep.subr.bf16.mxu0 %v1864
    %2453 = vmatpush1.bf16.msra.mxu0 %v1863
    %2454 = vmatprep.mubr.bf16.mxu0 %v584
    %2455 = vmatmul.mubr.bf16.gmra.mrb[0].mxu0 %v583
    %v2456 = vpop.f32.mrb[0].mxu0
    %v2457 = vadd.f32 %v2414, %v2456
    %v2458 = vpop.f32.mrb[0].mxu0
    %v2459 = vadd.f32 %v2416, %v2458
    %v2460 = vpop.f32.mrb[0].mxu0
    %v2461 = vadd.f32 %v2418, %v2460
    %v2462 = vpop.f32.mrb[0].mxu0
    %v2463 = vadd.f32 %v2420, %v2462
    %2464 = vdwg.mxu0
    %v2465 = vmul.f32 %v2199, %v290
    %v2466 = vmul.f32 %v2201, %v290
    %v2467 = vmul.f32 %v2285, %v290
    %v2468 = vmul.f32 %v2287, %v290
    %v2469 = vmul.f32 %v2371, %v290
    %v2470 = vmul.f32 %v2373, %v290
    %v2471 = vmul.f32 %v2457, %v290
    %v2472 = vmul.f32 %v2459, %v290
    %v2473 = vmul.f32 %v2203, %v291
    %v2474 = vmul.f32 %v2205, %v291
    %v2475 = vmul.f32 %v2289, %v291
    %v2476 = vmul.f32 %v2291, %v291
    %v2477 = vmul.f32 %v2375, %v291
    %v2478 = vmul.f32 %v2377, %v291
    %v2479 = vmul.f32 %v2461, %v291
    %v2480 = vmul.f32 %v2463, %v291
    %v2481 = vpack.c.bf16 %v2473, %v2465
    %v2482 = vpack.c.bf16 %v2474, %v2466
    %v2483 = vpack.c.bf16 %v2475, %v2467
    %v2484 = vpack.c.bf16 %v2476, %v2468
    %v2485 = vpack.c.bf16 %v2477, %v2469
    %v2486 = vpack.c.bf16 %v2478, %v2470
    %v2487 = vpack.c.bf16 %v2479, %v2471
    %v2488 = vpack.c.bf16 %v2480, %v2472
    %2489 = vmatprep.subr.bf16.mxu0 %v2482
    %2490 = vmatpush1.bf16.msra.mxu0 %v2481
    %2491 = vmatprep.subr.bf16.mxu0 0
    %2492 = vmatpush1.bf16.msra.mxu0 0
    %2493 = vmatprep.subr.bf16.mxu0 0
    %2494 = vmatpush1.bf16.msra.mxu0 0
    %2495 = vmatprep.subr.bf16.mxu0 0
    %2496 = vmatpush1.bf16.msra.mxu0 0
    %2497 = vmatprep.subr.bf16.mxu0 0
    %2498 = vmatpush1.bf16.msra.mxu0 0
    %2499 = vmatprep.subr.bf16.mxu0 0
    %2500 = vmatpush1.bf16.msra.mxu0 0
    %2501 = vmatprep.subr.bf16.mxu0 0
    %2502 = vmatpush1.bf16.msra.mxu0 0
    %2503 = vmatprep.subr.bf16.mxu0 0
    %2504 = vmatpush1.bf16.msra.mxu0 0
    %2505 = vmatprep.subr.bf16.mxu0 0
    %2506 = vmatpush1.bf16.msra.mxu0 0
    %2507 = vmatprep.subr.bf16.mxu0 0
    %2508 = vmatpush1.bf16.msra.mxu0 0
    %2509 = vmatprep.subr.bf16.mxu0 0
    %2510 = vmatpush1.bf16.msra.mxu0 0
    %2511 = vmatprep.subr.bf16.mxu0 0
    %2512 = vmatpush1.bf16.msra.mxu0 0
    %2513 = vmatprep.subr.bf16.mxu0 0
    %2514 = vmatpush1.bf16.msra.mxu0 0
    %2515 = vmatprep.subr.bf16.mxu0 0
    %2516 = vmatpush1.bf16.msra.mxu0 0
    %2517 = vmatprep.subr.bf16.mxu0 0
    %2518 = vmatpush1.bf16.msra.mxu0 0
    %2519 = vmatprep.subr.bf16.mxu0 0
    %2520 = vmatpush1.bf16.msra.mxu0 0
    %2521 = vmatprep.mubr.bf16.mxu0 0
    %2522 = vmatmul.mubr.bf16.gmra.mrb[0].mxu0 %v447
    %v2523 = vpop.f32.mrb[0].mxu0
    %v2524 = vadd.f32 0.0, %v2523
    %v2525 = vpop.f32.mrb[0].mxu0
    %v2526 = vadd.f32 0.0, %v2525
    %v2527 = vpop.f32.mrb[0].mxu0
    %v2528 = vadd.f32 0.0, %v2527
    %v2529 = vpop.f32.mrb[0].mxu0
    %v2530 = vadd.f32 0.0, %v2529
    %2531 = vdwg.mxu0
    %2532 = vmatprep.subr.bf16.mxu0 %v2484
    %2533 = vmatpush1.bf16.msra.mxu0 %v2483
    %2534 = vmatprep.subr.bf16.mxu0 0
    %2535 = vmatpush1.bf16.msra.mxu0 0
    %2536 = vmatprep.subr.bf16.mxu0 0
    %2537 = vmatpush1.bf16.msra.mxu0 0
    %2538 = vmatprep.subr.bf16.mxu0 0
    %2539 = vmatpush1.bf16.msra.mxu0 0
    %2540 = vmatprep.subr.bf16.mxu0 0
    %2541 = vmatpush1.bf16.msra.mxu0 0
    %2542 = vmatprep.subr.bf16.mxu0 0
    %2543 = vmatpush1.bf16.msra.mxu0 0
    %2544 = vmatprep.subr.bf16.mxu0 0
    %2545 = vmatpush1.bf16.msra.mxu0 0
    %2546 = vmatprep.subr.bf16.mxu0 0
    %2547 = vmatpush1.bf16.msra.mxu0 0
    %2548 = vmatprep.subr.bf16.mxu0 0
    %2549 = vmatpush1.bf16.msra.mxu0 0
    %2550 = vmatprep.subr.bf16.mxu0 0
    %2551 = vmatpush1.bf16.msra.mxu0 0
    %2552 = vmatprep.subr.bf16.mxu0 0
    %2553 = vmatpush1.bf16.msra.mxu0 0
    %2554 = vmatprep.subr.bf16.mxu0 0
    %2555 = vmatpush1.bf16.msra.mxu0 0
    %2556 = vmatprep.subr.bf16.mxu0 0
    %2557 = vmatpush1.bf16.msra.mxu0 0
    %2558 = vmatprep.subr.bf16.mxu0 0
    %2559 = vmatpush1.bf16.msra.mxu0 0
    %2560 = vmatprep.subr.bf16.mxu0 0
    %2561 = vmatpush1.bf16.msra.mxu0 0
    %2562 = vmatprep.subr.bf16.mxu0 0
    %2563 = vmatpush1.bf16.msra.mxu0 0
    %2564 = vmatprep.mubr.bf16.mxu0 0
    %2565 = vmatmul.mubr.bf16.gmra.mrb[0].mxu0 %v447
    %v2566 = vpop.f32.mrb[0].mxu0
    %v2567 = vadd.f32 0.0, %v2566
    %v2568 = vpop.f32.mrb[0].mxu0
    %v2569 = vadd.f32 0.0, %v2568
    %v2570 = vpop.f32.mrb[0].mxu0
    %v2571 = vadd.f32 0.0, %v2570
    %v2572 = vpop.f32.mrb[0].mxu0
    %v2573 = vadd.f32 0.0, %v2572
    %2574 = vdwg.mxu0
    %2575 = vmatprep.subr.bf16.mxu0 %v2486
    %2576 = vmatpush1.bf16.msra.mxu0 %v2485
    %2577 = vmatprep.subr.bf16.mxu0 0
    %2578 = vmatpush1.bf16.msra.mxu0 0
    %2579 = vmatprep.subr.bf16.mxu0 0
    %2580 = vmatpush1.bf16.msra.mxu0 0
    %2581 = vmatprep.subr.bf16.mxu0 0
    %2582 = vmatpush1.bf16.msra.mxu0 0
    %2583 = vmatprep.subr.bf16.mxu0 0
    %2584 = vmatpush1.bf16.msra.mxu0 0
    %2585 = vmatprep.subr.bf16.mxu0 0
    %2586 = vmatpush1.bf16.msra.mxu0 0
    %2587 = vmatprep.subr.bf16.mxu0 0
    %2588 = vmatpush1.bf16.msra.mxu0 0
    %2589 = vmatprep.subr.bf16.mxu0 0
    %2590 = vmatpush1.bf16.msra.mxu0 0
    %2591 = vmatprep.subr.bf16.mxu0 0
    %2592 = vmatpush1.bf16.msra.mxu0 0
    %2593 = vmatprep.subr.bf16.mxu0 0
    %2594 = vmatpush1.bf16.msra.mxu0 0
    %2595 = vmatprep.subr.bf16.mxu0 0
    %2596 = vmatpush1.bf16.msra.mxu0 0
    %2597 = vmatprep.subr.bf16.mxu0 0
    %2598 = vmatpush1.bf16.msra.mxu0 0
    %2599 = vmatprep.subr.bf16.mxu0 0
    %2600 = vmatpush1.bf16.msra.mxu0 0
    %2601 = vmatprep.subr.bf16.mxu0 0
    %2602 = vmatpush1.bf16.msra.mxu0 0
    %2603 = vmatprep.subr.bf16.mxu0 0
    %2604 = vmatpush1.bf16.msra.mxu0 0
    %2605 = vmatprep.subr.bf16.mxu0 0
    %2606 = vmatpush1.bf16.msra.mxu0 0
    %2607 = vmatprep.mubr.bf16.mxu0 0
    %2608 = vmatmul.mubr.bf16.gmra.mrb[0].mxu0 %v447
    %v2609 = vpop.f32.mrb[0].mxu0
    %v2610 = vadd.f32 0.0, %v2609
    %v2611 = vpop.f32.mrb[0].mxu0
    %v2612 = vadd.f32 0.0, %v2611
    %v2613 = vpop.f32.mrb[0].mxu0
    %v2614 = vadd.f32 0.0, %v2613
    %v2615 = vpop.f32.mrb[0].mxu0
    %v2616 = vadd.f32 0.0, %v2615
    %2617 = vdwg.mxu0
    %2618 = vmatprep.subr.bf16.mxu0 %v2488
    %2619 = vmatpush1.bf16.msra.mxu0 %v2487
    %2620 = vmatprep.subr.bf16.mxu0 0
    %2621 = vmatpush1.bf16.msra.mxu0 0
    %2622 = vmatprep.subr.bf16.mxu0 0
    %2623 = vmatpush1.bf16.msra.mxu0 0
    %2624 = vmatprep.subr.bf16.mxu0 0
    %2625 = vmatpush1.bf16.msra.mxu0 0
    %2626 = vmatprep.subr.bf16.mxu0 0
    %2627 = vmatpush1.bf16.msra.mxu0 0
    %2628 = vmatprep.subr.bf16.mxu0 0
    %2629 = vmatpush1.bf16.msra.mxu0 0
    %2630 = vmatprep.subr.bf16.mxu0 0
    %2631 = vmatpush1.bf16.msra.mxu0 0
    %2632 = vmatprep.subr.bf16.mxu0 0
    %2633 = vmatpush1.bf16.msra.mxu0 0
    %2634 = vmatprep.subr.bf16.mxu0 0
    %2635 = vmatpush1.bf16.msra.mxu0 0
    %2636 = vmatprep.subr.bf16.mxu0 0
    %2637 = vmatpush1.bf16.msra.mxu0 0
    %2638 = vmatprep.subr.bf16.mxu0 0
    %2639 = vmatpush1.bf16.msra.mxu0 0
    %2640 = vmatprep.subr.bf16.mxu0 0
    %2641 = vmatpush1.bf16.msra.mxu0 0
    %2642 = vmatprep.subr.bf16.mxu0 0
    %2643 = vmatpush1.bf16.msra.mxu0 0
    %2644 = vmatprep.subr.bf16.mxu0 0
    %2645 = vmatpush1.bf16.msra.mxu0 0
    %2646 = vmatprep.subr.bf16.mxu0 0
    %2647 = vmatpush1.bf16.msra.mxu0 0
    %2648 = vmatprep.subr.bf16.mxu0 0
    %2649 = vmatpush1.bf16.msra.mxu0 0
    %2650 = vmatprep.mubr.bf16.mxu0 0
    %2651 = vmatmul.mubr.bf16.gmra.mrb[0].mxu0 %v447
    %v2652 = vpop.f32.mrb[0].mxu0
    %v2653 = vadd.f32 0.0, %v2652
    %v2654 = vpop.f32.mrb[0].mxu0
    %v2655 = vadd.f32 0.0, %v2654
    %v2656 = vpop.f32.mrb[0].mxu0
    %v2657 = vadd.f32 0.0, %v2656
    %v2658 = vpop.f32.mrb[0].mxu0
    %v2659 = vadd.f32 0.0, %v2658
    %2660 = vdwg.mxu0
    %v2661 = vmul.f32 %v2524, %v290
    %v2662 = vmul.f32 %v2526, %v290
    %v2663 = vmul.f32 %v2567, %v290
    %v2664 = vmul.f32 %v2569, %v290
    %v2665 = vmul.f32 %v2610, %v290
    %v2666 = vmul.f32 %v2612, %v290
    %v2667 = vmul.f32 %v2653, %v290
    %v2668 = vmul.f32 %v2655, %v290
    %v2669 = vmul.f32 %v2528, %v291
    %v2670 = vmul.f32 %v2530, %v291
    %v2671 = vmul.f32 %v2571, %v291
    %v2672 = vmul.f32 %v2573, %v291
    %v2673 = vmul.f32 %v2614, %v291
    %v2674 = vmul.f32 %v2616, %v291
    %v2675 = vmul.f32 %v2657, %v291
    %v2676 = vmul.f32 %v2659, %v291
    %v2677 = vld [vmem:[#allocation12] sm:$0xff]
    %v2679 = vlaneseq
    %v2680 = vshrl.u32 %v2679, 7
    %v2681 = vsub.s32 0, %v2680
    %v2682 = vrot.slane %v2677, %v2681
    %v2683 = vlaneseq
    %v2684 = vshrl.u32 %v2683, 7
    %v2685 = vsub.s32 1, %v2684
    %v2686 = vrot.slane %v2677, %v2685
    %v2687 = vlaneseq
    %v2688 = vshrl.u32 %v2687, 7
    %v2689 = vsub.s32 2, %v2688
    %v2690 = vrot.slane %v2677, %v2689
    %v2691 = vlaneseq
    %v2692 = vshrl.u32 %v2691, 7
    %v2693 = vsub.s32 3, %v2692
    %v2694 = vrot.slane %v2677, %v2693
    %v2695 = vlaneseq
    %v2696 = vshrl.u32 %v2695, 7
    %v2697 = vsub.s32 4, %v2696
    %v2698 = vrot.slane %v2677, %v2697
    %v2699 = vlaneseq
    %v2700 = vshrl.u32 %v2699, 7
    %v2701 = vsub.s32 5, %v2700
    %v2702 = vrot.slane %v2677, %v2701
    %v2703 = vlaneseq
    %v2704 = vshrl.u32 %v2703, 7
    %v2705 = vsub.s32 6, %v2704
    %v2706 = vrot.slane %v2677, %v2705
    %v2707 = vlaneseq
    %v2708 = vshrl.u32 %v2707, 7
    %v2709 = vsub.s32 7, %v2708
    %v2710 = vrot.slane %v2677, %v2709
    %v2719 = vadd.f32 %v2661, %v2682
    %v2720 = vadd.f32 %v2662, %v2686
    %v2721 = vadd.f32 %v2663, %v2690
    %v2722 = vadd.f32 %v2664, %v2694
    %v2723 = vadd.f32 %v2665, %v2698
    %v2724 = vadd.f32 %v2666, %v2702
    %v2725 = vadd.f32 %v2667, %v2706
    %v2726 = vadd.f32 %v2668, %v2710
    %v2727 = vadd.f32 %v2669, %v2682
    %v2728 = vadd.f32 %v2670, %v2686
    %v2729 = vadd.f32 %v2671, %v2690
    %v2730 = vadd.f32 %v2672, %v2694
    %v2731 = vadd.f32 %v2673, %v2698
    %v2732 = vadd.f32 %v2674, %v2702
    %v2733 = vadd.f32 %v2675, %v2706
    %v2734 = vadd.f32 %v2676, %v2710
    %v2735 = vmax.f32 %v2719, 0.0
    %v2736 = vmax.f32 %v2720, 0.0
    %v2737 = vmax.f32 %v2721, 0.0
    %v2738 = vmax.f32 %v2722, 0.0
    %v2739 = vmax.f32 %v2723, 0.0
    %v2740 = vmax.f32 %v2724, 0.0
    %v2741 = vmax.f32 %v2725, 0.0
    %v2742 = vmax.f32 %v2726, 0.0
    %v2743 = vmax.f32 %v2727, 0.0
    %v2744 = vmax.f32 %v2728, 0.0
    %v2745 = vmax.f32 %v2729, 0.0
    %v2746 = vmax.f32 %v2730, 0.0
    %v2747 = vmax.f32 %v2731, 0.0
    %v2748 = vmax.f32 %v2732, 0.0
    %v2749 = vmax.f32 %v2733, 0.0
    %v2750 = vmax.f32 %v2734, 0.0
    %v2751 = vpack.c.bf16 %v2743, %v2735
    %v2752 = vpack.c.bf16 %v2744, %v2736
    %v2753 = vpack.c.bf16 %v2745, %v2737
    %v2754 = vpack.c.bf16 %v2746, %v2738
    %v2755 = vpack.c.bf16 %v2747, %v2739
    %v2756 = vpack.c.bf16 %v2748, %v2740
    %v2757 = vpack.c.bf16 %v2749, %v2741
    %v2758 = vpack.c.bf16 %v2750, %v2742
    %v2759 = vld [vmem:[#allocation14] sm:$0xff]
    %v2760 = vld [vmem:[#allocation14 + $0x8] sm:$0xff]
    %v2761 = vld [vmem:[#allocation14 + $0x10] sm:$0xff]
    %v2762 = vld [vmem:[#allocation14 + $0x18] sm:$0xff]
    %v2763 = vld [vmem:[#allocation14 + $0x20] sm:$0xff]
    %v2764 = vld [vmem:[#allocation14 + $0x28] sm:$0xff]
    %v2765 = vld [vmem:[#allocation14 + $0x30] sm:$0xff]
    %v2766 = vld [vmem:[#allocation14 + $0x38] sm:$0xff]
    %v2767 = vld [vmem:[#allocation14 + $0x40] sm:$0xff]
    %v2768 = vld [vmem:[#allocation14 + $0x48] sm:$0xff]
    %v2769 = vld [vmem:[#allocation14 + $0x50] sm:$0xff]
    %v2770 = vld [vmem:[#allocation14 + $0x58] sm:$0xff]
    %v2771 = vld [vmem:[#allocation14 + $0x60] sm:$0xff]
    %v2772 = vld [vmem:[#allocation14 + $0x68] sm:$0xff]
    %v2773 = vld [vmem:[#allocation14 + $0x70] sm:$0xff]
    %v2774 = vld [vmem:[#allocation14 + $0x78] sm:$0xff]
    %v2775 = vld [vmem:[#allocation14 + $0x80] sm:$0xff]
    %v2776 = vld [vmem:[#allocation14 + $0x88] sm:$0xff]
    %v2777 = vld [vmem:[#allocation14 + $0x90] sm:$0xff]
    %v2778 = vld [vmem:[#allocation14 + $0x98] sm:$0xff]
    %v2779 = vld [vmem:[#allocation14 + $0xa0] sm:$0xff]
    %v2780 = vld [vmem:[#allocation14 + $0xa8] sm:$0xff]
    %v2781 = vld [vmem:[#allocation14 + $0xb0] sm:$0xff]
    %v2782 = vld [vmem:[#allocation14 + $0xb8] sm:$0xff]
    %v2783 = vld [vmem:[#allocation14 + $0xc0] sm:$0xff]
    %v2784 = vld [vmem:[#allocation14 + $0xc8] sm:$0xff]
    %v2785 = vld [vmem:[#allocation14 + $0xd0] sm:$0xff]
    %v2786 = vld [vmem:[#allocation14 + $0xd8] sm:$0xff]
    %v2787 = vld [vmem:[#allocation14 + $0xe0] sm:$0xff]
    %v2788 = vld [vmem:[#allocation14 + $0xe8] sm:$0xff]
    %v2789 = vld [vmem:[#allocation14 + $0xf0] sm:$0xff]
    %v2790 = vld [vmem:[#allocation14 + $0xf8] sm:$0xff]
    %v2791 = vld [vmem:[#allocation14 + $0x100] sm:$0xff]
    %v2792 = vld [vmem:[#allocation14 + $0x108] sm:$0xff]
    %v2793 = vld [vmem:[#allocation14 + $0x110] sm:$0xff]
    %v2794 = vld [vmem:[#allocation14 + $0x118] sm:$0xff]
    %v2795 = vld [vmem:[#allocation14 + $0x120] sm:$0xff]
    %v2796 = vld [vmem:[#allocation14 + $0x128] sm:$0xff]
    %v2797 = vld [vmem:[#allocation14 + $0x130] sm:$0xff]
    %v2798 = vld [vmem:[#allocation14 + $0x138] sm:$0xff]
    %v2799 = vld [vmem:[#allocation14 + $0x140] sm:$0xff]
    %v2800 = vld [vmem:[#allocation14 + $0x148] sm:$0xff]
    %v2801 = vld [vmem:[#allocation14 + $0x150] sm:$0xff]
    %v2802 = vld [vmem:[#allocation14 + $0x158] sm:$0xff]
    %v2803 = vld [vmem:[#allocation14 + $0x160] sm:$0xff]
    %v2804 = vld [vmem:[#allocation14 + $0x168] sm:$0xff]
    %v2805 = vld [vmem:[#allocation14 + $0x170] sm:$0xff]
    %v2806 = vld [vmem:[#allocation14 + $0x178] sm:$0xff]
    %v2807 = vld [vmem:[#allocation14 + $0x180] sm:$0xff]
    %v2808 = vld [vmem:[#allocation14 + $0x188] sm:$0xff]
    %v2809 = vld [vmem:[#allocation14 + $0x190] sm:$0xff]
    %v2810 = vld [vmem:[#allocation14 + $0x198] sm:$0xff]
    %v2811 = vld [vmem:[#allocation14 + $0x1a0] sm:$0xff]
    %v2812 = vld [vmem:[#allocation14 + $0x1a8] sm:$0xff]
    %v2813 = vld [vmem:[#allocation14 + $0x1b0] sm:$0xff]
    %v2814 = vld [vmem:[#allocation14 + $0x1b8] sm:$0xff]
    %v2815 = vld [vmem:[#allocation14 + $0x1c0] sm:$0xff]
    %v2816 = vld [vmem:[#allocation14 + $0x1c8] sm:$0xff]
    %v2817 = vld [vmem:[#allocation14 + $0x1d0] sm:$0xff]
    %v2818 = vld [vmem:[#allocation14 + $0x1d8] sm:$0xff]
    %v2819 = vld [vmem:[#allocation14 + $0x1e0] sm:$0xff]
    %v2820 = vld [vmem:[#allocation14 + $0x1e8] sm:$0xff]
    %v2821 = vld [vmem:[#allocation14 + $0x1f0] sm:$0xff]
    %v2822 = vld [vmem:[#allocation14 + $0x1f8] sm:$0xff]
    %v2823 = vld [vmem:[#allocation14 + $0x200] sm:$0xff]
    %v2824 = vld [vmem:[#allocation14 + $0x208] sm:$0xff]
    %v2825 = vld [vmem:[#allocation14 + $0x210] sm:$0xff]
    %v2826 = vld [vmem:[#allocation14 + $0x218] sm:$0xff]
    %v2827 = vld [vmem:[#allocation14 + $0x220] sm:$0xff]
    %v2828 = vld [vmem:[#allocation14 + $0x228] sm:$0xff]
    %v2829 = vld [vmem:[#allocation14 + $0x230] sm:$0xff]
    %v2830 = vld [vmem:[#allocation14 + $0x238] sm:$0xff]
    %v2831 = vld [vmem:[#allocation14 + $0x240] sm:$0xff]
    %v2832 = vld [vmem:[#allocation14 + $0x248] sm:$0xff]
    %v2833 = vld [vmem:[#allocation14 + $0x250] sm:$0xff]
    %v2834 = vld [vmem:[#allocation14 + $0x258] sm:$0xff]
    %v2835 = vld [vmem:[#allocation14 + $0x260] sm:$0xff]
    %v2836 = vld [vmem:[#allocation14 + $0x268] sm:$0xff]
    %v2837 = vld [vmem:[#allocation14 + $0x270] sm:$0xff]
    %v2838 = vld [vmem:[#allocation14 + $0x278] sm:$0xff]
    %v2839 = vld [vmem:[#allocation14 + $0x280] sm:$0xff]
    %v2840 = vld [vmem:[#allocation14 + $0x288] sm:$0xff]
    %v2841 = vld [vmem:[#allocation14 + $0x290] sm:$0xff]
    %v2842 = vld [vmem:[#allocation14 + $0x298] sm:$0xff]
    %v2843 = vld [vmem:[#allocation14 + $0x2a0] sm:$0xff]
    %v2844 = vld [vmem:[#allocation14 + $0x2a8] sm:$0xff]
    %v2845 = vld [vmem:[#allocation14 + $0x2b0] sm:$0xff]
    %v2846 = vld [vmem:[#allocation14 + $0x2b8] sm:$0xff]
    %v2847 = vld [vmem:[#allocation14 + $0x2c0] sm:$0xff]
    %v2848 = vld [vmem:[#allocation14 + $0x2c8] sm:$0xff]
    %v2849 = vld [vmem:[#allocation14 + $0x2d0] sm:$0xff]
    %v2850 = vld [vmem:[#allocation14 + $0x2d8] sm:$0xff]
    %v2851 = vld [vmem:[#allocation14 + $0x2e0] sm:$0xff]
    %v2852 = vld [vmem:[#allocation14 + $0x2e8] sm:$0xff]
    %v2853 = vld [vmem:[#allocation14 + $0x2f0] sm:$0xff]
    %v2854 = vld [vmem:[#allocation14 + $0x2f8] sm:$0xff]
    %v2855 = vld [vmem:[#allocation14 + $0x300] sm:$0xff]
    %v2856 = vld [vmem:[#allocation14 + $0x308] sm:$0xff]
    %v2857 = vld [vmem:[#allocation14 + $0x310] sm:$0xff]
    %v2858 = vld [vmem:[#allocation14 + $0x318] sm:$0xff]
    %v2859 = vld [vmem:[#allocation14 + $0x320] sm:$0xff]
    %v2860 = vld [vmem:[#allocation14 + $0x328] sm:$0xff]
    %v2861 = vld [vmem:[#allocation14 + $0x330] sm:$0xff]
    %v2862 = vld [vmem:[#allocation14 + $0x338] sm:$0xff]
    %v2863 = vld [vmem:[#allocation14 + $0x340] sm:$0xff]
    %v2864 = vld [vmem:[#allocation14 + $0x348] sm:$0xff]
    %v2865 = vld [vmem:[#allocation14 + $0x350] sm:$0xff]
    %v2866 = vld [vmem:[#allocation14 + $0x358] sm:$0xff]
    %v2867 = vld [vmem:[#allocation14 + $0x360] sm:$0xff]
    %v2868 = vld [vmem:[#allocation14 + $0x368] sm:$0xff]
    %v2869 = vld [vmem:[#allocation14 + $0x370] sm:$0xff]
    %v2870 = vld [vmem:[#allocation14 + $0x378] sm:$0xff]
    %v2871 = vld [vmem:[#allocation14 + $0x380] sm:$0xff]
    %v2872 = vld [vmem:[#allocation14 + $0x388] sm:$0xff]
    %v2873 = vld [vmem:[#allocation14 + $0x390] sm:$0xff]
    %v2874 = vld [vmem:[#allocation14 + $0x398] sm:$0xff]
    %v2875 = vld [vmem:[#allocation14 + $0x3a0] sm:$0xff]
    %v2876 = vld [vmem:[#allocation14 + $0x3a8] sm:$0xff]
    %v2877 = vld [vmem:[#allocation14 + $0x3b0] sm:$0xff]
    %v2878 = vld [vmem:[#allocation14 + $0x3b8] sm:$0xff]
    %v2879 = vld [vmem:[#allocation14 + $0x3c0] sm:$0xff]
    %v2880 = vld [vmem:[#allocation14 + $0x3c8] sm:$0xff]
    %v2881 = vld [vmem:[#allocation14 + $0x3d0] sm:$0xff]
    %v2882 = vld [vmem:[#allocation14 + $0x3d8] sm:$0xff]
    %v2883 = vld [vmem:[#allocation14 + $0x3e0] sm:$0xff]
    %v2884 = vld [vmem:[#allocation14 + $0x3e8] sm:$0xff]
    %v2885 = vld [vmem:[#allocation14 + $0x3f0] sm:$0xff]
    %v2886 = vld [vmem:[#allocation14 + $0x3f8] sm:$0xff]
    %v2887 = vld [vmem:[#allocation14 + $0x400] sm:$0xff]
    %v2888 = vld [vmem:[#allocation14 + $0x408] sm:$0xff]
    %v2889 = vld [vmem:[#allocation14 + $0x410] sm:$0xff]
    %v2890 = vld [vmem:[#allocation14 + $0x418] sm:$0xff]
    %v2891 = vld [vmem:[#allocation14 + $0x420] sm:$0xff]
    %v2892 = vld [vmem:[#allocation14 + $0x428] sm:$0xff]
    %v2893 = vld [vmem:[#allocation14 + $0x430] sm:$0xff]
    %v2894 = vld [vmem:[#allocation14 + $0x438] sm:$0xff]
    %v2895 = vld [vmem:[#allocation14 + $0x440] sm:$0xff]
    %v2896 = vld [vmem:[#allocation14 + $0x448] sm:$0xff]
    %v2897 = vld [vmem:[#allocation14 + $0x450] sm:$0xff]
    %v2898 = vld [vmem:[#allocation14 + $0x458] sm:$0xff]
    %v2899 = vld [vmem:[#allocation14 + $0x460] sm:$0xff]
    %v2900 = vld [vmem:[#allocation14 + $0x468] sm:$0xff]
    %v2901 = vld [vmem:[#allocation14 + $0x470] sm:$0xff]
    %v2902 = vld [vmem:[#allocation14 + $0x478] sm:$0xff]
    %v2903 = vld [vmem:[#allocation14 + $0x480] sm:$0xff]
    %v2904 = vld [vmem:[#allocation14 + $0x488] sm:$0xff]
    %v2905 = vld [vmem:[#allocation14 + $0x490] sm:$0xff]
    %v2906 = vld [vmem:[#allocation14 + $0x498] sm:$0xff]
    %v2907 = vld [vmem:[#allocation14 + $0x4a0] sm:$0xff]
    %v2908 = vld [vmem:[#allocation14 + $0x4a8] sm:$0xff]
    %v2909 = vld [vmem:[#allocation14 + $0x4b0] sm:$0xff]
    %v2910 = vld [vmem:[#allocation14 + $0x4b8] sm:$0xff]
    %v2911 = vld [vmem:[#allocation14 + $0x4c0] sm:$0xff]
    %v2912 = vld [vmem:[#allocation14 + $0x4c8] sm:$0xff]
    %v2913 = vld [vmem:[#allocation14 + $0x4d0] sm:$0xff]
    %v2914 = vld [vmem:[#allocation14 + $0x4d8] sm:$0xff]
    %v2915 = vld [vmem:[#allocation14 + $0x4e0] sm:$0xff]
    %v2916 = vld [vmem:[#allocation14 + $0x4e8] sm:$0xff]
    %v2917 = vld [vmem:[#allocation14 + $0x4f0] sm:$0xff]
    %v2918 = vld [vmem:[#allocation14 + $0x4f8] sm:$0xff]
    %v2919 = vld [vmem:[#allocation14 + $0x500] sm:$0xff]
    %v2920 = vld [vmem:[#allocation14 + $0x508] sm:$0xff]
    %v2921 = vld [vmem:[#allocation14 + $0x510] sm:$0xff]
    %v2922 = vld [vmem:[#allocation14 + $0x518] sm:$0xff]
    %v2923 = vld [vmem:[#allocation14 + $0x520] sm:$0xff]
    %v2924 = vld [vmem:[#allocation14 + $0x528] sm:$0xff]
    %v2925 = vld [vmem:[#allocation14 + $0x530] sm:$0xff]
    %v2926 = vld [vmem:[#allocation14 + $0x538] sm:$0xff]
    %v2927 = vld [vmem:[#allocation14 + $0x540] sm:$0xff]
    %v2928 = vld [vmem:[#allocation14 + $0x548] sm:$0xff]
    %v2929 = vld [vmem:[#allocation14 + $0x550] sm:$0xff]
    %v2930 = vld [vmem:[#allocation14 + $0x558] sm:$0xff]
    %v2931 = vld [vmem:[#allocation14 + $0x560] sm:$0xff]
    %v2932 = vld [vmem:[#allocation14 + $0x568] sm:$0xff]
    %v2933 = vld [vmem:[#allocation14 + $0x570] sm:$0xff]
    %v2934 = vld [vmem:[#allocation14 + $0x578] sm:$0xff]
    %v2935 = vld [vmem:[#allocation14 + $0x580] sm:$0xff]
    %v2936 = vld [vmem:[#allocation14 + $0x588] sm:$0xff]
    %v2937 = vld [vmem:[#allocation14 + $0x590] sm:$0xff]
    %v2938 = vld [vmem:[#allocation14 + $0x598] sm:$0xff]
    %v2939 = vld [vmem:[#allocation14 + $0x5a0] sm:$0xff]
    %v2940 = vld [vmem:[#allocation14 + $0x5a8] sm:$0xff]
    %v2941 = vld [vmem:[#allocation14 + $0x5b0] sm:$0xff]
    %v2942 = vld [vmem:[#allocation14 + $0x5b8] sm:$0xff]
    %v2943 = vld [vmem:[#allocation14 + $0x5c0] sm:$0xff]
    %v2944 = vld [vmem:[#allocation14 + $0x5c8] sm:$0xff]
    %v2945 = vld [vmem:[#allocation14 + $0x5d0] sm:$0xff]
    %v2946 = vld [vmem:[#allocation14 + $0x5d8] sm:$0xff]
    %v2947 = vld [vmem:[#allocation14 + $0x5e0] sm:$0xff]
    %v2948 = vld [vmem:[#allocation14 + $0x5e8] sm:$0xff]
    %v2949 = vld [vmem:[#allocation14 + $0x5f0] sm:$0xff]
    %v2950 = vld [vmem:[#allocation14 + $0x5f8] sm:$0xff]
    %v2951 = vld [vmem:[#allocation14 + $0x600] sm:$0xff]
    %v2952 = vld [vmem:[#allocation14 + $0x608] sm:$0xff]
    %v2953 = vld [vmem:[#allocation14 + $0x610] sm:$0xff]
    %v2954 = vld [vmem:[#allocation14 + $0x618] sm:$0xff]
    %v2955 = vld [vmem:[#allocation14 + $0x620] sm:$0xff]
    %v2956 = vld [vmem:[#allocation14 + $0x628] sm:$0xff]
    %v2957 = vld [vmem:[#allocation14 + $0x630] sm:$0xff]
    %v2958 = vld [vmem:[#allocation14 + $0x638] sm:$0xff]
    %v2959 = vld [vmem:[#allocation14 + $0x640] sm:$0xff]
    %v2960 = vld [vmem:[#allocation14 + $0x648] sm:$0xff]
    %v2961 = vld [vmem:[#allocation14 + $0x650] sm:$0xff]
    %v2962 = vld [vmem:[#allocation14 + $0x658] sm:$0xff]
    %v2963 = vld [vmem:[#allocation14 + $0x660] sm:$0xff]
    %v2964 = vld [vmem:[#allocation14 + $0x668] sm:$0xff]
    %v2965 = vld [vmem:[#allocation14 + $0x670] sm:$0xff]
    %v2966 = vld [vmem:[#allocation14 + $0x678] sm:$0xff]
    %v2967 = vld [vmem:[#allocation14 + $0x680] sm:$0xff]
    %v2968 = vld [vmem:[#allocation14 + $0x688] sm:$0xff]
    %v2969 = vld [vmem:[#allocation14 + $0x690] sm:$0xff]
    %v2970 = vld [vmem:[#allocation14 + $0x698] sm:$0xff]
    %v2971 = vld [vmem:[#allocation14 + $0x6a0] sm:$0xff]
    %v2972 = vld [vmem:[#allocation14 + $0x6a8] sm:$0xff]
    %v2973 = vld [vmem:[#allocation14 + $0x6b0] sm:$0xff]
    %v2974 = vld [vmem:[#allocation14 + $0x6b8] sm:$0xff]
    %v2975 = vld [vmem:[#allocation14 + $0x6c0] sm:$0xff]
    %v2976 = vld [vmem:[#allocation14 + $0x6c8] sm:$0xff]
    %v2977 = vld [vmem:[#allocation14 + $0x6d0] sm:$0xff]
    %v2978 = vld [vmem:[#allocation14 + $0x6d8] sm:$0xff]
    %v2979 = vld [vmem:[#allocation14 + $0x6e0] sm:$0xff]
    %v2980 = vld [vmem:[#allocation14 + $0x6e8] sm:$0xff]
    %v2981 = vld [vmem:[#allocation14 + $0x6f0] sm:$0xff]
    %v2982 = vld [vmem:[#allocation14 + $0x6f8] sm:$0xff]
    %v2983 = vld [vmem:[#allocation14 + $0x700] sm:$0xff]
    %v2984 = vld [vmem:[#allocation14 + $0x708] sm:$0xff]
    %v2985 = vld [vmem:[#allocation14 + $0x710] sm:$0xff]
    %v2986 = vld [vmem:[#allocation14 + $0x718] sm:$0xff]
    %v2987 = vld [vmem:[#allocation14 + $0x720] sm:$0xff]
    %v2988 = vld [vmem:[#allocation14 + $0x728] sm:$0xff]
    %v2989 = vld [vmem:[#allocation14 + $0x730] sm:$0xff]
    %v2990 = vld [vmem:[#allocation14 + $0x738] sm:$0xff]
    %v2991 = vld [vmem:[#allocation14 + $0x740] sm:$0xff]
    %v2992 = vld [vmem:[#allocation14 + $0x748] sm:$0xff]
    %v2993 = vld [vmem:[#allocation14 + $0x750] sm:$0xff]
    %v2994 = vld [vmem:[#allocation14 + $0x758] sm:$0xff]
    %v2995 = vld [vmem:[#allocation14 + $0x760] sm:$0xff]
    %v2996 = vld [vmem:[#allocation14 + $0x768] sm:$0xff]
    %v2997 = vld [vmem:[#allocation14 + $0x770] sm:$0xff]
    %v2998 = vld [vmem:[#allocation14 + $0x778] sm:$0xff]
    %v2999 = vld [vmem:[#allocation14 + $0x780] sm:$0xff]
    %v3000 = vld [vmem:[#allocation14 + $0x788] sm:$0xff]
    %v3001 = vld [vmem:[#allocation14 + $0x790] sm:$0xff]
    %v3002 = vld [vmem:[#allocation14 + $0x798] sm:$0xff]
    %v3003 = vld [vmem:[#allocation14 + $0x7a0] sm:$0xff]
    %v3004 = vld [vmem:[#allocation14 + $0x7a8] sm:$0xff]
    %v3005 = vld [vmem:[#allocation14 + $0x7b0] sm:$0xff]
    %v3006 = vld [vmem:[#allocation14 + $0x7b8] sm:$0xff]
    %v3007 = vld [vmem:[#allocation14 + $0x7c0] sm:$0xff]
    %v3008 = vld [vmem:[#allocation14 + $0x7c8] sm:$0xff]
    %v3009 = vld [vmem:[#allocation14 + $0x7d0] sm:$0xff]
    %v3010 = vld [vmem:[#allocation14 + $0x7d8] sm:$0xff]
    %v3011 = vld [vmem:[#allocation14 + $0x7e0] sm:$0xff]
    %v3012 = vld [vmem:[#allocation14 + $0x7e8] sm:$0xff]
    %v3013 = vld [vmem:[#allocation14 + $0x7f0] sm:$0xff]
    %v3014 = vld [vmem:[#allocation14 + $0x7f8] sm:$0xff]
    %v3015 = vld [vmem:[#allocation14 + $0x800] sm:$0xff]
    %v3016 = vld [vmem:[#allocation14 + $0x808] sm:$0xff]
    %v3017 = vld [vmem:[#allocation14 + $0x810] sm:$0xff]
    %v3018 = vld [vmem:[#allocation14 + $0x818] sm:$0xff]
    %v3019 = vld [vmem:[#allocation14 + $0x820] sm:$0xff]
    %v3020 = vld [vmem:[#allocation14 + $0x828] sm:$0xff]
    %v3021 = vld [vmem:[#allocation14 + $0x830] sm:$0xff]
    %v3022 = vld [vmem:[#allocation14 + $0x838] sm:$0xff]
    %v3023 = vld [vmem:[#allocation14 + $0x840] sm:$0xff]
    %v3024 = vld [vmem:[#allocation14 + $0x848] sm:$0xff]
    %v3025 = vld [vmem:[#allocation14 + $0x850] sm:$0xff]
    %v3026 = vld [vmem:[#allocation14 + $0x858] sm:$0xff]
    %v3027 = vld [vmem:[#allocation14 + $0x860] sm:$0xff]
    %v3028 = vld [vmem:[#allocation14 + $0x868] sm:$0xff]
    %v3029 = vld [vmem:[#allocation14 + $0x870] sm:$0xff]
    %v3030 = vld [vmem:[#allocation14 + $0x878] sm:$0xff]
    %v3031 = vld [vmem:[#allocation14 + $0x880] sm:$0xff]
    %v3032 = vld [vmem:[#allocation14 + $0x888] sm:$0xff]
    %v3033 = vld [vmem:[#allocation14 + $0x890] sm:$0xff]
    %v3034 = vld [vmem:[#allocation14 + $0x898] sm:$0xff]
    %v3035 = vld [vmem:[#allocation14 + $0x8a0] sm:$0xff]
    %v3036 = vld [vmem:[#allocation14 + $0x8a8] sm:$0xff]
    %v3037 = vld [vmem:[#allocation14 + $0x8b0] sm:$0xff]
    %v3038 = vld [vmem:[#allocation14 + $0x8b8] sm:$0xff]
    %v3039 = vld [vmem:[#allocation14 + $0x8c0] sm:$0xff]
    %v3040 = vld [vmem:[#allocation14 + $0x8c8] sm:$0xff]
    %v3041 = vld [vmem:[#allocation14 + $0x8d0] sm:$0xff]
    %v3042 = vld [vmem:[#allocation14 + $0x8d8] sm:$0xff]
    %v3043 = vld [vmem:[#allocation14 + $0x8e0] sm:$0xff]
    %v3044 = vld [vmem:[#allocation14 + $0x8e8] sm:$0xff]
    %v3045 = vld [vmem:[#allocation14 + $0x8f0] sm:$0xff]
    %v3046 = vld [vmem:[#allocation14 + $0x8f8] sm:$0xff]
    %v3047 = vld [vmem:[#allocation14 + $0x900] sm:$0xff]
    %v3048 = vld [vmem:[#allocation14 + $0x908] sm:$0xff]
    %v3049 = vld [vmem:[#allocation14 + $0x910] sm:$0xff]
    %v3050 = vld [vmem:[#allocation14 + $0x918] sm:$0xff]
    %v3051 = vld [vmem:[#allocation14 + $0x920] sm:$0xff]
    %v3052 = vld [vmem:[#allocation14 + $0x928] sm:$0xff]
    %v3053 = vld [vmem:[#allocation14 + $0x930] sm:$0xff]
    %v3054 = vld [vmem:[#allocation14 + $0x938] sm:$0xff]
    %v3055 = vld [vmem:[#allocation14 + $0x940] sm:$0xff]
    %v3056 = vld [vmem:[#allocation14 + $0x948] sm:$0xff]
    %v3057 = vld [vmem:[#allocation14 + $0x950] sm:$0xff]
    %v3058 = vld [vmem:[#allocation14 + $0x958] sm:$0xff]
    %v3059 = vld [vmem:[#allocation14 + $0x960] sm:$0xff]
    %v3060 = vld [vmem:[#allocation14 + $0x968] sm:$0xff]
    %v3061 = vld [vmem:[#allocation14 + $0x970] sm:$0xff]
    %v3062 = vld [vmem:[#allocation14 + $0x978] sm:$0xff]
    %v3063 = vld [vmem:[#allocation14 + $0x980] sm:$0xff]
    %v3064 = vld [vmem:[#allocation14 + $0x988] sm:$0xff]
    %v3065 = vld [vmem:[#allocation14 + $0x990] sm:$0xff]
    %v3066 = vld [vmem:[#allocation14 + $0x998] sm:$0xff]
    %v3067 = vld [vmem:[#allocation14 + $0x9a0] sm:$0xff]
    %v3068 = vld [vmem:[#allocation14 + $0x9a8] sm:$0xff]
    %v3069 = vld [vmem:[#allocation14 + $0x9b0] sm:$0xff]
    %v3070 = vld [vmem:[#allocation14 + $0x9b8] sm:$0xff]
    %v3071 = vld [vmem:[#allocation14 + $0x9c0] sm:$0xff]
    %v3072 = vld [vmem:[#allocation14 + $0x9c8] sm:$0xff]
    %v3073 = vld [vmem:[#allocation14 + $0x9d0] sm:$0xff]
    %v3074 = vld [vmem:[#allocation14 + $0x9d8] sm:$0xff]
    %v3075 = vld [vmem:[#allocation14 + $0x9e0] sm:$0xff]
    %v3076 = vld [vmem:[#allocation14 + $0x9e8] sm:$0xff]
    %v3077 = vld [vmem:[#allocation14 + $0x9f0] sm:$0xff]
    %v3078 = vld [vmem:[#allocation14 + $0x9f8] sm:$0xff]
    %v3079 = vld [vmem:[#allocation14 + $0xa00] sm:$0xff]
    %v3080 = vld [vmem:[#allocation14 + $0xa08] sm:$0xff]
    %v3081 = vld [vmem:[#allocation14 + $0xa10] sm:$0xff]
    %v3082 = vld [vmem:[#allocation14 + $0xa18] sm:$0xff]
    %v3083 = vld [vmem:[#allocation14 + $0xa20] sm:$0xff]
    %v3084 = vld [vmem:[#allocation14 + $0xa28] sm:$0xff]
    %v3085 = vld [vmem:[#allocation14 + $0xa30] sm:$0xff]
    %v3086 = vld [vmem:[#allocation14 + $0xa38] sm:$0xff]
    %v3087 = vld [vmem:[#allocation14 + $0xa40] sm:$0xff]
    %v3088 = vld [vmem:[#allocation14 + $0xa48] sm:$0xff]
    %v3089 = vld [vmem:[#allocation14 + $0xa50] sm:$0xff]
    %v3090 = vld [vmem:[#allocation14 + $0xa58] sm:$0xff]
    %v3091 = vld [vmem:[#allocation14 + $0xa60] sm:$0xff]
    %v3092 = vld [vmem:[#allocation14 + $0xa68] sm:$0xff]
    %v3093 = vld [vmem:[#allocation14 + $0xa70] sm:$0xff]
    %v3094 = vld [vmem:[#allocation14 + $0xa78] sm:$0xff]
    %v3095 = vld [vmem:[#allocation14 + $0xa80] sm:$0xff]
    %v3096 = vld [vmem:[#allocation14 + $0xa88] sm:$0xff]
    %v3097 = vld [vmem:[#allocation14 + $0xa90] sm:$0xff]
    %v3098 = vld [vmem:[#allocation14 + $0xa98] sm:$0xff]
    %v3099 = vld [vmem:[#allocation14 + $0xaa0] sm:$0xff]
    %v3100 = vld [vmem:[#allocation14 + $0xaa8] sm:$0xff]
    %v3101 = vld [vmem:[#allocation14 + $0xab0] sm:$0xff]
    %v3102 = vld [vmem:[#allocation14 + $0xab8] sm:$0xff]
    %v3103 = vld [vmem:[#allocation14 + $0xac0] sm:$0xff]
    %v3104 = vld [vmem:[#allocation14 + $0xac8] sm:$0xff]
    %v3105 = vld [vmem:[#allocation14 + $0xad0] sm:$0xff]
    %v3106 = vld [vmem:[#allocation14 + $0xad8] sm:$0xff]
    %v3107 = vld [vmem:[#allocation14 + $0xae0] sm:$0xff]
    %v3108 = vld [vmem:[#allocation14 + $0xae8] sm:$0xff]
    %v3109 = vld [vmem:[#allocation14 + $0xaf0] sm:$0xff]
    %v3110 = vld [vmem:[#allocation14 + $0xaf8] sm:$0xff]
    %v3111 = vld [vmem:[#allocation14 + $0xb00] sm:$0xff]
    %v3112 = vld [vmem:[#allocation14 + $0xb08] sm:$0xff]
    %v3113 = vld [vmem:[#allocation14 + $0xb10] sm:$0xff]
    %v3114 = vld [vmem:[#allocation14 + $0xb18] sm:$0xff]
    %v3115 = vld [vmem:[#allocation14 + $0xb20] sm:$0xff]
    %v3116 = vld [vmem:[#allocation14 + $0xb28] sm:$0xff]
    %v3117 = vld [vmem:[#allocation14 + $0xb30] sm:$0xff]
    %v3118 = vld [vmem:[#allocation14 + $0xb38] sm:$0xff]
    %v3119 = vld [vmem:[#allocation14 + $0xb40] sm:$0xff]
    %v3120 = vld [vmem:[#allocation14 + $0xb48] sm:$0xff]
    %v3121 = vld [vmem:[#allocation14 + $0xb50] sm:$0xff]
    %v3122 = vld [vmem:[#allocation14 + $0xb58] sm:$0xff]
    %v3123 = vld [vmem:[#allocation14 + $0xb60] sm:$0xff]
    %v3124 = vld [vmem:[#allocation14 + $0xb68] sm:$0xff]
    %v3125 = vld [vmem:[#allocation14 + $0xb70] sm:$0xff]
    %v3126 = vld [vmem:[#allocation14 + $0xb78] sm:$0xff]
    %v3127 = vld [vmem:[#allocation14 + $0xb80] sm:$0xff]
    %v3128 = vld [vmem:[#allocation14 + $0xb88] sm:$0xff]
    %v3129 = vld [vmem:[#allocation14 + $0xb90] sm:$0xff]
    %v3130 = vld [vmem:[#allocation14 + $0xb98] sm:$0xff]
    %v3131 = vld [vmem:[#allocation14 + $0xba0] sm:$0xff]
    %v3132 = vld [vmem:[#allocation14 + $0xba8] sm:$0xff]
    %v3133 = vld [vmem:[#allocation14 + $0xbb0] sm:$0xff]
    %v3134 = vld [vmem:[#allocation14 + $0xbb8] sm:$0xff]
    %v3135 = vld [vmem:[#allocation14 + $0xbc0] sm:$0xff]
    %v3136 = vld [vmem:[#allocation14 + $0xbc8] sm:$0xff]
    %v3137 = vld [vmem:[#allocation14 + $0xbd0] sm:$0xff]
    %v3138 = vld [vmem:[#allocation14 + $0xbd8] sm:$0xff]
    %v3139 = vld [vmem:[#allocation14 + $0xbe0] sm:$0xff]
    %v3140 = vld [vmem:[#allocation14 + $0xbe8] sm:$0xff]
    %v3141 = vld [vmem:[#allocation14 + $0xbf0] sm:$0xff]
    %v3142 = vld [vmem:[#allocation14 + $0xbf8] sm:$0xff]
    %v3143 = vld [vmem:[#allocation14 + $0xc00] sm:$0xff]
    %v3144 = vld [vmem:[#allocation14 + $0xc08] sm:$0xff]
    %v3145 = vld [vmem:[#allocation14 + $0xc10] sm:$0xff]
    %v3146 = vld [vmem:[#allocation14 + $0xc18] sm:$0xff]
    %v3147 = vld [vmem:[#allocation14 + $0xc20] sm:$0xff]
    %v3148 = vld [vmem:[#allocation14 + $0xc28] sm:$0xff]
    %v3149 = vld [vmem:[#allocation14 + $0xc30] sm:$0xff]
    %v3150 = vld [vmem:[#allocation14 + $0xc38] sm:$0xff]
    %v3151 = vld [vmem:[#allocation14 + $0xc40] sm:$0xff]
    %v3152 = vld [vmem:[#allocation14 + $0xc48] sm:$0xff]
    %v3153 = vld [vmem:[#allocation14 + $0xc50] sm:$0xff]
    %v3154 = vld [vmem:[#allocation14 + $0xc58] sm:$0xff]
    %v3155 = vld [vmem:[#allocation14 + $0xc60] sm:$0xff]
    %v3156 = vld [vmem:[#allocation14 + $0xc68] sm:$0xff]
    %v3157 = vld [vmem:[#allocation14 + $0xc70] sm:$0xff]
    %v3158 = vld [vmem:[#allocation14 + $0xc78] sm:$0xff]
    %v3159 = vld [vmem:[#allocation14 + $0xc80] sm:$0xff]
    %v3160 = vld [vmem:[#allocation14 + $0xc88] sm:$0xff]
    %v3161 = vld [vmem:[#allocation14 + $0xc90] sm:$0xff]
    %v3162 = vld [vmem:[#allocation14 + $0xc98] sm:$0xff]
    %v3163 = vld [vmem:[#allocation14 + $0xca0] sm:$0xff]
    %v3164 = vld [vmem:[#allocation14 + $0xca8] sm:$0xff]
    %v3165 = vld [vmem:[#allocation14 + $0xcb0] sm:$0xff]
    %v3166 = vld [vmem:[#allocation14 + $0xcb8] sm:$0xff]
    %v3167 = vld [vmem:[#allocation14 + $0xcc0] sm:$0xff]
    %v3168 = vld [vmem:[#allocation14 + $0xcc8] sm:$0xff]
    %v3169 = vld [vmem:[#allocation14 + $0xcd0] sm:$0xff]
    %v3170 = vld [vmem:[#allocation14 + $0xcd8] sm:$0xff]
    %v3171 = vld [vmem:[#allocation14 + $0xce0] sm:$0xff]
    %v3172 = vld [vmem:[#allocation14 + $0xce8] sm:$0xff]
    %v3173 = vld [vmem:[#allocation14 + $0xcf0] sm:$0xff]
    %v3174 = vld [vmem:[#allocation14 + $0xcf8] sm:$0xff]
    %v3175 = vld [vmem:[#allocation14 + $0xd00] sm:$0xff]
    %v3176 = vld [vmem:[#allocation14 + $0xd08] sm:$0xff]
    %v3177 = vld [vmem:[#allocation14 + $0xd10] sm:$0xff]
    %v3178 = vld [vmem:[#allocation14 + $0xd18] sm:$0xff]
    %v3179 = vld [vmem:[#allocation14 + $0xd20] sm:$0xff]
    %v3180 = vld [vmem:[#allocation14 + $0xd28] sm:$0xff]
    %v3181 = vld [vmem:[#allocation14 + $0xd30] sm:$0xff]
    %v3182 = vld [vmem:[#allocation14 + $0xd38] sm:$0xff]
    %v3183 = vld [vmem:[#allocation14 + $0xd40] sm:$0xff]
    %v3184 = vld [vmem:[#allocation14 + $0xd48] sm:$0xff]
    %v3185 = vld [vmem:[#allocation14 + $0xd50] sm:$0xff]
    %v3186 = vld [vmem:[#allocation14 + $0xd58] sm:$0xff]
    %v3187 = vld [vmem:[#allocation14 + $0xd60] sm:$0xff]
    %v3188 = vld [vmem:[#allocation14 + $0xd68] sm:$0xff]
    %v3189 = vld [vmem:[#allocation14 + $0xd70] sm:$0xff]
    %v3190 = vld [vmem:[#allocation14 + $0xd78] sm:$0xff]
    %v3191 = vld [vmem:[#allocation14 + $0xd80] sm:$0xff]
    %v3192 = vld [vmem:[#allocation14 + $0xd88] sm:$0xff]
    %v3193 = vld [vmem:[#allocation14 + $0xd90] sm:$0xff]
    %v3194 = vld [vmem:[#allocation14 + $0xd98] sm:$0xff]
    %v3195 = vld [vmem:[#allocation14 + $0xda0] sm:$0xff]
    %v3196 = vld [vmem:[#allocation14 + $0xda8] sm:$0xff]
    %v3197 = vld [vmem:[#allocation14 + $0xdb0] sm:$0xff]
    %v3198 = vld [vmem:[#allocation14 + $0xdb8] sm:$0xff]
    %v3199 = vld [vmem:[#allocation14 + $0xdc0] sm:$0xff]
    %v3200 = vld [vmem:[#allocation14 + $0xdc8] sm:$0xff]
    %v3201 = vld [vmem:[#allocation14 + $0xdd0] sm:$0xff]
    %v3202 = vld [vmem:[#allocation14 + $0xdd8] sm:$0xff]
    %v3203 = vld [vmem:[#allocation14 + $0xde0] sm:$0xff]
    %v3204 = vld [vmem:[#allocation14 + $0xde8] sm:$0xff]
    %v3205 = vld [vmem:[#allocation14 + $0xdf0] sm:$0xff]
    %v3206 = vld [vmem:[#allocation14 + $0xdf8] sm:$0xff]
    %v3207 = vld [vmem:[#allocation14 + $0xe00] sm:$0xff]
    %v3208 = vld [vmem:[#allocation14 + $0xe08] sm:$0xff]
    %v3209 = vld [vmem:[#allocation14 + $0xe10] sm:$0xff]
    %v3210 = vld [vmem:[#allocation14 + $0xe18] sm:$0xff]
    %v3211 = vld [vmem:[#allocation14 + $0xe20] sm:$0xff]
    %v3212 = vld [vmem:[#allocation14 + $0xe28] sm:$0xff]
    %v3213 = vld [vmem:[#allocation14 + $0xe30] sm:$0xff]
    %v3214 = vld [vmem:[#allocation14 + $0xe38] sm:$0xff]
    %v3215 = vld [vmem:[#allocation14 + $0xe40] sm:$0xff]
    %v3216 = vld [vmem:[#allocation14 + $0xe48] sm:$0xff]
    %v3217 = vld [vmem:[#allocation14 + $0xe50] sm:$0xff]
    %v3218 = vld [vmem:[#allocation14 + $0xe58] sm:$0xff]
    %v3219 = vld [vmem:[#allocation14 + $0xe60] sm:$0xff]
    %v3220 = vld [vmem:[#allocation14 + $0xe68] sm:$0xff]
    %v3221 = vld [vmem:[#allocation14 + $0xe70] sm:$0xff]
    %v3222 = vld [vmem:[#allocation14 + $0xe78] sm:$0xff]
    %v3223 = vld [vmem:[#allocation14 + $0xe80] sm:$0xff]
    %v3224 = vld [vmem:[#allocation14 + $0xe88] sm:$0xff]
    %v3225 = vld [vmem:[#allocation14 + $0xe90] sm:$0xff]
    %v3226 = vld [vmem:[#allocation14 + $0xe98] sm:$0xff]
    %v3227 = vld [vmem:[#allocation14 + $0xea0] sm:$0xff]
    %v3228 = vld [vmem:[#allocation14 + $0xea8] sm:$0xff]
    %v3229 = vld [vmem:[#allocation14 + $0xeb0] sm:$0xff]
    %v3230 = vld [vmem:[#allocation14 + $0xeb8] sm:$0xff]
    %v3231 = vld [vmem:[#allocation14 + $0xec0] sm:$0xff]
    %v3232 = vld [vmem:[#allocation14 + $0xec8] sm:$0xff]
    %v3233 = vld [vmem:[#allocation14 + $0xed0] sm:$0xff]
    %v3234 = vld [vmem:[#allocation14 + $0xed8] sm:$0xff]
    %v3235 = vld [vmem:[#allocation14 + $0xee0] sm:$0xff]
    %v3236 = vld [vmem:[#allocation14 + $0xee8] sm:$0xff]
    %v3237 = vld [vmem:[#allocation14 + $0xef0] sm:$0xff]
    %v3238 = vld [vmem:[#allocation14 + $0xef8] sm:$0xff]
    %v3239 = vld [vmem:[#allocation14 + $0xf00] sm:$0xff]
    %v3240 = vld [vmem:[#allocation14 + $0xf08] sm:$0xff]
    %v3241 = vld [vmem:[#allocation14 + $0xf10] sm:$0xff]
    %v3242 = vld [vmem:[#allocation14 + $0xf18] sm:$0xff]
    %v3243 = vld [vmem:[#allocation14 + $0xf20] sm:$0xff]
    %v3244 = vld [vmem:[#allocation14 + $0xf28] sm:$0xff]
    %v3245 = vld [vmem:[#allocation14 + $0xf30] sm:$0xff]
    %v3246 = vld [vmem:[#allocation14 + $0xf38] sm:$0xff]
    %v3247 = vld [vmem:[#allocation14 + $0xf40] sm:$0xff]
    %v3248 = vld [vmem:[#allocation14 + $0xf48] sm:$0xff]
    %v3249 = vld [vmem:[#allocation14 + $0xf50] sm:$0xff]
    %v3250 = vld [vmem:[#allocation14 + $0xf58] sm:$0xff]
    %v3251 = vld [vmem:[#allocation14 + $0xf60] sm:$0xff]
    %v3252 = vld [vmem:[#allocation14 + $0xf68] sm:$0xff]
    %v3253 = vld [vmem:[#allocation14 + $0xf70] sm:$0xff]
    %v3254 = vld [vmem:[#allocation14 + $0xf78] sm:$0xff]
    %v3255 = vld [vmem:[#allocation14 + $0xf80] sm:$0xff]
    %v3256 = vld [vmem:[#allocation14 + $0xf88] sm:$0xff]
    %v3257 = vld [vmem:[#allocation14 + $0xf90] sm:$0xff]
    %v3258 = vld [vmem:[#allocation14 + $0xf98] sm:$0xff]
    %v3259 = vld [vmem:[#allocation14 + $0xfa0] sm:$0xff]
    %v3260 = vld [vmem:[#allocation14 + $0xfa8] sm:$0xff]
    %v3261 = vld [vmem:[#allocation14 + $0xfb0] sm:$0xff]
    %v3262 = vld [vmem:[#allocation14 + $0xfb8] sm:$0xff]
    %v3263 = vld [vmem:[#allocation14 + $0xfc0] sm:$0xff]
    %v3264 = vld [vmem:[#allocation14 + $0xfc8] sm:$0xff]
    %v3265 = vld [vmem:[#allocation14 + $0xfd0] sm:$0xff]
    %v3266 = vld [vmem:[#allocation14 + $0xfd8] sm:$0xff]
    %v3267 = vld [vmem:[#allocation14 + $0xfe0] sm:$0xff]
    %v3268 = vld [vmem:[#allocation14 + $0xfe8] sm:$0xff]
    %v3269 = vld [vmem:[#allocation14 + $0xff0] sm:$0xff]
    %v3270 = vld [vmem:[#allocation14 + $0xff8] sm:$0xff]
    %v3783 = vunpack.c.l.b16 %v2759
    %v3784 = vunpack.c.h.b16 %v2759
    %v3785 = vunpack.c.l.b16 %v2760
    %v3786 = vunpack.c.h.b16 %v2760
    %v3787 = vunpack.c.l.b16 %v2761
    %v3788 = vunpack.c.h.b16 %v2761
    %v3789 = vunpack.c.l.b16 %v2762
    %v3790 = vunpack.c.h.b16 %v2762
    %v3791 = vunpack.c.l.b16 %v2763
    %v3792 = vunpack.c.h.b16 %v2763
    %v3793 = vunpack.c.l.b16 %v2764
    %v3794 = vunpack.c.h.b16 %v2764
    %v3795 = vunpack.c.l.b16 %v2765
    %v3796 = vunpack.c.h.b16 %v2765
    %v3797 = vunpack.c.l.b16 %v2766
    %v3798 = vunpack.c.h.b16 %v2766
    %v3799 = vunpack.c.l.b16 %v2767
    %v3800 = vunpack.c.h.b16 %v2767
    %v3801 = vunpack.c.l.b16 %v2768
    %v3802 = vunpack.c.h.b16 %v2768
    %v3803 = vunpack.c.l.b16 %v2769
    %v3804 = vunpack.c.h.b16 %v2769
    %v3805 = vunpack.c.l.b16 %v2770
    %v3806 = vunpack.c.h.b16 %v2770
    %v3807 = vunpack.c.l.b16 %v2771
    %v3808 = vunpack.c.h.b16 %v2771
    %v3809 = vunpack.c.l.b16 %v2772
    %v3810 = vunpack.c.h.b16 %v2772
    %v3811 = vunpack.c.l.b16 %v2773
    %v3812 = vunpack.c.h.b16 %v2773
    %v3813 = vunpack.c.l.b16 %v2774
    %v3814 = vunpack.c.h.b16 %v2774
    %v3815 = vunpack.c.l.b16 %v2775
    %v3816 = vunpack.c.h.b16 %v2775
    %v3817 = vunpack.c.l.b16 %v2776
    %v3818 = vunpack.c.h.b16 %v2776
    %v3819 = vunpack.c.l.b16 %v2777
    %v3820 = vunpack.c.h.b16 %v2777
    %v3821 = vunpack.c.l.b16 %v2778
    %v3822 = vunpack.c.h.b16 %v2778
    %v3823 = vunpack.c.l.b16 %v2779
    %v3824 = vunpack.c.h.b16 %v2779
    %v3825 = vunpack.c.l.b16 %v2780
    %v3826 = vunpack.c.h.b16 %v2780
    %v3827 = vunpack.c.l.b16 %v2781
    %v3828 = vunpack.c.h.b16 %v2781
    %v3829 = vunpack.c.l.b16 %v2782
    %v3830 = vunpack.c.h.b16 %v2782
    %v3831 = vunpack.c.l.b16 %v2783
    %v3832 = vunpack.c.h.b16 %v2783
    %v3833 = vunpack.c.l.b16 %v2784
    %v3834 = vunpack.c.h.b16 %v2784
    %v3835 = vunpack.c.l.b16 %v2785
    %v3836 = vunpack.c.h.b16 %v2785
    %v3837 = vunpack.c.l.b16 %v2786
    %v3838 = vunpack.c.h.b16 %v2786
    %v3839 = vunpack.c.l.b16 %v2787
    %v3840 = vunpack.c.h.b16 %v2787
    %v3841 = vunpack.c.l.b16 %v2788
    %v3842 = vunpack.c.h.b16 %v2788
    %v3843 = vunpack.c.l.b16 %v2789
    %v3844 = vunpack.c.h.b16 %v2789
    %v3845 = vunpack.c.l.b16 %v2790
    %v3846 = vunpack.c.h.b16 %v2790
    %v3847 = vunpack.c.l.b16 %v2791
    %v3848 = vunpack.c.h.b16 %v2791
    %v3849 = vunpack.c.l.b16 %v2792
    %v3850 = vunpack.c.h.b16 %v2792
    %v3851 = vunpack.c.l.b16 %v2793
    %v3852 = vunpack.c.h.b16 %v2793
    %v3853 = vunpack.c.l.b16 %v2794
    %v3854 = vunpack.c.h.b16 %v2794
    %v3855 = vunpack.c.l.b16 %v2795
    %v3856 = vunpack.c.h.b16 %v2795
    %v3857 = vunpack.c.l.b16 %v2796
    %v3858 = vunpack.c.h.b16 %v2796
    %v3859 = vunpack.c.l.b16 %v2797
    %v3860 = vunpack.c.h.b16 %v2797
    %v3861 = vunpack.c.l.b16 %v2798
    %v3862 = vunpack.c.h.b16 %v2798
    %v3863 = vunpack.c.l.b16 %v2799
    %v3864 = vunpack.c.h.b16 %v2799
    %v3865 = vunpack.c.l.b16 %v2800
    %v3866 = vunpack.c.h.b16 %v2800
    %v3867 = vunpack.c.l.b16 %v2801
    %v3868 = vunpack.c.h.b16 %v2801
    %v3869 = vunpack.c.l.b16 %v2802
    %v3870 = vunpack.c.h.b16 %v2802
    %v3871 = vunpack.c.l.b16 %v2803
    %v3872 = vunpack.c.h.b16 %v2803
    %v3873 = vunpack.c.l.b16 %v2804
    %v3874 = vunpack.c.h.b16 %v2804
    %v3875 = vunpack.c.l.b16 %v2805
    %v3876 = vunpack.c.h.b16 %v2805
    %v3877 = vunpack.c.l.b16 %v2806
    %v3878 = vunpack.c.h.b16 %v2806
    %v3879 = vunpack.c.l.b16 %v2807
    %v3880 = vunpack.c.h.b16 %v2807
    %v3881 = vunpack.c.l.b16 %v2808
    %v3882 = vunpack.c.h.b16 %v2808
    %v3883 = vunpack.c.l.b16 %v2809
    %v3884 = vunpack.c.h.b16 %v2809
    %v3885 = vunpack.c.l.b16 %v2810
    %v3886 = vunpack.c.h.b16 %v2810
    %v3887 = vunpack.c.l.b16 %v2811
    %v3888 = vunpack.c.h.b16 %v2811
    %v3889 = vunpack.c.l.b16 %v2812
    %v3890 = vunpack.c.h.b16 %v2812
    %v3891 = vunpack.c.l.b16 %v2813
    %v3892 = vunpack.c.h.b16 %v2813
    %v3893 = vunpack.c.l.b16 %v2814
    %v3894 = vunpack.c.h.b16 %v2814
    %v3895 = vunpack.c.l.b16 %v2815
    %v3896 = vunpack.c.h.b16 %v2815
    %v3897 = vunpack.c.l.b16 %v2816
    %v3898 = vunpack.c.h.b16 %v2816
    %v3899 = vunpack.c.l.b16 %v2817
    %v3900 = vunpack.c.h.b16 %v2817
    %v3901 = vunpack.c.l.b16 %v2818
    %v3902 = vunpack.c.h.b16 %v2818
    %v3903 = vunpack.c.l.b16 %v2819
    %v3904 = vunpack.c.h.b16 %v2819
    %v3905 = vunpack.c.l.b16 %v2820
    %v3906 = vunpack.c.h.b16 %v2820
    %v3907 = vunpack.c.l.b16 %v2821
    %v3908 = vunpack.c.h.b16 %v2821
    %v3909 = vunpack.c.l.b16 %v2822
    %v3910 = vunpack.c.h.b16 %v2822
    %v3911 = vunpack.c.l.b16 %v2823
    %v3912 = vunpack.c.h.b16 %v2823
    %v3913 = vunpack.c.l.b16 %v2824
    %v3914 = vunpack.c.h.b16 %v2824
    %v3915 = vunpack.c.l.b16 %v2825
    %v3916 = vunpack.c.h.b16 %v2825
    %v3917 = vunpack.c.l.b16 %v2826
    %v3918 = vunpack.c.h.b16 %v2826
    %v3919 = vunpack.c.l.b16 %v2827
    %v3920 = vunpack.c.h.b16 %v2827
    %v3921 = vunpack.c.l.b16 %v2828
    %v3922 = vunpack.c.h.b16 %v2828
    %v3923 = vunpack.c.l.b16 %v2829
    %v3924 = vunpack.c.h.b16 %v2829
    %v3925 = vunpack.c.l.b16 %v2830
    %v3926 = vunpack.c.h.b16 %v2830
    %v3927 = vunpack.c.l.b16 %v2831
    %v3928 = vunpack.c.h.b16 %v2831
    %v3929 = vunpack.c.l.b16 %v2832
    %v3930 = vunpack.c.h.b16 %v2832
    %v3931 = vunpack.c.l.b16 %v2833
    %v3932 = vunpack.c.h.b16 %v2833
    %v3933 = vunpack.c.l.b16 %v2834
    %v3934 = vunpack.c.h.b16 %v2834
    %v3935 = vunpack.c.l.b16 %v2835
    %v3936 = vunpack.c.h.b16 %v2835
    %v3937 = vunpack.c.l.b16 %v2836
    %v3938 = vunpack.c.h.b16 %v2836
    %v3939 = vunpack.c.l.b16 %v2837
    %v3940 = vunpack.c.h.b16 %v2837
    %v3941 = vunpack.c.l.b16 %v2838
    %v3942 = vunpack.c.h.b16 %v2838
    %v3943 = vunpack.c.l.b16 %v2839
    %v3944 = vunpack.c.h.b16 %v2839
    %v3945 = vunpack.c.l.b16 %v2840
    %v3946 = vunpack.c.h.b16 %v2840
    %v3947 = vunpack.c.l.b16 %v2841
    %v3948 = vunpack.c.h.b16 %v2841
    %v3949 = vunpack.c.l.b16 %v2842
    %v3950 = vunpack.c.h.b16 %v2842
    %v3951 = vunpack.c.l.b16 %v2843
    %v3952 = vunpack.c.h.b16 %v2843
    %v3953 = vunpack.c.l.b16 %v2844
    %v3954 = vunpack.c.h.b16 %v2844
    %v3955 = vunpack.c.l.b16 %v2845
    %v3956 = vunpack.c.h.b16 %v2845
    %v3957 = vunpack.c.l.b16 %v2846
    %v3958 = vunpack.c.h.b16 %v2846
    %v3959 = vunpack.c.l.b16 %v2847
    %v3960 = vunpack.c.h.b16 %v2847
    %v3961 = vunpack.c.l.b16 %v2848
    %v3962 = vunpack.c.h.b16 %v2848
    %v3963 = vunpack.c.l.b16 %v2849
    %v3964 = vunpack.c.h.b16 %v2849
    %v3965 = vunpack.c.l.b16 %v2850
    %v3966 = vunpack.c.h.b16 %v2850
    %v3967 = vunpack.c.l.b16 %v2851
    %v3968 = vunpack.c.h.b16 %v2851
    %v3969 = vunpack.c.l.b16 %v2852
    %v3970 = vunpack.c.h.b16 %v2852
    %v3971 = vunpack.c.l.b16 %v2853
    %v3972 = vunpack.c.h.b16 %v2853
    %v3973 = vunpack.c.l.b16 %v2854
    %v3974 = vunpack.c.h.b16 %v2854
    %v3975 = vunpack.c.l.b16 %v2855
    %v3976 = vunpack.c.h.b16 %v2855
    %v3977 = vunpack.c.l.b16 %v2856
    %v3978 = vunpack.c.h.b16 %v2856
    %v3979 = vunpack.c.l.b16 %v2857
    %v3980 = vunpack.c.h.b16 %v2857
    %v3981 = vunpack.c.l.b16 %v2858
    %v3982 = vunpack.c.h.b16 %v2858
    %v3983 = vunpack.c.l.b16 %v2859
    %v3984 = vunpack.c.h.b16 %v2859
    %v3985 = vunpack.c.l.b16 %v2860
    %v3986 = vunpack.c.h.b16 %v2860
    %v3987 = vunpack.c.l.b16 %v2861
    %v3988 = vunpack.c.h.b16 %v2861
    %v3989 = vunpack.c.l.b16 %v2862
    %v3990 = vunpack.c.h.b16 %v2862
    %v3991 = vunpack.c.l.b16 %v2863
    %v3992 = vunpack.c.h.b16 %v2863
    %v3993 = vunpack.c.l.b16 %v2864
    %v3994 = vunpack.c.h.b16 %v2864
    %v3995 = vunpack.c.l.b16 %v2865
    %v3996 = vunpack.c.h.b16 %v2865
    %v3997 = vunpack.c.l.b16 %v2866
    %v3998 = vunpack.c.h.b16 %v2866
    %v3999 = vunpack.c.l.b16 %v2867
    %v4000 = vunpack.c.h.b16 %v2867
    %v4001 = vunpack.c.l.b16 %v2868
    %v4002 = vunpack.c.h.b16 %v2868
    %v4003 = vunpack.c.l.b16 %v2869
    %v4004 = vunpack.c.h.b16 %v2869
    %v4005 = vunpack.c.l.b16 %v2870
    %v4006 = vunpack.c.h.b16 %v2870
    %v4007 = vunpack.c.l.b16 %v2871
    %v4008 = vunpack.c.h.b16 %v2871
    %v4009 = vunpack.c.l.b16 %v2872
    %v4010 = vunpack.c.h.b16 %v2872
    %v4011 = vunpack.c.l.b16 %v2873
    %v4012 = vunpack.c.h.b16 %v2873
    %v4013 = vunpack.c.l.b16 %v2874
    %v4014 = vunpack.c.h.b16 %v2874
    %v4015 = vunpack.c.l.b16 %v2875
    %v4016 = vunpack.c.h.b16 %v2875
    %v4017 = vunpack.c.l.b16 %v2876
    %v4018 = vunpack.c.h.b16 %v2876
    %v4019 = vunpack.c.l.b16 %v2877
    %v4020 = vunpack.c.h.b16 %v2877
    %v4021 = vunpack.c.l.b16 %v2878
    %v4022 = vunpack.c.h.b16 %v2878
    %v4023 = vunpack.c.l.b16 %v2879
    %v4024 = vunpack.c.h.b16 %v2879
    %v4025 = vunpack.c.l.b16 %v2880
    %v4026 = vunpack.c.h.b16 %v2880
    %v4027 = vunpack.c.l.b16 %v2881
    %v4028 = vunpack.c.h.b16 %v2881
    %v4029 = vunpack.c.l.b16 %v2882
    %v4030 = vunpack.c.h.b16 %v2882
    %v4031 = vunpack.c.l.b16 %v2883
    %v4032 = vunpack.c.h.b16 %v2883
    %v4033 = vunpack.c.l.b16 %v2884
    %v4034 = vunpack.c.h.b16 %v2884
    %v4035 = vunpack.c.l.b16 %v2885
    %v4036 = vunpack.c.h.b16 %v2885
    %v4037 = vunpack.c.l.b16 %v2886
    %v4038 = vunpack.c.h.b16 %v2886
    %v4039 = vunpack.c.l.b16 %v2887
    %v4040 = vunpack.c.h.b16 %v2887
    %v4041 = vunpack.c.l.b16 %v2888
    %v4042 = vunpack.c.h.b16 %v2888
    %v4043 = vunpack.c.l.b16 %v2889
    %v4044 = vunpack.c.h.b16 %v2889
    %v4045 = vunpack.c.l.b16 %v2890
    %v4046 = vunpack.c.h.b16 %v2890
    %v4047 = vunpack.c.l.b16 %v2891
    %v4048 = vunpack.c.h.b16 %v2891
    %v4049 = vunpack.c.l.b16 %v2892
    %v4050 = vunpack.c.h.b16 %v2892
    %v4051 = vunpack.c.l.b16 %v2893
    %v4052 = vunpack.c.h.b16 %v2893
    %v4053 = vunpack.c.l.b16 %v2894
    %v4054 = vunpack.c.h.b16 %v2894
    %v4055 = vunpack.c.l.b16 %v2895
    %v4056 = vunpack.c.h.b16 %v2895
    %v4057 = vunpack.c.l.b16 %v2896
    %v4058 = vunpack.c.h.b16 %v2896
    %v4059 = vunpack.c.l.b16 %v2897
    %v4060 = vunpack.c.h.b16 %v2897
    %v4061 = vunpack.c.l.b16 %v2898
    %v4062 = vunpack.c.h.b16 %v2898
    %v4063 = vunpack.c.l.b16 %v2899
    %v4064 = vunpack.c.h.b16 %v2899
    %v4065 = vunpack.c.l.b16 %v2900
    %v4066 = vunpack.c.h.b16 %v2900
    %v4067 = vunpack.c.l.b16 %v2901
    %v4068 = vunpack.c.h.b16 %v2901
    %v4069 = vunpack.c.l.b16 %v2902
    %v4070 = vunpack.c.h.b16 %v2902
    %v4071 = vunpack.c.l.b16 %v2903
    %v4072 = vunpack.c.h.b16 %v2903
    %v4073 = vunpack.c.l.b16 %v2904
    %v4074 = vunpack.c.h.b16 %v2904
    %v4075 = vunpack.c.l.b16 %v2905
    %v4076 = vunpack.c.h.b16 %v2905
    %v4077 = vunpack.c.l.b16 %v2906
    %v4078 = vunpack.c.h.b16 %v2906
    %v4079 = vunpack.c.l.b16 %v2907
    %v4080 = vunpack.c.h.b16 %v2907
    %v4081 = vunpack.c.l.b16 %v2908
    %v4082 = vunpack.c.h.b16 %v2908
    %v4083 = vunpack.c.l.b16 %v2909
    %v4084 = vunpack.c.h.b16 %v2909
    %v4085 = vunpack.c.l.b16 %v2910
    %v4086 = vunpack.c.h.b16 %v2910
    %v4087 = vunpack.c.l.b16 %v2911
    %v4088 = vunpack.c.h.b16 %v2911
    %v4089 = vunpack.c.l.b16 %v2912
    %v4090 = vunpack.c.h.b16 %v2912
    %v4091 = vunpack.c.l.b16 %v2913
    %v4092 = vunpack.c.h.b16 %v2913
    %v4093 = vunpack.c.l.b16 %v2914
    %v4094 = vunpack.c.h.b16 %v2914
    %v4095 = vunpack.c.l.b16 %v2915
    %v4096 = vunpack.c.h.b16 %v2915
    %v4097 = vunpack.c.l.b16 %v2916
    %v4098 = vunpack.c.h.b16 %v2916
    %v4099 = vunpack.c.l.b16 %v2917
    %v4100 = vunpack.c.h.b16 %v2917
    %v4101 = vunpack.c.l.b16 %v2918
    %v4102 = vunpack.c.h.b16 %v2918
    %v4103 = vunpack.c.l.b16 %v2919
    %v4104 = vunpack.c.h.b16 %v2919
    %v4105 = vunpack.c.l.b16 %v2920
    %v4106 = vunpack.c.h.b16 %v2920
    %v4107 = vunpack.c.l.b16 %v2921
    %v4108 = vunpack.c.h.b16 %v2921
    %v4109 = vunpack.c.l.b16 %v2922
    %v4110 = vunpack.c.h.b16 %v2922
    %v4111 = vunpack.c.l.b16 %v2923
    %v4112 = vunpack.c.h.b16 %v2923
    %v4113 = vunpack.c.l.b16 %v2924
    %v4114 = vunpack.c.h.b16 %v2924
    %v4115 = vunpack.c.l.b16 %v2925
    %v4116 = vunpack.c.h.b16 %v2925
    %v4117 = vunpack.c.l.b16 %v2926
    %v4118 = vunpack.c.h.b16 %v2926
    %v4119 = vunpack.c.l.b16 %v2927
    %v4120 = vunpack.c.h.b16 %v2927
    %v4121 = vunpack.c.l.b16 %v2928
    %v4122 = vunpack.c.h.b16 %v2928
    %v4123 = vunpack.c.l.b16 %v2929
    %v4124 = vunpack.c.h.b16 %v2929
    %v4125 = vunpack.c.l.b16 %v2930
    %v4126 = vunpack.c.h.b16 %v2930
    %v4127 = vunpack.c.l.b16 %v2931
    %v4128 = vunpack.c.h.b16 %v2931
    %v4129 = vunpack.c.l.b16 %v2932
    %v4130 = vunpack.c.h.b16 %v2932
    %v4131 = vunpack.c.l.b16 %v2933
    %v4132 = vunpack.c.h.b16 %v2933
    %v4133 = vunpack.c.l.b16 %v2934
    %v4134 = vunpack.c.h.b16 %v2934
    %v4135 = vunpack.c.l.b16 %v2935
    %v4136 = vunpack.c.h.b16 %v2935
    %v4137 = vunpack.c.l.b16 %v2936
    %v4138 = vunpack.c.h.b16 %v2936
    %v4139 = vunpack.c.l.b16 %v2937
    %v4140 = vunpack.c.h.b16 %v2937
    %v4141 = vunpack.c.l.b16 %v2938
    %v4142 = vunpack.c.h.b16 %v2938
    %v4143 = vunpack.c.l.b16 %v2939
    %v4144 = vunpack.c.h.b16 %v2939
    %v4145 = vunpack.c.l.b16 %v2940
    %v4146 = vunpack.c.h.b16 %v2940
    %v4147 = vunpack.c.l.b16 %v2941
    %v4148 = vunpack.c.h.b16 %v2941
    %v4149 = vunpack.c.l.b16 %v2942
    %v4150 = vunpack.c.h.b16 %v2942
    %v4151 = vunpack.c.l.b16 %v2943
    %v4152 = vunpack.c.h.b16 %v2943
    %v4153 = vunpack.c.l.b16 %v2944
    %v4154 = vunpack.c.h.b16 %v2944
    %v4155 = vunpack.c.l.b16 %v2945
    %v4156 = vunpack.c.h.b16 %v2945
    %v4157 = vunpack.c.l.b16 %v2946
    %v4158 = vunpack.c.h.b16 %v2946
    %v4159 = vunpack.c.l.b16 %v2947
    %v4160 = vunpack.c.h.b16 %v2947
    %v4161 = vunpack.c.l.b16 %v2948
    %v4162 = vunpack.c.h.b16 %v2948
    %v4163 = vunpack.c.l.b16 %v2949
    %v4164 = vunpack.c.h.b16 %v2949
    %v4165 = vunpack.c.l.b16 %v2950
    %v4166 = vunpack.c.h.b16 %v2950
    %v4167 = vunpack.c.l.b16 %v2951
    %v4168 = vunpack.c.h.b16 %v2951
    %v4169 = vunpack.c.l.b16 %v2952
    %v4170 = vunpack.c.h.b16 %v2952
    %v4171 = vunpack.c.l.b16 %v2953
    %v4172 = vunpack.c.h.b16 %v2953
    %v4173 = vunpack.c.l.b16 %v2954
    %v4174 = vunpack.c.h.b16 %v2954
    %v4175 = vunpack.c.l.b16 %v2955
    %v4176 = vunpack.c.h.b16 %v2955
    %v4177 = vunpack.c.l.b16 %v2956
    %v4178 = vunpack.c.h.b16 %v2956
    %v4179 = vunpack.c.l.b16 %v2957
    %v4180 = vunpack.c.h.b16 %v2957
    %v4181 = vunpack.c.l.b16 %v2958
    %v4182 = vunpack.c.h.b16 %v2958
    %v4183 = vunpack.c.l.b16 %v2959
    %v4184 = vunpack.c.h.b16 %v2959
    %v4185 = vunpack.c.l.b16 %v2960
    %v4186 = vunpack.c.h.b16 %v2960
    %v4187 = vunpack.c.l.b16 %v2961
    %v4188 = vunpack.c.h.b16 %v2961
    %v4189 = vunpack.c.l.b16 %v2962
    %v4190 = vunpack.c.h.b16 %v2962
    %v4191 = vunpack.c.l.b16 %v2963
    %v4192 = vunpack.c.h.b16 %v2963
    %v4193 = vunpack.c.l.b16 %v2964
    %v4194 = vunpack.c.h.b16 %v2964
    %v4195 = vunpack.c.l.b16 %v2965
    %v4196 = vunpack.c.h.b16 %v2965
    %v4197 = vunpack.c.l.b16 %v2966
    %v4198 = vunpack.c.h.b16 %v2966
    %v4199 = vunpack.c.l.b16 %v2967
    %v4200 = vunpack.c.h.b16 %v2967
    %v4201 = vunpack.c.l.b16 %v2968
    %v4202 = vunpack.c.h.b16 %v2968
    %v4203 = vunpack.c.l.b16 %v2969
    %v4204 = vunpack.c.h.b16 %v2969
    %v4205 = vunpack.c.l.b16 %v2970
    %v4206 = vunpack.c.h.b16 %v2970
    %v4207 = vunpack.c.l.b16 %v2971
    %v4208 = vunpack.c.h.b16 %v2971
    %v4209 = vunpack.c.l.b16 %v2972
    %v4210 = vunpack.c.h.b16 %v2972
    %v4211 = vunpack.c.l.b16 %v2973
    %v4212 = vunpack.c.h.b16 %v2973
    %v4213 = vunpack.c.l.b16 %v2974
    %v4214 = vunpack.c.h.b16 %v2974
    %v4215 = vunpack.c.l.b16 %v2975
    %v4216 = vunpack.c.h.b16 %v2975
    %v4217 = vunpack.c.l.b16 %v2976
    %v4218 = vunpack.c.h.b16 %v2976
    %v4219 = vunpack.c.l.b16 %v2977
    %v4220 = vunpack.c.h.b16 %v2977
    %v4221 = vunpack.c.l.b16 %v2978
    %v4222 = vunpack.c.h.b16 %v2978
    %v4223 = vunpack.c.l.b16 %v2979
    %v4224 = vunpack.c.h.b16 %v2979
    %v4225 = vunpack.c.l.b16 %v2980
    %v4226 = vunpack.c.h.b16 %v2980
    %v4227 = vunpack.c.l.b16 %v2981
    %v4228 = vunpack.c.h.b16 %v2981
    %v4229 = vunpack.c.l.b16 %v2982
    %v4230 = vunpack.c.h.b16 %v2982
    %v4231 = vunpack.c.l.b16 %v2983
    %v4232 = vunpack.c.h.b16 %v2983
    %v4233 = vunpack.c.l.b16 %v2984
    %v4234 = vunpack.c.h.b16 %v2984
    %v4235 = vunpack.c.l.b16 %v2985
    %v4236 = vunpack.c.h.b16 %v2985
    %v4237 = vunpack.c.l.b16 %v2986
    %v4238 = vunpack.c.h.b16 %v2986
    %v4239 = vunpack.c.l.b16 %v2987
    %v4240 = vunpack.c.h.b16 %v2987
    %v4241 = vunpack.c.l.b16 %v2988
    %v4242 = vunpack.c.h.b16 %v2988
    %v4243 = vunpack.c.l.b16 %v2989
    %v4244 = vunpack.c.h.b16 %v2989
    %v4245 = vunpack.c.l.b16 %v2990
    %v4246 = vunpack.c.h.b16 %v2990
    %v4247 = vunpack.c.l.b16 %v2991
    %v4248 = vunpack.c.h.b16 %v2991
    %v4249 = vunpack.c.l.b16 %v2992
    %v4250 = vunpack.c.h.b16 %v2992
    %v4251 = vunpack.c.l.b16 %v2993
    %v4252 = vunpack.c.h.b16 %v2993
    %v4253 = vunpack.c.l.b16 %v2994
    %v4254 = vunpack.c.h.b16 %v2994
    %v4255 = vunpack.c.l.b16 %v2995
    %v4256 = vunpack.c.h.b16 %v2995
    %v4257 = vunpack.c.l.b16 %v2996
    %v4258 = vunpack.c.h.b16 %v2996
    %v4259 = vunpack.c.l.b16 %v2997
    %v4260 = vunpack.c.h.b16 %v2997
    %v4261 = vunpack.c.l.b16 %v2998
    %v4262 = vunpack.c.h.b16 %v2998
    %v4263 = vunpack.c.l.b16 %v2999
    %v4264 = vunpack.c.h.b16 %v2999
    %v4265 = vunpack.c.l.b16 %v3000
    %v4266 = vunpack.c.h.b16 %v3000
    %v4267 = vunpack.c.l.b16 %v3001
    %v4268 = vunpack.c.h.b16 %v3001
    %v4269 = vunpack.c.l.b16 %v3002
    %v4270 = vunpack.c.h.b16 %v3002
    %v4271 = vunpack.c.l.b16 %v3003
    %v4272 = vunpack.c.h.b16 %v3003
    %v4273 = vunpack.c.l.b16 %v3004
    %v4274 = vunpack.c.h.b16 %v3004
    %v4275 = vunpack.c.l.b16 %v3005
    %v4276 = vunpack.c.h.b16 %v3005
    %v4277 = vunpack.c.l.b16 %v3006
    %v4278 = vunpack.c.h.b16 %v3006
    %v4279 = vunpack.c.l.b16 %v3007
    %v4280 = vunpack.c.h.b16 %v3007
    %v4281 = vunpack.c.l.b16 %v3008
    %v4282 = vunpack.c.h.b16 %v3008
    %v4283 = vunpack.c.l.b16 %v3009
    %v4284 = vunpack.c.h.b16 %v3009
    %v4285 = vunpack.c.l.b16 %v3010
    %v4286 = vunpack.c.h.b16 %v3010
    %v4287 = vunpack.c.l.b16 %v3011
    %v4288 = vunpack.c.h.b16 %v3011
    %v4289 = vunpack.c.l.b16 %v3012
    %v4290 = vunpack.c.h.b16 %v3012
    %v4291 = vunpack.c.l.b16 %v3013
    %v4292 = vunpack.c.h.b16 %v3013
    %v4293 = vunpack.c.l.b16 %v3014
    %v4294 = vunpack.c.h.b16 %v3014
    %v4295 = vunpack.c.l.b16 %v3015
    %v4296 = vunpack.c.h.b16 %v3015
    %v4297 = vunpack.c.l.b16 %v3016
    %v4298 = vunpack.c.h.b16 %v3016
    %v4299 = vunpack.c.l.b16 %v3017
    %v4300 = vunpack.c.h.b16 %v3017
    %v4301 = vunpack.c.l.b16 %v3018
    %v4302 = vunpack.c.h.b16 %v3018
    %v4303 = vunpack.c.l.b16 %v3019
    %v4304 = vunpack.c.h.b16 %v3019
    %v4305 = vunpack.c.l.b16 %v3020
    %v4306 = vunpack.c.h.b16 %v3020
    %v4307 = vunpack.c.l.b16 %v3021
    %v4308 = vunpack.c.h.b16 %v3021
    %v4309 = vunpack.c.l.b16 %v3022
    %v4310 = vunpack.c.h.b16 %v3022
    %v4311 = vunpack.c.l.b16 %v3023
    %v4312 = vunpack.c.h.b16 %v3023
    %v4313 = vunpack.c.l.b16 %v3024
    %v4314 = vunpack.c.h.b16 %v3024
    %v4315 = vunpack.c.l.b16 %v3025
    %v4316 = vunpack.c.h.b16 %v3025
    %v4317 = vunpack.c.l.b16 %v3026
    %v4318 = vunpack.c.h.b16 %v3026
    %v4319 = vunpack.c.l.b16 %v3027
    %v4320 = vunpack.c.h.b16 %v3027
    %v4321 = vunpack.c.l.b16 %v3028
    %v4322 = vunpack.c.h.b16 %v3028
    %v4323 = vunpack.c.l.b16 %v3029
    %v4324 = vunpack.c.h.b16 %v3029
    %v4325 = vunpack.c.l.b16 %v3030
    %v4326 = vunpack.c.h.b16 %v3030
    %v4327 = vunpack.c.l.b16 %v3031
    %v4328 = vunpack.c.h.b16 %v3031
    %v4329 = vunpack.c.l.b16 %v3032
    %v4330 = vunpack.c.h.b16 %v3032
    %v4331 = vunpack.c.l.b16 %v3033
    %v4332 = vunpack.c.h.b16 %v3033
    %v4333 = vunpack.c.l.b16 %v3034
    %v4334 = vunpack.c.h.b16 %v3034
    %v4335 = vunpack.c.l.b16 %v3035
    %v4336 = vunpack.c.h.b16 %v3035
    %v4337 = vunpack.c.l.b16 %v3036
    %v4338 = vunpack.c.h.b16 %v3036
    %v4339 = vunpack.c.l.b16 %v3037
    %v4340 = vunpack.c.h.b16 %v3037
    %v4341 = vunpack.c.l.b16 %v3038
    %v4342 = vunpack.c.h.b16 %v3038
    %v4343 = vunpack.c.l.b16 %v3039
    %v4344 = vunpack.c.h.b16 %v3039
    %v4345 = vunpack.c.l.b16 %v3040
    %v4346 = vunpack.c.h.b16 %v3040
    %v4347 = vunpack.c.l.b16 %v3041
    %v4348 = vunpack.c.h.b16 %v3041
    %v4349 = vunpack.c.l.b16 %v3042
    %v4350 = vunpack.c.h.b16 %v3042
    %v4351 = vunpack.c.l.b16 %v3043
    %v4352 = vunpack.c.h.b16 %v3043
    %v4353 = vunpack.c.l.b16 %v3044
    %v4354 = vunpack.c.h.b16 %v3044
    %v4355 = vunpack.c.l.b16 %v3045
    %v4356 = vunpack.c.h.b16 %v3045
    %v4357 = vunpack.c.l.b16 %v3046
    %v4358 = vunpack.c.h.b16 %v3046
    %v4359 = vunpack.c.l.b16 %v3047
    %v4360 = vunpack.c.h.b16 %v3047
    %v4361 = vunpack.c.l.b16 %v3048
    %v4362 = vunpack.c.h.b16 %v3048
    %v4363 = vunpack.c.l.b16 %v3049
    %v4364 = vunpack.c.h.b16 %v3049
    %v4365 = vunpack.c.l.b16 %v3050
    %v4366 = vunpack.c.h.b16 %v3050
    %v4367 = vunpack.c.l.b16 %v3051
    %v4368 = vunpack.c.h.b16 %v3051
    %v4369 = vunpack.c.l.b16 %v3052
    %v4370 = vunpack.c.h.b16 %v3052
    %v4371 = vunpack.c.l.b16 %v3053
    %v4372 = vunpack.c.h.b16 %v3053
    %v4373 = vunpack.c.l.b16 %v3054
    %v4374 = vunpack.c.h.b16 %v3054
    %v4375 = vunpack.c.l.b16 %v3055
    %v4376 = vunpack.c.h.b16 %v3055
    %v4377 = vunpack.c.l.b16 %v3056
    %v4378 = vunpack.c.h.b16 %v3056
    %v4379 = vunpack.c.l.b16 %v3057
    %v4380 = vunpack.c.h.b16 %v3057
    %v4381 = vunpack.c.l.b16 %v3058
    %v4382 = vunpack.c.h.b16 %v3058
    %v4383 = vunpack.c.l.b16 %v3059
    %v4384 = vunpack.c.h.b16 %v3059
    %v4385 = vunpack.c.l.b16 %v3060
    %v4386 = vunpack.c.h.b16 %v3060
    %v4387 = vunpack.c.l.b16 %v3061
    %v4388 = vunpack.c.h.b16 %v3061
    %v4389 = vunpack.c.l.b16 %v3062
    %v4390 = vunpack.c.h.b16 %v3062
    %v4391 = vunpack.c.l.b16 %v3063
    %v4392 = vunpack.c.h.b16 %v3063
    %v4393 = vunpack.c.l.b16 %v3064
    %v4394 = vunpack.c.h.b16 %v3064
    %v4395 = vunpack.c.l.b16 %v3065
    %v4396 = vunpack.c.h.b16 %v3065
    %v4397 = vunpack.c.l.b16 %v3066
    %v4398 = vunpack.c.h.b16 %v3066
    %v4399 = vunpack.c.l.b16 %v3067
    %v4400 = vunpack.c.h.b16 %v3067
    %v4401 = vunpack.c.l.b16 %v3068
    %v4402 = vunpack.c.h.b16 %v3068
    %v4403 = vunpack.c.l.b16 %v3069
    %v4404 = vunpack.c.h.b16 %v3069
    %v4405 = vunpack.c.l.b16 %v3070
    %v4406 = vunpack.c.h.b16 %v3070
    %v4407 = vunpack.c.l.b16 %v3071
    %v4408 = vunpack.c.h.b16 %v3071
    %v4409 = vunpack.c.l.b16 %v3072
    %v4410 = vunpack.c.h.b16 %v3072
    %v4411 = vunpack.c.l.b16 %v3073
    %v4412 = vunpack.c.h.b16 %v3073
    %v4413 = vunpack.c.l.b16 %v3074
    %v4414 = vunpack.c.h.b16 %v3074
    %v4415 = vunpack.c.l.b16 %v3075
    %v4416 = vunpack.c.h.b16 %v3075
    %v4417 = vunpack.c.l.b16 %v3076
    %v4418 = vunpack.c.h.b16 %v3076
    %v4419 = vunpack.c.l.b16 %v3077
    %v4420 = vunpack.c.h.b16 %v3077
    %v4421 = vunpack.c.l.b16 %v3078
    %v4422 = vunpack.c.h.b16 %v3078
    %v4423 = vunpack.c.l.b16 %v3079
    %v4424 = vunpack.c.h.b16 %v3079
    %v4425 = vunpack.c.l.b16 %v3080
    %v4426 = vunpack.c.h.b16 %v3080
    %v4427 = vunpack.c.l.b16 %v3081
    %v4428 = vunpack.c.h.b16 %v3081
    %v4429 = vunpack.c.l.b16 %v3082
    %v4430 = vunpack.c.h.b16 %v3082
    %v4431 = vunpack.c.l.b16 %v3083
    %v4432 = vunpack.c.h.b16 %v3083
    %v4433 = vunpack.c.l.b16 %v3084
    %v4434 = vunpack.c.h.b16 %v3084
    %v4435 = vunpack.c.l.b16 %v3085
    %v4436 = vunpack.c.h.b16 %v3085
    %v4437 = vunpack.c.l.b16 %v3086
    %v4438 = vunpack.c.h.b16 %v3086
    %v4439 = vunpack.c.l.b16 %v3087
    %v4440 = vunpack.c.h.b16 %v3087
    %v4441 = vunpack.c.l.b16 %v3088
    %v4442 = vunpack.c.h.b16 %v3088
    %v4443 = vunpack.c.l.b16 %v3089
    %v4444 = vunpack.c.h.b16 %v3089
    %v4445 = vunpack.c.l.b16 %v3090
    %v4446 = vunpack.c.h.b16 %v3090
    %v4447 = vunpack.c.l.b16 %v3091
    %v4448 = vunpack.c.h.b16 %v3091
    %v4449 = vunpack.c.l.b16 %v3092
    %v4450 = vunpack.c.h.b16 %v3092
    %v4451 = vunpack.c.l.b16 %v3093
    %v4452 = vunpack.c.h.b16 %v3093
    %v4453 = vunpack.c.l.b16 %v3094
    %v4454 = vunpack.c.h.b16 %v3094
    %v4455 = vunpack.c.l.b16 %v3095
    %v4456 = vunpack.c.h.b16 %v3095
    %v4457 = vunpack.c.l.b16 %v3096
    %v4458 = vunpack.c.h.b16 %v3096
    %v4459 = vunpack.c.l.b16 %v3097
    %v4460 = vunpack.c.h.b16 %v3097
    %v4461 = vunpack.c.l.b16 %v3098
    %v4462 = vunpack.c.h.b16 %v3098
    %v4463 = vunpack.c.l.b16 %v3099
    %v4464 = vunpack.c.h.b16 %v3099
    %v4465 = vunpack.c.l.b16 %v3100
    %v4466 = vunpack.c.h.b16 %v3100
    %v4467 = vunpack.c.l.b16 %v3101
    %v4468 = vunpack.c.h.b16 %v3101
    %v4469 = vunpack.c.l.b16 %v3102
    %v4470 = vunpack.c.h.b16 %v3102
    %v4471 = vunpack.c.l.b16 %v3103
    %v4472 = vunpack.c.h.b16 %v3103
    %v4473 = vunpack.c.l.b16 %v3104
    %v4474 = vunpack.c.h.b16 %v3104
    %v4475 = vunpack.c.l.b16 %v3105
    %v4476 = vunpack.c.h.b16 %v3105
    %v4477 = vunpack.c.l.b16 %v3106
    %v4478 = vunpack.c.h.b16 %v3106
    %v4479 = vunpack.c.l.b16 %v3107
    %v4480 = vunpack.c.h.b16 %v3107
    %v4481 = vunpack.c.l.b16 %v3108
    %v4482 = vunpack.c.h.b16 %v3108
    %v4483 = vunpack.c.l.b16 %v3109
    %v4484 = vunpack.c.h.b16 %v3109
    %v4485 = vunpack.c.l.b16 %v3110
    %v4486 = vunpack.c.h.b16 %v3110
    %v4487 = vunpack.c.l.b16 %v3111
    %v4488 = vunpack.c.h.b16 %v3111
    %v4489 = vunpack.c.l.b16 %v3112
    %v4490 = vunpack.c.h.b16 %v3112
    %v4491 = vunpack.c.l.b16 %v3113
    %v4492 = vunpack.c.h.b16 %v3113
    %v4493 = vunpack.c.l.b16 %v3114
    %v4494 = vunpack.c.h.b16 %v3114
    %v4495 = vunpack.c.l.b16 %v3115
    %v4496 = vunpack.c.h.b16 %v3115
    %v4497 = vunpack.c.l.b16 %v3116
    %v4498 = vunpack.c.h.b16 %v3116
    %v4499 = vunpack.c.l.b16 %v3117
    %v4500 = vunpack.c.h.b16 %v3117
    %v4501 = vunpack.c.l.b16 %v3118
    %v4502 = vunpack.c.h.b16 %v3118
    %v4503 = vunpack.c.l.b16 %v3119
    %v4504 = vunpack.c.h.b16 %v3119
    %v4505 = vunpack.c.l.b16 %v3120
    %v4506 = vunpack.c.h.b16 %v3120
    %v4507 = vunpack.c.l.b16 %v3121
    %v4508 = vunpack.c.h.b16 %v3121
    %v4509 = vunpack.c.l.b16 %v3122
    %v4510 = vunpack.c.h.b16 %v3122
    %v4511 = vunpack.c.l.b16 %v3123
    %v4512 = vunpack.c.h.b16 %v3123
    %v4513 = vunpack.c.l.b16 %v3124
    %v4514 = vunpack.c.h.b16 %v3124
    %v4515 = vunpack.c.l.b16 %v3125
    %v4516 = vunpack.c.h.b16 %v3125
    %v4517 = vunpack.c.l.b16 %v3126
    %v4518 = vunpack.c.h.b16 %v3126
    %v4519 = vunpack.c.l.b16 %v3127
    %v4520 = vunpack.c.h.b16 %v3127
    %v4521 = vunpack.c.l.b16 %v3128
    %v4522 = vunpack.c.h.b16 %v3128
    %v4523 = vunpack.c.l.b16 %v3129
    %v4524 = vunpack.c.h.b16 %v3129
    %v4525 = vunpack.c.l.b16 %v3130
    %v4526 = vunpack.c.h.b16 %v3130
    %v4527 = vunpack.c.l.b16 %v3131
    %v4528 = vunpack.c.h.b16 %v3131
    %v4529 = vunpack.c.l.b16 %v3132
    %v4530 = vunpack.c.h.b16 %v3132
    %v4531 = vunpack.c.l.b16 %v3133
    %v4532 = vunpack.c.h.b16 %v3133
    %v4533 = vunpack.c.l.b16 %v3134
    %v4534 = vunpack.c.h.b16 %v3134
    %v4535 = vunpack.c.l.b16 %v3135
    %v4536 = vunpack.c.h.b16 %v3135
    %v4537 = vunpack.c.l.b16 %v3136
    %v4538 = vunpack.c.h.b16 %v3136
    %v4539 = vunpack.c.l.b16 %v3137
    %v4540 = vunpack.c.h.b16 %v3137
    %v4541 = vunpack.c.l.b16 %v3138
    %v4542 = vunpack.c.h.b16 %v3138
    %v4543 = vunpack.c.l.b16 %v3139
    %v4544 = vunpack.c.h.b16 %v3139
    %v4545 = vunpack.c.l.b16 %v3140
    %v4546 = vunpack.c.h.b16 %v3140
    %v4547 = vunpack.c.l.b16 %v3141
    %v4548 = vunpack.c.h.b16 %v3141
    %v4549 = vunpack.c.l.b16 %v3142
    %v4550 = vunpack.c.h.b16 %v3142
    %v4551 = vunpack.c.l.b16 %v3143
    %v4552 = vunpack.c.h.b16 %v3143
    %v4553 = vunpack.c.l.b16 %v3144
    %v4554 = vunpack.c.h.b16 %v3144
    %v4555 = vunpack.c.l.b16 %v3145
    %v4556 = vunpack.c.h.b16 %v3145
    %v4557 = vunpack.c.l.b16 %v3146
    %v4558 = vunpack.c.h.b16 %v3146
    %v4559 = vunpack.c.l.b16 %v3147
    %v4560 = vunpack.c.h.b16 %v3147
    %v4561 = vunpack.c.l.b16 %v3148
    %v4562 = vunpack.c.h.b16 %v3148
    %v4563 = vunpack.c.l.b16 %v3149
    %v4564 = vunpack.c.h.b16 %v3149
    %v4565 = vunpack.c.l.b16 %v3150
    %v4566 = vunpack.c.h.b16 %v3150
    %v4567 = vunpack.c.l.b16 %v3151
    %v4568 = vunpack.c.h.b16 %v3151
    %v4569 = vunpack.c.l.b16 %v3152
    %v4570 = vunpack.c.h.b16 %v3152
    %v4571 = vunpack.c.l.b16 %v3153
    %v4572 = vunpack.c.h.b16 %v3153
    %v4573 = vunpack.c.l.b16 %v3154
    %v4574 = vunpack.c.h.b16 %v3154
    %v4575 = vunpack.c.l.b16 %v3155
    %v4576 = vunpack.c.h.b16 %v3155
    %v4577 = vunpack.c.l.b16 %v3156
    %v4578 = vunpack.c.h.b16 %v3156
    %v4579 = vunpack.c.l.b16 %v3157
    %v4580 = vunpack.c.h.b16 %v3157
    %v4581 = vunpack.c.l.b16 %v3158
    %v4582 = vunpack.c.h.b16 %v3158
    %v4583 = vunpack.c.l.b16 %v3159
    %v4584 = vunpack.c.h.b16 %v3159
    %v4585 = vunpack.c.l.b16 %v3160
    %v4586 = vunpack.c.h.b16 %v3160
    %v4587 = vunpack.c.l.b16 %v3161
    %v4588 = vunpack.c.h.b16 %v3161
    %v4589 = vunpack.c.l.b16 %v3162
    %v4590 = vunpack.c.h.b16 %v3162
    %v4591 = vunpack.c.l.b16 %v3163
    %v4592 = vunpack.c.h.b16 %v3163
    %v4593 = vunpack.c.l.b16 %v3164
    %v4594 = vunpack.c.h.b16 %v3164
    %v4595 = vunpack.c.l.b16 %v3165
    %v4596 = vunpack.c.h.b16 %v3165
    %v4597 = vunpack.c.l.b16 %v3166
    %v4598 = vunpack.c.h.b16 %v3166
    %v4599 = vunpack.c.l.b16 %v3167
    %v4600 = vunpack.c.h.b16 %v3167
    %v4601 = vunpack.c.l.b16 %v3168
    %v4602 = vunpack.c.h.b16 %v3168
    %v4603 = vunpack.c.l.b16 %v3169
    %v4604 = vunpack.c.h.b16 %v3169
    %v4605 = vunpack.c.l.b16 %v3170
    %v4606 = vunpack.c.h.b16 %v3170
    %v4607 = vunpack.c.l.b16 %v3171
    %v4608 = vunpack.c.h.b16 %v3171
    %v4609 = vunpack.c.l.b16 %v3172
    %v4610 = vunpack.c.h.b16 %v3172
    %v4611 = vunpack.c.l.b16 %v3173
    %v4612 = vunpack.c.h.b16 %v3173
    %v4613 = vunpack.c.l.b16 %v3174
    %v4614 = vunpack.c.h.b16 %v3174
    %v4615 = vunpack.c.l.b16 %v3175
    %v4616 = vunpack.c.h.b16 %v3175
    %v4617 = vunpack.c.l.b16 %v3176
    %v4618 = vunpack.c.h.b16 %v3176
    %v4619 = vunpack.c.l.b16 %v3177
    %v4620 = vunpack.c.h.b16 %v3177
    %v4621 = vunpack.c.l.b16 %v3178
    %v4622 = vunpack.c.h.b16 %v3178
    %v4623 = vunpack.c.l.b16 %v3179
    %v4624 = vunpack.c.h.b16 %v3179
    %v4625 = vunpack.c.l.b16 %v3180
    %v4626 = vunpack.c.h.b16 %v3180
    %v4627 = vunpack.c.l.b16 %v3181
    %v4628 = vunpack.c.h.b16 %v3181
    %v4629 = vunpack.c.l.b16 %v3182
    %v4630 = vunpack.c.h.b16 %v3182
    %v4631 = vunpack.c.l.b16 %v3183
    %v4632 = vunpack.c.h.b16 %v3183
    %v4633 = vunpack.c.l.b16 %v3184
    %v4634 = vunpack.c.h.b16 %v3184
    %v4635 = vunpack.c.l.b16 %v3185
    %v4636 = vunpack.c.h.b16 %v3185
    %v4637 = vunpack.c.l.b16 %v3186
    %v4638 = vunpack.c.h.b16 %v3186
    %v4639 = vunpack.c.l.b16 %v3187
    %v4640 = vunpack.c.h.b16 %v3187
    %v4641 = vunpack.c.l.b16 %v3188
    %v4642 = vunpack.c.h.b16 %v3188
    %v4643 = vunpack.c.l.b16 %v3189
    %v4644 = vunpack.c.h.b16 %v3189
    %v4645 = vunpack.c.l.b16 %v3190
    %v4646 = vunpack.c.h.b16 %v3190
    %v4647 = vunpack.c.l.b16 %v3191
    %v4648 = vunpack.c.h.b16 %v3191
    %v4649 = vunpack.c.l.b16 %v3192
    %v4650 = vunpack.c.h.b16 %v3192
    %v4651 = vunpack.c.l.b16 %v3193
    %v4652 = vunpack.c.h.b16 %v3193
    %v4653 = vunpack.c.l.b16 %v3194
    %v4654 = vunpack.c.h.b16 %v3194
    %v4655 = vunpack.c.l.b16 %v3195
    %v4656 = vunpack.c.h.b16 %v3195
    %v4657 = vunpack.c.l.b16 %v3196
    %v4658 = vunpack.c.h.b16 %v3196
    %v4659 = vunpack.c.l.b16 %v3197
    %v4660 = vunpack.c.h.b16 %v3197
    %v4661 = vunpack.c.l.b16 %v3198
    %v4662 = vunpack.c.h.b16 %v3198
    %v4663 = vunpack.c.l.b16 %v3199
    %v4664 = vunpack.c.h.b16 %v3199
    %v4665 = vunpack.c.l.b16 %v3200
    %v4666 = vunpack.c.h.b16 %v3200
    %v4667 = vunpack.c.l.b16 %v3201
    %v4668 = vunpack.c.h.b16 %v3201
    %v4669 = vunpack.c.l.b16 %v3202
    %v4670 = vunpack.c.h.b16 %v3202
    %v4671 = vunpack.c.l.b16 %v3203
    %v4672 = vunpack.c.h.b16 %v3203
    %v4673 = vunpack.c.l.b16 %v3204
    %v4674 = vunpack.c.h.b16 %v3204
    %v4675 = vunpack.c.l.b16 %v3205
    %v4676 = vunpack.c.h.b16 %v3205
    %v4677 = vunpack.c.l.b16 %v3206
    %v4678 = vunpack.c.h.b16 %v3206
    %v4679 = vunpack.c.l.b16 %v3207
    %v4680 = vunpack.c.h.b16 %v3207
    %v4681 = vunpack.c.l.b16 %v3208
    %v4682 = vunpack.c.h.b16 %v3208
    %v4683 = vunpack.c.l.b16 %v3209
    %v4684 = vunpack.c.h.b16 %v3209
    %v4685 = vunpack.c.l.b16 %v3210
    %v4686 = vunpack.c.h.b16 %v3210
    %v4687 = vunpack.c.l.b16 %v3211
    %v4688 = vunpack.c.h.b16 %v3211
    %v4689 = vunpack.c.l.b16 %v3212
    %v4690 = vunpack.c.h.b16 %v3212
    %v4691 = vunpack.c.l.b16 %v3213
    %v4692 = vunpack.c.h.b16 %v3213
    %v4693 = vunpack.c.l.b16 %v3214
    %v4694 = vunpack.c.h.b16 %v3214
    %v4695 = vunpack.c.l.b16 %v3215
    %v4696 = vunpack.c.h.b16 %v3215
    %v4697 = vunpack.c.l.b16 %v3216
    %v4698 = vunpack.c.h.b16 %v3216
    %v4699 = vunpack.c.l.b16 %v3217
    %v4700 = vunpack.c.h.b16 %v3217
    %v4701 = vunpack.c.l.b16 %v3218
    %v4702 = vunpack.c.h.b16 %v3218
    %v4703 = vunpack.c.l.b16 %v3219
    %v4704 = vunpack.c.h.b16 %v3219
    %v4705 = vunpack.c.l.b16 %v3220
    %v4706 = vunpack.c.h.b16 %v3220
    %v4707 = vunpack.c.l.b16 %v3221
    %v4708 = vunpack.c.h.b16 %v3221
    %v4709 = vunpack.c.l.b16 %v3222
    %v4710 = vunpack.c.h.b16 %v3222
    %v4711 = vunpack.c.l.b16 %v3223
    %v4712 = vunpack.c.h.b16 %v3223
    %v4713 = vunpack.c.l.b16 %v3224
    %v4714 = vunpack.c.h.b16 %v3224
    %v4715 = vunpack.c.l.b16 %v3225
    %v4716 = vunpack.c.h.b16 %v3225
    %v4717 = vunpack.c.l.b16 %v3226
    %v4718 = vunpack.c.h.b16 %v3226
    %v4719 = vunpack.c.l.b16 %v3227
    %v4720 = vunpack.c.h.b16 %v3227
    %v4721 = vunpack.c.l.b16 %v3228
    %v4722 = vunpack.c.h.b16 %v3228
    %v4723 = vunpack.c.l.b16 %v3229
    %v4724 = vunpack.c.h.b16 %v3229
    %v4725 = vunpack.c.l.b16 %v3230
    %v4726 = vunpack.c.h.b16 %v3230
    %v4727 = vunpack.c.l.b16 %v3231
    %v4728 = vunpack.c.h.b16 %v3231
    %v4729 = vunpack.c.l.b16 %v3232
    %v4730 = vunpack.c.h.b16 %v3232
    %v4731 = vunpack.c.l.b16 %v3233
    %v4732 = vunpack.c.h.b16 %v3233
    %v4733 = vunpack.c.l.b16 %v3234
    %v4734 = vunpack.c.h.b16 %v3234
    %v4735 = vunpack.c.l.b16 %v3235
    %v4736 = vunpack.c.h.b16 %v3235
    %v4737 = vunpack.c.l.b16 %v3236
    %v4738 = vunpack.c.h.b16 %v3236
    %v4739 = vunpack.c.l.b16 %v3237
    %v4740 = vunpack.c.h.b16 %v3237
    %v4741 = vunpack.c.l.b16 %v3238
    %v4742 = vunpack.c.h.b16 %v3238
    %v4743 = vunpack.c.l.b16 %v3239
    %v4744 = vunpack.c.h.b16 %v3239
    %v4745 = vunpack.c.l.b16 %v3240
    %v4746 = vunpack.c.h.b16 %v3240
    %v4747 = vunpack.c.l.b16 %v3241
    %v4748 = vunpack.c.h.b16 %v3241
    %v4749 = vunpack.c.l.b16 %v3242
    %v4750 = vunpack.c.h.b16 %v3242
    %v4751 = vunpack.c.l.b16 %v3243
    %v4752 = vunpack.c.h.b16 %v3243
    %v4753 = vunpack.c.l.b16 %v3244
    %v4754 = vunpack.c.h.b16 %v3244
    %v4755 = vunpack.c.l.b16 %v3245
    %v4756 = vunpack.c.h.b16 %v3245
    %v4757 = vunpack.c.l.b16 %v3246
    %v4758 = vunpack.c.h.b16 %v3246
    %v4759 = vunpack.c.l.b16 %v3247
    %v4760 = vunpack.c.h.b16 %v3247
    %v4761 = vunpack.c.l.b16 %v3248
    %v4762 = vunpack.c.h.b16 %v3248
    %v4763 = vunpack.c.l.b16 %v3249
    %v4764 = vunpack.c.h.b16 %v3249
    %v4765 = vunpack.c.l.b16 %v3250
    %v4766 = vunpack.c.h.b16 %v3250
    %v4767 = vunpack.c.l.b16 %v3251
    %v4768 = vunpack.c.h.b16 %v3251
    %v4769 = vunpack.c.l.b16 %v3252
    %v4770 = vunpack.c.h.b16 %v3252
    %v4771 = vunpack.c.l.b16 %v3253
    %v4772 = vunpack.c.h.b16 %v3253
    %v4773 = vunpack.c.l.b16 %v3254
    %v4774 = vunpack.c.h.b16 %v3254
    %v4775 = vunpack.c.l.b16 %v3255
    %v4776 = vunpack.c.h.b16 %v3255
    %v4777 = vunpack.c.l.b16 %v3256
    %v4778 = vunpack.c.h.b16 %v3256
    %v4779 = vunpack.c.l.b16 %v3257
    %v4780 = vunpack.c.h.b16 %v3257
    %v4781 = vunpack.c.l.b16 %v3258
    %v4782 = vunpack.c.h.b16 %v3258
    %v4783 = vunpack.c.l.b16 %v3259
    %v4784 = vunpack.c.h.b16 %v3259
    %v4785 = vunpack.c.l.b16 %v3260
    %v4786 = vunpack.c.h.b16 %v3260
    %v4787 = vunpack.c.l.b16 %v3261
    %v4788 = vunpack.c.h.b16 %v3261
    %v4789 = vunpack.c.l.b16 %v3262
    %v4790 = vunpack.c.h.b16 %v3262
    %v4791 = vunpack.c.l.b16 %v3263
    %v4792 = vunpack.c.h.b16 %v3263
    %v4793 = vunpack.c.l.b16 %v3264
    %v4794 = vunpack.c.h.b16 %v3264
    %v4795 = vunpack.c.l.b16 %v3265
    %v4796 = vunpack.c.h.b16 %v3265
    %v4797 = vunpack.c.l.b16 %v3266
    %v4798 = vunpack.c.h.b16 %v3266
    %v4799 = vunpack.c.l.b16 %v3267
    %v4800 = vunpack.c.h.b16 %v3267
    %v4801 = vunpack.c.l.b16 %v3268
    %v4802 = vunpack.c.h.b16 %v3268
    %v4803 = vunpack.c.l.b16 %v3269
    %v4804 = vunpack.c.h.b16 %v3269
    %v4805 = vunpack.c.l.b16 %v3270
    %v4806 = vunpack.c.h.b16 %v3270
    %v4807 = vpack.c.b16 %v3791, %v3783
    %v4808 = vpack.c.b16 %v3792, %v3784
    %v4809 = vpack.c.b16 %v3793, %v3785
    %v4810 = vpack.c.b16 %v3794, %v3786
    %v4811 = vpack.c.b16 %v3795, %v3787
    %v4812 = vpack.c.b16 %v3796, %v3788
    %v4813 = vpack.c.b16 %v3797, %v3789
    %v4814 = vpack.c.b16 %v3798, %v3790
    %v4815 = vpack.c.b16 %v3807, %v3799
    %v4816 = vpack.c.b16 %v3808, %v3800
    %v4817 = vpack.c.b16 %v3809, %v3801
    %v4818 = vpack.c.b16 %v3810, %v3802
    %v4819 = vpack.c.b16 %v3811, %v3803
    %v4820 = vpack.c.b16 %v3812, %v3804
    %v4821 = vpack.c.b16 %v3813, %v3805
    %v4822 = vpack.c.b16 %v3814, %v3806
    %v4823 = vpack.c.b16 %v3823, %v3815
    %v4824 = vpack.c.b16 %v3824, %v3816
    %v4825 = vpack.c.b16 %v3825, %v3817
    %v4826 = vpack.c.b16 %v3826, %v3818
    %v4827 = vpack.c.b16 %v3827, %v3819
    %v4828 = vpack.c.b16 %v3828, %v3820
    %v4829 = vpack.c.b16 %v3829, %v3821
    %v4830 = vpack.c.b16 %v3830, %v3822
    %v4831 = vpack.c.b16 %v3839, %v3831
    %v4832 = vpack.c.b16 %v3840, %v3832
    %v4833 = vpack.c.b16 %v3841, %v3833
    %v4834 = vpack.c.b16 %v3842, %v3834
    %v4835 = vpack.c.b16 %v3843, %v3835
    %v4836 = vpack.c.b16 %v3844, %v3836
    %v4837 = vpack.c.b16 %v3845, %v3837
    %v4838 = vpack.c.b16 %v3846, %v3838
    %v4839 = vpack.c.b16 %v3855, %v3847
    %v4840 = vpack.c.b16 %v3856, %v3848
    %v4841 = vpack.c.b16 %v3857, %v3849
    %v4842 = vpack.c.b16 %v3858, %v3850
    %v4843 = vpack.c.b16 %v3859, %v3851
    %v4844 = vpack.c.b16 %v3860, %v3852
    %v4845 = vpack.c.b16 %v3861, %v3853
    %v4846 = vpack.c.b16 %v3862, %v3854
    %v4847 = vpack.c.b16 %v3871, %v3863
    %v4848 = vpack.c.b16 %v3872, %v3864
    %v4849 = vpack.c.b16 %v3873, %v3865
    %v4850 = vpack.c.b16 %v3874, %v3866
    %v4851 = vpack.c.b16 %v3875, %v3867
    %v4852 = vpack.c.b16 %v3876, %v3868
    %v4853 = vpack.c.b16 %v3877, %v3869
    %v4854 = vpack.c.b16 %v3878, %v3870
    %v4855 = vpack.c.b16 %v3887, %v3879
    %v4856 = vpack.c.b16 %v3888, %v3880
    %v4857 = vpack.c.b16 %v3889, %v3881
    %v4858 = vpack.c.b16 %v3890, %v3882
    %v4859 = vpack.c.b16 %v3891, %v3883
    %v4860 = vpack.c.b16 %v3892, %v3884
    %v4861 = vpack.c.b16 %v3893, %v3885
    %v4862 = vpack.c.b16 %v3894, %v3886
    %v4863 = vpack.c.b16 %v3903, %v3895
    %v4864 = vpack.c.b16 %v3904, %v3896
    %v4865 = vpack.c.b16 %v3905, %v3897
    %v4866 = vpack.c.b16 %v3906, %v3898
    %v4867 = vpack.c.b16 %v3907, %v3899
    %v4868 = vpack.c.b16 %v3908, %v3900
    %v4869 = vpack.c.b16 %v3909, %v3901
    %v4870 = vpack.c.b16 %v3910, %v3902
    %v4871 = vpack.c.b16 %v3919, %v3911
    %v4872 = vpack.c.b16 %v3920, %v3912
    %v4873 = vpack.c.b16 %v3921, %v3913
    %v4874 = vpack.c.b16 %v3922, %v3914
    %v4875 = vpack.c.b16 %v3923, %v3915
    %v4876 = vpack.c.b16 %v3924, %v3916
    %v4877 = vpack.c.b16 %v3925, %v3917
    %v4878 = vpack.c.b16 %v3926, %v3918
    %v4879 = vpack.c.b16 %v3935, %v3927
    %v4880 = vpack.c.b16 %v3936, %v3928
    %v4881 = vpack.c.b16 %v3937, %v3929
    %v4882 = vpack.c.b16 %v3938, %v3930
    %v4883 = vpack.c.b16 %v3939, %v3931
    %v4884 = vpack.c.b16 %v3940, %v3932
    %v4885 = vpack.c.b16 %v3941, %v3933
    %v4886 = vpack.c.b16 %v3942, %v3934
    %v4887 = vpack.c.b16 %v3951, %v3943
    %v4888 = vpack.c.b16 %v3952, %v3944
    %v4889 = vpack.c.b16 %v3953, %v3945
    %v4890 = vpack.c.b16 %v3954, %v3946
    %v4891 = vpack.c.b16 %v3955, %v3947
    %v4892 = vpack.c.b16 %v3956, %v3948
    %v4893 = vpack.c.b16 %v3957, %v3949
    %v4894 = vpack.c.b16 %v3958, %v3950
    %v4895 = vpack.c.b16 %v3967, %v3959
    %v4896 = vpack.c.b16 %v3968, %v3960
    %v4897 = vpack.c.b16 %v3969, %v3961
    %v4898 = vpack.c.b16 %v3970, %v3962
    %v4899 = vpack.c.b16 %v3971, %v3963
    %v4900 = vpack.c.b16 %v3972, %v3964
    %v4901 = vpack.c.b16 %v3973, %v3965
    %v4902 = vpack.c.b16 %v3974, %v3966
    %v4903 = vpack.c.b16 %v3983, %v3975
    %v4904 = vpack.c.b16 %v3984, %v3976
    %v4905 = vpack.c.b16 %v3985, %v3977
    %v4906 = vpack.c.b16 %v3986, %v3978
    %v4907 = vpack.c.b16 %v3987, %v3979
    %v4908 = vpack.c.b16 %v3988, %v3980
    %v4909 = vpack.c.b16 %v3989, %v3981
    %v4910 = vpack.c.b16 %v3990, %v3982
    %v4911 = vpack.c.b16 %v3999, %v3991
    %v4912 = vpack.c.b16 %v4000, %v3992
    %v4913 = vpack.c.b16 %v4001, %v3993
    %v4914 = vpack.c.b16 %v4002, %v3994
    %v4915 = vpack.c.b16 %v4003, %v3995
    %v4916 = vpack.c.b16 %v4004, %v3996
    %v4917 = vpack.c.b16 %v4005, %v3997
    %v4918 = vpack.c.b16 %v4006, %v3998
    %v4919 = vpack.c.b16 %v4015, %v4007
    %v4920 = vpack.c.b16 %v4016, %v4008
    %v4921 = vpack.c.b16 %v4017, %v4009
    %v4922 = vpack.c.b16 %v4018, %v4010
    %v4923 = vpack.c.b16 %v4019, %v4011
    %v4924 = vpack.c.b16 %v4020, %v4012
    %v4925 = vpack.c.b16 %v4021, %v4013
    %v4926 = vpack.c.b16 %v4022, %v4014
    %v4927 = vpack.c.b16 %v4031, %v4023
    %v4928 = vpack.c.b16 %v4032, %v4024
    %v4929 = vpack.c.b16 %v4033, %v4025
    %v4930 = vpack.c.b16 %v4034, %v4026
    %v4931 = vpack.c.b16 %v4035, %v4027
    %v4932 = vpack.c.b16 %v4036, %v4028
    %v4933 = vpack.c.b16 %v4037, %v4029
    %v4934 = vpack.c.b16 %v4038, %v4030
    %v4935 = vpack.c.b16 %v4047, %v4039
    %v4936 = vpack.c.b16 %v4048, %v4040
    %v4937 = vpack.c.b16 %v4049, %v4041
    %v4938 = vpack.c.b16 %v4050, %v4042
    %v4939 = vpack.c.b16 %v4051, %v4043
    %v4940 = vpack.c.b16 %v4052, %v4044
    %v4941 = vpack.c.b16 %v4053, %v4045
    %v4942 = vpack.c.b16 %v4054, %v4046
    %v4943 = vpack.c.b16 %v4063, %v4055
    %v4944 = vpack.c.b16 %v4064, %v4056
    %v4945 = vpack.c.b16 %v4065, %v4057
    %v4946 = vpack.c.b16 %v4066, %v4058
    %v4947 = vpack.c.b16 %v4067, %v4059
    %v4948 = vpack.c.b16 %v4068, %v4060
    %v4949 = vpack.c.b16 %v4069, %v4061
    %v4950 = vpack.c.b16 %v4070, %v4062
    %v4951 = vpack.c.b16 %v4079, %v4071
    %v4952 = vpack.c.b16 %v4080, %v4072
    %v4953 = vpack.c.b16 %v4081, %v4073
    %v4954 = vpack.c.b16 %v4082, %v4074
    %v4955 = vpack.c.b16 %v4083, %v4075
    %v4956 = vpack.c.b16 %v4084, %v4076
    %v4957 = vpack.c.b16 %v4085, %v4077
    %v4958 = vpack.c.b16 %v4086, %v4078
    %v4959 = vpack.c.b16 %v4095, %v4087
    %v4960 = vpack.c.b16 %v4096, %v4088
    %v4961 = vpack.c.b16 %v4097, %v4089
    %v4962 = vpack.c.b16 %v4098, %v4090
    %v4963 = vpack.c.b16 %v4099, %v4091
    %v4964 = vpack.c.b16 %v4100, %v4092
    %v4965 = vpack.c.b16 %v4101, %v4093
    %v4966 = vpack.c.b16 %v4102, %v4094
    %v4967 = vpack.c.b16 %v4111, %v4103
    %v4968 = vpack.c.b16 %v4112, %v4104
    %v4969 = vpack.c.b16 %v4113, %v4105
    %v4970 = vpack.c.b16 %v4114, %v4106
    %v4971 = vpack.c.b16 %v4115, %v4107
    %v4972 = vpack.c.b16 %v4116, %v4108
    %v4973 = vpack.c.b16 %v4117, %v4109
    %v4974 = vpack.c.b16 %v4118, %v4110
    %v4975 = vpack.c.b16 %v4127, %v4119
    %v4976 = vpack.c.b16 %v4128, %v4120
    %v4977 = vpack.c.b16 %v4129, %v4121
    %v4978 = vpack.c.b16 %v4130, %v4122
    %v4979 = vpack.c.b16 %v4131, %v4123
    %v4980 = vpack.c.b16 %v4132, %v4124
    %v4981 = vpack.c.b16 %v4133, %v4125
    %v4982 = vpack.c.b16 %v4134, %v4126
    %v4983 = vpack.c.b16 %v4143, %v4135
    %v4984 = vpack.c.b16 %v4144, %v4136
    %v4985 = vpack.c.b16 %v4145, %v4137
    %v4986 = vpack.c.b16 %v4146, %v4138
    %v4987 = vpack.c.b16 %v4147, %v4139
    %v4988 = vpack.c.b16 %v4148, %v4140
    %v4989 = vpack.c.b16 %v4149, %v4141
    %v4990 = vpack.c.b16 %v4150, %v4142
    %v4991 = vpack.c.b16 %v4159, %v4151
    %v4992 = vpack.c.b16 %v4160, %v4152
    %v4993 = vpack.c.b16 %v4161, %v4153
    %v4994 = vpack.c.b16 %v4162, %v4154
    %v4995 = vpack.c.b16 %v4163, %v4155
    %v4996 = vpack.c.b16 %v4164, %v4156
    %v4997 = vpack.c.b16 %v4165, %v4157
    %v4998 = vpack.c.b16 %v4166, %v4158
    %v4999 = vpack.c.b16 %v4175, %v4167
    %v5000 = vpack.c.b16 %v4176, %v4168
    %v5001 = vpack.c.b16 %v4177, %v4169
    %v5002 = vpack.c.b16 %v4178, %v4170
    %v5003 = vpack.c.b16 %v4179, %v4171
    %v5004 = vpack.c.b16 %v4180, %v4172
    %v5005 = vpack.c.b16 %v4181, %v4173
    %v5006 = vpack.c.b16 %v4182, %v4174
    %v5007 = vpack.c.b16 %v4191, %v4183
    %v5008 = vpack.c.b16 %v4192, %v4184
    %v5009 = vpack.c.b16 %v4193, %v4185
    %v5010 = vpack.c.b16 %v4194, %v4186
    %v5011 = vpack.c.b16 %v4195, %v4187
    %v5012 = vpack.c.b16 %v4196, %v4188
    %v5013 = vpack.c.b16 %v4197, %v4189
    %v5014 = vpack.c.b16 %v4198, %v4190
    %v5015 = vpack.c.b16 %v4207, %v4199
    %v5016 = vpack.c.b16 %v4208, %v4200
    %v5017 = vpack.c.b16 %v4209, %v4201
    %v5018 = vpack.c.b16 %v4210, %v4202
    %v5019 = vpack.c.b16 %v4211, %v4203
    %v5020 = vpack.c.b16 %v4212, %v4204
    %v5021 = vpack.c.b16 %v4213, %v4205
    %v5022 = vpack.c.b16 %v4214, %v4206
    %v5023 = vpack.c.b16 %v4223, %v4215
    %v5024 = vpack.c.b16 %v4224, %v4216
    %v5025 = vpack.c.b16 %v4225, %v4217
    %v5026 = vpack.c.b16 %v4226, %v4218
    %v5027 = vpack.c.b16 %v4227, %v4219
    %v5028 = vpack.c.b16 %v4228, %v4220
    %v5029 = vpack.c.b16 %v4229, %v4221
    %v5030 = vpack.c.b16 %v4230, %v4222
    %v5031 = vpack.c.b16 %v4239, %v4231
    %v5032 = vpack.c.b16 %v4240, %v4232
    %v5033 = vpack.c.b16 %v4241, %v4233
    %v5034 = vpack.c.b16 %v4242, %v4234
    %v5035 = vpack.c.b16 %v4243, %v4235
    %v5036 = vpack.c.b16 %v4244, %v4236
    %v5037 = vpack.c.b16 %v4245, %v4237
    %v5038 = vpack.c.b16 %v4246, %v4238
    %v5039 = vpack.c.b16 %v4255, %v4247
    %v5040 = vpack.c.b16 %v4256, %v4248
    %v5041 = vpack.c.b16 %v4257, %v4249
    %v5042 = vpack.c.b16 %v4258, %v4250
    %v5043 = vpack.c.b16 %v4259, %v4251
    %v5044 = vpack.c.b16 %v4260, %v4252
    %v5045 = vpack.c.b16 %v4261, %v4253
    %v5046 = vpack.c.b16 %v4262, %v4254
    %v5047 = vpack.c.b16 %v4271, %v4263
    %v5048 = vpack.c.b16 %v4272, %v4264
    %v5049 = vpack.c.b16 %v4273, %v4265
    %v5050 = vpack.c.b16 %v4274, %v4266
    %v5051 = vpack.c.b16 %v4275, %v4267
    %v5052 = vpack.c.b16 %v4276, %v4268
    %v5053 = vpack.c.b16 %v4277, %v4269
    %v5054 = vpack.c.b16 %v4278, %v4270
    %v5055 = vpack.c.b16 %v4287, %v4279
    %v5056 = vpack.c.b16 %v4288, %v4280
    %v5057 = vpack.c.b16 %v4289, %v4281
    %v5058 = vpack.c.b16 %v4290, %v4282
    %v5059 = vpack.c.b16 %v4291, %v4283
    %v5060 = vpack.c.b16 %v4292, %v4284
    %v5061 = vpack.c.b16 %v4293, %v4285
    %v5062 = vpack.c.b16 %v4294, %v4286
    %v5063 = vpack.c.b16 %v4303, %v4295
    %v5064 = vpack.c.b16 %v4304, %v4296
    %v5065 = vpack.c.b16 %v4305, %v4297
    %v5066 = vpack.c.b16 %v4306, %v4298
    %v5067 = vpack.c.b16 %v4307, %v4299
    %v5068 = vpack.c.b16 %v4308, %v4300
    %v5069 = vpack.c.b16 %v4309, %v4301
    %v5070 = vpack.c.b16 %v4310, %v4302
    %v5071 = vpack.c.b16 %v4319, %v4311
    %v5072 = vpack.c.b16 %v4320, %v4312
    %v5073 = vpack.c.b16 %v4321, %v4313
    %v5074 = vpack.c.b16 %v4322, %v4314
    %v5075 = vpack.c.b16 %v4323, %v4315
    %v5076 = vpack.c.b16 %v4324, %v4316
    %v5077 = vpack.c.b16 %v4325, %v4317
    %v5078 = vpack.c.b16 %v4326, %v4318
    %v5079 = vpack.c.b16 %v4335, %v4327
    %v5080 = vpack.c.b16 %v4336, %v4328
    %v5081 = vpack.c.b16 %v4337, %v4329
    %v5082 = vpack.c.b16 %v4338, %v4330
    %v5083 = vpack.c.b16 %v4339, %v4331
    %v5084 = vpack.c.b16 %v4340, %v4332
    %v5085 = vpack.c.b16 %v4341, %v4333
    %v5086 = vpack.c.b16 %v4342, %v4334
    %v5087 = vpack.c.b16 %v4351, %v4343
    %v5088 = vpack.c.b16 %v4352, %v4344
    %v5089 = vpack.c.b16 %v4353, %v4345
    %v5090 = vpack.c.b16 %v4354, %v4346
    %v5091 = vpack.c.b16 %v4355, %v4347
    %v5092 = vpack.c.b16 %v4356, %v4348
    %v5093 = vpack.c.b16 %v4357, %v4349
    %v5094 = vpack.c.b16 %v4358, %v4350
    %v5095 = vpack.c.b16 %v4367, %v4359
    %v5096 = vpack.c.b16 %v4368, %v4360
    %v5097 = vpack.c.b16 %v4369, %v4361
    %v5098 = vpack.c.b16 %v4370, %v4362
    %v5099 = vpack.c.b16 %v4371, %v4363
    %v5100 = vpack.c.b16 %v4372, %v4364
    %v5101 = vpack.c.b16 %v4373, %v4365
    %v5102 = vpack.c.b16 %v4374, %v4366
    %v5103 = vpack.c.b16 %v4383, %v4375
    %v5104 = vpack.c.b16 %v4384, %v4376
    %v5105 = vpack.c.b16 %v4385, %v4377
    %v5106 = vpack.c.b16 %v4386, %v4378
    %v5107 = vpack.c.b16 %v4387, %v4379
    %v5108 = vpack.c.b16 %v4388, %v4380
    %v5109 = vpack.c.b16 %v4389, %v4381
    %v5110 = vpack.c.b16 %v4390, %v4382
    %v5111 = vpack.c.b16 %v4399, %v4391
    %v5112 = vpack.c.b16 %v4400, %v4392
    %v5113 = vpack.c.b16 %v4401, %v4393
    %v5114 = vpack.c.b16 %v4402, %v4394
    %v5115 = vpack.c.b16 %v4403, %v4395
    %v5116 = vpack.c.b16 %v4404, %v4396
    %v5117 = vpack.c.b16 %v4405, %v4397
    %v5118 = vpack.c.b16 %v4406, %v4398
    %v5119 = vpack.c.b16 %v4415, %v4407
    %v5120 = vpack.c.b16 %v4416, %v4408
    %v5121 = vpack.c.b16 %v4417, %v4409
    %v5122 = vpack.c.b16 %v4418, %v4410
    %v5123 = vpack.c.b16 %v4419, %v4411
    %v5124 = vpack.c.b16 %v4420, %v4412
    %v5125 = vpack.c.b16 %v4421, %v4413
    %v5126 = vpack.c.b16 %v4422, %v4414
    %v5127 = vpack.c.b16 %v4431, %v4423
    %v5128 = vpack.c.b16 %v4432, %v4424
    %v5129 = vpack.c.b16 %v4433, %v4425
    %v5130 = vpack.c.b16 %v4434, %v4426
    %v5131 = vpack.c.b16 %v4435, %v4427
    %v5132 = vpack.c.b16 %v4436, %v4428
    %v5133 = vpack.c.b16 %v4437, %v4429
    %v5134 = vpack.c.b16 %v4438, %v4430
    %v5135 = vpack.c.b16 %v4447, %v4439
    %v5136 = vpack.c.b16 %v4448, %v4440
    %v5137 = vpack.c.b16 %v4449, %v4441
    %v5138 = vpack.c.b16 %v4450, %v4442
    %v5139 = vpack.c.b16 %v4451, %v4443
    %v5140 = vpack.c.b16 %v4452, %v4444
    %v5141 = vpack.c.b16 %v4453, %v4445
    %v5142 = vpack.c.b16 %v4454, %v4446
    %v5143 = vpack.c.b16 %v4463, %v4455
    %v5144 = vpack.c.b16 %v4464, %v4456
    %v5145 = vpack.c.b16 %v4465, %v4457
    %v5146 = vpack.c.b16 %v4466, %v4458
    %v5147 = vpack.c.b16 %v4467, %v4459
    %v5148 = vpack.c.b16 %v4468, %v4460
    %v5149 = vpack.c.b16 %v4469, %v4461
    %v5150 = vpack.c.b16 %v4470, %v4462
    %v5151 = vpack.c.b16 %v4479, %v4471
    %v5152 = vpack.c.b16 %v4480, %v4472
    %v5153 = vpack.c.b16 %v4481, %v4473
    %v5154 = vpack.c.b16 %v4482, %v4474
    %v5155 = vpack.c.b16 %v4483, %v4475
    %v5156 = vpack.c.b16 %v4484, %v4476
    %v5157 = vpack.c.b16 %v4485, %v4477
    %v5158 = vpack.c.b16 %v4486, %v4478
    %v5159 = vpack.c.b16 %v4495, %v4487
    %v5160 = vpack.c.b16 %v4496, %v4488
    %v5161 = vpack.c.b16 %v4497, %v4489
    %v5162 = vpack.c.b16 %v4498, %v4490
    %v5163 = vpack.c.b16 %v4499, %v4491
    %v5164 = vpack.c.b16 %v4500, %v4492
    %v5165 = vpack.c.b16 %v4501, %v4493
    %v5166 = vpack.c.b16 %v4502, %v4494
    %v5167 = vpack.c.b16 %v4511, %v4503
    %v5168 = vpack.c.b16 %v4512, %v4504
    %v5169 = vpack.c.b16 %v4513, %v4505
    %v5170 = vpack.c.b16 %v4514, %v4506
    %v5171 = vpack.c.b16 %v4515, %v4507
    %v5172 = vpack.c.b16 %v4516, %v4508
    %v5173 = vpack.c.b16 %v4517, %v4509
    %v5174 = vpack.c.b16 %v4518, %v4510
    %v5175 = vpack.c.b16 %v4527, %v4519
    %v5176 = vpack.c.b16 %v4528, %v4520
    %v5177 = vpack.c.b16 %v4529, %v4521
    %v5178 = vpack.c.b16 %v4530, %v4522
    %v5179 = vpack.c.b16 %v4531, %v4523
    %v5180 = vpack.c.b16 %v4532, %v4524
    %v5181 = vpack.c.b16 %v4533, %v4525
    %v5182 = vpack.c.b16 %v4534, %v4526
    %v5183 = vpack.c.b16 %v4543, %v4535
    %v5184 = vpack.c.b16 %v4544, %v4536
    %v5185 = vpack.c.b16 %v4545, %v4537
    %v5186 = vpack.c.b16 %v4546, %v4538
    %v5187 = vpack.c.b16 %v4547, %v4539
    %v5188 = vpack.c.b16 %v4548, %v4540
    %v5189 = vpack.c.b16 %v4549, %v4541
    %v5190 = vpack.c.b16 %v4550, %v4542
    %v5191 = vpack.c.b16 %v4559, %v4551
    %v5192 = vpack.c.b16 %v4560, %v4552
    %v5193 = vpack.c.b16 %v4561, %v4553
    %v5194 = vpack.c.b16 %v4562, %v4554
    %v5195 = vpack.c.b16 %v4563, %v4555
    %v5196 = vpack.c.b16 %v4564, %v4556
    %v5197 = vpack.c.b16 %v4565, %v4557
    %v5198 = vpack.c.b16 %v4566, %v4558
    %v5199 = vpack.c.b16 %v4575, %v4567
    %v5200 = vpack.c.b16 %v4576, %v4568
    %v5201 = vpack.c.b16 %v4577, %v4569
    %v5202 = vpack.c.b16 %v4578, %v4570
    %v5203 = vpack.c.b16 %v4579, %v4571
    %v5204 = vpack.c.b16 %v4580, %v4572
    %v5205 = vpack.c.b16 %v4581, %v4573
    %v5206 = vpack.c.b16 %v4582, %v4574
    %v5207 = vpack.c.b16 %v4591, %v4583
    %v5208 = vpack.c.b16 %v4592, %v4584
    %v5209 = vpack.c.b16 %v4593, %v4585
    %v5210 = vpack.c.b16 %v4594, %v4586
    %v5211 = vpack.c.b16 %v4595, %v4587
    %v5212 = vpack.c.b16 %v4596, %v4588
    %v5213 = vpack.c.b16 %v4597, %v4589
    %v5214 = vpack.c.b16 %v4598, %v4590
    %v5215 = vpack.c.b16 %v4607, %v4599
    %v5216 = vpack.c.b16 %v4608, %v4600
    %v5217 = vpack.c.b16 %v4609, %v4601
    %v5218 = vpack.c.b16 %v4610, %v4602
    %v5219 = vpack.c.b16 %v4611, %v4603
    %v5220 = vpack.c.b16 %v4612, %v4604
    %v5221 = vpack.c.b16 %v4613, %v4605
    %v5222 = vpack.c.b16 %v4614, %v4606
    %v5223 = vpack.c.b16 %v4623, %v4615
    %v5224 = vpack.c.b16 %v4624, %v4616
    %v5225 = vpack.c.b16 %v4625, %v4617
    %v5226 = vpack.c.b16 %v4626, %v4618
    %v5227 = vpack.c.b16 %v4627, %v4619
    %v5228 = vpack.c.b16 %v4628, %v4620
    %v5229 = vpack.c.b16 %v4629, %v4621
    %v5230 = vpack.c.b16 %v4630, %v4622
    %v5231 = vpack.c.b16 %v4639, %v4631
    %v5232 = vpack.c.b16 %v4640, %v4632
    %v5233 = vpack.c.b16 %v4641, %v4633
    %v5234 = vpack.c.b16 %v4642, %v4634
    %v5235 = vpack.c.b16 %v4643, %v4635
    %v5236 = vpack.c.b16 %v4644, %v4636
    %v5237 = vpack.c.b16 %v4645, %v4637
    %v5238 = vpack.c.b16 %v4646, %v4638
    %v5239 = vpack.c.b16 %v4655, %v4647
    %v5240 = vpack.c.b16 %v4656, %v4648
    %v5241 = vpack.c.b16 %v4657, %v4649
    %v5242 = vpack.c.b16 %v4658, %v4650
    %v5243 = vpack.c.b16 %v4659, %v4651
    %v5244 = vpack.c.b16 %v4660, %v4652
    %v5245 = vpack.c.b16 %v4661, %v4653
    %v5246 = vpack.c.b16 %v4662, %v4654
    %v5247 = vpack.c.b16 %v4671, %v4663
    %v5248 = vpack.c.b16 %v4672, %v4664
    %v5249 = vpack.c.b16 %v4673, %v4665
    %v5250 = vpack.c.b16 %v4674, %v4666
    %v5251 = vpack.c.b16 %v4675, %v4667
    %v5252 = vpack.c.b16 %v4676, %v4668
    %v5253 = vpack.c.b16 %v4677, %v4669
    %v5254 = vpack.c.b16 %v4678, %v4670
    %v5255 = vpack.c.b16 %v4687, %v4679
    %v5256 = vpack.c.b16 %v4688, %v4680
    %v5257 = vpack.c.b16 %v4689, %v4681
    %v5258 = vpack.c.b16 %v4690, %v4682
    %v5259 = vpack.c.b16 %v4691, %v4683
    %v5260 = vpack.c.b16 %v4692, %v4684
    %v5261 = vpack.c.b16 %v4693, %v4685
    %v5262 = vpack.c.b16 %v4694, %v4686
    %v5263 = vpack.c.b16 %v4703, %v4695
    %v5264 = vpack.c.b16 %v4704, %v4696
    %v5265 = vpack.c.b16 %v4705, %v4697
    %v5266 = vpack.c.b16 %v4706, %v4698
    %v5267 = vpack.c.b16 %v4707, %v4699
    %v5268 = vpack.c.b16 %v4708, %v4700
    %v5269 = vpack.c.b16 %v4709, %v4701
    %v5270 = vpack.c.b16 %v4710, %v4702
    %v5271 = vpack.c.b16 %v4719, %v4711
    %v5272 = vpack.c.b16 %v4720, %v4712
    %v5273 = vpack.c.b16 %v4721, %v4713
    %v5274 = vpack.c.b16 %v4722, %v4714
    %v5275 = vpack.c.b16 %v4723, %v4715
    %v5276 = vpack.c.b16 %v4724, %v4716
    %v5277 = vpack.c.b16 %v4725, %v4717
    %v5278 = vpack.c.b16 %v4726, %v4718
    %v5279 = vpack.c.b16 %v4735, %v4727
    %v5280 = vpack.c.b16 %v4736, %v4728
    %v5281 = vpack.c.b16 %v4737, %v4729
    %v5282 = vpack.c.b16 %v4738, %v4730
    %v5283 = vpack.c.b16 %v4739, %v4731
    %v5284 = vpack.c.b16 %v4740, %v4732
    %v5285 = vpack.c.b16 %v4741, %v4733
    %v5286 = vpack.c.b16 %v4742, %v4734
    %v5287 = vpack.c.b16 %v4751, %v4743
    %v5288 = vpack.c.b16 %v4752, %v4744
    %v5289 = vpack.c.b16 %v4753, %v4745
    %v5290 = vpack.c.b16 %v4754, %v4746
    %v5291 = vpack.c.b16 %v4755, %v4747
    %v5292 = vpack.c.b16 %v4756, %v4748
    %v5293 = vpack.c.b16 %v4757, %v4749
    %v5294 = vpack.c.b16 %v4758, %v4750
    %v5295 = vpack.c.b16 %v4767, %v4759
    %v5296 = vpack.c.b16 %v4768, %v4760
    %v5297 = vpack.c.b16 %v4769, %v4761
    %v5298 = vpack.c.b16 %v4770, %v4762
    %v5299 = vpack.c.b16 %v4771, %v4763
    %v5300 = vpack.c.b16 %v4772, %v4764
    %v5301 = vpack.c.b16 %v4773, %v4765
    %v5302 = vpack.c.b16 %v4774, %v4766
    %v5303 = vpack.c.b16 %v4783, %v4775
    %v5304 = vpack.c.b16 %v4784, %v4776
    %v5305 = vpack.c.b16 %v4785, %v4777
    %v5306 = vpack.c.b16 %v4786, %v4778
    %v5307 = vpack.c.b16 %v4787, %v4779
    %v5308 = vpack.c.b16 %v4788, %v4780
    %v5309 = vpack.c.b16 %v4789, %v4781
    %v5310 = vpack.c.b16 %v4790, %v4782
    %v5311 = vpack.c.b16 %v4799, %v4791
    %v5312 = vpack.c.b16 %v4800, %v4792
    %v5313 = vpack.c.b16 %v4801, %v4793
    %v5314 = vpack.c.b16 %v4802, %v4794
    %v5315 = vpack.c.b16 %v4803, %v4795
    %v5316 = vpack.c.b16 %v4804, %v4796
    %v5317 = vpack.c.b16 %v4805, %v4797
    %v5318 = vpack.c.b16 %v4806, %v4798
    %5831 = vmatprep.subr.bf16.mxu0 %v4808
    %5832 = vmatpush1.bf16.msra.mxu0 %v4807
    %5833 = vmatprep.subr.bf16.mxu0 %v4816
    %5834 = vmatpush1.bf16.msra.mxu0 %v4815
    %5835 = vmatprep.subr.bf16.mxu0 %v4824
    %5836 = vmatpush1.bf16.msra.mxu0 %v4823
    %5837 = vmatprep.subr.bf16.mxu0 %v4832
    %5838 = vmatpush1.bf16.msra.mxu0 %v4831
    %5839 = vmatprep.subr.bf16.mxu0 %v4840
    %5840 = vmatpush1.bf16.msra.mxu0 %v4839
    %5841 = vmatprep.subr.bf16.mxu0 %v4848
    %5842 = vmatpush1.bf16.msra.mxu0 %v4847
    %5843 = vmatprep.subr.bf16.mxu0 %v4856
    %5844 = vmatpush1.bf16.msra.mxu0 %v4855
    %5845 = vmatprep.subr.bf16.mxu0 %v4864
    %5846 = vmatpush1.bf16.msra.mxu0 %v4863
    %5847 = vmatprep.subr.bf16.mxu0 %v4872
    %5848 = vmatpush1.bf16.msra.mxu0 %v4871
    %5849 = vmatprep.subr.bf16.mxu0 %v4880
    %5850 = vmatpush1.bf16.msra.mxu0 %v4879
    %5851 = vmatprep.subr.bf16.mxu0 %v4888
    %5852 = vmatpush1.bf16.msra.mxu0 %v4887
    %5853 = vmatprep.subr.bf16.mxu0 %v4896
    %5854 = vmatpush1.bf16.msra.mxu0 %v4895
    %5855 = vmatprep.subr.bf16.mxu0 %v4904
    %5856 = vmatpush1.bf16.msra.mxu0 %v4903
    %5857 = vmatprep.subr.bf16.mxu0 %v4912
    %5858 = vmatpush1.bf16.msra.mxu0 %v4911
    %5859 = vmatprep.subr.bf16.mxu0 %v4920
    %5860 = vmatpush1.bf16.msra.mxu0 %v4919
    %5861 = vmatprep.subr.bf16.mxu0 %v4928
    %5862 = vmatpush1.bf16.msra.mxu0 %v4927
    %5863 = vmatprep.mubr.bf16.mxu0 %v2752
    %5864 = vmatmul.mubr.bf16.gmra.mrb[0].mxu0 %v2751
    %v5865 = vpop.f32.mrb[0].mxu0
    %v5866 = vadd.f32 0.0, %v5865
    %v5867 = vpop.f32.mrb[0].mxu0
    %v5868 = vadd.f32 0.0, %v5867
    %v5869 = vpop.f32.mrb[0].mxu0
    %v5870 = vadd.f32 0.0, %v5869
    %v5871 = vpop.f32.mrb[0].mxu0
    %v5872 = vadd.f32 0.0, %v5871
    %5873 = vdwg.mxu0
    %5874 = vmatprep.subr.bf16.mxu0 %v4936
    %5875 = vmatpush1.bf16.msra.mxu0 %v4935
    %5876 = vmatprep.subr.bf16.mxu0 %v4944
    %5877 = vmatpush1.bf16.msra.mxu0 %v4943
    %5878 = vmatprep.subr.bf16.mxu0 %v4952
    %5879 = vmatpush1.bf16.msra.mxu0 %v4951
    %5880 = vmatprep.subr.bf16.mxu0 %v4960
    %5881 = vmatpush1.bf16.msra.mxu0 %v4959
    %5882 = vmatprep.subr.bf16.mxu0 %v4968
    %5883 = vmatpush1.bf16.msra.mxu0 %v4967
    %5884 = vmatprep.subr.bf16.mxu0 %v4976
    %5885 = vmatpush1.bf16.msra.mxu0 %v4975
    %5886 = vmatprep.subr.bf16.mxu0 %v4984
    %5887 = vmatpush1.bf16.msra.mxu0 %v4983
    %5888 = vmatprep.subr.bf16.mxu0 %v4992
    %5889 = vmatpush1.bf16.msra.mxu0 %v4991
    %5890 = vmatprep.subr.bf16.mxu0 %v5000
    %5891 = vmatpush1.bf16.msra.mxu0 %v4999
    %5892 = vmatprep.subr.bf16.mxu0 %v5008
    %5893 = vmatpush1.bf16.msra.mxu0 %v5007
    %5894 = vmatprep.subr.bf16.mxu0 %v5016
    %5895 = vmatpush1.bf16.msra.mxu0 %v5015
    %5896 = vmatprep.subr.bf16.mxu0 %v5024
    %5897 = vmatpush1.bf16.msra.mxu0 %v5023
    %5898 = vmatprep.subr.bf16.mxu0 %v5032
    %5899 = vmatpush1.bf16.msra.mxu0 %v5031
    %5900 = vmatprep.subr.bf16.mxu0 %v5040
    %5901 = vmatpush1.bf16.msra.mxu0 %v5039
    %5902 = vmatprep.subr.bf16.mxu0 %v5048
    %5903 = vmatpush1.bf16.msra.mxu0 %v5047
    %5904 = vmatprep.subr.bf16.mxu0 %v5056
    %5905 = vmatpush1.bf16.msra.mxu0 %v5055
    %5906 = vmatprep.mubr.bf16.mxu0 %v2754
    %5907 = vmatmul.mubr.bf16.gmra.mrb[0].mxu0 %v2753
    %v5908 = vpop.f32.mrb[0].mxu0
    %v5909 = vadd.f32 %v5866, %v5908
    %v5910 = vpop.f32.mrb[0].mxu0
    %v5911 = vadd.f32 %v5868, %v5910
    %v5912 = vpop.f32.mrb[0].mxu0
    %v5913 = vadd.f32 %v5870, %v5912
    %v5914 = vpop.f32.mrb[0].mxu0
    %v5915 = vadd.f32 %v5872, %v5914
    %5916 = vdwg.mxu0
    %5917 = vmatprep.subr.bf16.mxu0 %v5064
    %5918 = vmatpush1.bf16.msra.mxu0 %v5063
    %5919 = vmatprep.subr.bf16.mxu0 %v5072
    %5920 = vmatpush1.bf16.msra.mxu0 %v5071
    %5921 = vmatprep.subr.bf16.mxu0 %v5080
    %5922 = vmatpush1.bf16.msra.mxu0 %v5079
    %5923 = vmatprep.subr.bf16.mxu0 %v5088
    %5924 = vmatpush1.bf16.msra.mxu0 %v5087
    %5925 = vmatprep.subr.bf16.mxu0 %v5096
    %5926 = vmatpush1.bf16.msra.mxu0 %v5095
    %5927 = vmatprep.subr.bf16.mxu0 %v5104
    %5928 = vmatpush1.bf16.msra.mxu0 %v5103
    %5929 = vmatprep.subr.bf16.mxu0 %v5112
    %5930 = vmatpush1.bf16.msra.mxu0 %v5111
    %5931 = vmatprep.subr.bf16.mxu0 %v5120
    %5932 = vmatpush1.bf16.msra.mxu0 %v5119
    %5933 = vmatprep.subr.bf16.mxu0 %v5128
    %5934 = vmatpush1.bf16.msra.mxu0 %v5127
    %5935 = vmatprep.subr.bf16.mxu0 %v5136
    %5936 = vmatpush1.bf16.msra.mxu0 %v5135
    %5937 = vmatprep.subr.bf16.mxu0 %v5144
    %5938 = vmatpush1.bf16.msra.mxu0 %v5143
    %5939 = vmatprep.subr.bf16.mxu0 %v5152
    %5940 = vmatpush1.bf16.msra.mxu0 %v5151
    %5941 = vmatprep.subr.bf16.mxu0 %v5160
    %5942 = vmatpush1.bf16.msra.mxu0 %v5159
    %5943 = vmatprep.subr.bf16.mxu0 %v5168
    %5944 = vmatpush1.bf16.msra.mxu0 %v5167
    %5945 = vmatprep.subr.bf16.mxu0 %v5176
    %5946 = vmatpush1.bf16.msra.mxu0 %v5175
    %5947 = vmatprep.subr.bf16.mxu0 %v5184
    %5948 = vmatpush1.bf16.msra.mxu0 %v5183
    %5949 = vmatprep.mubr.bf16.mxu0 %v2756
    %5950 = vmatmul.mubr.bf16.gmra.mrb[0].mxu0 %v2755
    %v5951 = vpop.f32.mrb[0].mxu0
    %v5952 = vadd.f32 %v5909, %v5951
    %v5953 = vpop.f32.mrb[0].mxu0
    %v5954 = vadd.f32 %v5911, %v5953
    %v5955 = vpop.f32.mrb[0].mxu0
    %v5956 = vadd.f32 %v5913, %v5955
    %v5957 = vpop.f32.mrb[0].mxu0
    %v5958 = vadd.f32 %v5915, %v5957
    %5959 = vdwg.mxu0
    %5960 = vmatprep.subr.bf16.mxu0 %v5192
    %5961 = vmatpush1.bf16.msra.mxu0 %v5191
    %5962 = vmatprep.subr.bf16.mxu0 %v5200
    %5963 = vmatpush1.bf16.msra.mxu0 %v5199
    %5964 = vmatprep.subr.bf16.mxu0 %v5208
    %5965 = vmatpush1.bf16.msra.mxu0 %v5207
    %5966 = vmatprep.subr.bf16.mxu0 %v5216
    %5967 = vmatpush1.bf16.msra.mxu0 %v5215
    %5968 = vmatprep.subr.bf16.mxu0 %v5224
    %5969 = vmatpush1.bf16.msra.mxu0 %v5223
    %5970 = vmatprep.subr.bf16.mxu0 %v5232
    %5971 = vmatpush1.bf16.msra.mxu0 %v5231
    %5972 = vmatprep.subr.bf16.mxu0 %v5240
    %5973 = vmatpush1.bf16.msra.mxu0 %v5239
    %5974 = vmatprep.subr.bf16.mxu0 %v5248
    %5975 = vmatpush1.bf16.msra.mxu0 %v5247
    %5976 = vmatprep.subr.bf16.mxu0 %v5256
    %5977 = vmatpush1.bf16.msra.mxu0 %v5255
    %5978 = vmatprep.subr.bf16.mxu0 %v5264
    %5979 = vmatpush1.bf16.msra.mxu0 %v5263
    %5980 = vmatprep.subr.bf16.mxu0 %v5272
    %5981 = vmatpush1.bf16.msra.mxu0 %v5271
    %5982 = vmatprep.subr.bf16.mxu0 %v5280
    %5983 = vmatpush1.bf16.msra.mxu0 %v5279
    %5984 = vmatprep.subr.bf16.mxu0 %v5288
    %5985 = vmatpush1.bf16.msra.mxu0 %v5287
    %5986 = vmatprep.subr.bf16.mxu0 %v5296
    %5987 = vmatpush1.bf16.msra.mxu0 %v5295
    %5988 = vmatprep.subr.bf16.mxu0 %v5304
    %5989 = vmatpush1.bf16.msra.mxu0 %v5303
    %5990 = vmatprep.subr.bf16.mxu0 %v5312
    %5991 = vmatpush1.bf16.msra.mxu0 %v5311
    %5992 = vmatprep.mubr.bf16.mxu0 %v2758
    %5993 = vmatmul.mubr.bf16.gmra.mrb[0].mxu0 %v2757
    %v5994 = vpop.f32.mrb[0].mxu0
    %v5995 = vadd.f32 %v5952, %v5994
    %v5996 = vpop.f32.mrb[0].mxu0
    %v5997 = vadd.f32 %v5954, %v5996
    %v5998 = vpop.f32.mrb[0].mxu0
    %v5999 = vadd.f32 %v5956, %v5998
    %v6000 = vpop.f32.mrb[0].mxu0
    %v6001 = vadd.f32 %v5958, %v6000
    %6002 = vdwg.mxu0
    %6003 = vmatprep.subr.bf16.mxu0 %v4810
    %6004 = vmatpush1.bf16.msra.mxu0 %v4809
    %6005 = vmatprep.subr.bf16.mxu0 %v4818
    %6006 = vmatpush1.bf16.msra.mxu0 %v4817
    %6007 = vmatprep.subr.bf16.mxu0 %v4826
    %6008 = vmatpush1.bf16.msra.mxu0 %v4825
    %6009 = vmatprep.subr.bf16.mxu0 %v4834
    %6010 = vmatpush1.bf16.msra.mxu0 %v4833
    %6011 = vmatprep.subr.bf16.mxu0 %v4842
    %6012 = vmatpush1.bf16.msra.mxu0 %v4841
    %6013 = vmatprep.subr.bf16.mxu0 %v4850
    %6014 = vmatpush1.bf16.msra.mxu0 %v4849
    %6015 = vmatprep.subr.bf16.mxu0 %v4858
    %6016 = vmatpush1.bf16.msra.mxu0 %v4857
    %6017 = vmatprep.subr.bf16.mxu0 %v4866
    %6018 = vmatpush1.bf16.msra.mxu0 %v4865
    %6019 = vmatprep.subr.bf16.mxu0 %v4874
    %6020 = vmatpush1.bf16.msra.mxu0 %v4873
    %6021 = vmatprep.subr.bf16.mxu0 %v4882
    %6022 = vmatpush1.bf16.msra.mxu0 %v4881
    %6023 = vmatprep.subr.bf16.mxu0 %v4890
    %6024 = vmatpush1.bf16.msra.mxu0 %v4889
    %6025 = vmatprep.subr.bf16.mxu0 %v4898
    %6026 = vmatpush1.bf16.msra.mxu0 %v4897
    %6027 = vmatprep.subr.bf16.mxu0 %v4906
    %6028 = vmatpush1.bf16.msra.mxu0 %v4905
    %6029 = vmatprep.subr.bf16.mxu0 %v4914
    %6030 = vmatpush1.bf16.msra.mxu0 %v4913
    %6031 = vmatprep.subr.bf16.mxu0 %v4922
    %6032 = vmatpush1.bf16.msra.mxu0 %v4921
    %6033 = vmatprep.subr.bf16.mxu0 %v4930
    %6034 = vmatpush1.bf16.msra.mxu0 %v4929
    %6035 = vmatprep.mubr.bf16.mxu0 %v2752
    %6036 = vmatmul.mubr.bf16.gmra.mrb[0].mxu0 %v2751
    %v6037 = vpop.f32.mrb[0].mxu0
    %v6038 = vadd.f32 0.0, %v6037
    %v6039 = vpop.f32.mrb[0].mxu0
    %v6040 = vadd.f32 0.0, %v6039
    %v6041 = vpop.f32.mrb[0].mxu0
    %v6042 = vadd.f32 0.0, %v6041
    %v6043 = vpop.f32.mrb[0].mxu0
    %v6044 = vadd.f32 0.0, %v6043
    %6045 = vdwg.mxu0
    %6046 = vmatprep.subr.bf16.mxu0 %v4938
    %6047 = vmatpush1.bf16.msra.mxu0 %v4937
    %6048 = vmatprep.subr.bf16.mxu0 %v4946
    %6049 = vmatpush1.bf16.msra.mxu0 %v4945
    %6050 = vmatprep.subr.bf16.mxu0 %v4954
    %6051 = vmatpush1.bf16.msra.mxu0 %v4953
    %6052 = vmatprep.subr.bf16.mxu0 %v4962
    %6053 = vmatpush1.bf16.msra.mxu0 %v4961
    %6054 = vmatprep.subr.bf16.mxu0 %v4970
    %6055 = vmatpush1.bf16.msra.mxu0 %v4969
    %6056 = vmatprep.subr.bf16.mxu0 %v4978
    %6057 = vmatpush1.bf16.msra.mxu0 %v4977
    %6058 = vmatprep.subr.bf16.mxu0 %v4986
    %6059 = vmatpush1.bf16.msra.mxu0 %v4985
    %6060 = vmatprep.subr.bf16.mxu0 %v4994
    %6061 = vmatpush1.bf16.msra.mxu0 %v4993
    %6062 = vmatprep.subr.bf16.mxu0 %v5002
    %6063 = vmatpush1.bf16.msra.mxu0 %v5001
    %6064 = vmatprep.subr.bf16.mxu0 %v5010
    %6065 = vmatpush1.bf16.msra.mxu0 %v5009
    %6066 = vmatprep.subr.bf16.mxu0 %v5018
    %6067 = vmatpush1.bf16.msra.mxu0 %v5017
    %6068 = vmatprep.subr.bf16.mxu0 %v5026
    %6069 = vmatpush1.bf16.msra.mxu0 %v5025
    %6070 = vmatprep.subr.bf16.mxu0 %v5034
    %6071 = vmatpush1.bf16.msra.mxu0 %v5033
    %6072 = vmatprep.subr.bf16.mxu0 %v5042
    %6073 = vmatpush1.bf16.msra.mxu0 %v5041
    %6074 = vmatprep.subr.bf16.mxu0 %v5050
    %6075 = vmatpush1.bf16.msra.mxu0 %v5049
    %6076 = vmatprep.subr.bf16.mxu0 %v5058
    %6077 = vmatpush1.bf16.msra.mxu0 %v5057
    %6078 = vmatprep.mubr.bf16.mxu0 %v2754
    %6079 = vmatmul.mubr.bf16.gmra.mrb[0].mxu0 %v2753
    %v6080 = vpop.f32.mrb[0].mxu0
    %v6081 = vadd.f32 %v6038, %v6080
    %v6082 = vpop.f32.mrb[0].mxu0
    %v6083 = vadd.f32 %v6040, %v6082
    %v6084 = vpop.f32.mrb[0].mxu0
    %v6085 = vadd.f32 %v6042, %v6084
    %v6086 = vpop.f32.mrb[0].mxu0
    %v6087 = vadd.f32 %v6044, %v6086
    %6088 = vdwg.mxu0
    %6089 = vmatprep.subr.bf16.mxu0 %v5066
    %6090 = vmatpush1.bf16.msra.mxu0 %v5065
    %6091 = vmatprep.subr.bf16.mxu0 %v5074
    %6092 = vmatpush1.bf16.msra.mxu0 %v5073
    %6093 = vmatprep.subr.bf16.mxu0 %v5082
    %6094 = vmatpush1.bf16.msra.mxu0 %v5081
    %6095 = vmatprep.subr.bf16.mxu0 %v5090
    %6096 = vmatpush1.bf16.msra.mxu0 %v5089
    %6097 = vmatprep.subr.bf16.mxu0 %v5098
    %6098 = vmatpush1.bf16.msra.mxu0 %v5097
    %6099 = vmatprep.subr.bf16.mxu0 %v5106
    %6100 = vmatpush1.bf16.msra.mxu0 %v5105
    %6101 = vmatprep.subr.bf16.mxu0 %v5114
    %6102 = vmatpush1.bf16.msra.mxu0 %v5113
    %6103 = vmatprep.subr.bf16.mxu0 %v5122
    %6104 = vmatpush1.bf16.msra.mxu0 %v5121
    %6105 = vmatprep.subr.bf16.mxu0 %v5130
    %6106 = vmatpush1.bf16.msra.mxu0 %v5129
    %6107 = vmatprep.subr.bf16.mxu0 %v5138
    %6108 = vmatpush1.bf16.msra.mxu0 %v5137
    %6109 = vmatprep.subr.bf16.mxu0 %v5146
    %6110 = vmatpush1.bf16.msra.mxu0 %v5145
    %6111 = vmatprep.subr.bf16.mxu0 %v5154
    %6112 = vmatpush1.bf16.msra.mxu0 %v5153
    %6113 = vmatprep.subr.bf16.mxu0 %v5162
    %6114 = vmatpush1.bf16.msra.mxu0 %v5161
    %6115 = vmatprep.subr.bf16.mxu0 %v5170
    %6116 = vmatpush1.bf16.msra.mxu0 %v5169
    %6117 = vmatprep.subr.bf16.mxu0 %v5178
    %6118 = vmatpush1.bf16.msra.mxu0 %v5177
    %6119 = vmatprep.subr.bf16.mxu0 %v5186
    %6120 = vmatpush1.bf16.msra.mxu0 %v5185
    %6121 = vmatprep.mubr.bf16.mxu0 %v2756
    %6122 = vmatmul.mubr.bf16.gmra.mrb[0].mxu0 %v2755
    %v6123 = vpop.f32.mrb[0].mxu0
    %v6124 = vadd.f32 %v6081, %v6123
    %v6125 = vpop.f32.mrb[0].mxu0
    %v6126 = vadd.f32 %v6083, %v6125
    %v6127 = vpop.f32.mrb[0].mxu0
    %v6128 = vadd.f32 %v6085, %v6127
    %v6129 = vpop.f32.mrb[0].mxu0
    %v6130 = vadd.f32 %v6087, %v6129
    %6131 = vdwg.mxu0
    %6132 = vmatprep.subr.bf16.mxu0 %v5194
    %6133 = vmatpush1.bf16.msra.mxu0 %v5193
    %6134 = vmatprep.subr.bf16.mxu0 %v5202
    %6135 = vmatpush1.bf16.msra.mxu0 %v5201
    %6136 = vmatprep.subr.bf16.mxu0 %v5210
    %6137 = vmatpush1.bf16.msra.mxu0 %v5209
    %6138 = vmatprep.subr.bf16.mxu0 %v5218
    %6139 = vmatpush1.bf16.msra.mxu0 %v5217
    %6140 = vmatprep.subr.bf16.mxu0 %v5226
    %6141 = vmatpush1.bf16.msra.mxu0 %v5225
    %6142 = vmatprep.subr.bf16.mxu0 %v5234
    %6143 = vmatpush1.bf16.msra.mxu0 %v5233
    %6144 = vmatprep.subr.bf16.mxu0 %v5242
    %6145 = vmatpush1.bf16.msra.mxu0 %v5241
    %6146 = vmatprep.subr.bf16.mxu0 %v5250
    %6147 = vmatpush1.bf16.msra.mxu0 %v5249
    %6148 = vmatprep.subr.bf16.mxu0 %v5258
    %6149 = vmatpush1.bf16.msra.mxu0 %v5257
    %6150 = vmatprep.subr.bf16.mxu0 %v5266
    %6151 = vmatpush1.bf16.msra.mxu0 %v5265
    %6152 = vmatprep.subr.bf16.mxu0 %v5274
    %6153 = vmatpush1.bf16.msra.mxu0 %v5273
    %6154 = vmatprep.subr.bf16.mxu0 %v5282
    %6155 = vmatpush1.bf16.msra.mxu0 %v5281
    %6156 = vmatprep.subr.bf16.mxu0 %v5290
    %6157 = vmatpush1.bf16.msra.mxu0 %v5289
    %6158 = vmatprep.subr.bf16.mxu0 %v5298
    %6159 = vmatpush1.bf16.msra.mxu0 %v5297
    %6160 = vmatprep.subr.bf16.mxu0 %v5306
    %6161 = vmatpush1.bf16.msra.mxu0 %v5305
    %6162 = vmatprep.subr.bf16.mxu0 %v5314
    %6163 = vmatpush1.bf16.msra.mxu0 %v5313
    %6164 = vmatprep.mubr.bf16.mxu0 %v2758
    %6165 = vmatmul.mubr.bf16.gmra.mrb[0].mxu0 %v2757
    %v6166 = vpop.f32.mrb[0].mxu0
    %v6167 = vadd.f32 %v6124, %v6166
    %v6168 = vpop.f32.mrb[0].mxu0
    %v6169 = vadd.f32 %v6126, %v6168
    %v6170 = vpop.f32.mrb[0].mxu0
    %v6171 = vadd.f32 %v6128, %v6170
    %v6172 = vpop.f32.mrb[0].mxu0
    %v6173 = vadd.f32 %v6130, %v6172
    %6174 = vdwg.mxu0
    %6175 = vmatprep.subr.bf16.mxu0 %v4812
    %6176 = vmatpush1.bf16.msra.mxu0 %v4811
    %6177 = vmatprep.subr.bf16.mxu0 %v4820
    %6178 = vmatpush1.bf16.msra.mxu0 %v4819
    %6179 = vmatprep.subr.bf16.mxu0 %v4828
    %6180 = vmatpush1.bf16.msra.mxu0 %v4827
    %6181 = vmatprep.subr.bf16.mxu0 %v4836
    %6182 = vmatpush1.bf16.msra.mxu0 %v4835
    %6183 = vmatprep.subr.bf16.mxu0 %v4844
    %6184 = vmatpush1.bf16.msra.mxu0 %v4843
    %6185 = vmatprep.subr.bf16.mxu0 %v4852
    %6186 = vmatpush1.bf16.msra.mxu0 %v4851
    %6187 = vmatprep.subr.bf16.mxu0 %v4860
    %6188 = vmatpush1.bf16.msra.mxu0 %v4859
    %6189 = vmatprep.subr.bf16.mxu0 %v4868
    %6190 = vmatpush1.bf16.msra.mxu0 %v4867
    %6191 = vmatprep.subr.bf16.mxu0 %v4876
    %6192 = vmatpush1.bf16.msra.mxu0 %v4875
    %6193 = vmatprep.subr.bf16.mxu0 %v4884
    %6194 = vmatpush1.bf16.msra.mxu0 %v4883
    %6195 = vmatprep.subr.bf16.mxu0 %v4892
    %6196 = vmatpush1.bf16.msra.mxu0 %v4891
    %6197 = vmatprep.subr.bf16.mxu0 %v4900
    %6198 = vmatpush1.bf16.msra.mxu0 %v4899
    %6199 = vmatprep.subr.bf16.mxu0 %v4908
    %6200 = vmatpush1.bf16.msra.mxu0 %v4907
    %6201 = vmatprep.subr.bf16.mxu0 %v4916
    %6202 = vmatpush1.bf16.msra.mxu0 %v4915
    %6203 = vmatprep.subr.bf16.mxu0 %v4924
    %6204 = vmatpush1.bf16.msra.mxu0 %v4923
    %6205 = vmatprep.subr.bf16.mxu0 %v4932
    %6206 = vmatpush1.bf16.msra.mxu0 %v4931
    %6207 = vmatprep.mubr.bf16.mxu0 %v2752
    %6208 = vmatmul.mubr.bf16.gmra.mrb[0].mxu0 %v2751
    %v6209 = vpop.f32.mrb[0].mxu0
    %v6210 = vadd.f32 0.0, %v6209
    %v6211 = vpop.f32.mrb[0].mxu0
    %v6212 = vadd.f32 0.0, %v6211
    %v6213 = vpop.f32.mrb[0].mxu0
    %v6214 = vadd.f32 0.0, %v6213
    %v6215 = vpop.f32.mrb[0].mxu0
    %v6216 = vadd.f32 0.0, %v6215
    %6217 = vdwg.mxu0
    %6218 = vmatprep.subr.bf16.mxu0 %v4940
    %6219 = vmatpush1.bf16.msra.mxu0 %v4939
    %6220 = vmatprep.subr.bf16.mxu0 %v4948
    %6221 = vmatpush1.bf16.msra.mxu0 %v4947
    %6222 = vmatprep.subr.bf16.mxu0 %v4956
    %6223 = vmatpush1.bf16.msra.mxu0 %v4955
    %6224 = vmatprep.subr.bf16.mxu0 %v4964
    %6225 = vmatpush1.bf16.msra.mxu0 %v4963
    %6226 = vmatprep.subr.bf16.mxu0 %v4972
    %6227 = vmatpush1.bf16.msra.mxu0 %v4971
    %6228 = vmatprep.subr.bf16.mxu0 %v4980
    %6229 = vmatpush1.bf16.msra.mxu0 %v4979
    %6230 = vmatprep.subr.bf16.mxu0 %v4988
    %6231 = vmatpush1.bf16.msra.mxu0 %v4987
    %6232 = vmatprep.subr.bf16.mxu0 %v4996
    %6233 = vmatpush1.bf16.msra.mxu0 %v4995
    %6234 = vmatprep.subr.bf16.mxu0 %v5004
    %6235 = vmatpush1.bf16.msra.mxu0 %v5003
    %6236 = vmatprep.subr.bf16.mxu0 %v5012
    %6237 = vmatpush1.bf16.msra.mxu0 %v5011
    %6238 = vmatprep.subr.bf16.mxu0 %v5020
    %6239 = vmatpush1.bf16.msra.mxu0 %v5019
    %6240 = vmatprep.subr.bf16.mxu0 %v5028
    %6241 = vmatpush1.bf16.msra.mxu0 %v5027
    %6242 = vmatprep.subr.bf16.mxu0 %v5036
    %6243 = vmatpush1.bf16.msra.mxu0 %v5035
    %6244 = vmatprep.subr.bf16.mxu0 %v5044
    %6245 = vmatpush1.bf16.msra.mxu0 %v5043
    %6246 = vmatprep.subr.bf16.mxu0 %v5052
    %6247 = vmatpush1.bf16.msra.mxu0 %v5051
    %6248 = vmatprep.subr.bf16.mxu0 %v5060
    %6249 = vmatpush1.bf16.msra.mxu0 %v5059
    %6250 = vmatprep.mubr.bf16.mxu0 %v2754
    %6251 = vmatmul.mubr.bf16.gmra.mrb[0].mxu0 %v2753
    %v6252 = vpop.f32.mrb[0].mxu0
    %v6253 = vadd.f32 %v6210, %v6252
    %v6254 = vpop.f32.mrb[0].mxu0
    %v6255 = vadd.f32 %v6212, %v6254
    %v6256 = vpop.f32.mrb[0].mxu0
    %v6257 = vadd.f32 %v6214, %v6256
    %v6258 = vpop.f32.mrb[0].mxu0
    %v6259 = vadd.f32 %v6216, %v6258
    %6260 = vdwg.mxu0
    %6261 = vmatprep.subr.bf16.mxu0 %v5068
    %6262 = vmatpush1.bf16.msra.mxu0 %v5067
    %6263 = vmatprep.subr.bf16.mxu0 %v5076
    %6264 = vmatpush1.bf16.msra.mxu0 %v5075
    %6265 = vmatprep.subr.bf16.mxu0 %v5084
    %6266 = vmatpush1.bf16.msra.mxu0 %v5083
    %6267 = vmatprep.subr.bf16.mxu0 %v5092
    %6268 = vmatpush1.bf16.msra.mxu0 %v5091
    %6269 = vmatprep.subr.bf16.mxu0 %v5100
    %6270 = vmatpush1.bf16.msra.mxu0 %v5099
    %6271 = vmatprep.subr.bf16.mxu0 %v5108
    %6272 = vmatpush1.bf16.msra.mxu0 %v5107
    %6273 = vmatprep.subr.bf16.mxu0 %v5116
    %6274 = vmatpush1.bf16.msra.mxu0 %v5115
    %6275 = vmatprep.subr.bf16.mxu0 %v5124
    %6276 = vmatpush1.bf16.msra.mxu0 %v5123
    %6277 = vmatprep.subr.bf16.mxu0 %v5132
    %6278 = vmatpush1.bf16.msra.mxu0 %v5131
    %6279 = vmatprep.subr.bf16.mxu0 %v5140
    %6280 = vmatpush1.bf16.msra.mxu0 %v5139
    %6281 = vmatprep.subr.bf16.mxu0 %v5148
    %6282 = vmatpush1.bf16.msra.mxu0 %v5147
    %6283 = vmatprep.subr.bf16.mxu0 %v5156
    %6284 = vmatpush1.bf16.msra.mxu0 %v5155
    %6285 = vmatprep.subr.bf16.mxu0 %v5164
    %6286 = vmatpush1.bf16.msra.mxu0 %v5163
    %6287 = vmatprep.subr.bf16.mxu0 %v5172
    %6288 = vmatpush1.bf16.msra.mxu0 %v5171
    %6289 = vmatprep.subr.bf16.mxu0 %v5180
    %6290 = vmatpush1.bf16.msra.mxu0 %v5179
    %6291 = vmatprep.subr.bf16.mxu0 %v5188
    %6292 = vmatpush1.bf16.msra.mxu0 %v5187
    %6293 = vmatprep.mubr.bf16.mxu0 %v2756
    %6294 = vmatmul.mubr.bf16.gmra.mrb[0].mxu0 %v2755
    %v6295 = vpop.f32.mrb[0].mxu0
    %v6296 = vadd.f32 %v6253, %v6295
    %v6297 = vpop.f32.mrb[0].mxu0
    %v6298 = vadd.f32 %v6255, %v6297
    %v6299 = vpop.f32.mrb[0].mxu0
    %v6300 = vadd.f32 %v6257, %v6299
    %v6301 = vpop.f32.mrb[0].mxu0
    %v6302 = vadd.f32 %v6259, %v6301
    %6303 = vdwg.mxu0
    %6304 = vmatprep.subr.bf16.mxu0 %v5196
    %6305 = vmatpush1.bf16.msra.mxu0 %v5195
    %6306 = vmatprep.subr.bf16.mxu0 %v5204
    %6307 = vmatpush1.bf16.msra.mxu0 %v5203
    %6308 = vmatprep.subr.bf16.mxu0 %v5212
    %6309 = vmatpush1.bf16.msra.mxu0 %v5211
    %6310 = vmatprep.subr.bf16.mxu0 %v5220
    %6311 = vmatpush1.bf16.msra.mxu0 %v5219
    %6312 = vmatprep.subr.bf16.mxu0 %v5228
    %6313 = vmatpush1.bf16.msra.mxu0 %v5227
    %6314 = vmatprep.subr.bf16.mxu0 %v5236
    %6315 = vmatpush1.bf16.msra.mxu0 %v5235
    %6316 = vmatprep.subr.bf16.mxu0 %v5244
    %6317 = vmatpush1.bf16.msra.mxu0 %v5243
    %6318 = vmatprep.subr.bf16.mxu0 %v5252
    %6319 = vmatpush1.bf16.msra.mxu0 %v5251
    %6320 = vmatprep.subr.bf16.mxu0 %v5260
    %6321 = vmatpush1.bf16.msra.mxu0 %v5259
    %6322 = vmatprep.subr.bf16.mxu0 %v5268
    %6323 = vmatpush1.bf16.msra.mxu0 %v5267
    %6324 = vmatprep.subr.bf16.mxu0 %v5276
    %6325 = vmatpush1.bf16.msra.mxu0 %v5275
    %6326 = vmatprep.subr.bf16.mxu0 %v5284
    %6327 = vmatpush1.bf16.msra.mxu0 %v5283
    %6328 = vmatprep.subr.bf16.mxu0 %v5292
    %6329 = vmatpush1.bf16.msra.mxu0 %v5291
    %6330 = vmatprep.subr.bf16.mxu0 %v5300
    %6331 = vmatpush1.bf16.msra.mxu0 %v5299
    %6332 = vmatprep.subr.bf16.mxu0 %v5308
    %6333 = vmatpush1.bf16.msra.mxu0 %v5307
    %6334 = vmatprep.subr.bf16.mxu0 %v5316
    %6335 = vmatpush1.bf16.msra.mxu0 %v5315
    %6336 = vmatprep.mubr.bf16.mxu0 %v2758
    %6337 = vmatmul.mubr.bf16.gmra.mrb[0].mxu0 %v2757
    %v6338 = vpop.f32.mrb[0].mxu0
    %v6339 = vadd.f32 %v6296, %v6338
    %v6340 = vpop.f32.mrb[0].mxu0
    %v6341 = vadd.f32 %v6298, %v6340
    %v6342 = vpop.f32.mrb[0].mxu0
    %v6343 = vadd.f32 %v6300, %v6342
    %v6344 = vpop.f32.mrb[0].mxu0
    %v6345 = vadd.f32 %v6302, %v6344
    %6346 = vdwg.mxu0
    %6347 = vmatprep.subr.bf16.mxu0 %v4814
    %6348 = vmatpush1.bf16.msra.mxu0 %v4813
    %6349 = vmatprep.subr.bf16.mxu0 %v4822
    %6350 = vmatpush1.bf16.msra.mxu0 %v4821
    %6351 = vmatprep.subr.bf16.mxu0 %v4830
    %6352 = vmatpush1.bf16.msra.mxu0 %v4829
    %6353 = vmatprep.subr.bf16.mxu0 %v4838
    %6354 = vmatpush1.bf16.msra.mxu0 %v4837
    %6355 = vmatprep.subr.bf16.mxu0 %v4846
    %6356 = vmatpush1.bf16.msra.mxu0 %v4845
    %6357 = vmatprep.subr.bf16.mxu0 %v4854
    %6358 = vmatpush1.bf16.msra.mxu0 %v4853
    %6359 = vmatprep.subr.bf16.mxu0 %v4862
    %6360 = vmatpush1.bf16.msra.mxu0 %v4861
    %6361 = vmatprep.subr.bf16.mxu0 %v4870
    %6362 = vmatpush1.bf16.msra.mxu0 %v4869
    %6363 = vmatprep.subr.bf16.mxu0 %v4878
    %6364 = vmatpush1.bf16.msra.mxu0 %v4877
    %6365 = vmatprep.subr.bf16.mxu0 %v4886
    %6366 = vmatpush1.bf16.msra.mxu0 %v4885
    %6367 = vmatprep.subr.bf16.mxu0 %v4894
    %6368 = vmatpush1.bf16.msra.mxu0 %v4893
    %6369 = vmatprep.subr.bf16.mxu0 %v4902
    %6370 = vmatpush1.bf16.msra.mxu0 %v4901
    %6371 = vmatprep.subr.bf16.mxu0 %v4910
    %6372 = vmatpush1.bf16.msra.mxu0 %v4909
    %6373 = vmatprep.subr.bf16.mxu0 %v4918
    %6374 = vmatpush1.bf16.msra.mxu0 %v4917
    %6375 = vmatprep.subr.bf16.mxu0 %v4926
    %6376 = vmatpush1.bf16.msra.mxu0 %v4925
    %6377 = vmatprep.subr.bf16.mxu0 %v4934
    %6378 = vmatpush1.bf16.msra.mxu0 %v4933
    %6379 = vmatprep.mubr.bf16.mxu0 %v2752
    %6380 = vmatmul.mubr.bf16.gmra.mrb[0].mxu0 %v2751
    %v6381 = vpop.f32.mrb[0].mxu0
    %v6382 = vadd.f32 0.0, %v6381
    %v6383 = vpop.f32.mrb[0].mxu0
    %v6384 = vadd.f32 0.0, %v6383
    %v6385 = vpop.f32.mrb[0].mxu0
    %v6386 = vadd.f32 0.0, %v6385
    %v6387 = vpop.f32.mrb[0].mxu0
    %v6388 = vadd.f32 0.0, %v6387
    %6389 = vdwg.mxu0
    %6390 = vmatprep.subr.bf16.mxu0 %v4942
    %6391 = vmatpush1.bf16.msra.mxu0 %v4941
    %6392 = vmatprep.subr.bf16.mxu0 %v4950
    %6393 = vmatpush1.bf16.msra.mxu0 %v4949
    %6394 = vmatprep.subr.bf16.mxu0 %v4958
    %6395 = vmatpush1.bf16.msra.mxu0 %v4957
    %6396 = vmatprep.subr.bf16.mxu0 %v4966
    %6397 = vmatpush1.bf16.msra.mxu0 %v4965
    %6398 = vmatprep.subr.bf16.mxu0 %v4974
    %6399 = vmatpush1.bf16.msra.mxu0 %v4973
    %6400 = vmatprep.subr.bf16.mxu0 %v4982
    %6401 = vmatpush1.bf16.msra.mxu0 %v4981
    %6402 = vmatprep.subr.bf16.mxu0 %v4990
    %6403 = vmatpush1.bf16.msra.mxu0 %v4989
    %6404 = vmatprep.subr.bf16.mxu0 %v4998
    %6405 = vmatpush1.bf16.msra.mxu0 %v4997
    %6406 = vmatprep.subr.bf16.mxu0 %v5006
    %6407 = vmatpush1.bf16.msra.mxu0 %v5005
    %6408 = vmatprep.subr.bf16.mxu0 %v5014
    %6409 = vmatpush1.bf16.msra.mxu0 %v5013
    %6410 = vmatprep.subr.bf16.mxu0 %v5022
    %6411 = vmatpush1.bf16.msra.mxu0 %v5021
    %6412 = vmatprep.subr.bf16.mxu0 %v5030
    %6413 = vmatpush1.bf16.msra.mxu0 %v5029
    %6414 = vmatprep.subr.bf16.mxu0 %v5038
    %6415 = vmatpush1.bf16.msra.mxu0 %v5037
    %6416 = vmatprep.subr.bf16.mxu0 %v5046
    %6417 = vmatpush1.bf16.msra.mxu0 %v5045
    %6418 = vmatprep.subr.bf16.mxu0 %v5054
    %6419 = vmatpush1.bf16.msra.mxu0 %v5053
    %6420 = vmatprep.subr.bf16.mxu0 %v5062
    %6421 = vmatpush1.bf16.msra.mxu0 %v5061
    %6422 = vmatprep.mubr.bf16.mxu0 %v2754
    %6423 = vmatmul.mubr.bf16.gmra.mrb[0].mxu0 %v2753
    %v6424 = vpop.f32.mrb[0].mxu0
    %v6425 = vadd.f32 %v6382, %v6424
    %v6426 = vpop.f32.mrb[0].mxu0
    %v6427 = vadd.f32 %v6384, %v6426
    %v6428 = vpop.f32.mrb[0].mxu0
    %v6429 = vadd.f32 %v6386, %v6428
    %v6430 = vpop.f32.mrb[0].mxu0
    %v6431 = vadd.f32 %v6388, %v6430
    %6432 = vdwg.mxu0
    %6433 = vmatprep.subr.bf16.mxu0 %v5070
    %6434 = vmatpush1.bf16.msra.mxu0 %v5069
    %6435 = vmatprep.subr.bf16.mxu0 %v5078
    %6436 = vmatpush1.bf16.msra.mxu0 %v5077
    %6437 = vmatprep.subr.bf16.mxu0 %v5086
    %6438 = vmatpush1.bf16.msra.mxu0 %v5085
    %6439 = vmatprep.subr.bf16.mxu0 %v5094
    %6440 = vmatpush1.bf16.msra.mxu0 %v5093
    %6441 = vmatprep.subr.bf16.mxu0 %v5102
    %6442 = vmatpush1.bf16.msra.mxu0 %v5101
    %6443 = vmatprep.subr.bf16.mxu0 %v5110
    %6444 = vmatpush1.bf16.msra.mxu0 %v5109
    %6445 = vmatprep.subr.bf16.mxu0 %v5118
    %6446 = vmatpush1.bf16.msra.mxu0 %v5117
    %6447 = vmatprep.subr.bf16.mxu0 %v5126
    %6448 = vmatpush1.bf16.msra.mxu0 %v5125
    %6449 = vmatprep.subr.bf16.mxu0 %v5134
    %6450 = vmatpush1.bf16.msra.mxu0 %v5133
    %6451 = vmatprep.subr.bf16.mxu0 %v5142
    %6452 = vmatpush1.bf16.msra.mxu0 %v5141
    %6453 = vmatprep.subr.bf16.mxu0 %v5150
    %6454 = vmatpush1.bf16.msra.mxu0 %v5149
    %6455 = vmatprep.subr.bf16.mxu0 %v5158
    %6456 = vmatpush1.bf16.msra.mxu0 %v5157
    %6457 = vmatprep.subr.bf16.mxu0 %v5166
    %6458 = vmatpush1.bf16.msra.mxu0 %v5165
    %6459 = vmatprep.subr.bf16.mxu0 %v5174
    %6460 = vmatpush1.bf16.msra.mxu0 %v5173
    %6461 = vmatprep.subr.bf16.mxu0 %v5182
    %6462 = vmatpush1.bf16.msra.mxu0 %v5181
    %6463 = vmatprep.subr.bf16.mxu0 %v5190
    %6464 = vmatpush1.bf16.msra.mxu0 %v5189
    %6465 = vmatprep.mubr.bf16.mxu0 %v2756
    %6466 = vmatmul.mubr.bf16.gmra.mrb[0].mxu0 %v2755
    %v6467 = vpop.f32.mrb[0].mxu0
    %v6468 = vadd.f32 %v6425, %v6467
    %v6469 = vpop.f32.mrb[0].mxu0
    %v6470 = vadd.f32 %v6427, %v6469
    %v6471 = vpop.f32.mrb[0].mxu0
    %v6472 = vadd.f32 %v6429, %v6471
    %v6473 = vpop.f32.mrb[0].mxu0
    %v6474 = vadd.f32 %v6431, %v6473
    %6475 = vdwg.mxu0
    %6476 = vmatprep.subr.bf16.mxu0 %v5198
    %6477 = vmatpush1.bf16.msra.mxu0 %v5197
    %6478 = vmatprep.subr.bf16.mxu0 %v5206
    %6479 = vmatpush1.bf16.msra.mxu0 %v5205
    %6480 = vmatprep.subr.bf16.mxu0 %v5214
    %6481 = vmatpush1.bf16.msra.mxu0 %v5213
    %6482 = vmatprep.subr.bf16.mxu0 %v5222
    %6483 = vmatpush1.bf16.msra.mxu0 %v5221
    %6484 = vmatprep.subr.bf16.mxu0 %v5230
    %6485 = vmatpush1.bf16.msra.mxu0 %v5229
    %6486 = vmatprep.subr.bf16.mxu0 %v5238
    %6487 = vmatpush1.bf16.msra.mxu0 %v5237
    %6488 = vmatprep.subr.bf16.mxu0 %v5246
    %6489 = vmatpush1.bf16.msra.mxu0 %v5245
    %6490 = vmatprep.subr.bf16.mxu0 %v5254
    %6491 = vmatpush1.bf16.msra.mxu0 %v5253
    %6492 = vmatprep.subr.bf16.mxu0 %v5262
    %6493 = vmatpush1.bf16.msra.mxu0 %v5261
    %6494 = vmatprep.subr.bf16.mxu0 %v5270
    %6495 = vmatpush1.bf16.msra.mxu0 %v5269
    %6496 = vmatprep.subr.bf16.mxu0 %v5278
    %6497 = vmatpush1.bf16.msra.mxu0 %v5277
    %6498 = vmatprep.subr.bf16.mxu0 %v5286
    %6499 = vmatpush1.bf16.msra.mxu0 %v5285
    %6500 = vmatprep.subr.bf16.mxu0 %v5294
    %6501 = vmatpush1.bf16.msra.mxu0 %v5293
    %6502 = vmatprep.subr.bf16.mxu0 %v5302
    %6503 = vmatpush1.bf16.msra.mxu0 %v5301
    %6504 = vmatprep.subr.bf16.mxu0 %v5310
    %6505 = vmatpush1.bf16.msra.mxu0 %v5309
    %6506 = vmatprep.subr.bf16.mxu0 %v5318
    %6507 = vmatpush1.bf16.msra.mxu0 %v5317
    %6508 = vmatprep.mubr.bf16.mxu0 %v2758
    %6509 = vmatmul.mubr.bf16.gmra.mrb[0].mxu0 %v2757
    %v6510 = vpop.f32.mrb[0].mxu0
    %v6511 = vadd.f32 %v6468, %v6510
    %v6512 = vpop.f32.mrb[0].mxu0
    %v6513 = vadd.f32 %v6470, %v6512
    %v6514 = vpop.f32.mrb[0].mxu0
    %v6515 = vadd.f32 %v6472, %v6514
    %v6516 = vpop.f32.mrb[0].mxu0
    %v6517 = vadd.f32 %v6474, %v6516
    %6518 = vdwg.mxu0
    %v6519 = vmul.f32 %v5995, %v290
    %v6520 = vmul.f32 %v5997, %v290
    %v6521 = vmul.f32 %v6167, %v290
    %v6522 = vmul.f32 %v6169, %v290
    %v6523 = vmul.f32 %v6339, %v290
    %v6524 = vmul.f32 %v6341, %v290
    %v6525 = vmul.f32 %v6511, %v290
    %v6526 = vmul.f32 %v6513, %v290
    %v6527 = vmul.f32 %v5999, %v291
    %v6528 = vmul.f32 %v6001, %v291
    %v6529 = vmul.f32 %v6171, %v291
    %v6530 = vmul.f32 %v6173, %v291
    %v6531 = vmul.f32 %v6343, %v291
    %v6532 = vmul.f32 %v6345, %v291
    %v6533 = vmul.f32 %v6515, %v291
    %v6534 = vmul.f32 %v6517, %v291
    %v6535 = vpack.c.bf16 %v6527, %v6519
    %v6536 = vpack.c.bf16 %v6528, %v6520
    %v6537 = vpack.c.bf16 %v6529, %v6521
    %v6538 = vpack.c.bf16 %v6530, %v6522
    %v6539 = vpack.c.bf16 %v6531, %v6523
    %v6540 = vpack.c.bf16 %v6532, %v6524
    %v6541 = vpack.c.bf16 %v6533, %v6525
    %v6542 = vpack.c.bf16 %v6534, %v6526
    %6543 = vmatprep.subr.bf16.mxu0 %v6536
    %6544 = vmatpush1.bf16.msra.mxu0 %v6535
    %6545 = vmatprep.subr.bf16.mxu0 0
    %6546 = vmatpush1.bf16.msra.mxu0 0
    %6547 = vmatprep.subr.bf16.mxu0 0
    %6548 = vmatpush1.bf16.msra.mxu0 0
    %6549 = vmatprep.subr.bf16.mxu0 0
    %6550 = vmatpush1.bf16.msra.mxu0 0
    %6551 = vmatprep.subr.bf16.mxu0 0
    %6552 = vmatpush1.bf16.msra.mxu0 0
    %6553 = vmatprep.subr.bf16.mxu0 0
    %6554 = vmatpush1.bf16.msra.mxu0 0
    %6555 = vmatprep.subr.bf16.mxu0 0
    %6556 = vmatpush1.bf16.msra.mxu0 0
    %6557 = vmatprep.subr.bf16.mxu0 0
    %6558 = vmatpush1.bf16.msra.mxu0 0
    %6559 = vmatprep.subr.bf16.mxu0 0
    %6560 = vmatpush1.bf16.msra.mxu0 0
    %6561 = vmatprep.subr.bf16.mxu0 0
    %6562 = vmatpush1.bf16.msra.mxu0 0
    %6563 = vmatprep.subr.bf16.mxu0 0
    %6564 = vmatpush1.bf16.msra.mxu0 0
    %6565 = vmatprep.subr.bf16.mxu0 0
    %6566 = vmatpush1.bf16.msra.mxu0 0
    %6567 = vmatprep.subr.bf16.mxu0 0
    %6568 = vmatpush1.bf16.msra.mxu0 0
    %6569 = vmatprep.subr.bf16.mxu0 0
    %6570 = vmatpush1.bf16.msra.mxu0 0
    %6571 = vmatprep.subr.bf16.mxu0 0
    %6572 = vmatpush1.bf16.msra.mxu0 0
    %6573 = vmatprep.subr.bf16.mxu0 0
    %6574 = vmatpush1.bf16.msra.mxu0 0
    %6575 = vmatprep.mubr.bf16.mxu0 0
    %6576 = vmatmul.mubr.bf16.gmra.mrb[0].mxu0 %v447
    %v6577 = vpop.f32.mrb[0].mxu0
    %v6578 = vadd.f32 0.0, %v6577
    %v6579 = vpop.f32.mrb[0].mxu0
    %v6580 = vadd.f32 0.0, %v6579
    %v6581 = vpop.f32.mrb[0].mxu0
    %v6582 = vadd.f32 0.0, %v6581
    %v6583 = vpop.f32.mrb[0].mxu0
    %v6584 = vadd.f32 0.0, %v6583
    %6585 = vdwg.mxu0
    %6586 = vmatprep.subr.bf16.mxu0 %v6538
    %6587 = vmatpush1.bf16.msra.mxu0 %v6537
    %6588 = vmatprep.subr.bf16.mxu0 0
    %6589 = vmatpush1.bf16.msra.mxu0 0
    %6590 = vmatprep.subr.bf16.mxu0 0
    %6591 = vmatpush1.bf16.msra.mxu0 0
    %6592 = vmatprep.subr.bf16.mxu0 0
    %6593 = vmatpush1.bf16.msra.mxu0 0
    %6594 = vmatprep.subr.bf16.mxu0 0
    %6595 = vmatpush1.bf16.msra.mxu0 0
    %6596 = vmatprep.subr.bf16.mxu0 0
    %6597 = vmatpush1.bf16.msra.mxu0 0
    %6598 = vmatprep.subr.bf16.mxu0 0
    %6599 = vmatpush1.bf16.msra.mxu0 0
    %6600 = vmatprep.subr.bf16.mxu0 0
    %6601 = vmatpush1.bf16.msra.mxu0 0
    %6602 = vmatprep.subr.bf16.mxu0 0
    %6603 = vmatpush1.bf16.msra.mxu0 0
    %6604 = vmatprep.subr.bf16.mxu0 0
    %6605 = vmatpush1.bf16.msra.mxu0 0
    %6606 = vmatprep.subr.bf16.mxu0 0
    %6607 = vmatpush1.bf16.msra.mxu0 0
    %6608 = vmatprep.subr.bf16.mxu0 0
    %6609 = vmatpush1.bf16.msra.mxu0 0
    %6610 = vmatprep.subr.bf16.mxu0 0
    %6611 = vmatpush1.bf16.msra.mxu0 0
    %6612 = vmatprep.subr.bf16.mxu0 0
    %6613 = vmatpush1.bf16.msra.mxu0 0
    %6614 = vmatprep.subr.bf16.mxu0 0
    %6615 = vmatpush1.bf16.msra.mxu0 0
    %6616 = vmatprep.subr.bf16.mxu0 0
    %6617 = vmatpush1.bf16.msra.mxu0 0
    %6618 = vmatprep.mubr.bf16.mxu0 0
    %6619 = vmatmul.mubr.bf16.gmra.mrb[0].mxu0 %v447
    %v6620 = vpop.f32.mrb[0].mxu0
    %v6621 = vadd.f32 0.0, %v6620
    %v6622 = vpop.f32.mrb[0].mxu0
    %v6623 = vadd.f32 0.0, %v6622
    %v6624 = vpop.f32.mrb[0].mxu0
    %v6625 = vadd.f32 0.0, %v6624
    %v6626 = vpop.f32.mrb[0].mxu0
    %v6627 = vadd.f32 0.0, %v6626
    %6628 = vdwg.mxu0
    %6629 = vmatprep.subr.bf16.mxu0 %v6540
    %6630 = vmatpush1.bf16.msra.mxu0 %v6539
    %6631 = vmatprep.subr.bf16.mxu0 0
    %6632 = vmatpush1.bf16.msra.mxu0 0
    %6633 = vmatprep.subr.bf16.mxu0 0
    %6634 = vmatpush1.bf16.msra.mxu0 0
    %6635 = vmatprep.subr.bf16.mxu0 0
    %6636 = vmatpush1.bf16.msra.mxu0 0
    %6637 = vmatprep.subr.bf16.mxu0 0
    %6638 = vmatpush1.bf16.msra.mxu0 0
    %6639 = vmatprep.subr.bf16.mxu0 0
    %6640 = vmatpush1.bf16.msra.mxu0 0
    %6641 = vmatprep.subr.bf16.mxu0 0
    %6642 = vmatpush1.bf16.msra.mxu0 0
    %6643 = vmatprep.subr.bf16.mxu0 0
    %6644 = vmatpush1.bf16.msra.mxu0 0
    %6645 = vmatprep.subr.bf16.mxu0 0
    %6646 = vmatpush1.bf16.msra.mxu0 0
    %6647 = vmatprep.subr.bf16.mxu0 0
    %6648 = vmatpush1.bf16.msra.mxu0 0
    %6649 = vmatprep.subr.bf16.mxu0 0
    %6650 = vmatpush1.bf16.msra.mxu0 0
    %6651 = vmatprep.subr.bf16.mxu0 0
    %6652 = vmatpush1.bf16.msra.mxu0 0
    %6653 = vmatprep.subr.bf16.mxu0 0
    %6654 = vmatpush1.bf16.msra.mxu0 0
    %6655 = vmatprep.subr.bf16.mxu0 0
    %6656 = vmatpush1.bf16.msra.mxu0 0
    %6657 = vmatprep.subr.bf16.mxu0 0
    %6658 = vmatpush1.bf16.msra.mxu0 0
    %6659 = vmatprep.subr.bf16.mxu0 0
    %6660 = vmatpush1.bf16.msra.mxu0 0
    %6661 = vmatprep.mubr.bf16.mxu0 0
    %6662 = vmatmul.mubr.bf16.gmra.mrb[0].mxu0 %v447
    %v6663 = vpop.f32.mrb[0].mxu0
    %v6664 = vadd.f32 0.0, %v6663
    %v6665 = vpop.f32.mrb[0].mxu0
    %v6666 = vadd.f32 0.0, %v6665
    %v6667 = vpop.f32.mrb[0].mxu0
    %v6668 = vadd.f32 0.0, %v6667
    %v6669 = vpop.f32.mrb[0].mxu0
    %v6670 = vadd.f32 0.0, %v6669
    %6671 = vdwg.mxu0
    %6672 = vmatprep.subr.bf16.mxu0 %v6542
    %6673 = vmatpush1.bf16.msra.mxu0 %v6541
    %6674 = vmatprep.subr.bf16.mxu0 0
    %6675 = vmatpush1.bf16.msra.mxu0 0
    %6676 = vmatprep.subr.bf16.mxu0 0
    %6677 = vmatpush1.bf16.msra.mxu0 0
    %6678 = vmatprep.subr.bf16.mxu0 0
    %6679 = vmatpush1.bf16.msra.mxu0 0
    %6680 = vmatprep.subr.bf16.mxu0 0
    %6681 = vmatpush1.bf16.msra.mxu0 0
    %6682 = vmatprep.subr.bf16.mxu0 0
    %6683 = vmatpush1.bf16.msra.mxu0 0
    %6684 = vmatprep.subr.bf16.mxu0 0
    %6685 = vmatpush1.bf16.msra.mxu0 0
    %6686 = vmatprep.subr.bf16.mxu0 0
    %6687 = vmatpush1.bf16.msra.mxu0 0
    %6688 = vmatprep.subr.bf16.mxu0 0
    %6689 = vmatpush1.bf16.msra.mxu0 0
    %6690 = vmatprep.subr.bf16.mxu0 0
    %6691 = vmatpush1.bf16.msra.mxu0 0
    %6692 = vmatprep.subr.bf16.mxu0 0
    %6693 = vmatpush1.bf16.msra.mxu0 0
    %6694 = vmatprep.subr.bf16.mxu0 0
    %6695 = vmatpush1.bf16.msra.mxu0 0
    %6696 = vmatprep.subr.bf16.mxu0 0
    %6697 = vmatpush1.bf16.msra.mxu0 0
    %6698 = vmatprep.subr.bf16.mxu0 0
    %6699 = vmatpush1.bf16.msra.mxu0 0
    %6700 = vmatprep.subr.bf16.mxu0 0
    %6701 = vmatpush1.bf16.msra.mxu0 0
    %6702 = vmatprep.subr.bf16.mxu0 0
    %6703 = vmatpush1.bf16.msra.mxu0 0
    %6704 = vmatprep.mubr.bf16.mxu0 0
    %6705 = vmatmul.mubr.bf16.gmra.mrb[0].mxu0 %v447
    %v6706 = vpop.f32.mrb[0].mxu0
    %v6707 = vadd.f32 0.0, %v6706
    %v6708 = vpop.f32.mrb[0].mxu0
    %v6709 = vadd.f32 0.0, %v6708
    %v6710 = vpop.f32.mrb[0].mxu0
    %v6711 = vadd.f32 0.0, %v6710
    %v6712 = vpop.f32.mrb[0].mxu0
    %v6713 = vadd.f32 0.0, %v6712
    %6714 = vdwg.mxu0
    %v6715 = vmul.f32 %v6578, %v290
    %v6716 = vmul.f32 %v6580, %v290
    %v6717 = vmul.f32 %v6621, %v290
    %v6718 = vmul.f32 %v6623, %v290
    %v6719 = vmul.f32 %v6664, %v290
    %v6720 = vmul.f32 %v6666, %v290
    %v6721 = vmul.f32 %v6707, %v290
    %v6722 = vmul.f32 %v6709, %v290
    %v6723 = vmul.f32 %v6582, %v291
    %v6724 = vmul.f32 %v6584, %v291
    %v6725 = vmul.f32 %v6625, %v291
    %v6726 = vmul.f32 %v6627, %v291
    %v6727 = vmul.f32 %v6668, %v291
    %v6728 = vmul.f32 %v6670, %v291
    %v6729 = vmul.f32 %v6711, %v291
    %v6730 = vmul.f32 %v6713, %v291
    %v6731 = vld [vmem:[#allocation15] sm:$0xff]
    %v6733 = vlaneseq
    %v6734 = vshrl.u32 %v6733, 7
    %v6735 = vsub.s32 0, %v6734
    %v6736 = vrot.slane %v6731, %v6735
    %v6737 = vlaneseq
    %v6738 = vshrl.u32 %v6737, 7
    %v6739 = vsub.s32 1, %v6738
    %v6740 = vrot.slane %v6731, %v6739
    %v6741 = vlaneseq
    %v6742 = vshrl.u32 %v6741, 7
    %v6743 = vsub.s32 2, %v6742
    %v6744 = vrot.slane %v6731, %v6743
    %v6745 = vlaneseq
    %v6746 = vshrl.u32 %v6745, 7
    %v6747 = vsub.s32 3, %v6746
    %v6748 = vrot.slane %v6731, %v6747
    %v6749 = vlaneseq
    %v6750 = vshrl.u32 %v6749, 7
    %v6751 = vsub.s32 4, %v6750
    %v6752 = vrot.slane %v6731, %v6751
    %v6753 = vlaneseq
    %v6754 = vshrl.u32 %v6753, 7
    %v6755 = vsub.s32 5, %v6754
    %v6756 = vrot.slane %v6731, %v6755
    %v6757 = vlaneseq
    %v6758 = vshrl.u32 %v6757, 7
    %v6759 = vsub.s32 6, %v6758
    %v6760 = vrot.slane %v6731, %v6759
    %v6761 = vlaneseq
    %v6762 = vshrl.u32 %v6761, 7
    %v6763 = vsub.s32 7, %v6762
    %v6764 = vrot.slane %v6731, %v6763
    %v6773 = vadd.f32 %v6715, %v6736
    %v6774 = vadd.f32 %v6716, %v6740
    %v6775 = vadd.f32 %v6717, %v6744
    %v6776 = vadd.f32 %v6718, %v6748
    %v6777 = vadd.f32 %v6719, %v6752
    %v6778 = vadd.f32 %v6720, %v6756
    %v6779 = vadd.f32 %v6721, %v6760
    %v6780 = vadd.f32 %v6722, %v6764
    %v6781 = vadd.f32 %v6723, %v6736
    %v6782 = vadd.f32 %v6724, %v6740
    %v6783 = vadd.f32 %v6725, %v6744
    %v6784 = vadd.f32 %v6726, %v6748
    %v6785 = vadd.f32 %v6727, %v6752
    %v6786 = vadd.f32 %v6728, %v6756
    %v6787 = vadd.f32 %v6729, %v6760
    %v6788 = vadd.f32 %v6730, %v6764
    %v6789 = vmax.f32 %v6773, 0.0
    %v6790 = vmax.f32 %v6774, 0.0
    %v6791 = vmax.f32 %v6775, 0.0
    %v6792 = vmax.f32 %v6776, 0.0
    %v6793 = vmax.f32 %v6777, 0.0
    %v6794 = vmax.f32 %v6778, 0.0
    %v6795 = vmax.f32 %v6779, 0.0
    %v6796 = vmax.f32 %v6780, 0.0
    %v6797 = vmax.f32 %v6781, 0.0
    %v6798 = vmax.f32 %v6782, 0.0
    %v6799 = vmax.f32 %v6783, 0.0
    %v6800 = vmax.f32 %v6784, 0.0
    %v6801 = vmax.f32 %v6785, 0.0
    %v6802 = vmax.f32 %v6786, 0.0
    %v6803 = vmax.f32 %v6787, 0.0
    %v6804 = vmax.f32 %v6788, 0.0
    %v6805 = vpack.c.bf16 %v6797, %v6789
    %v6806 = vpack.c.bf16 %v6798, %v6790
    %v6807 = vpack.c.bf16 %v6799, %v6791
    %v6808 = vpack.c.bf16 %v6800, %v6792
    %v6809 = vpack.c.bf16 %v6801, %v6793
    %v6810 = vpack.c.bf16 %v6802, %v6794
    %v6811 = vpack.c.bf16 %v6803, %v6795
    %v6812 = vpack.c.bf16 %v6804, %v6796
    %v6813 = vld [vmem:[#allocation17] sm:$0xff]
    %v6814 = vld [vmem:[#allocation17 + $0x8] sm:$0xff]
    %v6815 = vld [vmem:[#allocation17 + $0x10] sm:$0xff]
    %v6816 = vld [vmem:[#allocation17 + $0x18] sm:$0xff]
    %v6817 = vld [vmem:[#allocation17 + $0x20] sm:$0xff]
    %v6818 = vld [vmem:[#allocation17 + $0x28] sm:$0xff]
    %v6819 = vld [vmem:[#allocation17 + $0x30] sm:$0xff]
    %v6820 = vld [vmem:[#allocation17 + $0x38] sm:$0xff]
    %v6821 = vld [vmem:[#allocation17 + $0x40] sm:$0xff]
    %v6822 = vld [vmem:[#allocation17 + $0x48] sm:$0xff]
    %v6823 = vld [vmem:[#allocation17 + $0x50] sm:$0xff]
    %v6824 = vld [vmem:[#allocation17 + $0x58] sm:$0xff]
    %v6825 = vld [vmem:[#allocation17 + $0x60] sm:$0xff]
    %v6826 = vld [vmem:[#allocation17 + $0x68] sm:$0xff]
    %v6827 = vld [vmem:[#allocation17 + $0x70] sm:$0xff]
    %v6828 = vld [vmem:[#allocation17 + $0x78] sm:$0xff]
    %v6829 = vld [vmem:[#allocation17 + $0x80] sm:$0xff]
    %v6830 = vld [vmem:[#allocation17 + $0x88] sm:$0xff]
    %v6831 = vld [vmem:[#allocation17 + $0x90] sm:$0xff]
    %v6832 = vld [vmem:[#allocation17 + $0x98] sm:$0xff]
    %v6833 = vld [vmem:[#allocation17 + $0xa0] sm:$0xff]
    %v6834 = vld [vmem:[#allocation17 + $0xa8] sm:$0xff]
    %v6835 = vld [vmem:[#allocation17 + $0xb0] sm:$0xff]
    %v6836 = vld [vmem:[#allocation17 + $0xb8] sm:$0xff]
    %v6837 = vld [vmem:[#allocation17 + $0xc0] sm:$0xff]
    %v6838 = vld [vmem:[#allocation17 + $0xc8] sm:$0xff]
    %v6839 = vld [vmem:[#allocation17 + $0xd0] sm:$0xff]
    %v6840 = vld [vmem:[#allocation17 + $0xd8] sm:$0xff]
    %v6841 = vld [vmem:[#allocation17 + $0xe0] sm:$0xff]
    %v6842 = vld [vmem:[#allocation17 + $0xe8] sm:$0xff]
    %v6843 = vld [vmem:[#allocation17 + $0xf0] sm:$0xff]
    %v6844 = vld [vmem:[#allocation17 + $0xf8] sm:$0xff]
    %v6845 = vld [vmem:[#allocation17 + $0x100] sm:$0xff]
    %v6846 = vld [vmem:[#allocation17 + $0x108] sm:$0xff]
    %v6847 = vld [vmem:[#allocation17 + $0x110] sm:$0xff]
    %v6848 = vld [vmem:[#allocation17 + $0x118] sm:$0xff]
    %v6849 = vld [vmem:[#allocation17 + $0x120] sm:$0xff]
    %v6850 = vld [vmem:[#allocation17 + $0x128] sm:$0xff]
    %v6851 = vld [vmem:[#allocation17 + $0x130] sm:$0xff]
    %v6852 = vld [vmem:[#allocation17 + $0x138] sm:$0xff]
    %v6853 = vld [vmem:[#allocation17 + $0x140] sm:$0xff]
    %v6854 = vld [vmem:[#allocation17 + $0x148] sm:$0xff]
    %v6855 = vld [vmem:[#allocation17 + $0x150] sm:$0xff]
    %v6856 = vld [vmem:[#allocation17 + $0x158] sm:$0xff]
    %v6857 = vld [vmem:[#allocation17 + $0x160] sm:$0xff]
    %v6858 = vld [vmem:[#allocation17 + $0x168] sm:$0xff]
    %v6859 = vld [vmem:[#allocation17 + $0x170] sm:$0xff]
    %v6860 = vld [vmem:[#allocation17 + $0x178] sm:$0xff]
    %v6861 = vld [vmem:[#allocation17 + $0x180] sm:$0xff]
    %v6862 = vld [vmem:[#allocation17 + $0x188] sm:$0xff]
    %v6863 = vld [vmem:[#allocation17 + $0x190] sm:$0xff]
    %v6864 = vld [vmem:[#allocation17 + $0x198] sm:$0xff]
    %v6865 = vld [vmem:[#allocation17 + $0x1a0] sm:$0xff]
    %v6866 = vld [vmem:[#allocation17 + $0x1a8] sm:$0xff]
    %v6867 = vld [vmem:[#allocation17 + $0x1b0] sm:$0xff]
    %v6868 = vld [vmem:[#allocation17 + $0x1b8] sm:$0xff]
    %v6869 = vld [vmem:[#allocation17 + $0x1c0] sm:$0xff]
    %v6870 = vld [vmem:[#allocation17 + $0x1c8] sm:$0xff]
    %v6871 = vld [vmem:[#allocation17 + $0x1d0] sm:$0xff]
    %v6872 = vld [vmem:[#allocation17 + $0x1d8] sm:$0xff]
    %v6873 = vld [vmem:[#allocation17 + $0x1e0] sm:$0xff]
    %v6874 = vld [vmem:[#allocation17 + $0x1e8] sm:$0xff]
    %v6875 = vld [vmem:[#allocation17 + $0x1f0] sm:$0xff]
    %v6876 = vld [vmem:[#allocation17 + $0x1f8] sm:$0xff]
    %v6877 = vld [vmem:[#allocation17 + $0x200] sm:$0xff]
    %v6878 = vld [vmem:[#allocation17 + $0x208] sm:$0xff]
    %v6879 = vld [vmem:[#allocation17 + $0x210] sm:$0xff]
    %v6880 = vld [vmem:[#allocation17 + $0x218] sm:$0xff]
    %v6881 = vld [vmem:[#allocation17 + $0x220] sm:$0xff]
    %v6882 = vld [vmem:[#allocation17 + $0x228] sm:$0xff]
    %v6883 = vld [vmem:[#allocation17 + $0x230] sm:$0xff]
    %v6884 = vld [vmem:[#allocation17 + $0x238] sm:$0xff]
    %v6885 = vld [vmem:[#allocation17 + $0x240] sm:$0xff]
    %v6886 = vld [vmem:[#allocation17 + $0x248] sm:$0xff]
    %v6887 = vld [vmem:[#allocation17 + $0x250] sm:$0xff]
    %v6888 = vld [vmem:[#allocation17 + $0x258] sm:$0xff]
    %v6889 = vld [vmem:[#allocation17 + $0x260] sm:$0xff]
    %v6890 = vld [vmem:[#allocation17 + $0x268] sm:$0xff]
    %v6891 = vld [vmem:[#allocation17 + $0x270] sm:$0xff]
    %v6892 = vld [vmem:[#allocation17 + $0x278] sm:$0xff]
    %v6893 = vld [vmem:[#allocation17 + $0x280] sm:$0xff]
    %v6894 = vld [vmem:[#allocation17 + $0x288] sm:$0xff]
    %v6895 = vld [vmem:[#allocation17 + $0x290] sm:$0xff]
    %v6896 = vld [vmem:[#allocation17 + $0x298] sm:$0xff]
    %v6897 = vld [vmem:[#allocation17 + $0x2a0] sm:$0xff]
    %v6898 = vld [vmem:[#allocation17 + $0x2a8] sm:$0xff]
    %v6899 = vld [vmem:[#allocation17 + $0x2b0] sm:$0xff]
    %v6900 = vld [vmem:[#allocation17 + $0x2b8] sm:$0xff]
    %v6901 = vld [vmem:[#allocation17 + $0x2c0] sm:$0xff]
    %v6902 = vld [vmem:[#allocation17 + $0x2c8] sm:$0xff]
    %v6903 = vld [vmem:[#allocation17 + $0x2d0] sm:$0xff]
    %v6904 = vld [vmem:[#allocation17 + $0x2d8] sm:$0xff]
    %v6905 = vld [vmem:[#allocation17 + $0x2e0] sm:$0xff]
    %v6906 = vld [vmem:[#allocation17 + $0x2e8] sm:$0xff]
    %v6907 = vld [vmem:[#allocation17 + $0x2f0] sm:$0xff]
    %v6908 = vld [vmem:[#allocation17 + $0x2f8] sm:$0xff]
    %v6909 = vld [vmem:[#allocation17 + $0x300] sm:$0xff]
    %v6910 = vld [vmem:[#allocation17 + $0x308] sm:$0xff]
    %v6911 = vld [vmem:[#allocation17 + $0x310] sm:$0xff]
    %v6912 = vld [vmem:[#allocation17 + $0x318] sm:$0xff]
    %v6913 = vld [vmem:[#allocation17 + $0x320] sm:$0xff]
    %v6914 = vld [vmem:[#allocation17 + $0x328] sm:$0xff]
    %v6915 = vld [vmem:[#allocation17 + $0x330] sm:$0xff]
    %v6916 = vld [vmem:[#allocation17 + $0x338] sm:$0xff]
    %v6917 = vld [vmem:[#allocation17 + $0x340] sm:$0xff]
    %v6918 = vld [vmem:[#allocation17 + $0x348] sm:$0xff]
    %v6919 = vld [vmem:[#allocation17 + $0x350] sm:$0xff]
    %v6920 = vld [vmem:[#allocation17 + $0x358] sm:$0xff]
    %v6921 = vld [vmem:[#allocation17 + $0x360] sm:$0xff]
    %v6922 = vld [vmem:[#allocation17 + $0x368] sm:$0xff]
    %v6923 = vld [vmem:[#allocation17 + $0x370] sm:$0xff]
    %v6924 = vld [vmem:[#allocation17 + $0x378] sm:$0xff]
    %v6925 = vld [vmem:[#allocation17 + $0x380] sm:$0xff]
    %v6926 = vld [vmem:[#allocation17 + $0x388] sm:$0xff]
    %v6927 = vld [vmem:[#allocation17 + $0x390] sm:$0xff]
    %v6928 = vld [vmem:[#allocation17 + $0x398] sm:$0xff]
    %v6929 = vld [vmem:[#allocation17 + $0x3a0] sm:$0xff]
    %v6930 = vld [vmem:[#allocation17 + $0x3a8] sm:$0xff]
    %v6931 = vld [vmem:[#allocation17 + $0x3b0] sm:$0xff]
    %v6932 = vld [vmem:[#allocation17 + $0x3b8] sm:$0xff]
    %v6933 = vld [vmem:[#allocation17 + $0x3c0] sm:$0xff]
    %v6934 = vld [vmem:[#allocation17 + $0x3c8] sm:$0xff]
    %v6935 = vld [vmem:[#allocation17 + $0x3d0] sm:$0xff]
    %v6936 = vld [vmem:[#allocation17 + $0x3d8] sm:$0xff]
    %v6937 = vld [vmem:[#allocation17 + $0x3e0] sm:$0xff]
    %v6938 = vld [vmem:[#allocation17 + $0x3e8] sm:$0xff]
    %v6939 = vld [vmem:[#allocation17 + $0x3f0] sm:$0xff]
    %v6940 = vld [vmem:[#allocation17 + $0x3f8] sm:$0xff]
    %v6941 = vld [vmem:[#allocation17 + $0x400] sm:$0xff]
    %v6942 = vld [vmem:[#allocation17 + $0x408] sm:$0xff]
    %v6943 = vld [vmem:[#allocation17 + $0x410] sm:$0xff]
    %v6944 = vld [vmem:[#allocation17 + $0x418] sm:$0xff]
    %v6945 = vld [vmem:[#allocation17 + $0x420] sm:$0xff]
    %v6946 = vld [vmem:[#allocation17 + $0x428] sm:$0xff]
    %v6947 = vld [vmem:[#allocation17 + $0x430] sm:$0xff]
    %v6948 = vld [vmem:[#allocation17 + $0x438] sm:$0xff]
    %v6949 = vld [vmem:[#allocation17 + $0x440] sm:$0xff]
    %v6950 = vld [vmem:[#allocation17 + $0x448] sm:$0xff]
    %v6951 = vld [vmem:[#allocation17 + $0x450] sm:$0xff]
    %v6952 = vld [vmem:[#allocation17 + $0x458] sm:$0xff]
    %v6953 = vld [vmem:[#allocation17 + $0x460] sm:$0xff]
    %v6954 = vld [vmem:[#allocation17 + $0x468] sm:$0xff]
    %v6955 = vld [vmem:[#allocation17 + $0x470] sm:$0xff]
    %v6956 = vld [vmem:[#allocation17 + $0x478] sm:$0xff]
    %v6957 = vld [vmem:[#allocation17 + $0x480] sm:$0xff]
    %v6958 = vld [vmem:[#allocation17 + $0x488] sm:$0xff]
    %v6959 = vld [vmem:[#allocation17 + $0x490] sm:$0xff]
    %v6960 = vld [vmem:[#allocation17 + $0x498] sm:$0xff]
    %v6961 = vld [vmem:[#allocation17 + $0x4a0] sm:$0xff]
    %v6962 = vld [vmem:[#allocation17 + $0x4a8] sm:$0xff]
    %v6963 = vld [vmem:[#allocation17 + $0x4b0] sm:$0xff]
    %v6964 = vld [vmem:[#allocation17 + $0x4b8] sm:$0xff]
    %v6965 = vld [vmem:[#allocation17 + $0x4c0] sm:$0xff]
    %v6966 = vld [vmem:[#allocation17 + $0x4c8] sm:$0xff]
    %v6967 = vld [vmem:[#allocation17 + $0x4d0] sm:$0xff]
    %v6968 = vld [vmem:[#allocation17 + $0x4d8] sm:$0xff]
    %v6969 = vld [vmem:[#allocation17 + $0x4e0] sm:$0xff]
    %v6970 = vld [vmem:[#allocation17 + $0x4e8] sm:$0xff]
    %v6971 = vld [vmem:[#allocation17 + $0x4f0] sm:$0xff]
    %v6972 = vld [vmem:[#allocation17 + $0x4f8] sm:$0xff]
    %v6973 = vld [vmem:[#allocation17 + $0x500] sm:$0xff]
    %v6974 = vld [vmem:[#allocation17 + $0x508] sm:$0xff]
    %v6975 = vld [vmem:[#allocation17 + $0x510] sm:$0xff]
    %v6976 = vld [vmem:[#allocation17 + $0x518] sm:$0xff]
    %v6977 = vld [vmem:[#allocation17 + $0x520] sm:$0xff]
    %v6978 = vld [vmem:[#allocation17 + $0x528] sm:$0xff]
    %v6979 = vld [vmem:[#allocation17 + $0x530] sm:$0xff]
    %v6980 = vld [vmem:[#allocation17 + $0x538] sm:$0xff]
    %v6981 = vld [vmem:[#allocation17 + $0x540] sm:$0xff]
    %v6982 = vld [vmem:[#allocation17 + $0x548] sm:$0xff]
    %v6983 = vld [vmem:[#allocation17 + $0x550] sm:$0xff]
    %v6984 = vld [vmem:[#allocation17 + $0x558] sm:$0xff]
    %v6985 = vld [vmem:[#allocation17 + $0x560] sm:$0xff]
    %v6986 = vld [vmem:[#allocation17 + $0x568] sm:$0xff]
    %v6987 = vld [vmem:[#allocation17 + $0x570] sm:$0xff]
    %v6988 = vld [vmem:[#allocation17 + $0x578] sm:$0xff]
    %v6989 = vld [vmem:[#allocation17 + $0x580] sm:$0xff]
    %v6990 = vld [vmem:[#allocation17 + $0x588] sm:$0xff]
    %v6991 = vld [vmem:[#allocation17 + $0x590] sm:$0xff]
    %v6992 = vld [vmem:[#allocation17 + $0x598] sm:$0xff]
    %v6993 = vld [vmem:[#allocation17 + $0x5a0] sm:$0xff]
    %v6994 = vld [vmem:[#allocation17 + $0x5a8] sm:$0xff]
    %v6995 = vld [vmem:[#allocation17 + $0x5b0] sm:$0xff]
    %v6996 = vld [vmem:[#allocation17 + $0x5b8] sm:$0xff]
    %v6997 = vld [vmem:[#allocation17 + $0x5c0] sm:$0xff]
    %v6998 = vld [vmem:[#allocation17 + $0x5c8] sm:$0xff]
    %v6999 = vld [vmem:[#allocation17 + $0x5d0] sm:$0xff]
    %v7000 = vld [vmem:[#allocation17 + $0x5d8] sm:$0xff]
    %v7001 = vld [vmem:[#allocation17 + $0x5e0] sm:$0xff]
    %v7002 = vld [vmem:[#allocation17 + $0x5e8] sm:$0xff]
    %v7003 = vld [vmem:[#allocation17 + $0x5f0] sm:$0xff]
    %v7004 = vld [vmem:[#allocation17 + $0x5f8] sm:$0xff]
    %v7005 = vld [vmem:[#allocation17 + $0x600] sm:$0xff]
    %v7006 = vld [vmem:[#allocation17 + $0x608] sm:$0xff]
    %v7007 = vld [vmem:[#allocation17 + $0x610] sm:$0xff]
    %v7008 = vld [vmem:[#allocation17 + $0x618] sm:$0xff]
    %v7009 = vld [vmem:[#allocation17 + $0x620] sm:$0xff]
    %v7010 = vld [vmem:[#allocation17 + $0x628] sm:$0xff]
    %v7011 = vld [vmem:[#allocation17 + $0x630] sm:$0xff]
    %v7012 = vld [vmem:[#allocation17 + $0x638] sm:$0xff]
    %v7013 = vld [vmem:[#allocation17 + $0x640] sm:$0xff]
    %v7014 = vld [vmem:[#allocation17 + $0x648] sm:$0xff]
    %v7015 = vld [vmem:[#allocation17 + $0x650] sm:$0xff]
    %v7016 = vld [vmem:[#allocation17 + $0x658] sm:$0xff]
    %v7017 = vld [vmem:[#allocation17 + $0x660] sm:$0xff]
    %v7018 = vld [vmem:[#allocation17 + $0x668] sm:$0xff]
    %v7019 = vld [vmem:[#allocation17 + $0x670] sm:$0xff]
    %v7020 = vld [vmem:[#allocation17 + $0x678] sm:$0xff]
    %v7021 = vld [vmem:[#allocation17 + $0x680] sm:$0xff]
    %v7022 = vld [vmem:[#allocation17 + $0x688] sm:$0xff]
    %v7023 = vld [vmem:[#allocation17 + $0x690] sm:$0xff]
    %v7024 = vld [vmem:[#allocation17 + $0x698] sm:$0xff]
    %v7025 = vld [vmem:[#allocation17 + $0x6a0] sm:$0xff]
    %v7026 = vld [vmem:[#allocation17 + $0x6a8] sm:$0xff]
    %v7027 = vld [vmem:[#allocation17 + $0x6b0] sm:$0xff]
    %v7028 = vld [vmem:[#allocation17 + $0x6b8] sm:$0xff]
    %v7029 = vld [vmem:[#allocation17 + $0x6c0] sm:$0xff]
    %v7030 = vld [vmem:[#allocation17 + $0x6c8] sm:$0xff]
    %v7031 = vld [vmem:[#allocation17 + $0x6d0] sm:$0xff]
    %v7032 = vld [vmem:[#allocation17 + $0x6d8] sm:$0xff]
    %v7033 = vld [vmem:[#allocation17 + $0x6e0] sm:$0xff]
    %v7034 = vld [vmem:[#allocation17 + $0x6e8] sm:$0xff]
    %v7035 = vld [vmem:[#allocation17 + $0x6f0] sm:$0xff]
    %v7036 = vld [vmem:[#allocation17 + $0x6f8] sm:$0xff]
    %v7037 = vld [vmem:[#allocation17 + $0x700] sm:$0xff]
    %v7038 = vld [vmem:[#allocation17 + $0x708] sm:$0xff]
    %v7039 = vld [vmem:[#allocation17 + $0x710] sm:$0xff]
    %v7040 = vld [vmem:[#allocation17 + $0x718] sm:$0xff]
    %v7041 = vld [vmem:[#allocation17 + $0x720] sm:$0xff]
    %v7042 = vld [vmem:[#allocation17 + $0x728] sm:$0xff]
    %v7043 = vld [vmem:[#allocation17 + $0x730] sm:$0xff]
    %v7044 = vld [vmem:[#allocation17 + $0x738] sm:$0xff]
    %v7045 = vld [vmem:[#allocation17 + $0x740] sm:$0xff]
    %v7046 = vld [vmem:[#allocation17 + $0x748] sm:$0xff]
    %v7047 = vld [vmem:[#allocation17 + $0x750] sm:$0xff]
    %v7048 = vld [vmem:[#allocation17 + $0x758] sm:$0xff]
    %v7049 = vld [vmem:[#allocation17 + $0x760] sm:$0xff]
    %v7050 = vld [vmem:[#allocation17 + $0x768] sm:$0xff]
    %v7051 = vld [vmem:[#allocation17 + $0x770] sm:$0xff]
    %v7052 = vld [vmem:[#allocation17 + $0x778] sm:$0xff]
    %v7053 = vld [vmem:[#allocation17 + $0x780] sm:$0xff]
    %v7054 = vld [vmem:[#allocation17 + $0x788] sm:$0xff]
    %v7055 = vld [vmem:[#allocation17 + $0x790] sm:$0xff]
    %v7056 = vld [vmem:[#allocation17 + $0x798] sm:$0xff]
    %v7057 = vld [vmem:[#allocation17 + $0x7a0] sm:$0xff]
    %v7058 = vld [vmem:[#allocation17 + $0x7a8] sm:$0xff]
    %v7059 = vld [vmem:[#allocation17 + $0x7b0] sm:$0xff]
    %v7060 = vld [vmem:[#allocation17 + $0x7b8] sm:$0xff]
    %v7061 = vld [vmem:[#allocation17 + $0x7c0] sm:$0xff]
    %v7062 = vld [vmem:[#allocation17 + $0x7c8] sm:$0xff]
    %v7063 = vld [vmem:[#allocation17 + $0x7d0] sm:$0xff]
    %v7064 = vld [vmem:[#allocation17 + $0x7d8] sm:$0xff]
    %v7065 = vld [vmem:[#allocation17 + $0x7e0] sm:$0xff]
    %v7066 = vld [vmem:[#allocation17 + $0x7e8] sm:$0xff]
    %v7067 = vld [vmem:[#allocation17 + $0x7f0] sm:$0xff]
    %v7068 = vld [vmem:[#allocation17 + $0x7f8] sm:$0xff]
    %v7325 = vunpack.c.l.b16 %v6813
    %v7326 = vunpack.c.h.b16 %v6813
    %v7327 = vunpack.c.l.b16 %v6814
    %v7328 = vunpack.c.h.b16 %v6814
    %v7329 = vunpack.c.l.b16 %v6815
    %v7330 = vunpack.c.h.b16 %v6815
    %v7331 = vunpack.c.l.b16 %v6816
    %v7332 = vunpack.c.h.b16 %v6816
    %v7333 = vunpack.c.l.b16 %v6817
    %v7334 = vunpack.c.h.b16 %v6817
    %v7335 = vunpack.c.l.b16 %v6818
    %v7336 = vunpack.c.h.b16 %v6818
    %v7337 = vunpack.c.l.b16 %v6819
    %v7338 = vunpack.c.h.b16 %v6819
    %v7339 = vunpack.c.l.b16 %v6820
    %v7340 = vunpack.c.h.b16 %v6820
    %v7341 = vunpack.c.l.b16 %v6821
    %v7342 = vunpack.c.h.b16 %v6821
    %v7343 = vunpack.c.l.b16 %v6822
    %v7344 = vunpack.c.h.b16 %v6822
    %v7345 = vunpack.c.l.b16 %v6823
    %v7346 = vunpack.c.h.b16 %v6823
    %v7347 = vunpack.c.l.b16 %v6824
    %v7348 = vunpack.c.h.b16 %v6824
    %v7349 = vunpack.c.l.b16 %v6825
    %v7350 = vunpack.c.h.b16 %v6825
    %v7351 = vunpack.c.l.b16 %v6826
    %v7352 = vunpack.c.h.b16 %v6826
    %v7353 = vunpack.c.l.b16 %v6827
    %v7354 = vunpack.c.h.b16 %v6827
    %v7355 = vunpack.c.l.b16 %v6828
    %v7356 = vunpack.c.h.b16 %v6828
    %v7357 = vunpack.c.l.b16 %v6829
    %v7358 = vunpack.c.h.b16 %v6829
    %v7359 = vunpack.c.l.b16 %v6830
    %v7360 = vunpack.c.h.b16 %v6830
    %v7361 = vunpack.c.l.b16 %v6831
    %v7362 = vunpack.c.h.b16 %v6831
    %v7363 = vunpack.c.l.b16 %v6832
    %v7364 = vunpack.c.h.b16 %v6832
    %v7365 = vunpack.c.l.b16 %v6833
    %v7366 = vunpack.c.h.b16 %v6833
    %v7367 = vunpack.c.l.b16 %v6834
    %v7368 = vunpack.c.h.b16 %v6834
    %v7369 = vunpack.c.l.b16 %v6835
    %v7370 = vunpack.c.h.b16 %v6835
    %v7371 = vunpack.c.l.b16 %v6836
    %v7372 = vunpack.c.h.b16 %v6836
    %v7373 = vunpack.c.l.b16 %v6837
    %v7374 = vunpack.c.h.b16 %v6837
    %v7375 = vunpack.c.l.b16 %v6838
    %v7376 = vunpack.c.h.b16 %v6838
    %v7377 = vunpack.c.l.b16 %v6839
    %v7378 = vunpack.c.h.b16 %v6839
    %v7379 = vunpack.c.l.b16 %v6840
    %v7380 = vunpack.c.h.b16 %v6840
    %v7381 = vunpack.c.l.b16 %v6841
    %v7382 = vunpack.c.h.b16 %v6841
    %v7383 = vunpack.c.l.b16 %v6842
    %v7384 = vunpack.c.h.b16 %v6842
    %v7385 = vunpack.c.l.b16 %v6843
    %v7386 = vunpack.c.h.b16 %v6843
    %v7387 = vunpack.c.l.b16 %v6844
    %v7388 = vunpack.c.h.b16 %v6844
    %v7389 = vunpack.c.l.b16 %v6845
    %v7390 = vunpack.c.h.b16 %v6845
    %v7391 = vunpack.c.l.b16 %v6846
    %v7392 = vunpack.c.h.b16 %v6846
    %v7393 = vunpack.c.l.b16 %v6847
    %v7394 = vunpack.c.h.b16 %v6847
    %v7395 = vunpack.c.l.b16 %v6848
    %v7396 = vunpack.c.h.b16 %v6848
    %v7397 = vunpack.c.l.b16 %v6849
    %v7398 = vunpack.c.h.b16 %v6849
    %v7399 = vunpack.c.l.b16 %v6850
    %v7400 = vunpack.c.h.b16 %v6850
    %v7401 = vunpack.c.l.b16 %v6851
    %v7402 = vunpack.c.h.b16 %v6851
    %v7403 = vunpack.c.l.b16 %v6852
    %v7404 = vunpack.c.h.b16 %v6852
    %v7405 = vunpack.c.l.b16 %v6853
    %v7406 = vunpack.c.h.b16 %v6853
    %v7407 = vunpack.c.l.b16 %v6854
    %v7408 = vunpack.c.h.b16 %v6854
    %v7409 = vunpack.c.l.b16 %v6855
    %v7410 = vunpack.c.h.b16 %v6855
    %v7411 = vunpack.c.l.b16 %v6856
    %v7412 = vunpack.c.h.b16 %v6856
    %v7413 = vunpack.c.l.b16 %v6857
    %v7414 = vunpack.c.h.b16 %v6857
    %v7415 = vunpack.c.l.b16 %v6858
    %v7416 = vunpack.c.h.b16 %v6858
    %v7417 = vunpack.c.l.b16 %v6859
    %v7418 = vunpack.c.h.b16 %v6859
    %v7419 = vunpack.c.l.b16 %v6860
    %v7420 = vunpack.c.h.b16 %v6860
    %v7421 = vunpack.c.l.b16 %v6861
    %v7422 = vunpack.c.h.b16 %v6861
    %v7423 = vunpack.c.l.b16 %v6862
    %v7424 = vunpack.c.h.b16 %v6862
    %v7425 = vunpack.c.l.b16 %v6863
    %v7426 = vunpack.c.h.b16 %v6863
    %v7427 = vunpack.c.l.b16 %v6864
    %v7428 = vunpack.c.h.b16 %v6864
    %v7429 = vunpack.c.l.b16 %v6865
    %v7430 = vunpack.c.h.b16 %v6865
    %v7431 = vunpack.c.l.b16 %v6866
    %v7432 = vunpack.c.h.b16 %v6866
    %v7433 = vunpack.c.l.b16 %v6867
    %v7434 = vunpack.c.h.b16 %v6867
    %v7435 = vunpack.c.l.b16 %v6868
    %v7436 = vunpack.c.h.b16 %v6868
    %v7437 = vunpack.c.l.b16 %v6869
    %v7438 = vunpack.c.h.b16 %v6869
    %v7439 = vunpack.c.l.b16 %v6870
    %v7440 = vunpack.c.h.b16 %v6870
    %v7441 = vunpack.c.l.b16 %v6871
    %v7442 = vunpack.c.h.b16 %v6871
    %v7443 = vunpack.c.l.b16 %v6872
    %v7444 = vunpack.c.h.b16 %v6872
    %v7445 = vunpack.c.l.b16 %v6873
    %v7446 = vunpack.c.h.b16 %v6873
    %v7447 = vunpack.c.l.b16 %v6874
    %v7448 = vunpack.c.h.b16 %v6874
    %v7449 = vunpack.c.l.b16 %v6875
    %v7450 = vunpack.c.h.b16 %v6875
    %v7451 = vunpack.c.l.b16 %v6876
    %v7452 = vunpack.c.h.b16 %v6876
    %v7453 = vunpack.c.l.b16 %v6877
    %v7454 = vunpack.c.h.b16 %v6877
    %v7455 = vunpack.c.l.b16 %v6878
    %v7456 = vunpack.c.h.b16 %v6878
    %v7457 = vunpack.c.l.b16 %v6879
    %v7458 = vunpack.c.h.b16 %v6879
    %v7459 = vunpack.c.l.b16 %v6880
    %v7460 = vunpack.c.h.b16 %v6880
    %v7461 = vunpack.c.l.b16 %v6881
    %v7462 = vunpack.c.h.b16 %v6881
    %v7463 = vunpack.c.l.b16 %v6882
    %v7464 = vunpack.c.h.b16 %v6882
    %v7465 = vunpack.c.l.b16 %v6883
    %v7466 = vunpack.c.h.b16 %v6883
    %v7467 = vunpack.c.l.b16 %v6884
    %v7468 = vunpack.c.h.b16 %v6884
    %v7469 = vunpack.c.l.b16 %v6885
    %v7470 = vunpack.c.h.b16 %v6885
    %v7471 = vunpack.c.l.b16 %v6886
    %v7472 = vunpack.c.h.b16 %v6886
    %v7473 = vunpack.c.l.b16 %v6887
    %v7474 = vunpack.c.h.b16 %v6887
    %v7475 = vunpack.c.l.b16 %v6888
    %v7476 = vunpack.c.h.b16 %v6888
    %v7477 = vunpack.c.l.b16 %v6889
    %v7478 = vunpack.c.h.b16 %v6889
    %v7479 = vunpack.c.l.b16 %v6890
    %v7480 = vunpack.c.h.b16 %v6890
    %v7481 = vunpack.c.l.b16 %v6891
    %v7482 = vunpack.c.h.b16 %v6891
    %v7483 = vunpack.c.l.b16 %v6892
    %v7484 = vunpack.c.h.b16 %v6892
    %v7485 = vunpack.c.l.b16 %v6893
    %v7486 = vunpack.c.h.b16 %v6893
    %v7487 = vunpack.c.l.b16 %v6894
    %v7488 = vunpack.c.h.b16 %v6894
    %v7489 = vunpack.c.l.b16 %v6895
    %v7490 = vunpack.c.h.b16 %v6895
    %v7491 = vunpack.c.l.b16 %v6896
    %v7492 = vunpack.c.h.b16 %v6896
    %v7493 = vunpack.c.l.b16 %v6897
    %v7494 = vunpack.c.h.b16 %v6897
    %v7495 = vunpack.c.l.b16 %v6898
    %v7496 = vunpack.c.h.b16 %v6898
    %v7497 = vunpack.c.l.b16 %v6899
    %v7498 = vunpack.c.h.b16 %v6899
    %v7499 = vunpack.c.l.b16 %v6900
    %v7500 = vunpack.c.h.b16 %v6900
    %v7501 = vunpack.c.l.b16 %v6901
    %v7502 = vunpack.c.h.b16 %v6901
    %v7503 = vunpack.c.l.b16 %v6902
    %v7504 = vunpack.c.h.b16 %v6902
    %v7505 = vunpack.c.l.b16 %v6903
    %v7506 = vunpack.c.h.b16 %v6903
    %v7507 = vunpack.c.l.b16 %v6904
    %v7508 = vunpack.c.h.b16 %v6904
    %v7509 = vunpack.c.l.b16 %v6905
    %v7510 = vunpack.c.h.b16 %v6905
    %v7511 = vunpack.c.l.b16 %v6906
    %v7512 = vunpack.c.h.b16 %v6906
    %v7513 = vunpack.c.l.b16 %v6907
    %v7514 = vunpack.c.h.b16 %v6907
    %v7515 = vunpack.c.l.b16 %v6908
    %v7516 = vunpack.c.h.b16 %v6908
    %v7517 = vunpack.c.l.b16 %v6909
    %v7518 = vunpack.c.h.b16 %v6909
    %v7519 = vunpack.c.l.b16 %v6910
    %v7520 = vunpack.c.h.b16 %v6910
    %v7521 = vunpack.c.l.b16 %v6911
    %v7522 = vunpack.c.h.b16 %v6911
    %v7523 = vunpack.c.l.b16 %v6912
    %v7524 = vunpack.c.h.b16 %v6912
    %v7525 = vunpack.c.l.b16 %v6913
    %v7526 = vunpack.c.h.b16 %v6913
    %v7527 = vunpack.c.l.b16 %v6914
    %v7528 = vunpack.c.h.b16 %v6914
    %v7529 = vunpack.c.l.b16 %v6915
    %v7530 = vunpack.c.h.b16 %v6915
    %v7531 = vunpack.c.l.b16 %v6916
    %v7532 = vunpack.c.h.b16 %v6916
    %v7533 = vunpack.c.l.b16 %v6917
    %v7534 = vunpack.c.h.b16 %v6917
    %v7535 = vunpack.c.l.b16 %v6918
    %v7536 = vunpack.c.h.b16 %v6918
    %v7537 = vunpack.c.l.b16 %v6919
    %v7538 = vunpack.c.h.b16 %v6919
    %v7539 = vunpack.c.l.b16 %v6920
    %v7540 = vunpack.c.h.b16 %v6920
    %v7541 = vunpack.c.l.b16 %v6921
    %v7542 = vunpack.c.h.b16 %v6921
    %v7543 = vunpack.c.l.b16 %v6922
    %v7544 = vunpack.c.h.b16 %v6922
    %v7545 = vunpack.c.l.b16 %v6923
    %v7546 = vunpack.c.h.b16 %v6923
    %v7547 = vunpack.c.l.b16 %v6924
    %v7548 = vunpack.c.h.b16 %v6924
    %v7549 = vunpack.c.l.b16 %v6925
    %v7550 = vunpack.c.h.b16 %v6925
    %v7551 = vunpack.c.l.b16 %v6926
    %v7552 = vunpack.c.h.b16 %v6926
    %v7553 = vunpack.c.l.b16 %v6927
    %v7554 = vunpack.c.h.b16 %v6927
    %v7555 = vunpack.c.l.b16 %v6928
    %v7556 = vunpack.c.h.b16 %v6928
    %v7557 = vunpack.c.l.b16 %v6929
    %v7558 = vunpack.c.h.b16 %v6929
    %v7559 = vunpack.c.l.b16 %v6930
    %v7560 = vunpack.c.h.b16 %v6930
    %v7561 = vunpack.c.l.b16 %v6931
    %v7562 = vunpack.c.h.b16 %v6931
    %v7563 = vunpack.c.l.b16 %v6932
    %v7564 = vunpack.c.h.b16 %v6932
    %v7565 = vunpack.c.l.b16 %v6933
    %v7566 = vunpack.c.h.b16 %v6933
    %v7567 = vunpack.c.l.b16 %v6934
    %v7568 = vunpack.c.h.b16 %v6934
    %v7569 = vunpack.c.l.b16 %v6935
    %v7570 = vunpack.c.h.b16 %v6935
    %v7571 = vunpack.c.l.b16 %v6936
    %v7572 = vunpack.c.h.b16 %v6936
    %v7573 = vunpack.c.l.b16 %v6937
    %v7574 = vunpack.c.h.b16 %v6937
    %v7575 = vunpack.c.l.b16 %v6938
    %v7576 = vunpack.c.h.b16 %v6938
    %v7577 = vunpack.c.l.b16 %v6939
    %v7578 = vunpack.c.h.b16 %v6939
    %v7579 = vunpack.c.l.b16 %v6940
    %v7580 = vunpack.c.h.b16 %v6940
    %v7581 = vunpack.c.l.b16 %v6941
    %v7582 = vunpack.c.h.b16 %v6941
    %v7583 = vunpack.c.l.b16 %v6942
    %v7584 = vunpack.c.h.b16 %v6942
    %v7585 = vunpack.c.l.b16 %v6943
    %v7586 = vunpack.c.h.b16 %v6943
    %v7587 = vunpack.c.l.b16 %v6944
    %v7588 = vunpack.c.h.b16 %v6944
    %v7589 = vunpack.c.l.b16 %v6945
    %v7590 = vunpack.c.h.b16 %v6945
    %v7591 = vunpack.c.l.b16 %v6946
    %v7592 = vunpack.c.h.b16 %v6946
    %v7593 = vunpack.c.l.b16 %v6947
    %v7594 = vunpack.c.h.b16 %v6947
    %v7595 = vunpack.c.l.b16 %v6948
    %v7596 = vunpack.c.h.b16 %v6948
    %v7597 = vunpack.c.l.b16 %v6949
    %v7598 = vunpack.c.h.b16 %v6949
    %v7599 = vunpack.c.l.b16 %v6950
    %v7600 = vunpack.c.h.b16 %v6950
    %v7601 = vunpack.c.l.b16 %v6951
    %v7602 = vunpack.c.h.b16 %v6951
    %v7603 = vunpack.c.l.b16 %v6952
    %v7604 = vunpack.c.h.b16 %v6952
    %v7605 = vunpack.c.l.b16 %v6953
    %v7606 = vunpack.c.h.b16 %v6953
    %v7607 = vunpack.c.l.b16 %v6954
    %v7608 = vunpack.c.h.b16 %v6954
    %v7609 = vunpack.c.l.b16 %v6955
    %v7610 = vunpack.c.h.b16 %v6955
    %v7611 = vunpack.c.l.b16 %v6956
    %v7612 = vunpack.c.h.b16 %v6956
    %v7613 = vunpack.c.l.b16 %v6957
    %v7614 = vunpack.c.h.b16 %v6957
    %v7615 = vunpack.c.l.b16 %v6958
    %v7616 = vunpack.c.h.b16 %v6958
    %v7617 = vunpack.c.l.b16 %v6959
    %v7618 = vunpack.c.h.b16 %v6959
    %v7619 = vunpack.c.l.b16 %v6960
    %v7620 = vunpack.c.h.b16 %v6960
    %v7621 = vunpack.c.l.b16 %v6961
    %v7622 = vunpack.c.h.b16 %v6961
    %v7623 = vunpack.c.l.b16 %v6962
    %v7624 = vunpack.c.h.b16 %v6962
    %v7625 = vunpack.c.l.b16 %v6963
    %v7626 = vunpack.c.h.b16 %v6963
    %v7627 = vunpack.c.l.b16 %v6964
    %v7628 = vunpack.c.h.b16 %v6964
    %v7629 = vunpack.c.l.b16 %v6965
    %v7630 = vunpack.c.h.b16 %v6965
    %v7631 = vunpack.c.l.b16 %v6966
    %v7632 = vunpack.c.h.b16 %v6966
    %v7633 = vunpack.c.l.b16 %v6967
    %v7634 = vunpack.c.h.b16 %v6967
    %v7635 = vunpack.c.l.b16 %v6968
    %v7636 = vunpack.c.h.b16 %v6968
    %v7637 = vunpack.c.l.b16 %v6969
    %v7638 = vunpack.c.h.b16 %v6969
    %v7639 = vunpack.c.l.b16 %v6970
    %v7640 = vunpack.c.h.b16 %v6970
    %v7641 = vunpack.c.l.b16 %v6971
    %v7642 = vunpack.c.h.b16 %v6971
    %v7643 = vunpack.c.l.b16 %v6972
    %v7644 = vunpack.c.h.b16 %v6972
    %v7645 = vunpack.c.l.b16 %v6973
    %v7646 = vunpack.c.h.b16 %v6973
    %v7647 = vunpack.c.l.b16 %v6974
    %v7648 = vunpack.c.h.b16 %v6974
    %v7649 = vunpack.c.l.b16 %v6975
    %v7650 = vunpack.c.h.b16 %v6975
    %v7651 = vunpack.c.l.b16 %v6976
    %v7652 = vunpack.c.h.b16 %v6976
    %v7653 = vunpack.c.l.b16 %v6977
    %v7654 = vunpack.c.h.b16 %v6977
    %v7655 = vunpack.c.l.b16 %v6978
    %v7656 = vunpack.c.h.b16 %v6978
    %v7657 = vunpack.c.l.b16 %v6979
    %v7658 = vunpack.c.h.b16 %v6979
    %v7659 = vunpack.c.l.b16 %v6980
    %v7660 = vunpack.c.h.b16 %v6980
    %v7661 = vunpack.c.l.b16 %v6981
    %v7662 = vunpack.c.h.b16 %v6981
    %v7663 = vunpack.c.l.b16 %v6982
    %v7664 = vunpack.c.h.b16 %v6982
    %v7665 = vunpack.c.l.b16 %v6983
    %v7666 = vunpack.c.h.b16 %v6983
    %v7667 = vunpack.c.l.b16 %v6984
    %v7668 = vunpack.c.h.b16 %v6984
    %v7669 = vunpack.c.l.b16 %v6985
    %v7670 = vunpack.c.h.b16 %v6985
    %v7671 = vunpack.c.l.b16 %v6986
    %v7672 = vunpack.c.h.b16 %v6986
    %v7673 = vunpack.c.l.b16 %v6987
    %v7674 = vunpack.c.h.b16 %v6987
    %v7675 = vunpack.c.l.b16 %v6988
    %v7676 = vunpack.c.h.b16 %v6988
    %v7677 = vunpack.c.l.b16 %v6989
    %v7678 = vunpack.c.h.b16 %v6989
    %v7679 = vunpack.c.l.b16 %v6990
    %v7680 = vunpack.c.h.b16 %v6990
    %v7681 = vunpack.c.l.b16 %v6991
    %v7682 = vunpack.c.h.b16 %v6991
    %v7683 = vunpack.c.l.b16 %v6992
    %v7684 = vunpack.c.h.b16 %v6992
    %v7685 = vunpack.c.l.b16 %v6993
    %v7686 = vunpack.c.h.b16 %v6993
    %v7687 = vunpack.c.l.b16 %v6994
    %v7688 = vunpack.c.h.b16 %v6994
    %v7689 = vunpack.c.l.b16 %v6995
    %v7690 = vunpack.c.h.b16 %v6995
    %v7691 = vunpack.c.l.b16 %v6996
    %v7692 = vunpack.c.h.b16 %v6996
    %v7693 = vunpack.c.l.b16 %v6997
    %v7694 = vunpack.c.h.b16 %v6997
    %v7695 = vunpack.c.l.b16 %v6998
    %v7696 = vunpack.c.h.b16 %v6998
    %v7697 = vunpack.c.l.b16 %v6999
    %v7698 = vunpack.c.h.b16 %v6999
    %v7699 = vunpack.c.l.b16 %v7000
    %v7700 = vunpack.c.h.b16 %v7000
    %v7701 = vunpack.c.l.b16 %v7001
    %v7702 = vunpack.c.h.b16 %v7001
    %v7703 = vunpack.c.l.b16 %v7002
    %v7704 = vunpack.c.h.b16 %v7002
    %v7705 = vunpack.c.l.b16 %v7003
    %v7706 = vunpack.c.h.b16 %v7003
    %v7707 = vunpack.c.l.b16 %v7004
    %v7708 = vunpack.c.h.b16 %v7004
    %v7709 = vunpack.c.l.b16 %v7005
    %v7710 = vunpack.c.h.b16 %v7005
    %v7711 = vunpack.c.l.b16 %v7006
    %v7712 = vunpack.c.h.b16 %v7006
    %v7713 = vunpack.c.l.b16 %v7007
    %v7714 = vunpack.c.h.b16 %v7007
    %v7715 = vunpack.c.l.b16 %v7008
    %v7716 = vunpack.c.h.b16 %v7008
    %v7717 = vunpack.c.l.b16 %v7009
    %v7718 = vunpack.c.h.b16 %v7009
    %v7719 = vunpack.c.l.b16 %v7010
    %v7720 = vunpack.c.h.b16 %v7010
    %v7721 = vunpack.c.l.b16 %v7011
    %v7722 = vunpack.c.h.b16 %v7011
    %v7723 = vunpack.c.l.b16 %v7012
    %v7724 = vunpack.c.h.b16 %v7012
    %v7725 = vunpack.c.l.b16 %v7013
    %v7726 = vunpack.c.h.b16 %v7013
    %v7727 = vunpack.c.l.b16 %v7014
    %v7728 = vunpack.c.h.b16 %v7014
    %v7729 = vunpack.c.l.b16 %v7015
    %v7730 = vunpack.c.h.b16 %v7015
    %v7731 = vunpack.c.l.b16 %v7016
    %v7732 = vunpack.c.h.b16 %v7016
    %v7733 = vunpack.c.l.b16 %v7017
    %v7734 = vunpack.c.h.b16 %v7017
    %v7735 = vunpack.c.l.b16 %v7018
    %v7736 = vunpack.c.h.b16 %v7018
    %v7737 = vunpack.c.l.b16 %v7019
    %v7738 = vunpack.c.h.b16 %v7019
    %v7739 = vunpack.c.l.b16 %v7020
    %v7740 = vunpack.c.h.b16 %v7020
    %v7741 = vunpack.c.l.b16 %v7021
    %v7742 = vunpack.c.h.b16 %v7021
    %v7743 = vunpack.c.l.b16 %v7022
    %v7744 = vunpack.c.h.b16 %v7022
    %v7745 = vunpack.c.l.b16 %v7023
    %v7746 = vunpack.c.h.b16 %v7023
    %v7747 = vunpack.c.l.b16 %v7024
    %v7748 = vunpack.c.h.b16 %v7024
    %v7749 = vunpack.c.l.b16 %v7025
    %v7750 = vunpack.c.h.b16 %v7025
    %v7751 = vunpack.c.l.b16 %v7026
    %v7752 = vunpack.c.h.b16 %v7026
    %v7753 = vunpack.c.l.b16 %v7027
    %v7754 = vunpack.c.h.b16 %v7027
    %v7755 = vunpack.c.l.b16 %v7028
    %v7756 = vunpack.c.h.b16 %v7028
    %v7757 = vunpack.c.l.b16 %v7029
    %v7758 = vunpack.c.h.b16 %v7029
    %v7759 = vunpack.c.l.b16 %v7030
    %v7760 = vunpack.c.h.b16 %v7030
    %v7761 = vunpack.c.l.b16 %v7031
    %v7762 = vunpack.c.h.b16 %v7031
    %v7763 = vunpack.c.l.b16 %v7032
    %v7764 = vunpack.c.h.b16 %v7032
    %v7765 = vunpack.c.l.b16 %v7033
    %v7766 = vunpack.c.h.b16 %v7033
    %v7767 = vunpack.c.l.b16 %v7034
    %v7768 = vunpack.c.h.b16 %v7034
    %v7769 = vunpack.c.l.b16 %v7035
    %v7770 = vunpack.c.h.b16 %v7035
    %v7771 = vunpack.c.l.b16 %v7036
    %v7772 = vunpack.c.h.b16 %v7036
    %v7773 = vunpack.c.l.b16 %v7037
    %v7774 = vunpack.c.h.b16 %v7037
    %v7775 = vunpack.c.l.b16 %v7038
    %v7776 = vunpack.c.h.b16 %v7038
    %v7777 = vunpack.c.l.b16 %v7039
    %v7778 = vunpack.c.h.b16 %v7039
    %v7779 = vunpack.c.l.b16 %v7040
    %v7780 = vunpack.c.h.b16 %v7040
    %v7781 = vunpack.c.l.b16 %v7041
    %v7782 = vunpack.c.h.b16 %v7041
    %v7783 = vunpack.c.l.b16 %v7042
    %v7784 = vunpack.c.h.b16 %v7042
    %v7785 = vunpack.c.l.b16 %v7043
    %v7786 = vunpack.c.h.b16 %v7043
    %v7787 = vunpack.c.l.b16 %v7044
    %v7788 = vunpack.c.h.b16 %v7044
    %v7789 = vunpack.c.l.b16 %v7045
    %v7790 = vunpack.c.h.b16 %v7045
    %v7791 = vunpack.c.l.b16 %v7046
    %v7792 = vunpack.c.h.b16 %v7046
    %v7793 = vunpack.c.l.b16 %v7047
    %v7794 = vunpack.c.h.b16 %v7047
    %v7795 = vunpack.c.l.b16 %v7048
    %v7796 = vunpack.c.h.b16 %v7048
    %v7797 = vunpack.c.l.b16 %v7049
    %v7798 = vunpack.c.h.b16 %v7049
    %v7799 = vunpack.c.l.b16 %v7050
    %v7800 = vunpack.c.h.b16 %v7050
    %v7801 = vunpack.c.l.b16 %v7051
    %v7802 = vunpack.c.h.b16 %v7051
    %v7803 = vunpack.c.l.b16 %v7052
    %v7804 = vunpack.c.h.b16 %v7052
    %v7805 = vunpack.c.l.b16 %v7053
    %v7806 = vunpack.c.h.b16 %v7053
    %v7807 = vunpack.c.l.b16 %v7054
    %v7808 = vunpack.c.h.b16 %v7054
    %v7809 = vunpack.c.l.b16 %v7055
    %v7810 = vunpack.c.h.b16 %v7055
    %v7811 = vunpack.c.l.b16 %v7056
    %v7812 = vunpack.c.h.b16 %v7056
    %v7813 = vunpack.c.l.b16 %v7057
    %v7814 = vunpack.c.h.b16 %v7057
    %v7815 = vunpack.c.l.b16 %v7058
    %v7816 = vunpack.c.h.b16 %v7058
    %v7817 = vunpack.c.l.b16 %v7059
    %v7818 = vunpack.c.h.b16 %v7059
    %v7819 = vunpack.c.l.b16 %v7060
    %v7820 = vunpack.c.h.b16 %v7060
    %v7821 = vunpack.c.l.b16 %v7061
    %v7822 = vunpack.c.h.b16 %v7061
    %v7823 = vunpack.c.l.b16 %v7062
    %v7824 = vunpack.c.h.b16 %v7062
    %v7825 = vunpack.c.l.b16 %v7063
    %v7826 = vunpack.c.h.b16 %v7063
    %v7827 = vunpack.c.l.b16 %v7064
    %v7828 = vunpack.c.h.b16 %v7064
    %v7829 = vunpack.c.l.b16 %v7065
    %v7830 = vunpack.c.h.b16 %v7065
    %v7831 = vunpack.c.l.b16 %v7066
    %v7832 = vunpack.c.h.b16 %v7066
    %v7833 = vunpack.c.l.b16 %v7067
    %v7834 = vunpack.c.h.b16 %v7067
    %v7835 = vunpack.c.l.b16 %v7068
    %v7836 = vunpack.c.h.b16 %v7068
    %v7837 = vpack.c.b16 %v7329, %v7325
    %v7838 = vpack.c.b16 %v7330, %v7326
    %v7839 = vpack.c.b16 %v7331, %v7327
    %v7840 = vpack.c.b16 %v7332, %v7328
    %v7841 = vpack.c.b16 %v7337, %v7333
    %v7842 = vpack.c.b16 %v7338, %v7334
    %v7843 = vpack.c.b16 %v7339, %v7335
    %v7844 = vpack.c.b16 %v7340, %v7336
    %v7845 = vpack.c.b16 %v7345, %v7341
    %v7846 = vpack.c.b16 %v7346, %v7342
    %v7847 = vpack.c.b16 %v7347, %v7343
    %v7848 = vpack.c.b16 %v7348, %v7344
    %v7849 = vpack.c.b16 %v7353, %v7349
    %v7850 = vpack.c.b16 %v7354, %v7350
    %v7851 = vpack.c.b16 %v7355, %v7351
    %v7852 = vpack.c.b16 %v7356, %v7352
    %v7853 = vpack.c.b16 %v7361, %v7357
    %v7854 = vpack.c.b16 %v7362, %v7358
    %v7855 = vpack.c.b16 %v7363, %v7359
    %v7856 = vpack.c.b16 %v7364, %v7360
    %v7857 = vpack.c.b16 %v7369, %v7365
    %v7858 = vpack.c.b16 %v7370, %v7366
    %v7859 = vpack.c.b16 %v7371, %v7367
    %v7860 = vpack.c.b16 %v7372, %v7368
    %v7861 = vpack.c.b16 %v7377, %v7373
    %v7862 = vpack.c.b16 %v7378, %v7374
    %v7863 = vpack.c.b16 %v7379, %v7375
    %v7864 = vpack.c.b16 %v7380, %v7376
    %v7865 = vpack.c.b16 %v7385, %v7381
    %v7866 = vpack.c.b16 %v7386, %v7382
    %v7867 = vpack.c.b16 %v7387, %v7383
    %v7868 = vpack.c.b16 %v7388, %v7384
    %v7869 = vpack.c.b16 %v7393, %v7389
    %v7870 = vpack.c.b16 %v7394, %v7390
    %v7871 = vpack.c.b16 %v7395, %v7391
    %v7872 = vpack.c.b16 %v7396, %v7392
    %v7873 = vpack.c.b16 %v7401, %v7397
    %v7874 = vpack.c.b16 %v7402, %v7398
    %v7875 = vpack.c.b16 %v7403, %v7399
    %v7876 = vpack.c.b16 %v7404, %v7400
    %v7877 = vpack.c.b16 %v7409, %v7405
    %v7878 = vpack.c.b16 %v7410, %v7406
    %v7879 = vpack.c.b16 %v7411, %v7407
    %v7880 = vpack.c.b16 %v7412, %v7408
    %v7881 = vpack.c.b16 %v7417, %v7413
    %v7882 = vpack.c.b16 %v7418, %v7414
    %v7883 = vpack.c.b16 %v7419, %v7415
    %v7884 = vpack.c.b16 %v7420, %v7416
    %v7885 = vpack.c.b16 %v7425, %v7421
    %v7886 = vpack.c.b16 %v7426, %v7422
    %v7887 = vpack.c.b16 %v7427, %v7423
    %v7888 = vpack.c.b16 %v7428, %v7424
    %v7889 = vpack.c.b16 %v7433, %v7429
    %v7890 = vpack.c.b16 %v7434, %v7430
    %v7891 = vpack.c.b16 %v7435, %v7431
    %v7892 = vpack.c.b16 %v7436, %v7432
    %v7893 = vpack.c.b16 %v7441, %v7437
    %v7894 = vpack.c.b16 %v7442, %v7438
    %v7895 = vpack.c.b16 %v7443, %v7439
    %v7896 = vpack.c.b16 %v7444, %v7440
    %v7897 = vpack.c.b16 %v7449, %v7445
    %v7898 = vpack.c.b16 %v7450, %v7446
    %v7899 = vpack.c.b16 %v7451, %v7447
    %v7900 = vpack.c.b16 %v7452, %v7448
    %v7901 = vpack.c.b16 %v7457, %v7453
    %v7902 = vpack.c.b16 %v7458, %v7454
    %v7903 = vpack.c.b16 %v7459, %v7455
    %v7904 = vpack.c.b16 %v7460, %v7456
    %v7905 = vpack.c.b16 %v7465, %v7461
    %v7906 = vpack.c.b16 %v7466, %v7462
    %v7907 = vpack.c.b16 %v7467, %v7463
    %v7908 = vpack.c.b16 %v7468, %v7464
    %v7909 = vpack.c.b16 %v7473, %v7469
    %v7910 = vpack.c.b16 %v7474, %v7470
    %v7911 = vpack.c.b16 %v7475, %v7471
    %v7912 = vpack.c.b16 %v7476, %v7472
    %v7913 = vpack.c.b16 %v7481, %v7477
    %v7914 = vpack.c.b16 %v7482, %v7478
    %v7915 = vpack.c.b16 %v7483, %v7479
    %v7916 = vpack.c.b16 %v7484, %v7480
    %v7917 = vpack.c.b16 %v7489, %v7485
    %v7918 = vpack.c.b16 %v7490, %v7486
    %v7919 = vpack.c.b16 %v7491, %v7487
    %v7920 = vpack.c.b16 %v7492, %v7488
    %v7921 = vpack.c.b16 %v7497, %v7493
    %v7922 = vpack.c.b16 %v7498, %v7494
    %v7923 = vpack.c.b16 %v7499, %v7495
    %v7924 = vpack.c.b16 %v7500, %v7496
    %v7925 = vpack.c.b16 %v7505, %v7501
    %v7926 = vpack.c.b16 %v7506, %v7502
    %v7927 = vpack.c.b16 %v7507, %v7503
    %v7928 = vpack.c.b16 %v7508, %v7504
    %v7929 = vpack.c.b16 %v7513, %v7509
    %v7930 = vpack.c.b16 %v7514, %v7510
    %v7931 = vpack.c.b16 %v7515, %v7511
    %v7932 = vpack.c.b16 %v7516, %v7512
    %v7933 = vpack.c.b16 %v7521, %v7517
    %v7934 = vpack.c.b16 %v7522, %v7518
    %v7935 = vpack.c.b16 %v7523, %v7519
    %v7936 = vpack.c.b16 %v7524, %v7520
    %v7937 = vpack.c.b16 %v7529, %v7525
    %v7938 = vpack.c.b16 %v7530, %v7526
    %v7939 = vpack.c.b16 %v7531, %v7527
    %v7940 = vpack.c.b16 %v7532, %v7528
    %v7941 = vpack.c.b16 %v7537, %v7533
    %v7942 = vpack.c.b16 %v7538, %v7534
    %v7943 = vpack.c.b16 %v7539, %v7535
    %v7944 = vpack.c.b16 %v7540, %v7536
    %v7945 = vpack.c.b16 %v7545, %v7541
    %v7946 = vpack.c.b16 %v7546, %v7542
    %v7947 = vpack.c.b16 %v7547, %v7543
    %v7948 = vpack.c.b16 %v7548, %v7544
    %v7949 = vpack.c.b16 %v7553, %v7549
    %v7950 = vpack.c.b16 %v7554, %v7550
    %v7951 = vpack.c.b16 %v7555, %v7551
    %v7952 = vpack.c.b16 %v7556, %v7552
    %v7953 = vpack.c.b16 %v7561, %v7557
    %v7954 = vpack.c.b16 %v7562, %v7558
    %v7955 = vpack.c.b16 %v7563, %v7559
    %v7956 = vpack.c.b16 %v7564, %v7560
    %v7957 = vpack.c.b16 %v7569, %v7565
    %v7958 = vpack.c.b16 %v7570, %v7566
    %v7959 = vpack.c.b16 %v7571, %v7567
    %v7960 = vpack.c.b16 %v7572, %v7568
    %v7961 = vpack.c.b16 %v7577, %v7573
    %v7962 = vpack.c.b16 %v7578, %v7574
    %v7963 = vpack.c.b16 %v7579, %v7575
    %v7964 = vpack.c.b16 %v7580, %v7576
    %v7965 = vpack.c.b16 %v7585, %v7581
    %v7966 = vpack.c.b16 %v7586, %v7582
    %v7967 = vpack.c.b16 %v7587, %v7583
    %v7968 = vpack.c.b16 %v7588, %v7584
    %v7969 = vpack.c.b16 %v7593, %v7589
    %v7970 = vpack.c.b16 %v7594, %v7590
    %v7971 = vpack.c.b16 %v7595, %v7591
    %v7972 = vpack.c.b16 %v7596, %v7592
    %v7973 = vpack.c.b16 %v7601, %v7597
    %v7974 = vpack.c.b16 %v7602, %v7598
    %v7975 = vpack.c.b16 %v7603, %v7599
    %v7976 = vpack.c.b16 %v7604, %v7600
    %v7977 = vpack.c.b16 %v7609, %v7605
    %v7978 = vpack.c.b16 %v7610, %v7606
    %v7979 = vpack.c.b16 %v7611, %v7607
    %v7980 = vpack.c.b16 %v7612, %v7608
    %v7981 = vpack.c.b16 %v7617, %v7613
    %v7982 = vpack.c.b16 %v7618, %v7614
    %v7983 = vpack.c.b16 %v7619, %v7615
    %v7984 = vpack.c.b16 %v7620, %v7616
    %v7985 = vpack.c.b16 %v7625, %v7621
    %v7986 = vpack.c.b16 %v7626, %v7622
    %v7987 = vpack.c.b16 %v7627, %v7623
    %v7988 = vpack.c.b16 %v7628, %v7624
    %v7989 = vpack.c.b16 %v7633, %v7629
    %v7990 = vpack.c.b16 %v7634, %v7630
    %v7991 = vpack.c.b16 %v7635, %v7631
    %v7992 = vpack.c.b16 %v7636, %v7632
    %v7993 = vpack.c.b16 %v7641, %v7637
    %v7994 = vpack.c.b16 %v7642, %v7638
    %v7995 = vpack.c.b16 %v7643, %v7639
    %v7996 = vpack.c.b16 %v7644, %v7640
    %v7997 = vpack.c.b16 %v7649, %v7645
    %v7998 = vpack.c.b16 %v7650, %v7646
    %v7999 = vpack.c.b16 %v7651, %v7647
    %v8000 = vpack.c.b16 %v7652, %v7648
    %v8001 = vpack.c.b16 %v7657, %v7653
    %v8002 = vpack.c.b16 %v7658, %v7654
    %v8003 = vpack.c.b16 %v7659, %v7655
    %v8004 = vpack.c.b16 %v7660, %v7656
    %v8005 = vpack.c.b16 %v7665, %v7661
    %v8006 = vpack.c.b16 %v7666, %v7662
    %v8007 = vpack.c.b16 %v7667, %v7663
    %v8008 = vpack.c.b16 %v7668, %v7664
    %v8009 = vpack.c.b16 %v7673, %v7669
    %v8010 = vpack.c.b16 %v7674, %v7670
    %v8011 = vpack.c.b16 %v7675, %v7671
    %v8012 = vpack.c.b16 %v7676, %v7672
    %v8013 = vpack.c.b16 %v7681, %v7677
    %v8014 = vpack.c.b16 %v7682, %v7678
    %v8015 = vpack.c.b16 %v7683, %v7679
    %v8016 = vpack.c.b16 %v7684, %v7680
    %v8017 = vpack.c.b16 %v7689, %v7685
    %v8018 = vpack.c.b16 %v7690, %v7686
    %v8019 = vpack.c.b16 %v7691, %v7687
    %v8020 = vpack.c.b16 %v7692, %v7688
    %v8021 = vpack.c.b16 %v7697, %v7693
    %v8022 = vpack.c.b16 %v7698, %v7694
    %v8023 = vpack.c.b16 %v7699, %v7695
    %v8024 = vpack.c.b16 %v7700, %v7696
    %v8025 = vpack.c.b16 %v7705, %v7701
    %v8026 = vpack.c.b16 %v7706, %v7702
    %v8027 = vpack.c.b16 %v7707, %v7703
    %v8028 = vpack.c.b16 %v7708, %v7704
    %v8029 = vpack.c.b16 %v7713, %v7709
    %v8030 = vpack.c.b16 %v7714, %v7710
    %v8031 = vpack.c.b16 %v7715, %v7711
    %v8032 = vpack.c.b16 %v7716, %v7712
    %v8033 = vpack.c.b16 %v7721, %v7717
    %v8034 = vpack.c.b16 %v7722, %v7718
    %v8035 = vpack.c.b16 %v7723, %v7719
    %v8036 = vpack.c.b16 %v7724, %v7720
    %v8037 = vpack.c.b16 %v7729, %v7725
    %v8038 = vpack.c.b16 %v7730, %v7726
    %v8039 = vpack.c.b16 %v7731, %v7727
    %v8040 = vpack.c.b16 %v7732, %v7728
    %v8041 = vpack.c.b16 %v7737, %v7733
    %v8042 = vpack.c.b16 %v7738, %v7734
    %v8043 = vpack.c.b16 %v7739, %v7735
    %v8044 = vpack.c.b16 %v7740, %v7736
    %v8045 = vpack.c.b16 %v7745, %v7741
    %v8046 = vpack.c.b16 %v7746, %v7742
    %v8047 = vpack.c.b16 %v7747, %v7743
    %v8048 = vpack.c.b16 %v7748, %v7744
    %v8049 = vpack.c.b16 %v7753, %v7749
    %v8050 = vpack.c.b16 %v7754, %v7750
    %v8051 = vpack.c.b16 %v7755, %v7751
    %v8052 = vpack.c.b16 %v7756, %v7752
    %v8053 = vpack.c.b16 %v7761, %v7757
    %v8054 = vpack.c.b16 %v7762, %v7758
    %v8055 = vpack.c.b16 %v7763, %v7759
    %v8056 = vpack.c.b16 %v7764, %v7760
    %v8057 = vpack.c.b16 %v7769, %v7765
    %v8058 = vpack.c.b16 %v7770, %v7766
    %v8059 = vpack.c.b16 %v7771, %v7767
    %v8060 = vpack.c.b16 %v7772, %v7768
    %v8061 = vpack.c.b16 %v7777, %v7773
    %v8062 = vpack.c.b16 %v7778, %v7774
    %v8063 = vpack.c.b16 %v7779, %v7775
    %v8064 = vpack.c.b16 %v7780, %v7776
    %v8065 = vpack.c.b16 %v7785, %v7781
    %v8066 = vpack.c.b16 %v7786, %v7782
    %v8067 = vpack.c.b16 %v7787, %v7783
    %v8068 = vpack.c.b16 %v7788, %v7784
    %v8069 = vpack.c.b16 %v7793, %v7789
    %v8070 = vpack.c.b16 %v7794, %v7790
    %v8071 = vpack.c.b16 %v7795, %v7791
    %v8072 = vpack.c.b16 %v7796, %v7792
    %v8073 = vpack.c.b16 %v7801, %v7797
    %v8074 = vpack.c.b16 %v7802, %v7798
    %v8075 = vpack.c.b16 %v7803, %v7799
    %v8076 = vpack.c.b16 %v7804, %v7800
    %v8077 = vpack.c.b16 %v7809, %v7805
    %v8078 = vpack.c.b16 %v7810, %v7806
    %v8079 = vpack.c.b16 %v7811, %v7807
    %v8080 = vpack.c.b16 %v7812, %v7808
    %v8081 = vpack.c.b16 %v7817, %v7813
    %v8082 = vpack.c.b16 %v7818, %v7814
    %v8083 = vpack.c.b16 %v7819, %v7815
    %v8084 = vpack.c.b16 %v7820, %v7816
    %v8085 = vpack.c.b16 %v7825, %v7821
    %v8086 = vpack.c.b16 %v7826, %v7822
    %v8087 = vpack.c.b16 %v7827, %v7823
    %v8088 = vpack.c.b16 %v7828, %v7824
    %v8089 = vpack.c.b16 %v7833, %v7829
    %v8090 = vpack.c.b16 %v7834, %v7830
    %v8091 = vpack.c.b16 %v7835, %v7831
    %v8092 = vpack.c.b16 %v7836, %v7832
    %8349 = vmatprep.subr.bf16.mxu0 %v7838
    %8350 = vmatpush1.bf16.msra.mxu0 %v7837
    %8351 = vmatprep.subr.bf16.mxu0 %v7842
    %8352 = vmatpush1.bf16.msra.mxu0 %v7841
    %8353 = vmatprep.subr.bf16.mxu0 %v7846
    %8354 = vmatpush1.bf16.msra.mxu0 %v7845
    %8355 = vmatprep.subr.bf16.mxu0 %v7850
    %8356 = vmatpush1.bf16.msra.mxu0 %v7849
    %8357 = vmatprep.subr.bf16.mxu0 %v7854
    %8358 = vmatpush1.bf16.msra.mxu0 %v7853
    %8359 = vmatprep.subr.bf16.mxu0 %v7858
    %8360 = vmatpush1.bf16.msra.mxu0 %v7857
    %8361 = vmatprep.subr.bf16.mxu0 %v7862
    %8362 = vmatpush1.bf16.msra.mxu0 %v7861
    %8363 = vmatprep.subr.bf16.mxu0 %v7866
    %8364 = vmatpush1.bf16.msra.mxu0 %v7865
    %8365 = vmatprep.subr.bf16.mxu0 %v7870
    %8366 = vmatpush1.bf16.msra.mxu0 %v7869
    %8367 = vmatprep.subr.bf16.mxu0 %v7874
    %8368 = vmatpush1.bf16.msra.mxu0 %v7873
    %8369 = vmatprep.subr.bf16.mxu0 %v7878
    %8370 = vmatpush1.bf16.msra.mxu0 %v7877
    %8371 = vmatprep.subr.bf16.mxu0 %v7882
    %8372 = vmatpush1.bf16.msra.mxu0 %v7881
    %8373 = vmatprep.subr.bf16.mxu0 %v7886
    %8374 = vmatpush1.bf16.msra.mxu0 %v7885
    %8375 = vmatprep.subr.bf16.mxu0 %v7890
    %8376 = vmatpush1.bf16.msra.mxu0 %v7889
    %8377 = vmatprep.subr.bf16.mxu0 %v7894
    %8378 = vmatpush1.bf16.msra.mxu0 %v7893
    %8379 = vmatprep.subr.bf16.mxu0 %v7898
    %8380 = vmatpush1.bf16.msra.mxu0 %v7897
    %8381 = vmatprep.mubr.bf16.mxu0 %v6806
    %8382 = vmatmul.mubr.bf16.gmra.mrb[0].mxu0 %v6805
    %v8383 = vpop.f32.mrb[0].mxu0
    %v8384 = vadd.f32 0.0, %v8383
    %v8385 = vpop.f32.mrb[0].mxu0
    %v8386 = vadd.f32 0.0, %v8385
    %v8387 = vpop.f32.mrb[0].mxu0
    %v8388 = vadd.f32 0.0, %v8387
    %v8389 = vpop.f32.mrb[0].mxu0
    %v8390 = vadd.f32 0.0, %v8389
    %8391 = vdwg.mxu0
    %8392 = vmatprep.subr.bf16.mxu0 %v7902
    %8393 = vmatpush1.bf16.msra.mxu0 %v7901
    %8394 = vmatprep.subr.bf16.mxu0 %v7906
    %8395 = vmatpush1.bf16.msra.mxu0 %v7905
    %8396 = vmatprep.subr.bf16.mxu0 %v7910
    %8397 = vmatpush1.bf16.msra.mxu0 %v7909
    %8398 = vmatprep.subr.bf16.mxu0 %v7914
    %8399 = vmatpush1.bf16.msra.mxu0 %v7913
    %8400 = vmatprep.subr.bf16.mxu0 %v7918
    %8401 = vmatpush1.bf16.msra.mxu0 %v7917
    %8402 = vmatprep.subr.bf16.mxu0 %v7922
    %8403 = vmatpush1.bf16.msra.mxu0 %v7921
    %8404 = vmatprep.subr.bf16.mxu0 %v7926
    %8405 = vmatpush1.bf16.msra.mxu0 %v7925
    %8406 = vmatprep.subr.bf16.mxu0 %v7930
    %8407 = vmatpush1.bf16.msra.mxu0 %v7929
    %8408 = vmatprep.subr.bf16.mxu0 %v7934
    %8409 = vmatpush1.bf16.msra.mxu0 %v7933
    %8410 = vmatprep.subr.bf16.mxu0 %v7938
    %8411 = vmatpush1.bf16.msra.mxu0 %v7937
    %8412 = vmatprep.subr.bf16.mxu0 %v7942
    %8413 = vmatpush1.bf16.msra.mxu0 %v7941
    %8414 = vmatprep.subr.bf16.mxu0 %v7946
    %8415 = vmatpush1.bf16.msra.mxu0 %v7945
    %8416 = vmatprep.subr.bf16.mxu0 %v7950
    %8417 = vmatpush1.bf16.msra.mxu0 %v7949
    %8418 = vmatprep.subr.bf16.mxu0 %v7954
    %8419 = vmatpush1.bf16.msra.mxu0 %v7953
    %8420 = vmatprep.subr.bf16.mxu0 %v7958
    %8421 = vmatpush1.bf16.msra.mxu0 %v7957
    %8422 = vmatprep.subr.bf16.mxu0 %v7962
    %8423 = vmatpush1.bf16.msra.mxu0 %v7961
    %8424 = vmatprep.mubr.bf16.mxu0 %v6808
    %8425 = vmatmul.mubr.bf16.gmra.mrb[0].mxu0 %v6807
    %v8426 = vpop.f32.mrb[0].mxu0
    %v8427 = vadd.f32 %v8384, %v8426
    %v8428 = vpop.f32.mrb[0].mxu0
    %v8429 = vadd.f32 %v8386, %v8428
    %v8430 = vpop.f32.mrb[0].mxu0
    %v8431 = vadd.f32 %v8388, %v8430
    %v8432 = vpop.f32.mrb[0].mxu0
    %v8433 = vadd.f32 %v8390, %v8432
    %8434 = vdwg.mxu0
    %8435 = vmatprep.subr.bf16.mxu0 %v7966
    %8436 = vmatpush1.bf16.msra.mxu0 %v7965
    %8437 = vmatprep.subr.bf16.mxu0 %v7970
    %8438 = vmatpush1.bf16.msra.mxu0 %v7969
    %8439 = vmatprep.subr.bf16.mxu0 %v7974
    %8440 = vmatpush1.bf16.msra.mxu0 %v7973
    %8441 = vmatprep.subr.bf16.mxu0 %v7978
    %8442 = vmatpush1.bf16.msra.mxu0 %v7977
    %8443 = vmatprep.subr.bf16.mxu0 %v7982
    %8444 = vmatpush1.bf16.msra.mxu0 %v7981
    %8445 = vmatprep.subr.bf16.mxu0 %v7986
    %8446 = vmatpush1.bf16.msra.mxu0 %v7985
    %8447 = vmatprep.subr.bf16.mxu0 %v7990
    %8448 = vmatpush1.bf16.msra.mxu0 %v7989
    %8449 = vmatprep.subr.bf16.mxu0 %v7994
    %8450 = vmatpush1.bf16.msra.mxu0 %v7993
    %8451 = vmatprep.subr.bf16.mxu0 %v7998
    %8452 = vmatpush1.bf16.msra.mxu0 %v7997
    %8453 = vmatprep.subr.bf16.mxu0 %v8002
    %8454 = vmatpush1.bf16.msra.mxu0 %v8001
    %8455 = vmatprep.subr.bf16.mxu0 %v8006
    %8456 = vmatpush1.bf16.msra.mxu0 %v8005
    %8457 = vmatprep.subr.bf16.mxu0 %v8010
    %8458 = vmatpush1.bf16.msra.mxu0 %v8009
    %8459 = vmatprep.subr.bf16.mxu0 %v8014
    %8460 = vmatpush1.bf16.msra.mxu0 %v8013
    %8461 = vmatprep.subr.bf16.mxu0 %v8018
    %8462 = vmatpush1.bf16.msra.mxu0 %v8017
    %8463 = vmatprep.subr.bf16.mxu0 %v8022
    %8464 = vmatpush1.bf16.msra.mxu0 %v8021
    %8465 = vmatprep.subr.bf16.mxu0 %v8026
    %8466 = vmatpush1.bf16.msra.mxu0 %v8025
    %8467 = vmatprep.mubr.bf16.mxu0 %v6810
    %8468 = vmatmul.mubr.bf16.gmra.mrb[0].mxu0 %v6809
    %v8469 = vpop.f32.mrb[0].mxu0
    %v8470 = vadd.f32 %v8427, %v8469
    %v8471 = vpop.f32.mrb[0].mxu0
    %v8472 = vadd.f32 %v8429, %v8471
    %v8473 = vpop.f32.mrb[0].mxu0
    %v8474 = vadd.f32 %v8431, %v8473
    %v8475 = vpop.f32.mrb[0].mxu0
    %v8476 = vadd.f32 %v8433, %v8475
    %8477 = vdwg.mxu0
    %8478 = vmatprep.subr.bf16.mxu0 %v8030
    %8479 = vmatpush1.bf16.msra.mxu0 %v8029
    %8480 = vmatprep.subr.bf16.mxu0 %v8034
    %8481 = vmatpush1.bf16.msra.mxu0 %v8033
    %8482 = vmatprep.subr.bf16.mxu0 %v8038
    %8483 = vmatpush1.bf16.msra.mxu0 %v8037
    %8484 = vmatprep.subr.bf16.mxu0 %v8042
    %8485 = vmatpush1.bf16.msra.mxu0 %v8041
    %8486 = vmatprep.subr.bf16.mxu0 %v8046
    %8487 = vmatpush1.bf16.msra.mxu0 %v8045
    %8488 = vmatprep.subr.bf16.mxu0 %v8050
    %8489 = vmatpush1.bf16.msra.mxu0 %v8049
    %8490 = vmatprep.subr.bf16.mxu0 %v8054
    %8491 = vmatpush1.bf16.msra.mxu0 %v8053
    %8492 = vmatprep.subr.bf16.mxu0 %v8058
    %8493 = vmatpush1.bf16.msra.mxu0 %v8057
    %8494 = vmatprep.subr.bf16.mxu0 %v8062
    %8495 = vmatpush1.bf16.msra.mxu0 %v8061
    %8496 = vmatprep.subr.bf16.mxu0 %v8066
    %8497 = vmatpush1.bf16.msra.mxu0 %v8065
    %8498 = vmatprep.subr.bf16.mxu0 %v8070
    %8499 = vmatpush1.bf16.msra.mxu0 %v8069
    %8500 = vmatprep.subr.bf16.mxu0 %v8074
    %8501 = vmatpush1.bf16.msra.mxu0 %v8073
    %8502 = vmatprep.subr.bf16.mxu0 %v8078
    %8503 = vmatpush1.bf16.msra.mxu0 %v8077
    %8504 = vmatprep.subr.bf16.mxu0 %v8082
    %8505 = vmatpush1.bf16.msra.mxu0 %v8081
    %8506 = vmatprep.subr.bf16.mxu0 %v8086
    %8507 = vmatpush1.bf16.msra.mxu0 %v8085
    %8508 = vmatprep.subr.bf16.mxu0 %v8090
    %8509 = vmatpush1.bf16.msra.mxu0 %v8089
    %8510 = vmatprep.mubr.bf16.mxu0 %v6812
    %8511 = vmatmul.mubr.bf16.gmra.mrb[0].mxu0 %v6811
    %v8512 = vpop.f32.mrb[0].mxu0
    %v8513 = vadd.f32 %v8470, %v8512
    %v8514 = vpop.f32.mrb[0].mxu0
    %v8515 = vadd.f32 %v8472, %v8514
    %v8516 = vpop.f32.mrb[0].mxu0
    %v8517 = vadd.f32 %v8474, %v8516
    %v8518 = vpop.f32.mrb[0].mxu0
    %v8519 = vadd.f32 %v8476, %v8518
    %8520 = vdwg.mxu0
    %8521 = vmatprep.subr.bf16.mxu0 %v7840
    %8522 = vmatpush1.bf16.msra.mxu0 %v7839
    %8523 = vmatprep.subr.bf16.mxu0 %v7844
    %8524 = vmatpush1.bf16.msra.mxu0 %v7843
    %8525 = vmatprep.subr.bf16.mxu0 %v7848
    %8526 = vmatpush1.bf16.msra.mxu0 %v7847
    %8527 = vmatprep.subr.bf16.mxu0 %v7852
    %8528 = vmatpush1.bf16.msra.mxu0 %v7851
    %8529 = vmatprep.subr.bf16.mxu0 %v7856
    %8530 = vmatpush1.bf16.msra.mxu0 %v7855
    %8531 = vmatprep.subr.bf16.mxu0 %v7860
    %8532 = vmatpush1.bf16.msra.mxu0 %v7859
    %8533 = vmatprep.subr.bf16.mxu0 %v7864
    %8534 = vmatpush1.bf16.msra.mxu0 %v7863
    %8535 = vmatprep.subr.bf16.mxu0 %v7868
    %8536 = vmatpush1.bf16.msra.mxu0 %v7867
    %8537 = vmatprep.subr.bf16.mxu0 %v7872
    %8538 = vmatpush1.bf16.msra.mxu0 %v7871
    %8539 = vmatprep.subr.bf16.mxu0 %v7876
    %8540 = vmatpush1.bf16.msra.mxu0 %v7875
    %8541 = vmatprep.subr.bf16.mxu0 %v7880
    %8542 = vmatpush1.bf16.msra.mxu0 %v7879
    %8543 = vmatprep.subr.bf16.mxu0 %v7884
    %8544 = vmatpush1.bf16.msra.mxu0 %v7883
    %8545 = vmatprep.subr.bf16.mxu0 %v7888
    %8546 = vmatpush1.bf16.msra.mxu0 %v7887
    %8547 = vmatprep.subr.bf16.mxu0 %v7892
    %8548 = vmatpush1.bf16.msra.mxu0 %v7891
    %8549 = vmatprep.subr.bf16.mxu0 %v7896
    %8550 = vmatpush1.bf16.msra.mxu0 %v7895
    %8551 = vmatprep.subr.bf16.mxu0 %v7900
    %8552 = vmatpush1.bf16.msra.mxu0 %v7899
    %8553 = vmatprep.mubr.bf16.mxu0 %v6806
    %8554 = vmatmul.mubr.bf16.gmra.mrb[0].mxu0 %v6805
    %v8555 = vpop.f32.mrb[0].mxu0
    %v8556 = vadd.f32 0.0, %v8555
    %v8557 = vpop.f32.mrb[0].mxu0
    %v8558 = vadd.f32 0.0, %v8557
    %v8559 = vpop.f32.mrb[0].mxu0
    %v8560 = vadd.f32 0.0, %v8559
    %v8561 = vpop.f32.mrb[0].mxu0
    %v8562 = vadd.f32 0.0, %v8561
    %8563 = vdwg.mxu0
    %8564 = vmatprep.subr.bf16.mxu0 %v7904
    %8565 = vmatpush1.bf16.msra.mxu0 %v7903
    %8566 = vmatprep.subr.bf16.mxu0 %v7908
    %8567 = vmatpush1.bf16.msra.mxu0 %v7907
    %8568 = vmatprep.subr.bf16.mxu0 %v7912
    %8569 = vmatpush1.bf16.msra.mxu0 %v7911
    %8570 = vmatprep.subr.bf16.mxu0 %v7916
    %8571 = vmatpush1.bf16.msra.mxu0 %v7915
    %8572 = vmatprep.subr.bf16.mxu0 %v7920
    %8573 = vmatpush1.bf16.msra.mxu0 %v7919
    %8574 = vmatprep.subr.bf16.mxu0 %v7924
    %8575 = vmatpush1.bf16.msra.mxu0 %v7923
    %8576 = vmatprep.subr.bf16.mxu0 %v7928
    %8577 = vmatpush1.bf16.msra.mxu0 %v7927
    %8578 = vmatprep.subr.bf16.mxu0 %v7932
    %8579 = vmatpush1.bf16.msra.mxu0 %v7931
    %8580 = vmatprep.subr.bf16.mxu0 %v7936
    %8581 = vmatpush1.bf16.msra.mxu0 %v7935
    %8582 = vmatprep.subr.bf16.mxu0 %v7940
    %8583 = vmatpush1.bf16.msra.mxu0 %v7939
    %8584 = vmatprep.subr.bf16.mxu0 %v7944
    %8585 = vmatpush1.bf16.msra.mxu0 %v7943
    %8586 = vmatprep.subr.bf16.mxu0 %v7948
    %8587 = vmatpush1.bf16.msra.mxu0 %v7947
    %8588 = vmatprep.subr.bf16.mxu0 %v7952
    %8589 = vmatpush1.bf16.msra.mxu0 %v7951
    %8590 = vmatprep.subr.bf16.mxu0 %v7956
    %8591 = vmatpush1.bf16.msra.mxu0 %v7955
    %8592 = vmatprep.subr.bf16.mxu0 %v7960
    %8593 = vmatpush1.bf16.msra.mxu0 %v7959
    %8594 = vmatprep.subr.bf16.mxu0 %v7964
    %8595 = vmatpush1.bf16.msra.mxu0 %v7963
    %8596 = vmatprep.mubr.bf16.mxu0 %v6808
    %8597 = vmatmul.mubr.bf16.gmra.mrb[0].mxu0 %v6807
    %v8598 = vpop.f32.mrb[0].mxu0
    %v8599 = vadd.f32 %v8556, %v8598
    %v8600 = vpop.f32.mrb[0].mxu0
    %v8601 = vadd.f32 %v8558, %v8600
    %v8602 = vpop.f32.mrb[0].mxu0
    %v8603 = vadd.f32 %v8560, %v8602
    %v8604 = vpop.f32.mrb[0].mxu0
    %v8605 = vadd.f32 %v8562, %v8604
    %8606 = vdwg.mxu0
    %8607 = vmatprep.subr.bf16.mxu0 %v7968
    %8608 = vmatpush1.bf16.msra.mxu0 %v7967
    %8609 = vmatprep.subr.bf16.mxu0 %v7972
    %8610 = vmatpush1.bf16.msra.mxu0 %v7971
    %8611 = vmatprep.subr.bf16.mxu0 %v7976
    %8612 = vmatpush1.bf16.msra.mxu0 %v7975
    %8613 = vmatprep.subr.bf16.mxu0 %v7980
    %8614 = vmatpush1.bf16.msra.mxu0 %v7979
    %8615 = vmatprep.subr.bf16.mxu0 %v7984
    %8616 = vmatpush1.bf16.msra.mxu0 %v7983
    %8617 = vmatprep.subr.bf16.mxu0 %v7988
    %8618 = vmatpush1.bf16.msra.mxu0 %v7987
    %8619 = vmatprep.subr.bf16.mxu0 %v7992
    %8620 = vmatpush1.bf16.msra.mxu0 %v7991
    %8621 = vmatprep.subr.bf16.mxu0 %v7996
    %8622 = vmatpush1.bf16.msra.mxu0 %v7995
    %8623 = vmatprep.subr.bf16.mxu0 %v8000
    %8624 = vmatpush1.bf16.msra.mxu0 %v7999
    %8625 = vmatprep.subr.bf16.mxu0 %v8004
    %8626 = vmatpush1.bf16.msra.mxu0 %v8003
    %8627 = vmatprep.subr.bf16.mxu0 %v8008
    %8628 = vmatpush1.bf16.msra.mxu0 %v8007
    %8629 = vmatprep.subr.bf16.mxu0 %v8012
    %8630 = vmatpush1.bf16.msra.mxu0 %v8011
    %8631 = vmatprep.subr.bf16.mxu0 %v8016
    %8632 = vmatpush1.bf16.msra.mxu0 %v8015
    %8633 = vmatprep.subr.bf16.mxu0 %v8020
    %8634 = vmatpush1.bf16.msra.mxu0 %v8019
    %8635 = vmatprep.subr.bf16.mxu0 %v8024
    %8636 = vmatpush1.bf16.msra.mxu0 %v8023
    %8637 = vmatprep.subr.bf16.mxu0 %v8028
    %8638 = vmatpush1.bf16.msra.mxu0 %v8027
    %8639 = vmatprep.mubr.bf16.mxu0 %v6810
    %8640 = vmatmul.mubr.bf16.gmra.mrb[0].mxu0 %v6809
    %v8641 = vpop.f32.mrb[0].mxu0
    %v8642 = vadd.f32 %v8599, %v8641
    %v8643 = vpop.f32.mrb[0].mxu0
    %v8644 = vadd.f32 %v8601, %v8643
    %v8645 = vpop.f32.mrb[0].mxu0
    %v8646 = vadd.f32 %v8603, %v8645
    %v8647 = vpop.f32.mrb[0].mxu0
    %v8648 = vadd.f32 %v8605, %v8647
    %8649 = vdwg.mxu0
    %8650 = vmatprep.subr.bf16.mxu0 %v8032
    %8651 = vmatpush1.bf16.msra.mxu0 %v8031
    %8652 = vmatprep.subr.bf16.mxu0 %v8036
    %8653 = vmatpush1.bf16.msra.mxu0 %v8035
    %8654 = vmatprep.subr.bf16.mxu0 %v8040
    %8655 = vmatpush1.bf16.msra.mxu0 %v8039
    %8656 = vmatprep.subr.bf16.mxu0 %v8044
    %8657 = vmatpush1.bf16.msra.mxu0 %v8043
    %8658 = vmatprep.subr.bf16.mxu0 %v8048
    %8659 = vmatpush1.bf16.msra.mxu0 %v8047
    %8660 = vmatprep.subr.bf16.mxu0 %v8052
    %8661 = vmatpush1.bf16.msra.mxu0 %v8051
    %8662 = vmatprep.subr.bf16.mxu0 %v8056
    %8663 = vmatpush1.bf16.msra.mxu0 %v8055
    %8664 = vmatprep.subr.bf16.mxu0 %v8060
    %8665 = vmatpush1.bf16.msra.mxu0 %v8059
    %8666 = vmatprep.subr.bf16.mxu0 %v8064
    %8667 = vmatpush1.bf16.msra.mxu0 %v8063
    %8668 = vmatprep.subr.bf16.mxu0 %v8068
    %8669 = vmatpush1.bf16.msra.mxu0 %v8067
    %8670 = vmatprep.subr.bf16.mxu0 %v8072
    %8671 = vmatpush1.bf16.msra.mxu0 %v8071
    %8672 = vmatprep.subr.bf16.mxu0 %v8076
    %8673 = vmatpush1.bf16.msra.mxu0 %v8075
    %8674 = vmatprep.subr.bf16.mxu0 %v8080
    %8675 = vmatpush1.bf16.msra.mxu0 %v8079
    %8676 = vmatprep.subr.bf16.mxu0 %v8084
    %8677 = vmatpush1.bf16.msra.mxu0 %v8083
    %8678 = vmatprep.subr.bf16.mxu0 %v8088
    %8679 = vmatpush1.bf16.msra.mxu0 %v8087
    %8680 = vmatprep.subr.bf16.mxu0 %v8092
    %8681 = vmatpush1.bf16.msra.mxu0 %v8091
    %8682 = vmatprep.mubr.bf16.mxu0 %v6812
    %8683 = vmatmul.mubr.bf16.gmra.mrb[0].mxu0 %v6811
    %v8684 = vpop.f32.mrb[0].mxu0
    %v8685 = vadd.f32 %v8642, %v8684
    %v8686 = vpop.f32.mrb[0].mxu0
    %v8687 = vadd.f32 %v8644, %v8686
    %v8688 = vpop.f32.mrb[0].mxu0
    %v8689 = vadd.f32 %v8646, %v8688
    %v8690 = vpop.f32.mrb[0].mxu0
    %v8691 = vadd.f32 %v8648, %v8690
    %8692 = vdwg.mxu0
    %v8693 = vmul.f32 %v8513, %v290
    %v8694 = vmul.f32 %v8515, %v290
    %v8695 = vmul.f32 %v8685, %v290
    %v8696 = vmul.f32 %v8687, %v290
    %v8697 = vmul.f32 %v8517, %v291
    %v8698 = vmul.f32 %v8519, %v291
    %v8699 = vmul.f32 %v8689, %v291
    %v8700 = vmul.f32 %v8691, %v291
    %v8701 = vpack.c.bf16 %v8697, %v8693
    %v8702 = vpack.c.bf16 %v8698, %v8694
    %v8703 = vpack.c.bf16 %v8699, %v8695
    %v8704 = vpack.c.bf16 %v8700, %v8696
    %8705 = vmatprep.subr.bf16.mxu0 %v8702
    %8706 = vmatpush1.bf16.msra.mxu0 %v8701
    %8707 = vmatprep.subr.bf16.mxu0 0
    %8708 = vmatpush1.bf16.msra.mxu0 0
    %8709 = vmatprep.subr.bf16.mxu0 0
    %8710 = vmatpush1.bf16.msra.mxu0 0
    %8711 = vmatprep.subr.bf16.mxu0 0
    %8712 = vmatpush1.bf16.msra.mxu0 0
    %8713 = vmatprep.subr.bf16.mxu0 0
    %8714 = vmatpush1.bf16.msra.mxu0 0
    %8715 = vmatprep.subr.bf16.mxu0 0
    %8716 = vmatpush1.bf16.msra.mxu0 0
    %8717 = vmatprep.subr.bf16.mxu0 0
    %8718 = vmatpush1.bf16.msra.mxu0 0
    %8719 = vmatprep.subr.bf16.mxu0 0
    %8720 = vmatpush1.bf16.msra.mxu0 0
    %8721 = vmatprep.subr.bf16.mxu0 0
    %8722 = vmatpush1.bf16.msra.mxu0 0
    %8723 = vmatprep.subr.bf16.mxu0 0
    %8724 = vmatpush1.bf16.msra.mxu0 0
    %8725 = vmatprep.subr.bf16.mxu0 0
    %8726 = vmatpush1.bf16.msra.mxu0 0
    %8727 = vmatprep.subr.bf16.mxu0 0
    %8728 = vmatpush1.bf16.msra.mxu0 0
    %8729 = vmatprep.subr.bf16.mxu0 0
    %8730 = vmatpush1.bf16.msra.mxu0 0
    %8731 = vmatprep.subr.bf16.mxu0 0
    %8732 = vmatpush1.bf16.msra.mxu0 0
    %8733 = vmatprep.subr.bf16.mxu0 0
    %8734 = vmatpush1.bf16.msra.mxu0 0
    %8735 = vmatprep.subr.bf16.mxu0 0
    %8736 = vmatpush1.bf16.msra.mxu0 0
    %8737 = vmatprep.mubr.bf16.mxu0 0
    %8738 = vmatmul.mubr.bf16.gmra.mrb[0].mxu0 %v447
    %v8739 = vpop.f32.mrb[0].mxu0
    %v8740 = vadd.f32 0.0, %v8739
    %v8741 = vpop.f32.mrb[0].mxu0
    %v8742 = vadd.f32 0.0, %v8741
    %v8743 = vpop.f32.mrb[0].mxu0
    %v8744 = vadd.f32 0.0, %v8743
    %v8745 = vpop.f32.mrb[0].mxu0
    %v8746 = vadd.f32 0.0, %v8745
    %8747 = vdwg.mxu0
    %8748 = vmatprep.subr.bf16.mxu0 %v8704
    %8749 = vmatpush1.bf16.msra.mxu0 %v8703
    %8750 = vmatprep.subr.bf16.mxu0 0
    %8751 = vmatpush1.bf16.msra.mxu0 0
    %8752 = vmatprep.subr.bf16.mxu0 0
    %8753 = vmatpush1.bf16.msra.mxu0 0
    %8754 = vmatprep.subr.bf16.mxu0 0
    %8755 = vmatpush1.bf16.msra.mxu0 0
    %8756 = vmatprep.subr.bf16.mxu0 0
    %8757 = vmatpush1.bf16.msra.mxu0 0
    %8758 = vmatprep.subr.bf16.mxu0 0
    %8759 = vmatpush1.bf16.msra.mxu0 0
    %8760 = vmatprep.subr.bf16.mxu0 0
    %8761 = vmatpush1.bf16.msra.mxu0 0
    %8762 = vmatprep.subr.bf16.mxu0 0
    %8763 = vmatpush1.bf16.msra.mxu0 0
    %8764 = vmatprep.subr.bf16.mxu0 0
    %8765 = vmatpush1.bf16.msra.mxu0 0
    %8766 = vmatprep.subr.bf16.mxu0 0
    %8767 = vmatpush1.bf16.msra.mxu0 0
    %8768 = vmatprep.subr.bf16.mxu0 0
    %8769 = vmatpush1.bf16.msra.mxu0 0
    %8770 = vmatprep.subr.bf16.mxu0 0
    %8771 = vmatpush1.bf16.msra.mxu0 0
    %8772 = vmatprep.subr.bf16.mxu0 0
    %8773 = vmatpush1.bf16.msra.mxu0 0
    %8774 = vmatprep.subr.bf16.mxu0 0
    %8775 = vmatpush1.bf16.msra.mxu0 0
    %8776 = vmatprep.subr.bf16.mxu0 0
    %8777 = vmatpush1.bf16.msra.mxu0 0
    %8778 = vmatprep.subr.bf16.mxu0 0
    %8779 = vmatpush1.bf16.msra.mxu0 0
    %8780 = vmatprep.mubr.bf16.mxu0 0
    %8781 = vmatmul.mubr.bf16.gmra.mrb[0].mxu0 %v447
    %v8782 = vpop.f32.mrb[0].mxu0
    %v8783 = vadd.f32 0.0, %v8782
    %v8784 = vpop.f32.mrb[0].mxu0
    %v8785 = vadd.f32 0.0, %v8784
    %v8786 = vpop.f32.mrb[0].mxu0
    %v8787 = vadd.f32 0.0, %v8786
    %v8788 = vpop.f32.mrb[0].mxu0
    %v8789 = vadd.f32 0.0, %v8788
    %8790 = vdwg.mxu0
    %v8791 = vmul.f32 %v8740, %v290
    %v8792 = vmul.f32 %v8742, %v290
    %v8793 = vmul.f32 %v8783, %v290
    %v8794 = vmul.f32 %v8785, %v290
    %v8795 = vmul.f32 %v8744, %v291
    %v8796 = vmul.f32 %v8746, %v291
    %v8797 = vmul.f32 %v8787, %v291
    %v8798 = vmul.f32 %v8789, %v291
    %v8799 = vld [vmem:[#allocation18] sm:$0xf]
    %v8801 = vlaneseq
    %v8802 = vshrl.u32 %v8801, 7
    %v8803 = vsub.s32 0, %v8802
    %v8804 = vrot.slane %v8799, %v8803
    %v8805 = vlaneseq
    %v8806 = vshrl.u32 %v8805, 7
    %v8807 = vsub.s32 1, %v8806
    %v8808 = vrot.slane %v8799, %v8807
    %v8809 = vlaneseq
    %v8810 = vshrl.u32 %v8809, 7
    %v8811 = vsub.s32 2, %v8810
    %v8812 = vrot.slane %v8799, %v8811
    %v8813 = vlaneseq
    %v8814 = vshrl.u32 %v8813, 7
    %v8815 = vsub.s32 3, %v8814
    %v8816 = vrot.slane %v8799, %v8815
    %v8821 = vadd.f32 %v8791, %v8804
    %v8822 = vadd.f32 %v8792, %v8808
    %v8823 = vadd.f32 %v8793, %v8812
    %v8824 = vadd.f32 %v8794, %v8816
    %v8825 = vadd.f32 %v8795, %v8804
    %v8826 = vadd.f32 %v8796, %v8808
    %v8827 = vadd.f32 %v8797, %v8812
    %v8828 = vadd.f32 %v8798, %v8816
    %v8829 = vmax.f32 %v8821, 0.0
    %v8830 = vmax.f32 %v8822, 0.0
    %v8831 = vmax.f32 %v8823, 0.0
    %v8832 = vmax.f32 %v8824, 0.0
    %v8833 = vmax.f32 %v8825, 0.0
    %v8834 = vmax.f32 %v8826, 0.0
    %v8835 = vmax.f32 %v8827, 0.0
    %v8836 = vmax.f32 %v8828, 0.0
    %v8837 = vpack.c.bf16 %v8833, %v8829
    %v8838 = vpack.c.bf16 %v8834, %v8830
    %v8839 = vpack.c.bf16 %v8835, %v8831
    %v8840 = vpack.c.bf16 %v8836, %v8832
    %v8841 = vlaneseq
    %v8842 = vshrl.u32 %v8841, 7
    %v8843 = vlaneseq
    %v8844 = vand.u32 %v8843, 127
    %vm8845 = vcmp.eq.s32.totalorder %v8842, 0
    %s8846 = sld [smem:[#allocation3]]
    %v8847 = vstv %s8846
    %v8848 = vsel %vm8845, %v8847, 4294967295
    %vm8849 = vcmp.eq.s32.totalorder %v8842, 1
    %s8850 = sld [smem:[#allocation3 + $0x1]]
    %v8851 = vstv %s8850
    %v8852 = vsel %vm8849, %v8851, %v8848
    %vm8853 = vcmp.eq.s32.totalorder %v8844, %v8852
    %v8854 = vsel %vm8853, 1, 0
    %v8855 = vcvt.s32.f32 %v8854
    %v8856 = vpack.c.bf16 %v8855, %v8855
    %v8858 = vsel %vm283, %v8856, 0
    %8860 = vmatprep.subr.bf16.mxu0 %v8838
    %8861 = vmatpush1.bf16.msra.mxu0 %v8837
    %8862 = vmatprep.subr.bf16.mxu0 0
    %8863 = vmatpush1.bf16.msra.mxu0 0
    %8864 = vmatprep.subr.bf16.mxu0 0
    %8865 = vmatpush1.bf16.msra.mxu0 0
    %8866 = vmatprep.subr.bf16.mxu0 0
    %8867 = vmatpush1.bf16.msra.mxu0 0
    %8868 = vmatprep.subr.bf16.mxu0 0
    %8869 = vmatpush1.bf16.msra.mxu0 0
    %8870 = vmatprep.subr.bf16.mxu0 0
    %8871 = vmatpush1.bf16.msra.mxu0 0
    %8872 = vmatprep.subr.bf16.mxu0 0
    %8873 = vmatpush1.bf16.msra.mxu0 0
    %8874 = vmatprep.subr.bf16.mxu0 0
    %8875 = vmatpush1.bf16.msra.mxu0 0
    %8876 = vmatprep.subr.bf16.mxu0 0
    %8877 = vmatpush1.bf16.msra.mxu0 0
    %8878 = vmatprep.subr.bf16.mxu0 0
    %8879 = vmatpush1.bf16.msra.mxu0 0
    %8880 = vmatprep.subr.bf16.mxu0 0
    %8881 = vmatpush1.bf16.msra.mxu0 0
    %8882 = vmatprep.subr.bf16.mxu0 0
    %8883 = vmatpush1.bf16.msra.mxu0 0
    %8884 = vmatprep.subr.bf16.mxu0 0
    %8885 = vmatpush1.bf16.msra.mxu0 0
    %8886 = vmatprep.subr.bf16.mxu0 0
    %8887 = vmatpush1.bf16.msra.mxu0 0
    %8888 = vmatprep.subr.bf16.mxu0 0
    %8889 = vmatpush1.bf16.msra.mxu0 0
    %8890 = vmatprep.subr.bf16.mxu0 0
    %8891 = vmatpush1.bf16.msra.mxu0 0
    %8892 = vmatprep.mubr.bf16.mxu0 0
    %8893 = vmatmul.mubr.bf16.gmra.mrb[0].mxu0 %v8858
    %v8894 = vpop.f32.mrb[0].mxu0
    %v8895 = vadd.f32 0.0, %v8894
    %v8896 = vpop.f32.mrb[0].mxu0
    %v8897 = vadd.f32 0.0, %v8896
    %v8898 = vpop.f32.mrb[0].mxu0
    %v8899 = vpop.f32.mrb[0].mxu0
    %8900 = vdwg.mxu0
    %8901 = vmatprep.subr.bf16.mxu0 %v8840
    %8902 = vmatpush1.bf16.msra.mxu0 %v8839
    %8903 = vmatprep.subr.bf16.mxu0 0
    %8904 = vmatpush1.bf16.msra.mxu0 0
    %8905 = vmatprep.subr.bf16.mxu0 0
    %8906 = vmatpush1.bf16.msra.mxu0 0
    %8907 = vmatprep.subr.bf16.mxu0 0
    %8908 = vmatpush1.bf16.msra.mxu0 0
    %8909 = vmatprep.subr.bf16.mxu0 0
    %8910 = vmatpush1.bf16.msra.mxu0 0
    %8911 = vmatprep.subr.bf16.mxu0 0
    %8912 = vmatpush1.bf16.msra.mxu0 0
    %8913 = vmatprep.subr.bf16.mxu0 0
    %8914 = vmatpush1.bf16.msra.mxu0 0
    %8915 = vmatprep.subr.bf16.mxu0 0
    %8916 = vmatpush1.bf16.msra.mxu0 0
    %8917 = vmatprep.subr.bf16.mxu0 0
    %8918 = vmatpush1.bf16.msra.mxu0 0
    %8919 = vmatprep.subr.bf16.mxu0 0
    %8920 = vmatpush1.bf16.msra.mxu0 0
    %8921 = vmatprep.subr.bf16.mxu0 0
    %8922 = vmatpush1.bf16.msra.mxu0 0
    %8923 = vmatprep.subr.bf16.mxu0 0
    %8924 = vmatpush1.bf16.msra.mxu0 0
    %8925 = vmatprep.subr.bf16.mxu0 0
    %8926 = vmatpush1.bf16.msra.mxu0 0
    %8927 = vmatprep.subr.bf16.mxu0 0
    %8928 = vmatpush1.bf16.msra.mxu0 0
    %8929 = vmatprep.subr.bf16.mxu0 0
    %8930 = vmatpush1.bf16.msra.mxu0 0
    %8931 = vmatprep.subr.bf16.mxu0 0
    %8932 = vmatpush1.bf16.msra.mxu0 0
    %8933 = vmatprep.mubr.bf16.mxu0 0
    %8934 = vmatmul.mubr.bf16.gmra.mrb[0].mxu0 %v8858
    %v8935 = vpop.f32.mrb[0].mxu0
    %v8936 = vadd.f32 0.0, %v8935
    %v8937 = vpop.f32.mrb[0].mxu0
    %v8938 = vadd.f32 0.0, %v8937
    %v8939 = vpop.f32.mrb[0].mxu0
    %v8940 = vpop.f32.mrb[0].mxu0
    %8941 = vdwg.mxu0
    %v8942 = vld [vmem:[%s3] sm:$0xff]
    %v8943 = vpack.c.bf16 %v8942, %v8942
    %v8944 = vpack.c.bf16 %v8895, %v8895
    %v8945 = vpack.c.bf16 %v8897, %v8897
    %v8946 = vpack.c.bf16 %v8936, %v8936
    %v8947 = vpack.c.bf16 %v8938, %v8938
    %v8948 = vld [vmem:[#allocation20] sm:$0xff]
    %v8949 = vld [vmem:[#allocation20 + $0x8] sm:$0xff]
    %v8950 = vld [vmem:[#allocation20 + $0x10] sm:$0xff]
    %v8951 = vld [vmem:[#allocation20 + $0x18] sm:$0xff]
    %v8952 = vld [vmem:[#allocation20 + $0x20] sm:$0xff]
    %v8953 = vld [vmem:[#allocation20 + $0x28] sm:$0xff]
    %v8954 = vld [vmem:[#allocation20 + $0x30] sm:$0xff]
    %v8955 = vld [vmem:[#allocation20 + $0x38] sm:$0xff]
    %v8956 = vld [vmem:[#allocation20 + $0x40] sm:$0xff]
    %v8957 = vld [vmem:[#allocation20 + $0x48] sm:$0xff]
    %v8958 = vld [vmem:[#allocation20 + $0x50] sm:$0xff]
    %v8959 = vld [vmem:[#allocation20 + $0x58] sm:$0xff]
    %v8960 = vld [vmem:[#allocation20 + $0x60] sm:$0xff]
    %v8961 = vld [vmem:[#allocation20 + $0x68] sm:$0xff]
    %v8962 = vld [vmem:[#allocation20 + $0x70] sm:$0xff]
    %v8963 = vld [vmem:[#allocation20 + $0x78] sm:$0xff]
    %v8964 = vld [vmem:[#allocation20 + $0x80] sm:$0xff]
    %v8965 = vld [vmem:[#allocation20 + $0x88] sm:$0xff]
    %v8966 = vld [vmem:[#allocation20 + $0x90] sm:$0xff]
    %v8967 = vld [vmem:[#allocation20 + $0x98] sm:$0xff]
    %v8968 = vld [vmem:[#allocation20 + $0xa0] sm:$0xff]
    %v8969 = vld [vmem:[#allocation20 + $0xa8] sm:$0xff]
    %v8970 = vld [vmem:[#allocation20 + $0xb0] sm:$0xff]
    %v8971 = vld [vmem:[#allocation20 + $0xb8] sm:$0xff]
    %v8972 = vld [vmem:[#allocation20 + $0xc0] sm:$0xff]
    %v8973 = vld [vmem:[#allocation20 + $0xc8] sm:$0xff]
    %v8974 = vld [vmem:[#allocation20 + $0xd0] sm:$0xff]
    %v8975 = vld [vmem:[#allocation20 + $0xd8] sm:$0xff]
    %v8976 = vld [vmem:[#allocation20 + $0xe0] sm:$0xff]
    %v8977 = vld [vmem:[#allocation20 + $0xe8] sm:$0xff]
    %v8978 = vld [vmem:[#allocation20 + $0xf0] sm:$0xff]
    %v8979 = vld [vmem:[#allocation20 + $0xf8] sm:$0xff]
    %v8980 = vld [vmem:[#allocation20 + $0x100] sm:$0xff]
    %v8981 = vld [vmem:[#allocation20 + $0x108] sm:$0xff]
    %v8982 = vld [vmem:[#allocation20 + $0x110] sm:$0xff]
    %v8983 = vld [vmem:[#allocation20 + $0x118] sm:$0xff]
    %v8984 = vld [vmem:[#allocation20 + $0x120] sm:$0xff]
    %v8985 = vld [vmem:[#allocation20 + $0x128] sm:$0xff]
    %v8986 = vld [vmem:[#allocation20 + $0x130] sm:$0xff]
    %v8987 = vld [vmem:[#allocation20 + $0x138] sm:$0xff]
    %v8988 = vld [vmem:[#allocation20 + $0x140] sm:$0xff]
    %v8989 = vld [vmem:[#allocation20 + $0x148] sm:$0xff]
    %v8990 = vld [vmem:[#allocation20 + $0x150] sm:$0xff]
    %v8991 = vld [vmem:[#allocation20 + $0x158] sm:$0xff]
    %v8992 = vld [vmem:[#allocation20 + $0x160] sm:$0xff]
    %v8993 = vld [vmem:[#allocation20 + $0x168] sm:$0xff]
    %v8994 = vld [vmem:[#allocation20 + $0x170] sm:$0xff]
    %v8995 = vld [vmem:[#allocation20 + $0x178] sm:$0xff]
    %v8996 = vld [vmem:[#allocation20 + $0x180] sm:$0xff]
    %v8997 = vld [vmem:[#allocation20 + $0x188] sm:$0xff]
    %v8998 = vld [vmem:[#allocation20 + $0x190] sm:$0xff]
    %v8999 = vld [vmem:[#allocation20 + $0x198] sm:$0xff]
    %v9000 = vld [vmem:[#allocation20 + $0x1a0] sm:$0xff]
    %v9001 = vld [vmem:[#allocation20 + $0x1a8] sm:$0xff]
    %v9002 = vld [vmem:[#allocation20 + $0x1b0] sm:$0xff]
    %v9003 = vld [vmem:[#allocation20 + $0x1b8] sm:$0xff]
    %v9004 = vld [vmem:[#allocation20 + $0x1c0] sm:$0xff]
    %v9005 = vld [vmem:[#allocation20 + $0x1c8] sm:$0xff]
    %v9006 = vld [vmem:[#allocation20 + $0x1d0] sm:$0xff]
    %v9007 = vld [vmem:[#allocation20 + $0x1d8] sm:$0xff]
    %v9008 = vld [vmem:[#allocation20 + $0x1e0] sm:$0xff]
    %v9009 = vld [vmem:[#allocation20 + $0x1e8] sm:$0xff]
    %v9010 = vld [vmem:[#allocation20 + $0x1f0] sm:$0xff]
    %v9011 = vld [vmem:[#allocation20 + $0x1f8] sm:$0xff]
    %v9012 = vld [vmem:[#allocation20 + $0x200] sm:$0xff]
    %v9013 = vld [vmem:[#allocation20 + $0x208] sm:$0xff]
    %v9014 = vld [vmem:[#allocation20 + $0x210] sm:$0xff]
    %v9015 = vld [vmem:[#allocation20 + $0x218] sm:$0xff]
    %v9016 = vld [vmem:[#allocation20 + $0x220] sm:$0xff]
    %v9017 = vld [vmem:[#allocation20 + $0x228] sm:$0xff]
    %v9018 = vld [vmem:[#allocation20 + $0x230] sm:$0xff]
    %v9019 = vld [vmem:[#allocation20 + $0x238] sm:$0xff]
    %v9020 = vld [vmem:[#allocation20 + $0x240] sm:$0xff]
    %v9021 = vld [vmem:[#allocation20 + $0x248] sm:$0xff]
    %v9022 = vld [vmem:[#allocation20 + $0x250] sm:$0xff]
    %v9023 = vld [vmem:[#allocation20 + $0x258] sm:$0xff]
    %v9024 = vld [vmem:[#allocation20 + $0x260] sm:$0xff]
    %v9025 = vld [vmem:[#allocation20 + $0x268] sm:$0xff]
    %v9026 = vld [vmem:[#allocation20 + $0x270] sm:$0xff]
    %v9027 = vld [vmem:[#allocation20 + $0x278] sm:$0xff]
    %v9028 = vld [vmem:[#allocation20 + $0x280] sm:$0xff]
    %v9029 = vld [vmem:[#allocation20 + $0x288] sm:$0xff]
    %v9030 = vld [vmem:[#allocation20 + $0x290] sm:$0xff]
    %v9031 = vld [vmem:[#allocation20 + $0x298] sm:$0xff]
    %v9032 = vld [vmem:[#allocation20 + $0x2a0] sm:$0xff]
    %v9033 = vld [vmem:[#allocation20 + $0x2a8] sm:$0xff]
    %v9034 = vld [vmem:[#allocation20 + $0x2b0] sm:$0xff]
    %v9035 = vld [vmem:[#allocation20 + $0x2b8] sm:$0xff]
    %v9036 = vld [vmem:[#allocation20 + $0x2c0] sm:$0xff]
    %v9037 = vld [vmem:[#allocation20 + $0x2c8] sm:$0xff]
    %v9038 = vld [vmem:[#allocation20 + $0x2d0] sm:$0xff]
    %v9039 = vld [vmem:[#allocation20 + $0x2d8] sm:$0xff]
    %v9040 = vld [vmem:[#allocation20 + $0x2e0] sm:$0xff]
    %v9041 = vld [vmem:[#allocation20 + $0x2e8] sm:$0xff]
    %v9042 = vld [vmem:[#allocation20 + $0x2f0] sm:$0xff]
    %v9043 = vld [vmem:[#allocation20 + $0x2f8] sm:$0xff]
    %v9044 = vld [vmem:[#allocation20 + $0x300] sm:$0xff]
    %v9045 = vld [vmem:[#allocation20 + $0x308] sm:$0xff]
    %v9046 = vld [vmem:[#allocation20 + $0x310] sm:$0xff]
    %v9047 = vld [vmem:[#allocation20 + $0x318] sm:$0xff]
    %v9048 = vld [vmem:[#allocation20 + $0x320] sm:$0xff]
    %v9049 = vld [vmem:[#allocation20 + $0x328] sm:$0xff]
    %v9050 = vld [vmem:[#allocation20 + $0x330] sm:$0xff]
    %v9051 = vld [vmem:[#allocation20 + $0x338] sm:$0xff]
    %v9052 = vld [vmem:[#allocation20 + $0x340] sm:$0xff]
    %v9053 = vld [vmem:[#allocation20 + $0x348] sm:$0xff]
    %v9054 = vld [vmem:[#allocation20 + $0x350] sm:$0xff]
    %v9055 = vld [vmem:[#allocation20 + $0x358] sm:$0xff]
    %v9056 = vld [vmem:[#allocation20 + $0x360] sm:$0xff]
    %v9057 = vld [vmem:[#allocation20 + $0x368] sm:$0xff]
    %v9058 = vld [vmem:[#allocation20 + $0x370] sm:$0xff]
    %v9059 = vld [vmem:[#allocation20 + $0x378] sm:$0xff]
    %v9060 = vld [vmem:[#allocation20 + $0x380] sm:$0xff]
    %v9061 = vld [vmem:[#allocation20 + $0x388] sm:$0xff]
    %v9062 = vld [vmem:[#allocation20 + $0x390] sm:$0xff]
    %v9063 = vld [vmem:[#allocation20 + $0x398] sm:$0xff]
    %v9064 = vld [vmem:[#allocation20 + $0x3a0] sm:$0xff]
    %v9065 = vld [vmem:[#allocation20 + $0x3a8] sm:$0xff]
    %v9066 = vld [vmem:[#allocation20 + $0x3b0] sm:$0xff]
    %v9067 = vld [vmem:[#allocation20 + $0x3b8] sm:$0xff]
    %v9068 = vld [vmem:[#allocation20 + $0x3c0] sm:$0xff]
    %v9069 = vld [vmem:[#allocation20 + $0x3c8] sm:$0xff]
    %v9070 = vld [vmem:[#allocation20 + $0x3d0] sm:$0xff]
    %v9071 = vld [vmem:[#allocation20 + $0x3d8] sm:$0xff]
    %v9072 = vld [vmem:[#allocation20 + $0x3e0] sm:$0xff]
    %v9073 = vld [vmem:[#allocation20 + $0x3e8] sm:$0xff]
    %v9074 = vld [vmem:[#allocation20 + $0x3f0] sm:$0xff]
    %v9075 = vld [vmem:[#allocation20 + $0x3f8] sm:$0xff]
    %v9076 = vld [vmem:[#allocation20 + $0x400] sm:$0xff]
    %v9077 = vld [vmem:[#allocation20 + $0x408] sm:$0xff]
    %v9078 = vld [vmem:[#allocation20 + $0x410] sm:$0xff]
    %v9079 = vld [vmem:[#allocation20 + $0x418] sm:$0xff]
    %v9080 = vld [vmem:[#allocation20 + $0x420] sm:$0xff]
    %v9081 = vld [vmem:[#allocation20 + $0x428] sm:$0xff]
    %v9082 = vld [vmem:[#allocation20 + $0x430] sm:$0xff]
    %v9083 = vld [vmem:[#allocation20 + $0x438] sm:$0xff]
    %v9084 = vld [vmem:[#allocation20 + $0x440] sm:$0xff]
    %v9085 = vld [vmem:[#allocation20 + $0x448] sm:$0xff]
    %v9086 = vld [vmem:[#allocation20 + $0x450] sm:$0xff]
    %v9087 = vld [vmem:[#allocation20 + $0x458] sm:$0xff]
    %v9088 = vld [vmem:[#allocation20 + $0x460] sm:$0xff]
    %v9089 = vld [vmem:[#allocation20 + $0x468] sm:$0xff]
    %v9090 = vld [vmem:[#allocation20 + $0x470] sm:$0xff]
    %v9091 = vld [vmem:[#allocation20 + $0x478] sm:$0xff]
    %v9092 = vld [vmem:[#allocation20 + $0x480] sm:$0xff]
    %v9093 = vld [vmem:[#allocation20 + $0x488] sm:$0xff]
    %v9094 = vld [vmem:[#allocation20 + $0x490] sm:$0xff]
    %v9095 = vld [vmem:[#allocation20 + $0x498] sm:$0xff]
    %v9096 = vld [vmem:[#allocation20 + $0x4a0] sm:$0xff]
    %v9097 = vld [vmem:[#allocation20 + $0x4a8] sm:$0xff]
    %v9098 = vld [vmem:[#allocation20 + $0x4b0] sm:$0xff]
    %v9099 = vld [vmem:[#allocation20 + $0x4b8] sm:$0xff]
    %v9100 = vld [vmem:[#allocation20 + $0x4c0] sm:$0xff]
    %v9101 = vld [vmem:[#allocation20 + $0x4c8] sm:$0xff]
    %v9102 = vld [vmem:[#allocation20 + $0x4d0] sm:$0xff]
    %v9103 = vld [vmem:[#allocation20 + $0x4d8] sm:$0xff]
    %v9104 = vld [vmem:[#allocation20 + $0x4e0] sm:$0xff]
    %v9105 = vld [vmem:[#allocation20 + $0x4e8] sm:$0xff]
    %v9106 = vld [vmem:[#allocation20 + $0x4f0] sm:$0xff]
    %v9107 = vld [vmem:[#allocation20 + $0x4f8] sm:$0xff]
    %v9108 = vld [vmem:[#allocation20 + $0x500] sm:$0xff]
    %v9109 = vld [vmem:[#allocation20 + $0x508] sm:$0xff]
    %v9110 = vld [vmem:[#allocation20 + $0x510] sm:$0xff]
    %v9111 = vld [vmem:[#allocation20 + $0x518] sm:$0xff]
    %v9112 = vld [vmem:[#allocation20 + $0x520] sm:$0xff]
    %v9113 = vld [vmem:[#allocation20 + $0x528] sm:$0xff]
    %v9114 = vld [vmem:[#allocation20 + $0x530] sm:$0xff]
    %v9115 = vld [vmem:[#allocation20 + $0x538] sm:$0xff]
    %v9116 = vld [vmem:[#allocation20 + $0x540] sm:$0xff]
    %v9117 = vld [vmem:[#allocation20 + $0x548] sm:$0xff]
    %v9118 = vld [vmem:[#allocation20 + $0x550] sm:$0xff]
    %v9119 = vld [vmem:[#allocation20 + $0x558] sm:$0xff]
    %v9120 = vld [vmem:[#allocation20 + $0x560] sm:$0xff]
    %v9121 = vld [vmem:[#allocation20 + $0x568] sm:$0xff]
    %v9122 = vld [vmem:[#allocation20 + $0x570] sm:$0xff]
    %v9123 = vld [vmem:[#allocation20 + $0x578] sm:$0xff]
    %v9124 = vld [vmem:[#allocation20 + $0x580] sm:$0xff]
    %v9125 = vld [vmem:[#allocation20 + $0x588] sm:$0xff]
    %v9126 = vld [vmem:[#allocation20 + $0x590] sm:$0xff]
    %v9127 = vld [vmem:[#allocation20 + $0x598] sm:$0xff]
    %v9128 = vld [vmem:[#allocation20 + $0x5a0] sm:$0xff]
    %v9129 = vld [vmem:[#allocation20 + $0x5a8] sm:$0xff]
    %v9130 = vld [vmem:[#allocation20 + $0x5b0] sm:$0xff]
    %v9131 = vld [vmem:[#allocation20 + $0x5b8] sm:$0xff]
    %v9132 = vld [vmem:[#allocation20 + $0x5c0] sm:$0xff]
    %v9133 = vld [vmem:[#allocation20 + $0x5c8] sm:$0xff]
    %v9134 = vld [vmem:[#allocation20 + $0x5d0] sm:$0xff]
    %v9135 = vld [vmem:[#allocation20 + $0x5d8] sm:$0xff]
    %v9136 = vld [vmem:[#allocation20 + $0x5e0] sm:$0xff]
    %v9137 = vld [vmem:[#allocation20 + $0x5e8] sm:$0xff]
    %v9138 = vld [vmem:[#allocation20 + $0x5f0] sm:$0xff]
    %v9139 = vld [vmem:[#allocation20 + $0x5f8] sm:$0xff]
    %v9140 = vld [vmem:[#allocation20 + $0x600] sm:$0xff]
    %v9141 = vld [vmem:[#allocation20 + $0x608] sm:$0xff]
    %v9142 = vld [vmem:[#allocation20 + $0x610] sm:$0xff]
    %v9143 = vld [vmem:[#allocation20 + $0x618] sm:$0xff]
    %v9144 = vld [vmem:[#allocation20 + $0x620] sm:$0xff]
    %v9145 = vld [vmem:[#allocation20 + $0x628] sm:$0xff]
    %v9146 = vld [vmem:[#allocation20 + $0x630] sm:$0xff]
    %v9147 = vld [vmem:[#allocation20 + $0x638] sm:$0xff]
    %v9148 = vld [vmem:[#allocation20 + $0x640] sm:$0xff]
    %v9149 = vld [vmem:[#allocation20 + $0x648] sm:$0xff]
    %v9150 = vld [vmem:[#allocation20 + $0x650] sm:$0xff]
    %v9151 = vld [vmem:[#allocation20 + $0x658] sm:$0xff]
    %v9152 = vld [vmem:[#allocation20 + $0x660] sm:$0xff]
    %v9153 = vld [vmem:[#allocation20 + $0x668] sm:$0xff]
    %v9154 = vld [vmem:[#allocation20 + $0x670] sm:$0xff]
    %v9155 = vld [vmem:[#allocation20 + $0x678] sm:$0xff]
    %v9156 = vld [vmem:[#allocation20 + $0x680] sm:$0xff]
    %v9157 = vld [vmem:[#allocation20 + $0x688] sm:$0xff]
    %v9158 = vld [vmem:[#allocation20 + $0x690] sm:$0xff]
    %v9159 = vld [vmem:[#allocation20 + $0x698] sm:$0xff]
    %v9160 = vld [vmem:[#allocation20 + $0x6a0] sm:$0xff]
    %v9161 = vld [vmem:[#allocation20 + $0x6a8] sm:$0xff]
    %v9162 = vld [vmem:[#allocation20 + $0x6b0] sm:$0xff]
    %v9163 = vld [vmem:[#allocation20 + $0x6b8] sm:$0xff]
    %v9164 = vld [vmem:[#allocation20 + $0x6c0] sm:$0xff]
    %v9165 = vld [vmem:[#allocation20 + $0x6c8] sm:$0xff]
    %v9166 = vld [vmem:[#allocation20 + $0x6d0] sm:$0xff]
    %v9167 = vld [vmem:[#allocation20 + $0x6d8] sm:$0xff]
    %v9168 = vld [vmem:[#allocation20 + $0x6e0] sm:$0xff]
    %v9169 = vld [vmem:[#allocation20 + $0x6e8] sm:$0xff]
    %v9170 = vld [vmem:[#allocation20 + $0x6f0] sm:$0xff]
    %v9171 = vld [vmem:[#allocation20 + $0x6f8] sm:$0xff]
    %v9172 = vld [vmem:[#allocation20 + $0x700] sm:$0xff]
    %v9173 = vld [vmem:[#allocation20 + $0x708] sm:$0xff]
    %v9174 = vld [vmem:[#allocation20 + $0x710] sm:$0xff]
    %v9175 = vld [vmem:[#allocation20 + $0x718] sm:$0xff]
    %v9176 = vld [vmem:[#allocation20 + $0x720] sm:$0xff]
    %v9177 = vld [vmem:[#allocation20 + $0x728] sm:$0xff]
    %v9178 = vld [vmem:[#allocation20 + $0x730] sm:$0xff]
    %v9179 = vld [vmem:[#allocation20 + $0x738] sm:$0xff]
    %v9180 = vld [vmem:[#allocation20 + $0x740] sm:$0xff]
    %v9181 = vld [vmem:[#allocation20 + $0x748] sm:$0xff]
    %v9182 = vld [vmem:[#allocation20 + $0x750] sm:$0xff]
    %v9183 = vld [vmem:[#allocation20 + $0x758] sm:$0xff]
    %v9184 = vld [vmem:[#allocation20 + $0x760] sm:$0xff]
    %v9185 = vld [vmem:[#allocation20 + $0x768] sm:$0xff]
    %v9186 = vld [vmem:[#allocation20 + $0x770] sm:$0xff]
    %v9187 = vld [vmem:[#allocation20 + $0x778] sm:$0xff]
    %v9188 = vld [vmem:[#allocation20 + $0x780] sm:$0xff]
    %v9189 = vld [vmem:[#allocation20 + $0x788] sm:$0xff]
    %v9190 = vld [vmem:[#allocation20 + $0x790] sm:$0xff]
    %v9191 = vld [vmem:[#allocation20 + $0x798] sm:$0xff]
    %v9192 = vld [vmem:[#allocation20 + $0x7a0] sm:$0xff]
    %v9193 = vld [vmem:[#allocation20 + $0x7a8] sm:$0xff]
    %v9194 = vld [vmem:[#allocation20 + $0x7b0] sm:$0xff]
    %v9195 = vld [vmem:[#allocation20 + $0x7b8] sm:$0xff]
    %v9196 = vld [vmem:[#allocation20 + $0x7c0] sm:$0xff]
    %v9197 = vld [vmem:[#allocation20 + $0x7c8] sm:$0xff]
    %v9198 = vld [vmem:[#allocation20 + $0x7d0] sm:$0xff]
    %v9199 = vld [vmem:[#allocation20 + $0x7d8] sm:$0xff]
    %v9200 = vld [vmem:[#allocation20 + $0x7e0] sm:$0xff]
    %v9201 = vld [vmem:[#allocation20 + $0x7e8] sm:$0xff]
    %v9202 = vld [vmem:[#allocation20 + $0x7f0] sm:$0xff]
    %v9203 = vld [vmem:[#allocation20 + $0x7f8] sm:$0xff]
    %v9204 = vld [vmem:[#allocation21] sm:$0xff]
    %v9205 = vld [vmem:[#allocation21 + $0x8] sm:$0xff]
    %v9206 = vld [vmem:[#allocation21 + $0x10] sm:$0xff]
    %v9207 = vld [vmem:[#allocation21 + $0x18] sm:$0xff]
    %v9208 = vld [vmem:[#allocation21 + $0x20] sm:$0xff]
    %v9209 = vld [vmem:[#allocation21 + $0x28] sm:$0xff]
    %v9210 = vld [vmem:[#allocation21 + $0x30] sm:$0xff]
    %v9211 = vld [vmem:[#allocation21 + $0x38] sm:$0xff]
    %v9220 = vunpack.c.l.b16 %v9204
    %v9221 = vunpack.c.h.b16 %v9204
    %v9222 = vunpack.c.l.b16 %v9205
    %v9223 = vunpack.c.h.b16 %v9205
    %v9224 = vunpack.c.l.b16 %v9206
    %v9225 = vunpack.c.h.b16 %v9206
    %v9226 = vunpack.c.l.b16 %v9207
    %v9227 = vunpack.c.h.b16 %v9207
    %v9228 = vunpack.c.l.b16 %v9208
    %v9229 = vunpack.c.h.b16 %v9208
    %v9230 = vunpack.c.l.b16 %v9209
    %v9231 = vunpack.c.h.b16 %v9209
    %v9232 = vunpack.c.l.b16 %v9210
    %v9233 = vunpack.c.h.b16 %v9210
    %v9234 = vunpack.c.l.b16 %v9211
    %v9235 = vunpack.c.h.b16 %v9211
    %v9236 = vpack.c.b16 %v9228, %v9220
    %v9237 = vpack.c.b16 %v9229, %v9221
    %v9238 = vpack.c.b16 %v9230, %v9222
    %v9239 = vpack.c.b16 %v9231, %v9223
    %v9240 = vpack.c.b16 %v9232, %v9224
    %v9241 = vpack.c.b16 %v9233, %v9225
    %v9242 = vpack.c.b16 %v9234, %v9226
    %v9243 = vpack.c.b16 %v9235, %v9227
    %v9253 = vsel %vm283, %v8943, 0
    %9255 = vmatprep.subr.bf16.mxu0 %v9237
    %9256 = vmatpush1.bf16.msra.mxu0 %v9236
    %9257 = vmatprep.subr.bf16.mxu0 0
    %9258 = vmatpush1.bf16.msra.mxu0 0
    %9259 = vmatprep.subr.bf16.mxu0 0
    %9260 = vmatpush1.bf16.msra.mxu0 0
    %9261 = vmatprep.subr.bf16.mxu0 0
    %9262 = vmatpush1.bf16.msra.mxu0 0
    %9263 = vmatprep.subr.bf16.mxu0 0
    %9264 = vmatpush1.bf16.msra.mxu0 0
    %9265 = vmatprep.subr.bf16.mxu0 0
    %9266 = vmatpush1.bf16.msra.mxu0 0
    %9267 = vmatprep.subr.bf16.mxu0 0
    %9268 = vmatpush1.bf16.msra.mxu0 0
    %9269 = vmatprep.subr.bf16.mxu0 0
    %9270 = vmatpush1.bf16.msra.mxu0 0
    %9271 = vmatprep.subr.bf16.mxu0 0
    %9272 = vmatpush1.bf16.msra.mxu0 0
    %9273 = vmatprep.subr.bf16.mxu0 0
    %9274 = vmatpush1.bf16.msra.mxu0 0
    %9275 = vmatprep.subr.bf16.mxu0 0
    %9276 = vmatpush1.bf16.msra.mxu0 0
    %9277 = vmatprep.subr.bf16.mxu0 0
    %9278 = vmatpush1.bf16.msra.mxu0 0
    %9279 = vmatprep.subr.bf16.mxu0 0
    %9280 = vmatpush1.bf16.msra.mxu0 0
    %9281 = vmatprep.subr.bf16.mxu0 0
    %9282 = vmatpush1.bf16.msra.mxu0 0
    %9283 = vmatprep.subr.bf16.mxu0 0
    %9284 = vmatpush1.bf16.msra.mxu0 0
    %9285 = vmatprep.subr.bf16.mxu0 0
    %9286 = vmatpush1.bf16.msra.mxu0 0
    %9287 = vmatprep.mubr.bf16.mxu0 0
    %9288 = vmatmul.mubr.bf16.gmra.mrb[0].mxu0 %v9253
    %v9289 = vpop.f32.mrb[0].mxu0
    %v9290 = vadd.f32 0.0, %v9289
    %v9291 = vpop.f32.mrb[0].mxu0
    %v9292 = vadd.f32 0.0, %v9291
    %v9293 = vpop.f32.mrb[0].mxu0
    %v9294 = vpop.f32.mrb[0].mxu0
    %9295 = vdwg.mxu0
    %9296 = vmatprep.subr.bf16.mxu0 %v9239
    %9297 = vmatpush1.bf16.msra.mxu0 %v9238
    %9298 = vmatprep.subr.bf16.mxu0 0
    %9299 = vmatpush1.bf16.msra.mxu0 0
    %9300 = vmatprep.subr.bf16.mxu0 0
    %9301 = vmatpush1.bf16.msra.mxu0 0
    %9302 = vmatprep.subr.bf16.mxu0 0
    %9303 = vmatpush1.bf16.msra.mxu0 0
    %9304 = vmatprep.subr.bf16.mxu0 0
    %9305 = vmatpush1.bf16.msra.mxu0 0
    %9306 = vmatprep.subr.bf16.mxu0 0
    %9307 = vmatpush1.bf16.msra.mxu0 0
    %9308 = vmatprep.subr.bf16.mxu0 0
    %9309 = vmatpush1.bf16.msra.mxu0 0
    %9310 = vmatprep.subr.bf16.mxu0 0
    %9311 = vmatpush1.bf16.msra.mxu0 0
    %9312 = vmatprep.subr.bf16.mxu0 0
    %9313 = vmatpush1.bf16.msra.mxu0 0
    %9314 = vmatprep.subr.bf16.mxu0 0
    %9315 = vmatpush1.bf16.msra.mxu0 0
    %9316 = vmatprep.subr.bf16.mxu0 0
    %9317 = vmatpush1.bf16.msra.mxu0 0
    %9318 = vmatprep.subr.bf16.mxu0 0
    %9319 = vmatpush1.bf16.msra.mxu0 0
    %9320 = vmatprep.subr.bf16.mxu0 0
    %9321 = vmatpush1.bf16.msra.mxu0 0
    %9322 = vmatprep.subr.bf16.mxu0 0
    %9323 = vmatpush1.bf16.msra.mxu0 0
    %9324 = vmatprep.subr.bf16.mxu0 0
    %9325 = vmatpush1.bf16.msra.mxu0 0
    %9326 = vmatprep.subr.bf16.mxu0 0
    %9327 = vmatpush1.bf16.msra.mxu0 0
    %9328 = vmatprep.mubr.bf16.mxu0 0
    %9329 = vmatmul.mubr.bf16.gmra.mrb[0].mxu0 %v9253
    %v9330 = vpop.f32.mrb[0].mxu0
    %v9331 = vadd.f32 0.0, %v9330
    %v9332 = vpop.f32.mrb[0].mxu0
    %v9333 = vadd.f32 0.0, %v9332
    %v9334 = vpop.f32.mrb[0].mxu0
    %v9335 = vpop.f32.mrb[0].mxu0
    %9336 = vdwg.mxu0
    %9337 = vmatprep.subr.bf16.mxu0 %v9241
    %9338 = vmatpush1.bf16.msra.mxu0 %v9240
    %9339 = vmatprep.subr.bf16.mxu0 0
    %9340 = vmatpush1.bf16.msra.mxu0 0
    %9341 = vmatprep.subr.bf16.mxu0 0
    %9342 = vmatpush1.bf16.msra.mxu0 0
    %9343 = vmatprep.subr.bf16.mxu0 0
    %9344 = vmatpush1.bf16.msra.mxu0 0
    %9345 = vmatprep.subr.bf16.mxu0 0
    %9346 = vmatpush1.bf16.msra.mxu0 0
    %9347 = vmatprep.subr.bf16.mxu0 0
    %9348 = vmatpush1.bf16.msra.mxu0 0
    %9349 = vmatprep.subr.bf16.mxu0 0
    %9350 = vmatpush1.bf16.msra.mxu0 0
    %9351 = vmatprep.subr.bf16.mxu0 0
    %9352 = vmatpush1.bf16.msra.mxu0 0
    %9353 = vmatprep.subr.bf16.mxu0 0
    %9354 = vmatpush1.bf16.msra.mxu0 0
    %9355 = vmatprep.subr.bf16.mxu0 0
    %9356 = vmatpush1.bf16.msra.mxu0 0
    %9357 = vmatprep.subr.bf16.mxu0 0
    %9358 = vmatpush1.bf16.msra.mxu0 0
    %9359 = vmatprep.subr.bf16.mxu0 0
    %9360 = vmatpush1.bf16.msra.mxu0 0
    %9361 = vmatprep.subr.bf16.mxu0 0
    %9362 = vmatpush1.bf16.msra.mxu0 0
    %9363 = vmatprep.subr.bf16.mxu0 0
    %9364 = vmatpush1.bf16.msra.mxu0 0
    %9365 = vmatprep.subr.bf16.mxu0 0
    %9366 = vmatpush1.bf16.msra.mxu0 0
    %9367 = vmatprep.subr.bf16.mxu0 0
    %9368 = vmatpush1.bf16.msra.mxu0 0
    %9369 = vmatprep.mubr.bf16.mxu0 0
    %9370 = vmatmul.mubr.bf16.gmra.mrb[0].mxu0 %v9253
    %v9371 = vpop.f32.mrb[0].mxu0
    %v9372 = vadd.f32 0.0, %v9371
    %v9373 = vpop.f32.mrb[0].mxu0
    %v9374 = vadd.f32 0.0, %v9373
    %v9375 = vpop.f32.mrb[0].mxu0
    %v9376 = vpop.f32.mrb[0].mxu0
    %9377 = vdwg.mxu0
    %9378 = vmatprep.subr.bf16.mxu0 %v9243
    %9379 = vmatpush1.bf16.msra.mxu0 %v9242
    %9380 = vmatprep.subr.bf16.mxu0 0
    %9381 = vmatpush1.bf16.msra.mxu0 0
    %9382 = vmatprep.subr.bf16.mxu0 0
    %9383 = vmatpush1.bf16.msra.mxu0 0
    %9384 = vmatprep.subr.bf16.mxu0 0
    %9385 = vmatpush1.bf16.msra.mxu0 0
    %9386 = vmatprep.subr.bf16.mxu0 0
    %9387 = vmatpush1.bf16.msra.mxu0 0
    %9388 = vmatprep.subr.bf16.mxu0 0
    %9389 = vmatpush1.bf16.msra.mxu0 0
    %9390 = vmatprep.subr.bf16.mxu0 0
    %9391 = vmatpush1.bf16.msra.mxu0 0
    %9392 = vmatprep.subr.bf16.mxu0 0
    %9393 = vmatpush1.bf16.msra.mxu0 0
    %9394 = vmatprep.subr.bf16.mxu0 0
    %9395 = vmatpush1.bf16.msra.mxu0 0
    %9396 = vmatprep.subr.bf16.mxu0 0
    %9397 = vmatpush1.bf16.msra.mxu0 0
    %9398 = vmatprep.subr.bf16.mxu0 0
    %9399 = vmatpush1.bf16.msra.mxu0 0
    %9400 = vmatprep.subr.bf16.mxu0 0
    %9401 = vmatpush1.bf16.msra.mxu0 0
    %9402 = vmatprep.subr.bf16.mxu0 0
    %9403 = vmatpush1.bf16.msra.mxu0 0
    %9404 = vmatprep.subr.bf16.mxu0 0
    %9405 = vmatpush1.bf16.msra.mxu0 0
    %9406 = vmatprep.subr.bf16.mxu0 0
    %9407 = vmatpush1.bf16.msra.mxu0 0
    %9408 = vmatprep.subr.bf16.mxu0 0
    %9409 = vmatpush1.bf16.msra.mxu0 0
    %9410 = vmatprep.mubr.bf16.mxu0 0
    %9411 = vmatmul.mubr.bf16.gmra.mrb[0].mxu0 %v9253
    %v9412 = vpop.f32.mrb[0].mxu0
    %v9413 = vadd.f32 0.0, %v9412
    %v9414 = vpop.f32.mrb[0].mxu0
    %v9415 = vadd.f32 0.0, %v9414
    %v9416 = vpop.f32.mrb[0].mxu0
    %v9417 = vpop.f32.mrb[0].mxu0
    %9418 = vdwg.mxu0
    %v9675 = vunpack.c.l.b16 %v8948
    %v9676 = vunpack.c.h.b16 %v8948
    %v9677 = vunpack.c.l.b16 %v8949
    %v9678 = vunpack.c.h.b16 %v8949
    %v9679 = vunpack.c.l.b16 %v8950
    %v9680 = vunpack.c.h.b16 %v8950
    %v9681 = vunpack.c.l.b16 %v8951
    %v9682 = vunpack.c.h.b16 %v8951
    %v9683 = vunpack.c.l.b16 %v8952
    %v9684 = vunpack.c.h.b16 %v8952
    %v9685 = vunpack.c.l.b16 %v8953
    %v9686 = vunpack.c.h.b16 %v8953
    %v9687 = vunpack.c.l.b16 %v8954
    %v9688 = vunpack.c.h.b16 %v8954
    %v9689 = vunpack.c.l.b16 %v8955
    %v9690 = vunpack.c.h.b16 %v8955
    %v9691 = vunpack.c.l.b16 %v8956
    %v9692 = vunpack.c.h.b16 %v8956
    %v9693 = vunpack.c.l.b16 %v8957
    %v9694 = vunpack.c.h.b16 %v8957
    %v9695 = vunpack.c.l.b16 %v8958
    %v9696 = vunpack.c.h.b16 %v8958
    %v9697 = vunpack.c.l.b16 %v8959
    %v9698 = vunpack.c.h.b16 %v8959
    %v9699 = vunpack.c.l.b16 %v8960
    %v9700 = vunpack.c.h.b16 %v8960
    %v9701 = vunpack.c.l.b16 %v8961
    %v9702 = vunpack.c.h.b16 %v8961
    %v9703 = vunpack.c.l.b16 %v8962
    %v9704 = vunpack.c.h.b16 %v8962
    %v9705 = vunpack.c.l.b16 %v8963
    %v9706 = vunpack.c.h.b16 %v8963
    %v9707 = vunpack.c.l.b16 %v8964
    %v9708 = vunpack.c.h.b16 %v8964
    %v9709 = vunpack.c.l.b16 %v8965
    %v9710 = vunpack.c.h.b16 %v8965
    %v9711 = vunpack.c.l.b16 %v8966
    %v9712 = vunpack.c.h.b16 %v8966
    %v9713 = vunpack.c.l.b16 %v8967
    %v9714 = vunpack.c.h.b16 %v8967
    %v9715 = vunpack.c.l.b16 %v8968
    %v9716 = vunpack.c.h.b16 %v8968
    %v9717 = vunpack.c.l.b16 %v8969
    %v9718 = vunpack.c.h.b16 %v8969
    %v9719 = vunpack.c.l.b16 %v8970
    %v9720 = vunpack.c.h.b16 %v8970
    %v9721 = vunpack.c.l.b16 %v8971
    %v9722 = vunpack.c.h.b16 %v8971
    %v9723 = vunpack.c.l.b16 %v8972
    %v9724 = vunpack.c.h.b16 %v8972
    %v9725 = vunpack.c.l.b16 %v8973
    %v9726 = vunpack.c.h.b16 %v8973
    %v9727 = vunpack.c.l.b16 %v8974
    %v9728 = vunpack.c.h.b16 %v8974
    %v9729 = vunpack.c.l.b16 %v8975
    %v9730 = vunpack.c.h.b16 %v8975
    %v9731 = vunpack.c.l.b16 %v8976
    %v9732 = vunpack.c.h.b16 %v8976
    %v9733 = vunpack.c.l.b16 %v8977
    %v9734 = vunpack.c.h.b16 %v8977
    %v9735 = vunpack.c.l.b16 %v8978
    %v9736 = vunpack.c.h.b16 %v8978
    %v9737 = vunpack.c.l.b16 %v8979
    %v9738 = vunpack.c.h.b16 %v8979
    %v9739 = vunpack.c.l.b16 %v8980
    %v9740 = vunpack.c.h.b16 %v8980
    %v9741 = vunpack.c.l.b16 %v8981
    %v9742 = vunpack.c.h.b16 %v8981
    %v9743 = vunpack.c.l.b16 %v8982
    %v9744 = vunpack.c.h.b16 %v8982
    %v9745 = vunpack.c.l.b16 %v8983
    %v9746 = vunpack.c.h.b16 %v8983
    %v9747 = vunpack.c.l.b16 %v8984
    %v9748 = vunpack.c.h.b16 %v8984
    %v9749 = vunpack.c.l.b16 %v8985
    %v9750 = vunpack.c.h.b16 %v8985
    %v9751 = vunpack.c.l.b16 %v8986
    %v9752 = vunpack.c.h.b16 %v8986
    %v9753 = vunpack.c.l.b16 %v8987
    %v9754 = vunpack.c.h.b16 %v8987
    %v9755 = vunpack.c.l.b16 %v8988
    %v9756 = vunpack.c.h.b16 %v8988
    %v9757 = vunpack.c.l.b16 %v8989
    %v9758 = vunpack.c.h.b16 %v8989
    %v9759 = vunpack.c.l.b16 %v8990
    %v9760 = vunpack.c.h.b16 %v8990
    %v9761 = vunpack.c.l.b16 %v8991
    %v9762 = vunpack.c.h.b16 %v8991
    %v9763 = vunpack.c.l.b16 %v8992
    %v9764 = vunpack.c.h.b16 %v8992
    %v9765 = vunpack.c.l.b16 %v8993
    %v9766 = vunpack.c.h.b16 %v8993
    %v9767 = vunpack.c.l.b16 %v8994
    %v9768 = vunpack.c.h.b16 %v8994
    %v9769 = vunpack.c.l.b16 %v8995
    %v9770 = vunpack.c.h.b16 %v8995
    %v9771 = vunpack.c.l.b16 %v8996
    %v9772 = vunpack.c.h.b16 %v8996
    %v9773 = vunpack.c.l.b16 %v8997
    %v9774 = vunpack.c.h.b16 %v8997
    %v9775 = vunpack.c.l.b16 %v8998
    %v9776 = vunpack.c.h.b16 %v8998
    %v9777 = vunpack.c.l.b16 %v8999
    %v9778 = vunpack.c.h.b16 %v8999
    %v9779 = vunpack.c.l.b16 %v9000
    %v9780 = vunpack.c.h.b16 %v9000
    %v9781 = vunpack.c.l.b16 %v9001
    %v9782 = vunpack.c.h.b16 %v9001
    %v9783 = vunpack.c.l.b16 %v9002
    %v9784 = vunpack.c.h.b16 %v9002
    %v9785 = vunpack.c.l.b16 %v9003
    %v9786 = vunpack.c.h.b16 %v9003
    %v9787 = vunpack.c.l.b16 %v9004
    %v9788 = vunpack.c.h.b16 %v9004
    %v9789 = vunpack.c.l.b16 %v9005
    %v9790 = vunpack.c.h.b16 %v9005
    %v9791 = vunpack.c.l.b16 %v9006
    %v9792 = vunpack.c.h.b16 %v9006
    %v9793 = vunpack.c.l.b16 %v9007
    %v9794 = vunpack.c.h.b16 %v9007
    %v9795 = vunpack.c.l.b16 %v9008
    %v9796 = vunpack.c.h.b16 %v9008
    %v9797 = vunpack.c.l.b16 %v9009
    %v9798 = vunpack.c.h.b16 %v9009
    %v9799 = vunpack.c.l.b16 %v9010
    %v9800 = vunpack.c.h.b16 %v9010
    %v9801 = vunpack.c.l.b16 %v9011
    %v9802 = vunpack.c.h.b16 %v9011
    %v9803 = vunpack.c.l.b16 %v9012
    %v9804 = vunpack.c.h.b16 %v9012
    %v9805 = vunpack.c.l.b16 %v9013
    %v9806 = vunpack.c.h.b16 %v9013
    %v9807 = vunpack.c.l.b16 %v9014
    %v9808 = vunpack.c.h.b16 %v9014
    %v9809 = vunpack.c.l.b16 %v9015
    %v9810 = vunpack.c.h.b16 %v9015
    %v9811 = vunpack.c.l.b16 %v9016
    %v9812 = vunpack.c.h.b16 %v9016
    %v9813 = vunpack.c.l.b16 %v9017
    %v9814 = vunpack.c.h.b16 %v9017
    %v9815 = vunpack.c.l.b16 %v9018
    %v9816 = vunpack.c.h.b16 %v9018
    %v9817 = vunpack.c.l.b16 %v9019
    %v9818 = vunpack.c.h.b16 %v9019
    %v9819 = vunpack.c.l.b16 %v9020
    %v9820 = vunpack.c.h.b16 %v9020
    %v9821 = vunpack.c.l.b16 %v9021
    %v9822 = vunpack.c.h.b16 %v9021
    %v9823 = vunpack.c.l.b16 %v9022
    %v9824 = vunpack.c.h.b16 %v9022
    %v9825 = vunpack.c.l.b16 %v9023
    %v9826 = vunpack.c.h.b16 %v9023
    %v9827 = vunpack.c.l.b16 %v9024
    %v9828 = vunpack.c.h.b16 %v9024
    %v9829 = vunpack.c.l.b16 %v9025
    %v9830 = vunpack.c.h.b16 %v9025
    %v9831 = vunpack.c.l.b16 %v9026
    %v9832 = vunpack.c.h.b16 %v9026
    %v9833 = vunpack.c.l.b16 %v9027
    %v9834 = vunpack.c.h.b16 %v9027
    %v9835 = vunpack.c.l.b16 %v9028
    %v9836 = vunpack.c.h.b16 %v9028
    %v9837 = vunpack.c.l.b16 %v9029
    %v9838 = vunpack.c.h.b16 %v9029
    %v9839 = vunpack.c.l.b16 %v9030
    %v9840 = vunpack.c.h.b16 %v9030
    %v9841 = vunpack.c.l.b16 %v9031
    %v9842 = vunpack.c.h.b16 %v9031
    %v9843 = vunpack.c.l.b16 %v9032
    %v9844 = vunpack.c.h.b16 %v9032
    %v9845 = vunpack.c.l.b16 %v9033
    %v9846 = vunpack.c.h.b16 %v9033
    %v9847 = vunpack.c.l.b16 %v9034
    %v9848 = vunpack.c.h.b16 %v9034
    %v9849 = vunpack.c.l.b16 %v9035
    %v9850 = vunpack.c.h.b16 %v9035
    %v9851 = vunpack.c.l.b16 %v9036
    %v9852 = vunpack.c.h.b16 %v9036
    %v9853 = vunpack.c.l.b16 %v9037
    %v9854 = vunpack.c.h.b16 %v9037
    %v9855 = vunpack.c.l.b16 %v9038
    %v9856 = vunpack.c.h.b16 %v9038
    %v9857 = vunpack.c.l.b16 %v9039
    %v9858 = vunpack.c.h.b16 %v9039
    %v9859 = vunpack.c.l.b16 %v9040
    %v9860 = vunpack.c.h.b16 %v9040
    %v9861 = vunpack.c.l.b16 %v9041
    %v9862 = vunpack.c.h.b16 %v9041
    %v9863 = vunpack.c.l.b16 %v9042
    %v9864 = vunpack.c.h.b16 %v9042
    %v9865 = vunpack.c.l.b16 %v9043
    %v9866 = vunpack.c.h.b16 %v9043
    %v9867 = vunpack.c.l.b16 %v9044
    %v9868 = vunpack.c.h.b16 %v9044
    %v9869 = vunpack.c.l.b16 %v9045
    %v9870 = vunpack.c.h.b16 %v9045
    %v9871 = vunpack.c.l.b16 %v9046
    %v9872 = vunpack.c.h.b16 %v9046
    %v9873 = vunpack.c.l.b16 %v9047
    %v9874 = vunpack.c.h.b16 %v9047
    %v9875 = vunpack.c.l.b16 %v9048
    %v9876 = vunpack.c.h.b16 %v9048
    %v9877 = vunpack.c.l.b16 %v9049
    %v9878 = vunpack.c.h.b16 %v9049
    %v9879 = vunpack.c.l.b16 %v9050
    %v9880 = vunpack.c.h.b16 %v9050
    %v9881 = vunpack.c.l.b16 %v9051
    %v9882 = vunpack.c.h.b16 %v9051
    %v9883 = vunpack.c.l.b16 %v9052
    %v9884 = vunpack.c.h.b16 %v9052
    %v9885 = vunpack.c.l.b16 %v9053
    %v9886 = vunpack.c.h.b16 %v9053
    %v9887 = vunpack.c.l.b16 %v9054
    %v9888 = vunpack.c.h.b16 %v9054
    %v9889 = vunpack.c.l.b16 %v9055
    %v9890 = vunpack.c.h.b16 %v9055
    %v9891 = vunpack.c.l.b16 %v9056
    %v9892 = vunpack.c.h.b16 %v9056
    %v9893 = vunpack.c.l.b16 %v9057
    %v9894 = vunpack.c.h.b16 %v9057
    %v9895 = vunpack.c.l.b16 %v9058
    %v9896 = vunpack.c.h.b16 %v9058
    %v9897 = vunpack.c.l.b16 %v9059
    %v9898 = vunpack.c.h.b16 %v9059
    %v9899 = vunpack.c.l.b16 %v9060
    %v9900 = vunpack.c.h.b16 %v9060
    %v9901 = vunpack.c.l.b16 %v9061
    %v9902 = vunpack.c.h.b16 %v9061
    %v9903 = vunpack.c.l.b16 %v9062
    %v9904 = vunpack.c.h.b16 %v9062
    %v9905 = vunpack.c.l.b16 %v9063
    %v9906 = vunpack.c.h.b16 %v9063
    %v9907 = vunpack.c.l.b16 %v9064
    %v9908 = vunpack.c.h.b16 %v9064
    %v9909 = vunpack.c.l.b16 %v9065
    %v9910 = vunpack.c.h.b16 %v9065
    %v9911 = vunpack.c.l.b16 %v9066
    %v9912 = vunpack.c.h.b16 %v9066
    %v9913 = vunpack.c.l.b16 %v9067
    %v9914 = vunpack.c.h.b16 %v9067
    %v9915 = vunpack.c.l.b16 %v9068
    %v9916 = vunpack.c.h.b16 %v9068
    %v9917 = vunpack.c.l.b16 %v9069
    %v9918 = vunpack.c.h.b16 %v9069
    %v9919 = vunpack.c.l.b16 %v9070
    %v9920 = vunpack.c.h.b16 %v9070
    %v9921 = vunpack.c.l.b16 %v9071
    %v9922 = vunpack.c.h.b16 %v9071
    %v9923 = vunpack.c.l.b16 %v9072
    %v9924 = vunpack.c.h.b16 %v9072
    %v9925 = vunpack.c.l.b16 %v9073
    %v9926 = vunpack.c.h.b16 %v9073
    %v9927 = vunpack.c.l.b16 %v9074
    %v9928 = vunpack.c.h.b16 %v9074
    %v9929 = vunpack.c.l.b16 %v9075
    %v9930 = vunpack.c.h.b16 %v9075
    %v9931 = vunpack.c.l.b16 %v9076
    %v9932 = vunpack.c.h.b16 %v9076
    %v9933 = vunpack.c.l.b16 %v9077
    %v9934 = vunpack.c.h.b16 %v9077
    %v9935 = vunpack.c.l.b16 %v9078
    %v9936 = vunpack.c.h.b16 %v9078
    %v9937 = vunpack.c.l.b16 %v9079
    %v9938 = vunpack.c.h.b16 %v9079
    %v9939 = vunpack.c.l.b16 %v9080
    %v9940 = vunpack.c.h.b16 %v9080
    %v9941 = vunpack.c.l.b16 %v9081
    %v9942 = vunpack.c.h.b16 %v9081
    %v9943 = vunpack.c.l.b16 %v9082
    %v9944 = vunpack.c.h.b16 %v9082
    %v9945 = vunpack.c.l.b16 %v9083
    %v9946 = vunpack.c.h.b16 %v9083
    %v9947 = vunpack.c.l.b16 %v9084
    %v9948 = vunpack.c.h.b16 %v9084
    %v9949 = vunpack.c.l.b16 %v9085
    %v9950 = vunpack.c.h.b16 %v9085
    %v9951 = vunpack.c.l.b16 %v9086
    %v9952 = vunpack.c.h.b16 %v9086
    %v9953 = vunpack.c.l.b16 %v9087
    %v9954 = vunpack.c.h.b16 %v9087
    %v9955 = vunpack.c.l.b16 %v9088
    %v9956 = vunpack.c.h.b16 %v9088
    %v9957 = vunpack.c.l.b16 %v9089
    %v9958 = vunpack.c.h.b16 %v9089
    %v9959 = vunpack.c.l.b16 %v9090
    %v9960 = vunpack.c.h.b16 %v9090
    %v9961 = vunpack.c.l.b16 %v9091
    %v9962 = vunpack.c.h.b16 %v9091
    %v9963 = vunpack.c.l.b16 %v9092
    %v9964 = vunpack.c.h.b16 %v9092
    %v9965 = vunpack.c.l.b16 %v9093
    %v9966 = vunpack.c.h.b16 %v9093
    %v9967 = vunpack.c.l.b16 %v9094
    %v9968 = vunpack.c.h.b16 %v9094
    %v9969 = vunpack.c.l.b16 %v9095
    %v9970 = vunpack.c.h.b16 %v9095
    %v9971 = vunpack.c.l.b16 %v9096
    %v9972 = vunpack.c.h.b16 %v9096
    %v9973 = vunpack.c.l.b16 %v9097
    %v9974 = vunpack.c.h.b16 %v9097
    %v9975 = vunpack.c.l.b16 %v9098
    %v9976 = vunpack.c.h.b16 %v9098
    %v9977 = vunpack.c.l.b16 %v9099
    %v9978 = vunpack.c.h.b16 %v9099
    %v9979 = vunpack.c.l.b16 %v9100
    %v9980 = vunpack.c.h.b16 %v9100
    %v9981 = vunpack.c.l.b16 %v9101
    %v9982 = vunpack.c.h.b16 %v9101
    %v9983 = vunpack.c.l.b16 %v9102
    %v9984 = vunpack.c.h.b16 %v9102
    %v9985 = vunpack.c.l.b16 %v9103
    %v9986 = vunpack.c.h.b16 %v9103
    %v9987 = vunpack.c.l.b16 %v9104
    %v9988 = vunpack.c.h.b16 %v9104
    %v9989 = vunpack.c.l.b16 %v9105
    %v9990 = vunpack.c.h.b16 %v9105
    %v9991 = vunpack.c.l.b16 %v9106
    %v9992 = vunpack.c.h.b16 %v9106
    %v9993 = vunpack.c.l.b16 %v9107
    %v9994 = vunpack.c.h.b16 %v9107
    %v9995 = vunpack.c.l.b16 %v9108
    %v9996 = vunpack.c.h.b16 %v9108
    %v9997 = vunpack.c.l.b16 %v9109
    %v9998 = vunpack.c.h.b16 %v9109
    %v9999 = vunpack.c.l.b16 %v9110
    %v10000 = vunpack.c.h.b16 %v9110
    %v10001 = vunpack.c.l.b16 %v9111
    %v10002 = vunpack.c.h.b16 %v9111
    %v10003 = vunpack.c.l.b16 %v9112
    %v10004 = vunpack.c.h.b16 %v9112
    %v10005 = vunpack.c.l.b16 %v9113
    %v10006 = vunpack.c.h.b16 %v9113
    %v10007 = vunpack.c.l.b16 %v9114
    %v10008 = vunpack.c.h.b16 %v9114
    %v10009 = vunpack.c.l.b16 %v9115
    %v10010 = vunpack.c.h.b16 %v9115
    %v10011 = vunpack.c.l.b16 %v9116
    %v10012 = vunpack.c.h.b16 %v9116
    %v10013 = vunpack.c.l.b16 %v9117
    %v10014 = vunpack.c.h.b16 %v9117
    %v10015 = vunpack.c.l.b16 %v9118
    %v10016 = vunpack.c.h.b16 %v9118
    %v10017 = vunpack.c.l.b16 %v9119
    %v10018 = vunpack.c.h.b16 %v9119
    %v10019 = vunpack.c.l.b16 %v9120
    %v10020 = vunpack.c.h.b16 %v9120
    %v10021 = vunpack.c.l.b16 %v9121
    %v10022 = vunpack.c.h.b16 %v9121
    %v10023 = vunpack.c.l.b16 %v9122
    %v10024 = vunpack.c.h.b16 %v9122
    %v10025 = vunpack.c.l.b16 %v9123
    %v10026 = vunpack.c.h.b16 %v9123
    %v10027 = vunpack.c.l.b16 %v9124
    %v10028 = vunpack.c.h.b16 %v9124
    %v10029 = vunpack.c.l.b16 %v9125
    %v10030 = vunpack.c.h.b16 %v9125
    %v10031 = vunpack.c.l.b16 %v9126
    %v10032 = vunpack.c.h.b16 %v9126
    %v10033 = vunpack.c.l.b16 %v9127
    %v10034 = vunpack.c.h.b16 %v9127
    %v10035 = vunpack.c.l.b16 %v9128
    %v10036 = vunpack.c.h.b16 %v9128
    %v10037 = vunpack.c.l.b16 %v9129
    %v10038 = vunpack.c.h.b16 %v9129
    %v10039 = vunpack.c.l.b16 %v9130
    %v10040 = vunpack.c.h.b16 %v9130
    %v10041 = vunpack.c.l.b16 %v9131
    %v10042 = vunpack.c.h.b16 %v9131
    %v10043 = vunpack.c.l.b16 %v9132
    %v10044 = vunpack.c.h.b16 %v9132
    %v10045 = vunpack.c.l.b16 %v9133
    %v10046 = vunpack.c.h.b16 %v9133
    %v10047 = vunpack.c.l.b16 %v9134
    %v10048 = vunpack.c.h.b16 %v9134
    %v10049 = vunpack.c.l.b16 %v9135
    %v10050 = vunpack.c.h.b16 %v9135
    %v10051 = vunpack.c.l.b16 %v9136
    %v10052 = vunpack.c.h.b16 %v9136
    %v10053 = vunpack.c.l.b16 %v9137
    %v10054 = vunpack.c.h.b16 %v9137
    %v10055 = vunpack.c.l.b16 %v9138
    %v10056 = vunpack.c.h.b16 %v9138
    %v10057 = vunpack.c.l.b16 %v9139
    %v10058 = vunpack.c.h.b16 %v9139
    %v10059 = vunpack.c.l.b16 %v9140
    %v10060 = vunpack.c.h.b16 %v9140
    %v10061 = vunpack.c.l.b16 %v9141
    %v10062 = vunpack.c.h.b16 %v9141
    %v10063 = vunpack.c.l.b16 %v9142
    %v10064 = vunpack.c.h.b16 %v9142
    %v10065 = vunpack.c.l.b16 %v9143
    %v10066 = vunpack.c.h.b16 %v9143
    %v10067 = vunpack.c.l.b16 %v9144
    %v10068 = vunpack.c.h.b16 %v9144
    %v10069 = vunpack.c.l.b16 %v9145
    %v10070 = vunpack.c.h.b16 %v9145
    %v10071 = vunpack.c.l.b16 %v9146
    %v10072 = vunpack.c.h.b16 %v9146
    %v10073 = vunpack.c.l.b16 %v9147
    %v10074 = vunpack.c.h.b16 %v9147
    %v10075 = vunpack.c.l.b16 %v9148
    %v10076 = vunpack.c.h.b16 %v9148
    %v10077 = vunpack.c.l.b16 %v9149
    %v10078 = vunpack.c.h.b16 %v9149
    %v10079 = vunpack.c.l.b16 %v9150
    %v10080 = vunpack.c.h.b16 %v9150
    %v10081 = vunpack.c.l.b16 %v9151
    %v10082 = vunpack.c.h.b16 %v9151
    %v10083 = vunpack.c.l.b16 %v9152
    %v10084 = vunpack.c.h.b16 %v9152
    %v10085 = vunpack.c.l.b16 %v9153
    %v10086 = vunpack.c.h.b16 %v9153
    %v10087 = vunpack.c.l.b16 %v9154
    %v10088 = vunpack.c.h.b16 %v9154
    %v10089 = vunpack.c.l.b16 %v9155
    %v10090 = vunpack.c.h.b16 %v9155
    %v10091 = vunpack.c.l.b16 %v9156
    %v10092 = vunpack.c.h.b16 %v9156
    %v10093 = vunpack.c.l.b16 %v9157
    %v10094 = vunpack.c.h.b16 %v9157
    %v10095 = vunpack.c.l.b16 %v9158
    %v10096 = vunpack.c.h.b16 %v9158
    %v10097 = vunpack.c.l.b16 %v9159
    %v10098 = vunpack.c.h.b16 %v9159
    %v10099 = vunpack.c.l.b16 %v9160
    %v10100 = vunpack.c.h.b16 %v9160
    %v10101 = vunpack.c.l.b16 %v9161
    %v10102 = vunpack.c.h.b16 %v9161
    %v10103 = vunpack.c.l.b16 %v9162
    %v10104 = vunpack.c.h.b16 %v9162
    %v10105 = vunpack.c.l.b16 %v9163
    %v10106 = vunpack.c.h.b16 %v9163
    %v10107 = vunpack.c.l.b16 %v9164
    %v10108 = vunpack.c.h.b16 %v9164
    %v10109 = vunpack.c.l.b16 %v9165
    %v10110 = vunpack.c.h.b16 %v9165
    %v10111 = vunpack.c.l.b16 %v9166
    %v10112 = vunpack.c.h.b16 %v9166
    %v10113 = vunpack.c.l.b16 %v9167
    %v10114 = vunpack.c.h.b16 %v9167
    %v10115 = vunpack.c.l.b16 %v9168
    %v10116 = vunpack.c.h.b16 %v9168
    %v10117 = vunpack.c.l.b16 %v9169
    %v10118 = vunpack.c.h.b16 %v9169
    %v10119 = vunpack.c.l.b16 %v9170
    %v10120 = vunpack.c.h.b16 %v9170
    %v10121 = vunpack.c.l.b16 %v9171
    %v10122 = vunpack.c.h.b16 %v9171
    %v10123 = vunpack.c.l.b16 %v9172
    %v10124 = vunpack.c.h.b16 %v9172
    %v10125 = vunpack.c.l.b16 %v9173
    %v10126 = vunpack.c.h.b16 %v9173
    %v10127 = vunpack.c.l.b16 %v9174
    %v10128 = vunpack.c.h.b16 %v9174
    %v10129 = vunpack.c.l.b16 %v9175
    %v10130 = vunpack.c.h.b16 %v9175
    %v10131 = vunpack.c.l.b16 %v9176
    %v10132 = vunpack.c.h.b16 %v9176
    %v10133 = vunpack.c.l.b16 %v9177
    %v10134 = vunpack.c.h.b16 %v9177
    %v10135 = vunpack.c.l.b16 %v9178
    %v10136 = vunpack.c.h.b16 %v9178
    %v10137 = vunpack.c.l.b16 %v9179
    %v10138 = vunpack.c.h.b16 %v9179
    %v10139 = vunpack.c.l.b16 %v9180
    %v10140 = vunpack.c.h.b16 %v9180
    %v10141 = vunpack.c.l.b16 %v9181
    %v10142 = vunpack.c.h.b16 %v9181
    %v10143 = vunpack.c.l.b16 %v9182
    %v10144 = vunpack.c.h.b16 %v9182
    %v10145 = vunpack.c.l.b16 %v9183
    %v10146 = vunpack.c.h.b16 %v9183
    %v10147 = vunpack.c.l.b16 %v9184
    %v10148 = vunpack.c.h.b16 %v9184
    %v10149 = vunpack.c.l.b16 %v9185
    %v10150 = vunpack.c.h.b16 %v9185
    %v10151 = vunpack.c.l.b16 %v9186
    %v10152 = vunpack.c.h.b16 %v9186
    %v10153 = vunpack.c.l.b16 %v9187
    %v10154 = vunpack.c.h.b16 %v9187
    %v10155 = vunpack.c.l.b16 %v9188
    %v10156 = vunpack.c.h.b16 %v9188
    %v10157 = vunpack.c.l.b16 %v9189
    %v10158 = vunpack.c.h.b16 %v9189
    %v10159 = vunpack.c.l.b16 %v9190
    %v10160 = vunpack.c.h.b16 %v9190
    %v10161 = vunpack.c.l.b16 %v9191
    %v10162 = vunpack.c.h.b16 %v9191
    %v10163 = vunpack.c.l.b16 %v9192
    %v10164 = vunpack.c.h.b16 %v9192
    %v10165 = vunpack.c.l.b16 %v9193
    %v10166 = vunpack.c.h.b16 %v9193
    %v10167 = vunpack.c.l.b16 %v9194
    %v10168 = vunpack.c.h.b16 %v9194
    %v10169 = vunpack.c.l.b16 %v9195
    %v10170 = vunpack.c.h.b16 %v9195
    %v10171 = vunpack.c.l.b16 %v9196
    %v10172 = vunpack.c.h.b16 %v9196
    %v10173 = vunpack.c.l.b16 %v9197
    %v10174 = vunpack.c.h.b16 %v9197
    %v10175 = vunpack.c.l.b16 %v9198
    %v10176 = vunpack.c.h.b16 %v9198
    %v10177 = vunpack.c.l.b16 %v9199
    %v10178 = vunpack.c.h.b16 %v9199
    %v10179 = vunpack.c.l.b16 %v9200
    %v10180 = vunpack.c.h.b16 %v9200
    %v10181 = vunpack.c.l.b16 %v9201
    %v10182 = vunpack.c.h.b16 %v9201
    %v10183 = vunpack.c.l.b16 %v9202
    %v10184 = vunpack.c.h.b16 %v9202
    %v10185 = vunpack.c.l.b16 %v9203
    %v10186 = vunpack.c.h.b16 %v9203
    %v10187 = vpack.c.b16 %v9683, %v9675
    %v10188 = vpack.c.b16 %v9684, %v9676
    %v10189 = vpack.c.b16 %v9685, %v9677
    %v10190 = vpack.c.b16 %v9686, %v9678
    %v10191 = vpack.c.b16 %v9687, %v9679
    %v10192 = vpack.c.b16 %v9688, %v9680
    %v10193 = vpack.c.b16 %v9689, %v9681
    %v10194 = vpack.c.b16 %v9690, %v9682
    %v10195 = vpack.c.b16 %v9699, %v9691
    %v10196 = vpack.c.b16 %v9700, %v9692
    %v10197 = vpack.c.b16 %v9701, %v9693
    %v10198 = vpack.c.b16 %v9702, %v9694
    %v10199 = vpack.c.b16 %v9703, %v9695
    %v10200 = vpack.c.b16 %v9704, %v9696
    %v10201 = vpack.c.b16 %v9705, %v9697
    %v10202 = vpack.c.b16 %v9706, %v9698
    %v10203 = vpack.c.b16 %v9715, %v9707
    %v10204 = vpack.c.b16 %v9716, %v9708
    %v10205 = vpack.c.b16 %v9717, %v9709
    %v10206 = vpack.c.b16 %v9718, %v9710
    %v10207 = vpack.c.b16 %v9719, %v9711
    %v10208 = vpack.c.b16 %v9720, %v9712
    %v10209 = vpack.c.b16 %v9721, %v9713
    %v10210 = vpack.c.b16 %v9722, %v9714
    %v10211 = vpack.c.b16 %v9731, %v9723
    %v10212 = vpack.c.b16 %v9732, %v9724
    %v10213 = vpack.c.b16 %v9733, %v9725
    %v10214 = vpack.c.b16 %v9734, %v9726
    %v10215 = vpack.c.b16 %v9735, %v9727
    %v10216 = vpack.c.b16 %v9736, %v9728
    %v10217 = vpack.c.b16 %v9737, %v9729
    %v10218 = vpack.c.b16 %v9738, %v9730
    %v10219 = vpack.c.b16 %v9747, %v9739
    %v10220 = vpack.c.b16 %v9748, %v9740
    %v10221 = vpack.c.b16 %v9749, %v9741
    %v10222 = vpack.c.b16 %v9750, %v9742
    %v10223 = vpack.c.b16 %v9751, %v9743
    %v10224 = vpack.c.b16 %v9752, %v9744
    %v10225 = vpack.c.b16 %v9753, %v9745
    %v10226 = vpack.c.b16 %v9754, %v9746
    %v10227 = vpack.c.b16 %v9763, %v9755
    %v10228 = vpack.c.b16 %v9764, %v9756
    %v10229 = vpack.c.b16 %v9765, %v9757
    %v10230 = vpack.c.b16 %v9766, %v9758
    %v10231 = vpack.c.b16 %v9767, %v9759
    %v10232 = vpack.c.b16 %v9768, %v9760
    %v10233 = vpack.c.b16 %v9769, %v9761
    %v10234 = vpack.c.b16 %v9770, %v9762
    %v10235 = vpack.c.b16 %v9779, %v9771
    %v10236 = vpack.c.b16 %v9780, %v9772
    %v10237 = vpack.c.b16 %v9781, %v9773
    %v10238 = vpack.c.b16 %v9782, %v9774
    %v10239 = vpack.c.b16 %v9783, %v9775
    %v10240 = vpack.c.b16 %v9784, %v9776
    %v10241 = vpack.c.b16 %v9785, %v9777
    %v10242 = vpack.c.b16 %v9786, %v9778
    %v10243 = vpack.c.b16 %v9795, %v9787
    %v10244 = vpack.c.b16 %v9796, %v9788
    %v10245 = vpack.c.b16 %v9797, %v9789
    %v10246 = vpack.c.b16 %v9798, %v9790
    %v10247 = vpack.c.b16 %v9799, %v9791
    %v10248 = vpack.c.b16 %v9800, %v9792
    %v10249 = vpack.c.b16 %v9801, %v9793
    %v10250 = vpack.c.b16 %v9802, %v9794
    %v10251 = vpack.c.b16 %v9811, %v9803
    %v10252 = vpack.c.b16 %v9812, %v9804
    %v10253 = vpack.c.b16 %v9813, %v9805
    %v10254 = vpack.c.b16 %v9814, %v9806
    %v10255 = vpack.c.b16 %v9815, %v9807
    %v10256 = vpack.c.b16 %v9816, %v9808
    %v10257 = vpack.c.b16 %v9817, %v9809
    %v10258 = vpack.c.b16 %v9818, %v9810
    %v10259 = vpack.c.b16 %v9827, %v9819
    %v10260 = vpack.c.b16 %v9828, %v9820
    %v10261 = vpack.c.b16 %v9829, %v9821
    %v10262 = vpack.c.b16 %v9830, %v9822
    %v10263 = vpack.c.b16 %v9831, %v9823
    %v10264 = vpack.c.b16 %v9832, %v9824
    %v10265 = vpack.c.b16 %v9833, %v9825
    %v10266 = vpack.c.b16 %v9834, %v9826
    %v10267 = vpack.c.b16 %v9843, %v9835
    %v10268 = vpack.c.b16 %v9844, %v9836
    %v10269 = vpack.c.b16 %v9845, %v9837
    %v10270 = vpack.c.b16 %v9846, %v9838
    %v10271 = vpack.c.b16 %v9847, %v9839
    %v10272 = vpack.c.b16 %v9848, %v9840
    %v10273 = vpack.c.b16 %v9849, %v9841
    %v10274 = vpack.c.b16 %v9850, %v9842
    %v10275 = vpack.c.b16 %v9859, %v9851
    %v10276 = vpack.c.b16 %v9860, %v9852
    %v10277 = vpack.c.b16 %v9861, %v9853
    %v10278 = vpack.c.b16 %v9862, %v9854
    %v10279 = vpack.c.b16 %v9863, %v9855
    %v10280 = vpack.c.b16 %v9864, %v9856
    %v10281 = vpack.c.b16 %v9865, %v9857
    %v10282 = vpack.c.b16 %v9866, %v9858
    %v10283 = vpack.c.b16 %v9875, %v9867
    %v10284 = vpack.c.b16 %v9876, %v9868
    %v10285 = vpack.c.b16 %v9877, %v9869
    %v10286 = vpack.c.b16 %v9878, %v9870
    %v10287 = vpack.c.b16 %v9879, %v9871
    %v10288 = vpack.c.b16 %v9880, %v9872
    %v10289 = vpack.c.b16 %v9881, %v9873
    %v10290 = vpack.c.b16 %v9882, %v9874
    %v10291 = vpack.c.b16 %v9891, %v9883
    %v10292 = vpack.c.b16 %v9892, %v9884
    %v10293 = vpack.c.b16 %v9893, %v9885
    %v10294 = vpack.c.b16 %v9894, %v9886
    %v10295 = vpack.c.b16 %v9895, %v9887
    %v10296 = vpack.c.b16 %v9896, %v9888
    %v10297 = vpack.c.b16 %v9897, %v9889
    %v10298 = vpack.c.b16 %v9898, %v9890
    %v10299 = vpack.c.b16 %v9907, %v9899
    %v10300 = vpack.c.b16 %v9908, %v9900
    %v10301 = vpack.c.b16 %v9909, %v9901
    %v10302 = vpack.c.b16 %v9910, %v9902
    %v10303 = vpack.c.b16 %v9911, %v9903
    %v10304 = vpack.c.b16 %v9912, %v9904
    %v10305 = vpack.c.b16 %v9913, %v9905
    %v10306 = vpack.c.b16 %v9914, %v9906
    %v10307 = vpack.c.b16 %v9923, %v9915
    %v10308 = vpack.c.b16 %v9924, %v9916
    %v10309 = vpack.c.b16 %v9925, %v9917
    %v10310 = vpack.c.b16 %v9926, %v9918
    %v10311 = vpack.c.b16 %v9927, %v9919
    %v10312 = vpack.c.b16 %v9928, %v9920
    %v10313 = vpack.c.b16 %v9929, %v9921
    %v10314 = vpack.c.b16 %v9930, %v9922
    %v10315 = vpack.c.b16 %v9939, %v9931
    %v10316 = vpack.c.b16 %v9940, %v9932
    %v10317 = vpack.c.b16 %v9941, %v9933
    %v10318 = vpack.c.b16 %v9942, %v9934
    %v10319 = vpack.c.b16 %v9943, %v9935
    %v10320 = vpack.c.b16 %v9944, %v9936
    %v10321 = vpack.c.b16 %v9945, %v9937
    %v10322 = vpack.c.b16 %v9946, %v9938
    %v10323 = vpack.c.b16 %v9955, %v9947
    %v10324 = vpack.c.b16 %v9956, %v9948
    %v10325 = vpack.c.b16 %v9957, %v9949
    %v10326 = vpack.c.b16 %v9958, %v9950
    %v10327 = vpack.c.b16 %v9959, %v9951
    %v10328 = vpack.c.b16 %v9960, %v9952
    %v10329 = vpack.c.b16 %v9961, %v9953
    %v10330 = vpack.c.b16 %v9962, %v9954
    %v10331 = vpack.c.b16 %v9971, %v9963
    %v10332 = vpack.c.b16 %v9972, %v9964
    %v10333 = vpack.c.b16 %v9973, %v9965
    %v10334 = vpack.c.b16 %v9974, %v9966
    %v10335 = vpack.c.b16 %v9975, %v9967
    %v10336 = vpack.c.b16 %v9976, %v9968
    %v10337 = vpack.c.b16 %v9977, %v9969
    %v10338 = vpack.c.b16 %v9978, %v9970
    %v10339 = vpack.c.b16 %v9987, %v9979
    %v10340 = vpack.c.b16 %v9988, %v9980
    %v10341 = vpack.c.b16 %v9989, %v9981
    %v10342 = vpack.c.b16 %v9990, %v9982
    %v10343 = vpack.c.b16 %v9991, %v9983
    %v10344 = vpack.c.b16 %v9992, %v9984
    %v10345 = vpack.c.b16 %v9993, %v9985
    %v10346 = vpack.c.b16 %v9994, %v9986
    %v10347 = vpack.c.b16 %v10003, %v9995
    %v10348 = vpack.c.b16 %v10004, %v9996
    %v10349 = vpack.c.b16 %v10005, %v9997
    %v10350 = vpack.c.b16 %v10006, %v9998
    %v10351 = vpack.c.b16 %v10007, %v9999
    %v10352 = vpack.c.b16 %v10008, %v10000
    %v10353 = vpack.c.b16 %v10009, %v10001
    %v10354 = vpack.c.b16 %v10010, %v10002
    %v10355 = vpack.c.b16 %v10019, %v10011
    %v10356 = vpack.c.b16 %v10020, %v10012
    %v10357 = vpack.c.b16 %v10021, %v10013
    %v10358 = vpack.c.b16 %v10022, %v10014
    %v10359 = vpack.c.b16 %v10023, %v10015
    %v10360 = vpack.c.b16 %v10024, %v10016
    %v10361 = vpack.c.b16 %v10025, %v10017
    %v10362 = vpack.c.b16 %v10026, %v10018
    %v10363 = vpack.c.b16 %v10035, %v10027
    %v10364 = vpack.c.b16 %v10036, %v10028
    %v10365 = vpack.c.b16 %v10037, %v10029
    %v10366 = vpack.c.b16 %v10038, %v10030
    %v10367 = vpack.c.b16 %v10039, %v10031
    %v10368 = vpack.c.b16 %v10040, %v10032
    %v10369 = vpack.c.b16 %v10041, %v10033
    %v10370 = vpack.c.b16 %v10042, %v10034
    %v10371 = vpack.c.b16 %v10051, %v10043
    %v10372 = vpack.c.b16 %v10052, %v10044
    %v10373 = vpack.c.b16 %v10053, %v10045
    %v10374 = vpack.c.b16 %v10054, %v10046
    %v10375 = vpack.c.b16 %v10055, %v10047
    %v10376 = vpack.c.b16 %v10056, %v10048
    %v10377 = vpack.c.b16 %v10057, %v10049
    %v10378 = vpack.c.b16 %v10058, %v10050
    %v10379 = vpack.c.b16 %v10067, %v10059
    %v10380 = vpack.c.b16 %v10068, %v10060
    %v10381 = vpack.c.b16 %v10069, %v10061
    %v10382 = vpack.c.b16 %v10070, %v10062
    %v10383 = vpack.c.b16 %v10071, %v10063
    %v10384 = vpack.c.b16 %v10072, %v10064
    %v10385 = vpack.c.b16 %v10073, %v10065
    %v10386 = vpack.c.b16 %v10074, %v10066
    %v10387 = vpack.c.b16 %v10083, %v10075
    %v10388 = vpack.c.b16 %v10084, %v10076
    %v10389 = vpack.c.b16 %v10085, %v10077
    %v10390 = vpack.c.b16 %v10086, %v10078
    %v10391 = vpack.c.b16 %v10087, %v10079
    %v10392 = vpack.c.b16 %v10088, %v10080
    %v10393 = vpack.c.b16 %v10089, %v10081
    %v10394 = vpack.c.b16 %v10090, %v10082
    %v10395 = vpack.c.b16 %v10099, %v10091
    %v10396 = vpack.c.b16 %v10100, %v10092
    %v10397 = vpack.c.b16 %v10101, %v10093
    %v10398 = vpack.c.b16 %v10102, %v10094
    %v10399 = vpack.c.b16 %v10103, %v10095
    %v10400 = vpack.c.b16 %v10104, %v10096
    %v10401 = vpack.c.b16 %v10105, %v10097
    %v10402 = vpack.c.b16 %v10106, %v10098
    %v10403 = vpack.c.b16 %v10115, %v10107
    %v10404 = vpack.c.b16 %v10116, %v10108
    %v10405 = vpack.c.b16 %v10117, %v10109
    %v10406 = vpack.c.b16 %v10118, %v10110
    %v10407 = vpack.c.b16 %v10119, %v10111
    %v10408 = vpack.c.b16 %v10120, %v10112
    %v10409 = vpack.c.b16 %v10121, %v10113
    %v10410 = vpack.c.b16 %v10122, %v10114
    %v10411 = vpack.c.b16 %v10131, %v10123
    %v10412 = vpack.c.b16 %v10132, %v10124
    %v10413 = vpack.c.b16 %v10133, %v10125
    %v10414 = vpack.c.b16 %v10134, %v10126
    %v10415 = vpack.c.b16 %v10135, %v10127
    %v10416 = vpack.c.b16 %v10136, %v10128
    %v10417 = vpack.c.b16 %v10137, %v10129
    %v10418 = vpack.c.b16 %v10138, %v10130
    %v10419 = vpack.c.b16 %v10147, %v10139
    %v10420 = vpack.c.b16 %v10148, %v10140
    %v10421 = vpack.c.b16 %v10149, %v10141
    %v10422 = vpack.c.b16 %v10150, %v10142
    %v10423 = vpack.c.b16 %v10151, %v10143
    %v10424 = vpack.c.b16 %v10152, %v10144
    %v10425 = vpack.c.b16 %v10153, %v10145
    %v10426 = vpack.c.b16 %v10154, %v10146
    %v10427 = vpack.c.b16 %v10163, %v10155
    %v10428 = vpack.c.b16 %v10164, %v10156
    %v10429 = vpack.c.b16 %v10165, %v10157
    %v10430 = vpack.c.b16 %v10166, %v10158
    %v10431 = vpack.c.b16 %v10167, %v10159
    %v10432 = vpack.c.b16 %v10168, %v10160
    %v10433 = vpack.c.b16 %v10169, %v10161
    %v10434 = vpack.c.b16 %v10170, %v10162
    %v10435 = vpack.c.b16 %v10179, %v10171
    %v10436 = vpack.c.b16 %v10180, %v10172
    %v10437 = vpack.c.b16 %v10181, %v10173
    %v10438 = vpack.c.b16 %v10182, %v10174
    %v10439 = vpack.c.b16 %v10183, %v10175
    %v10440 = vpack.c.b16 %v10184, %v10176
    %v10441 = vpack.c.b16 %v10185, %v10177
    %v10442 = vpack.c.b16 %v10186, %v10178
    %10699 = vmatprep.subr.bf16.mxu0 %v10188
    %10700 = vmatpush1.bf16.msra.mxu0 %v10187
    %10701 = vmatprep.subr.bf16.mxu0 %v10196
    %10702 = vmatpush1.bf16.msra.mxu0 %v10195
    %10703 = vmatprep.subr.bf16.mxu0 %v10204
    %10704 = vmatpush1.bf16.msra.mxu0 %v10203
    %10705 = vmatprep.subr.bf16.mxu0 %v10212
    %10706 = vmatpush1.bf16.msra.mxu0 %v10211
    %10707 = vmatprep.subr.bf16.mxu0 %v10220
    %10708 = vmatpush1.bf16.msra.mxu0 %v10219
    %10709 = vmatprep.subr.bf16.mxu0 %v10228
    %10710 = vmatpush1.bf16.msra.mxu0 %v10227
    %10711 = vmatprep.subr.bf16.mxu0 %v10236
    %10712 = vmatpush1.bf16.msra.mxu0 %v10235
    %10713 = vmatprep.subr.bf16.mxu0 %v10244
    %10714 = vmatpush1.bf16.msra.mxu0 %v10243
    %10715 = vmatprep.subr.bf16.mxu0 %v10252
    %10716 = vmatpush1.bf16.msra.mxu0 %v10251
    %10717 = vmatprep.subr.bf16.mxu0 %v10260
    %10718 = vmatpush1.bf16.msra.mxu0 %v10259
    %10719 = vmatprep.subr.bf16.mxu0 %v10268
    %10720 = vmatpush1.bf16.msra.mxu0 %v10267
    %10721 = vmatprep.subr.bf16.mxu0 %v10276
    %10722 = vmatpush1.bf16.msra.mxu0 %v10275
    %10723 = vmatprep.subr.bf16.mxu0 %v10284
    %10724 = vmatpush1.bf16.msra.mxu0 %v10283
    %10725 = vmatprep.subr.bf16.mxu0 %v10292
    %10726 = vmatpush1.bf16.msra.mxu0 %v10291
    %10727 = vmatprep.subr.bf16.mxu0 %v10300
    %10728 = vmatpush1.bf16.msra.mxu0 %v10299
    %10729 = vmatprep.subr.bf16.mxu0 %v10308
    %10730 = vmatpush1.bf16.msra.mxu0 %v10307
    %10731 = vmatprep.mubr.bf16.mxu0 %v8945
    %10732 = vmatmul.mubr.bf16.gmra.mrb[0].mxu0 %v8944
    %v10733 = vpop.f32.mrb[0].mxu0
    %v10734 = vadd.f32 %v9290, %v10733
    %v10735 = vpop.f32.mrb[0].mxu0
    %v10736 = vadd.f32 %v9292, %v10735
    %v10737 = vpop.f32.mrb[0].mxu0
    %v10738 = vpop.f32.mrb[0].mxu0
    %10739 = vdwg.mxu0
    %10740 = vmatprep.subr.bf16.mxu0 %v10316
    %10741 = vmatpush1.bf16.msra.mxu0 %v10315
    %10742 = vmatprep.subr.bf16.mxu0 %v10324
    %10743 = vmatpush1.bf16.msra.mxu0 %v10323
    %10744 = vmatprep.subr.bf16.mxu0 %v10332
    %10745 = vmatpush1.bf16.msra.mxu0 %v10331
    %10746 = vmatprep.subr.bf16.mxu0 %v10340
    %10747 = vmatpush1.bf16.msra.mxu0 %v10339
    %10748 = vmatprep.subr.bf16.mxu0 %v10348
    %10749 = vmatpush1.bf16.msra.mxu0 %v10347
    %10750 = vmatprep.subr.bf16.mxu0 %v10356
    %10751 = vmatpush1.bf16.msra.mxu0 %v10355
    %10752 = vmatprep.subr.bf16.mxu0 %v10364
    %10753 = vmatpush1.bf16.msra.mxu0 %v10363
    %10754 = vmatprep.subr.bf16.mxu0 %v10372
    %10755 = vmatpush1.bf16.msra.mxu0 %v10371
    %10756 = vmatprep.subr.bf16.mxu0 %v10380
    %10757 = vmatpush1.bf16.msra.mxu0 %v10379
    %10758 = vmatprep.subr.bf16.mxu0 %v10388
    %10759 = vmatpush1.bf16.msra.mxu0 %v10387
    %10760 = vmatprep.subr.bf16.mxu0 %v10396
    %10761 = vmatpush1.bf16.msra.mxu0 %v10395
    %10762 = vmatprep.subr.bf16.mxu0 %v10404
    %10763 = vmatpush1.bf16.msra.mxu0 %v10403
    %10764 = vmatprep.subr.bf16.mxu0 %v10412
    %10765 = vmatpush1.bf16.msra.mxu0 %v10411
    %10766 = vmatprep.subr.bf16.mxu0 %v10420
    %10767 = vmatpush1.bf16.msra.mxu0 %v10419
    %10768 = vmatprep.subr.bf16.mxu0 %v10428
    %10769 = vmatpush1.bf16.msra.mxu0 %v10427
    %10770 = vmatprep.subr.bf16.mxu0 %v10436
    %10771 = vmatpush1.bf16.msra.mxu0 %v10435
    %10772 = vmatprep.mubr.bf16.mxu0 %v8947
    %10773 = vmatmul.mubr.bf16.gmra.mrb[0].mxu0 %v8946
    %v10774 = vpop.f32.mrb[0].mxu0
    %v10775 = vadd.f32 %v10734, %v10774
    %v10776 = vpop.f32.mrb[0].mxu0
    %v10777 = vadd.f32 %v10736, %v10776
    %v10778 = vpop.f32.mrb[0].mxu0
    %v10779 = vpop.f32.mrb[0].mxu0
    %10780 = vdwg.mxu0
    %10781 = vmatprep.subr.bf16.mxu0 %v10190
    %10782 = vmatpush1.bf16.msra.mxu0 %v10189
    %10783 = vmatprep.subr.bf16.mxu0 %v10198
    %10784 = vmatpush1.bf16.msra.mxu0 %v10197
    %10785 = vmatprep.subr.bf16.mxu0 %v10206
    %10786 = vmatpush1.bf16.msra.mxu0 %v10205
    %10787 = vmatprep.subr.bf16.mxu0 %v10214
    %10788 = vmatpush1.bf16.msra.mxu0 %v10213
    %10789 = vmatprep.subr.bf16.mxu0 %v10222
    %10790 = vmatpush1.bf16.msra.mxu0 %v10221
    %10791 = vmatprep.subr.bf16.mxu0 %v10230
    %10792 = vmatpush1.bf16.msra.mxu0 %v10229
    %10793 = vmatprep.subr.bf16.mxu0 %v10238
    %10794 = vmatpush1.bf16.msra.mxu0 %v10237
    %10795 = vmatprep.subr.bf16.mxu0 %v10246
    %10796 = vmatpush1.bf16.msra.mxu0 %v10245
    %10797 = vmatprep.subr.bf16.mxu0 %v10254
    %10798 = vmatpush1.bf16.msra.mxu0 %v10253
    %10799 = vmatprep.subr.bf16.mxu0 %v10262
    %10800 = vmatpush1.bf16.msra.mxu0 %v10261
    %10801 = vmatprep.subr.bf16.mxu0 %v10270
    %10802 = vmatpush1.bf16.msra.mxu0 %v10269
    %10803 = vmatprep.subr.bf16.mxu0 %v10278
    %10804 = vmatpush1.bf16.msra.mxu0 %v10277
    %10805 = vmatprep.subr.bf16.mxu0 %v10286
    %10806 = vmatpush1.bf16.msra.mxu0 %v10285
    %10807 = vmatprep.subr.bf16.mxu0 %v10294
    %10808 = vmatpush1.bf16.msra.mxu0 %v10293
    %10809 = vmatprep.subr.bf16.mxu0 %v10302
    %10810 = vmatpush1.bf16.msra.mxu0 %v10301
    %10811 = vmatprep.subr.bf16.mxu0 %v10310
    %10812 = vmatpush1.bf16.msra.mxu0 %v10309
    %10813 = vmatprep.mubr.bf16.mxu0 %v8945
    %10814 = vmatmul.mubr.bf16.gmra.mrb[0].mxu0 %v8944
    %v10815 = vpop.f32.mrb[0].mxu0
    %v10816 = vadd.f32 %v9331, %v10815
    %v10817 = vpop.f32.mrb[0].mxu0
    %v10818 = vadd.f32 %v9333, %v10817
    %v10819 = vpop.f32.mrb[0].mxu0
    %v10820 = vpop.f32.mrb[0].mxu0
    %10821 = vdwg.mxu0
    %10822 = vmatprep.subr.bf16.mxu0 %v10318
    %10823 = vmatpush1.bf16.msra.mxu0 %v10317
    %10824 = vmatprep.subr.bf16.mxu0 %v10326
    %10825 = vmatpush1.bf16.msra.mxu0 %v10325
    %10826 = vmatprep.subr.bf16.mxu0 %v10334
    %10827 = vmatpush1.bf16.msra.mxu0 %v10333
    %10828 = vmatprep.subr.bf16.mxu0 %v10342
    %10829 = vmatpush1.bf16.msra.mxu0 %v10341
    %10830 = vmatprep.subr.bf16.mxu0 %v10350
    %10831 = vmatpush1.bf16.msra.mxu0 %v10349
    %10832 = vmatprep.subr.bf16.mxu0 %v10358
    %10833 = vmatpush1.bf16.msra.mxu0 %v10357
    %10834 = vmatprep.subr.bf16.mxu0 %v10366
    %10835 = vmatpush1.bf16.msra.mxu0 %v10365
    %10836 = vmatprep.subr.bf16.mxu0 %v10374
    %10837 = vmatpush1.bf16.msra.mxu0 %v10373
    %10838 = vmatprep.subr.bf16.mxu0 %v10382
    %10839 = vmatpush1.bf16.msra.mxu0 %v10381
    %10840 = vmatprep.subr.bf16.mxu0 %v10390
    %10841 = vmatpush1.bf16.msra.mxu0 %v10389
    %10842 = vmatprep.subr.bf16.mxu0 %v10398
    %10843 = vmatpush1.bf16.msra.mxu0 %v10397
    %10844 = vmatprep.subr.bf16.mxu0 %v10406
    %10845 = vmatpush1.bf16.msra.mxu0 %v10405
    %10846 = vmatprep.subr.bf16.mxu0 %v10414
    %10847 = vmatpush1.bf16.msra.mxu0 %v10413
    %10848 = vmatprep.subr.bf16.mxu0 %v10422
    %10849 = vmatpush1.bf16.msra.mxu0 %v10421
    %10850 = vmatprep.subr.bf16.mxu0 %v10430
    %10851 = vmatpush1.bf16.msra.mxu0 %v10429
    %10852 = vmatprep.subr.bf16.mxu0 %v10438
    %10853 = vmatpush1.bf16.msra.mxu0 %v10437
    %10854 = vmatprep.mubr.bf16.mxu0 %v8947
    %10855 = vmatmul.mubr.bf16.gmra.mrb[0].mxu0 %v8946
    %v10856 = vpop.f32.mrb[0].mxu0
    %v10857 = vadd.f32 %v10816, %v10856
    %v10858 = vpop.f32.mrb[0].mxu0
    %v10859 = vadd.f32 %v10818, %v10858
    %v10860 = vpop.f32.mrb[0].mxu0
    %v10861 = vpop.f32.mrb[0].mxu0
    %10862 = vdwg.mxu0
    %10863 = vmatprep.subr.bf16.mxu0 %v10192
    %10864 = vmatpush1.bf16.msra.mxu0 %v10191
    %10865 = vmatprep.subr.bf16.mxu0 %v10200
    %10866 = vmatpush1.bf16.msra.mxu0 %v10199
    %10867 = vmatprep.subr.bf16.mxu0 %v10208
    %10868 = vmatpush1.bf16.msra.mxu0 %v10207
    %10869 = vmatprep.subr.bf16.mxu0 %v10216
    %10870 = vmatpush1.bf16.msra.mxu0 %v10215
    %10871 = vmatprep.subr.bf16.mxu0 %v10224
    %10872 = vmatpush1.bf16.msra.mxu0 %v10223
    %10873 = vmatprep.subr.bf16.mxu0 %v10232
    %10874 = vmatpush1.bf16.msra.mxu0 %v10231
    %10875 = vmatprep.subr.bf16.mxu0 %v10240
    %10876 = vmatpush1.bf16.msra.mxu0 %v10239
    %10877 = vmatprep.subr.bf16.mxu0 %v10248
    %10878 = vmatpush1.bf16.msra.mxu0 %v10247
    %10879 = vmatprep.subr.bf16.mxu0 %v10256
    %10880 = vmatpush1.bf16.msra.mxu0 %v10255
    %10881 = vmatprep.subr.bf16.mxu0 %v10264
    %10882 = vmatpush1.bf16.msra.mxu0 %v10263
    %10883 = vmatprep.subr.bf16.mxu0 %v10272
    %10884 = vmatpush1.bf16.msra.mxu0 %v10271
    %10885 = vmatprep.subr.bf16.mxu0 %v10280
    %10886 = vmatpush1.bf16.msra.mxu0 %v10279
    %10887 = vmatprep.subr.bf16.mxu0 %v10288
    %10888 = vmatpush1.bf16.msra.mxu0 %v10287
    %10889 = vmatprep.subr.bf16.mxu0 %v10296
    %10890 = vmatpush1.bf16.msra.mxu0 %v10295
    %10891 = vmatprep.subr.bf16.mxu0 %v10304
    %10892 = vmatpush1.bf16.msra.mxu0 %v10303
    %10893 = vmatprep.subr.bf16.mxu0 %v10312
    %10894 = vmatpush1.bf16.msra.mxu0 %v10311
    %10895 = vmatprep.mubr.bf16.mxu0 %v8945
    %10896 = vmatmul.mubr.bf16.gmra.mrb[0].mxu0 %v8944
    %v10897 = vpop.f32.mrb[0].mxu0
    %v10898 = vadd.f32 %v9372, %v10897
    %v10899 = vpop.f32.mrb[0].mxu0
    %v10900 = vadd.f32 %v9374, %v10899
    %v10901 = vpop.f32.mrb[0].mxu0
    %v10902 = vpop.f32.mrb[0].mxu0
    %10903 = vdwg.mxu0
    %10904 = vmatprep.subr.bf16.mxu0 %v10320
    %10905 = vmatpush1.bf16.msra.mxu0 %v10319
    %10906 = vmatprep.subr.bf16.mxu0 %v10328
    %10907 = vmatpush1.bf16.msra.mxu0 %v10327
    %10908 = vmatprep.subr.bf16.mxu0 %v10336
    %10909 = vmatpush1.bf16.msra.mxu0 %v10335
    %10910 = vmatprep.subr.bf16.mxu0 %v10344
    %10911 = vmatpush1.bf16.msra.mxu0 %v10343
    %10912 = vmatprep.subr.bf16.mxu0 %v10352
    %10913 = vmatpush1.bf16.msra.mxu0 %v10351
    %10914 = vmatprep.subr.bf16.mxu0 %v10360
    %10915 = vmatpush1.bf16.msra.mxu0 %v10359
    %10916 = vmatprep.subr.bf16.mxu0 %v10368
    %10917 = vmatpush1.bf16.msra.mxu0 %v10367
    %10918 = vmatprep.subr.bf16.mxu0 %v10376
    %10919 = vmatpush1.bf16.msra.mxu0 %v10375
    %10920 = vmatprep.subr.bf16.mxu0 %v10384
    %10921 = vmatpush1.bf16.msra.mxu0 %v10383
    %10922 = vmatprep.subr.bf16.mxu0 %v10392
    %10923 = vmatpush1.bf16.msra.mxu0 %v10391
    %10924 = vmatprep.subr.bf16.mxu0 %v10400
    %10925 = vmatpush1.bf16.msra.mxu0 %v10399
    %10926 = vmatprep.subr.bf16.mxu0 %v10408
    %10927 = vmatpush1.bf16.msra.mxu0 %v10407
    %10928 = vmatprep.subr.bf16.mxu0 %v10416
    %10929 = vmatpush1.bf16.msra.mxu0 %v10415
    %10930 = vmatprep.subr.bf16.mxu0 %v10424
    %10931 = vmatpush1.bf16.msra.mxu0 %v10423
    %10932 = vmatprep.subr.bf16.mxu0 %v10432
    %10933 = vmatpush1.bf16.msra.mxu0 %v10431
    %10934 = vmatprep.subr.bf16.mxu0 %v10440
    %10935 = vmatpush1.bf16.msra.mxu0 %v10439
    %10936 = vmatprep.mubr.bf16.mxu0 %v8947
    %10937 = vmatmul.mubr.bf16.gmra.mrb[0].mxu0 %v8946
    %v10938 = vpop.f32.mrb[0].mxu0
    %v10939 = vadd.f32 %v10898, %v10938
    %v10940 = vpop.f32.mrb[0].mxu0
    %v10941 = vadd.f32 %v10900, %v10940
    %v10942 = vpop.f32.mrb[0].mxu0
    %v10943 = vpop.f32.mrb[0].mxu0
    %10944 = vdwg.mxu0
    %10945 = vmatprep.subr.bf16.mxu0 %v10194
    %10946 = vmatpush1.bf16.msra.mxu0 %v10193
    %10947 = vmatprep.subr.bf16.mxu0 %v10202
    %10948 = vmatpush1.bf16.msra.mxu0 %v10201
    %10949 = vmatprep.subr.bf16.mxu0 %v10210
    %10950 = vmatpush1.bf16.msra.mxu0 %v10209
    %10951 = vmatprep.subr.bf16.mxu0 %v10218
    %10952 = vmatpush1.bf16.msra.mxu0 %v10217
    %10953 = vmatprep.subr.bf16.mxu0 %v10226
    %10954 = vmatpush1.bf16.msra.mxu0 %v10225
    %10955 = vmatprep.subr.bf16.mxu0 %v10234
    %10956 = vmatpush1.bf16.msra.mxu0 %v10233
    %10957 = vmatprep.subr.bf16.mxu0 %v10242
    %10958 = vmatpush1.bf16.msra.mxu0 %v10241
    %10959 = vmatprep.subr.bf16.mxu0 %v10250
    %10960 = vmatpush1.bf16.msra.mxu0 %v10249
    %10961 = vmatprep.subr.bf16.mxu0 %v10258
    %10962 = vmatpush1.bf16.msra.mxu0 %v10257
    %10963 = vmatprep.subr.bf16.mxu0 %v10266
    %10964 = vmatpush1.bf16.msra.mxu0 %v10265
    %10965 = vmatprep.subr.bf16.mxu0 %v10274
    %10966 = vmatpush1.bf16.msra.mxu0 %v10273
    %10967 = vmatprep.subr.bf16.mxu0 %v10282
    %10968 = vmatpush1.bf16.msra.mxu0 %v10281
    %10969 = vmatprep.subr.bf16.mxu0 %v10290
    %10970 = vmatpush1.bf16.msra.mxu0 %v10289
    %10971 = vmatprep.subr.bf16.mxu0 %v10298
    %10972 = vmatpush1.bf16.msra.mxu0 %v10297
    %10973 = vmatprep.subr.bf16.mxu0 %v10306
    %10974 = vmatpush1.bf16.msra.mxu0 %v10305
    %10975 = vmatprep.subr.bf16.mxu0 %v10314
    %10976 = vmatpush1.bf16.msra.mxu0 %v10313
    %10977 = vmatprep.mubr.bf16.mxu0 %v8945
    %10978 = vmatmul.mubr.bf16.gmra.mrb[0].mxu0 %v8944
    %v10979 = vpop.f32.mrb[0].mxu0
    %v10980 = vadd.f32 %v9413, %v10979
    %v10981 = vpop.f32.mrb[0].mxu0
    %v10982 = vadd.f32 %v9415, %v10981
    %v10983 = vpop.f32.mrb[0].mxu0
    %v10984 = vpop.f32.mrb[0].mxu0
    %10985 = vdwg.mxu0
    %10986 = vmatprep.subr.bf16.mxu0 %v10322
    %10987 = vmatpush1.bf16.msra.mxu0 %v10321
    %10988 = vmatprep.subr.bf16.mxu0 %v10330
    %10989 = vmatpush1.bf16.msra.mxu0 %v10329
    %10990 = vmatprep.subr.bf16.mxu0 %v10338
    %10991 = vmatpush1.bf16.msra.mxu0 %v10337
    %10992 = vmatprep.subr.bf16.mxu0 %v10346
    %10993 = vmatpush1.bf16.msra.mxu0 %v10345
    %10994 = vmatprep.subr.bf16.mxu0 %v10354
    %10995 = vmatpush1.bf16.msra.mxu0 %v10353
    %10996 = vmatprep.subr.bf16.mxu0 %v10362
    %10997 = vmatpush1.bf16.msra.mxu0 %v10361
    %10998 = vmatprep.subr.bf16.mxu0 %v10370
    %10999 = vmatpush1.bf16.msra.mxu0 %v10369
    %11000 = vmatprep.subr.bf16.mxu0 %v10378
    %11001 = vmatpush1.bf16.msra.mxu0 %v10377
    %11002 = vmatprep.subr.bf16.mxu0 %v10386
    %11003 = vmatpush1.bf16.msra.mxu0 %v10385
    %11004 = vmatprep.subr.bf16.mxu0 %v10394
    %11005 = vmatpush1.bf16.msra.mxu0 %v10393
    %11006 = vmatprep.subr.bf16.mxu0 %v10402
    %11007 = vmatpush1.bf16.msra.mxu0 %v10401
    %11008 = vmatprep.subr.bf16.mxu0 %v10410
    %11009 = vmatpush1.bf16.msra.mxu0 %v10409
    %11010 = vmatprep.subr.bf16.mxu0 %v10418
    %11011 = vmatpush1.bf16.msra.mxu0 %v10417
    %11012 = vmatprep.subr.bf16.mxu0 %v10426
    %11013 = vmatpush1.bf16.msra.mxu0 %v10425
    %11014 = vmatprep.subr.bf16.mxu0 %v10434
    %11015 = vmatpush1.bf16.msra.mxu0 %v10433
    %11016 = vmatprep.subr.bf16.mxu0 %v10442
    %11017 = vmatpush1.bf16.msra.mxu0 %v10441
    %11018 = vmatprep.mubr.bf16.mxu0 %v8947
    %11019 = vmatmul.mubr.bf16.gmra.mrb[0].mxu0 %v8946
    %v11020 = vpop.f32.mrb[0].mxu0
    %v11021 = vadd.f32 %v10980, %v11020
    %v11022 = vpop.f32.mrb[0].mxu0
    %v11023 = vadd.f32 %v10982, %v11022
    %v11024 = vpop.f32.mrb[0].mxu0
    %v11025 = vpop.f32.mrb[0].mxu0
    %11026 = vdwg.mxu0
    %v11027 = vld [vmem:[#allocation23] sm:$0xff]
    %v11029 = vlaneseq
    %v11030 = vshrl.u32 %v11029, 7
    %v11031 = vsub.s32 0, %v11030
    %v11032 = vrot.slane %v11027, %v11031
    %v11033 = vlaneseq
    %v11034 = vshrl.u32 %v11033, 7
    %v11035 = vsub.s32 1, %v11034
    %v11036 = vrot.slane %v11027, %v11035
    %v11037 = vlaneseq
    %v11038 = vshrl.u32 %v11037, 7
    %v11039 = vsub.s32 2, %v11038
    %v11040 = vrot.slane %v11027, %v11039
    %v11041 = vlaneseq
    %v11042 = vshrl.u32 %v11041, 7
    %v11043 = vsub.s32 3, %v11042
    %v11044 = vrot.slane %v11027, %v11043
    %v11045 = vlaneseq
    %v11046 = vshrl.u32 %v11045, 7
    %v11047 = vsub.s32 4, %v11046
    %v11048 = vrot.slane %v11027, %v11047
    %v11049 = vlaneseq
    %v11050 = vshrl.u32 %v11049, 7
    %v11051 = vsub.s32 5, %v11050
    %v11052 = vrot.slane %v11027, %v11051
    %v11053 = vlaneseq
    %v11054 = vshrl.u32 %v11053, 7
    %v11055 = vsub.s32 6, %v11054
    %v11056 = vrot.slane %v11027, %v11055
    %v11057 = vlaneseq
    %v11058 = vshrl.u32 %v11057, 7
    %v11059 = vsub.s32 7, %v11058
    %v11060 = vrot.slane %v11027, %v11059
    %v11069 = vadd.f32 %v10775, %v11032
    %v11070 = vadd.f32 %v10777, %v11036
    %v11071 = vadd.f32 %v10857, %v11040
    %v11072 = vadd.f32 %v10859, %v11044
    %v11073 = vadd.f32 %v10939, %v11048
    %v11074 = vadd.f32 %v10941, %v11052
    %v11075 = vadd.f32 %v11021, %v11056
    %v11076 = vadd.f32 %v11023, %v11060
    %v11077 = vmax.f32 %v11069, 0.0
    %v11078 = vmax.f32 %v11070, 0.0
    %v11079 = vmax.f32 %v11071, 0.0
    %v11080 = vmax.f32 %v11072, 0.0
    %v11081 = vmax.f32 %v11073, 0.0
    %v11082 = vmax.f32 %v11074, 0.0
    %v11083 = vmax.f32 %v11075, 0.0
    %v11084 = vmax.f32 %v11076, 0.0
    %v11085 = vpack.c.bf16 %v11077, %v11077
    %v11086 = vpack.c.bf16 %v11078, %v11078
    %v11087 = vpack.c.bf16 %v11079, %v11079
    %v11088 = vpack.c.bf16 %v11080, %v11080
    %v11089 = vpack.c.bf16 %v11081, %v11081
    %v11090 = vpack.c.bf16 %v11082, %v11082
    %v11091 = vpack.c.bf16 %v11083, %v11083
    %v11092 = vpack.c.bf16 %v11084, %v11084
    %v11093 = vld [vmem:[#allocation24] sm:$0xff]
    %v11094 = vld [vmem:[#allocation24 + $0x8] sm:$0xff]
    %v11095 = vld [vmem:[#allocation24 + $0x10] sm:$0xff]
    %v11096 = vld [vmem:[#allocation24 + $0x18] sm:$0xff]
    %v11097 = vld [vmem:[#allocation24 + $0x20] sm:$0xff]
    %v11098 = vld [vmem:[#allocation24 + $0x28] sm:$0xff]
    %v11099 = vld [vmem:[#allocation24 + $0x30] sm:$0xff]
    %v11100 = vld [vmem:[#allocation24 + $0x38] sm:$0xff]
    %v11101 = vld [vmem:[#allocation24 + $0x40] sm:$0xff]
    %v11102 = vld [vmem:[#allocation24 + $0x48] sm:$0xff]
    %v11103 = vld [vmem:[#allocation24 + $0x50] sm:$0xff]
    %v11104 = vld [vmem:[#allocation24 + $0x58] sm:$0xff]
    %v11105 = vld [vmem:[#allocation24 + $0x60] sm:$0xff]
    %v11106 = vld [vmem:[#allocation24 + $0x68] sm:$0xff]
    %v11107 = vld [vmem:[#allocation24 + $0x70] sm:$0xff]
    %v11108 = vld [vmem:[#allocation24 + $0x78] sm:$0xff]
    %v11109 = vld [vmem:[#allocation24 + $0x80] sm:$0xff]
    %v11110 = vld [vmem:[#allocation24 + $0x88] sm:$0xff]
    %v11111 = vld [vmem:[#allocation24 + $0x90] sm:$0xff]
    %v11112 = vld [vmem:[#allocation24 + $0x98] sm:$0xff]
    %v11113 = vld [vmem:[#allocation24 + $0xa0] sm:$0xff]
    %v11114 = vld [vmem:[#allocation24 + $0xa8] sm:$0xff]
    %v11115 = vld [vmem:[#allocation24 + $0xb0] sm:$0xff]
    %v11116 = vld [vmem:[#allocation24 + $0xb8] sm:$0xff]
    %v11117 = vld [vmem:[#allocation24 + $0xc0] sm:$0xff]
    %v11118 = vld [vmem:[#allocation24 + $0xc8] sm:$0xff]
    %v11119 = vld [vmem:[#allocation24 + $0xd0] sm:$0xff]
    %v11120 = vld [vmem:[#allocation24 + $0xd8] sm:$0xff]
    %v11121 = vld [vmem:[#allocation24 + $0xe0] sm:$0xff]
    %v11122 = vld [vmem:[#allocation24 + $0xe8] sm:$0xff]
    %v11123 = vld [vmem:[#allocation24 + $0xf0] sm:$0xff]
    %v11124 = vld [vmem:[#allocation24 + $0xf8] sm:$0xff]
    %v11125 = vld [vmem:[#allocation24 + $0x100] sm:$0xff]
    %v11126 = vld [vmem:[#allocation24 + $0x108] sm:$0xff]
    %v11127 = vld [vmem:[#allocation24 + $0x110] sm:$0xff]
    %v11128 = vld [vmem:[#allocation24 + $0x118] sm:$0xff]
    %v11129 = vld [vmem:[#allocation24 + $0x120] sm:$0xff]
    %v11130 = vld [vmem:[#allocation24 + $0x128] sm:$0xff]
    %v11131 = vld [vmem:[#allocation24 + $0x130] sm:$0xff]
    %v11132 = vld [vmem:[#allocation24 + $0x138] sm:$0xff]
    %v11133 = vld [vmem:[#allocation24 + $0x140] sm:$0xff]
    %v11134 = vld [vmem:[#allocation24 + $0x148] sm:$0xff]
    %v11135 = vld [vmem:[#allocation24 + $0x150] sm:$0xff]
    %v11136 = vld [vmem:[#allocation24 + $0x158] sm:$0xff]
    %v11137 = vld [vmem:[#allocation24 + $0x160] sm:$0xff]
    %v11138 = vld [vmem:[#allocation24 + $0x168] sm:$0xff]
    %v11139 = vld [vmem:[#allocation24 + $0x170] sm:$0xff]
    %v11140 = vld [vmem:[#allocation24 + $0x178] sm:$0xff]
    %v11141 = vld [vmem:[#allocation24 + $0x180] sm:$0xff]
    %v11142 = vld [vmem:[#allocation24 + $0x188] sm:$0xff]
    %v11143 = vld [vmem:[#allocation24 + $0x190] sm:$0xff]
    %v11144 = vld [vmem:[#allocation24 + $0x198] sm:$0xff]
    %v11145 = vld [vmem:[#allocation24 + $0x1a0] sm:$0xff]
    %v11146 = vld [vmem:[#allocation24 + $0x1a8] sm:$0xff]
    %v11147 = vld [vmem:[#allocation24 + $0x1b0] sm:$0xff]
    %v11148 = vld [vmem:[#allocation24 + $0x1b8] sm:$0xff]
    %v11149 = vld [vmem:[#allocation24 + $0x1c0] sm:$0xff]
    %v11150 = vld [vmem:[#allocation24 + $0x1c8] sm:$0xff]
    %v11151 = vld [vmem:[#allocation24 + $0x1d0] sm:$0xff]
    %v11152 = vld [vmem:[#allocation24 + $0x1d8] sm:$0xff]
    %v11153 = vld [vmem:[#allocation24 + $0x1e0] sm:$0xff]
    %v11154 = vld [vmem:[#allocation24 + $0x1e8] sm:$0xff]
    %v11155 = vld [vmem:[#allocation24 + $0x1f0] sm:$0xff]
    %v11156 = vld [vmem:[#allocation24 + $0x1f8] sm:$0xff]
    %v11157 = vld [vmem:[#allocation24 + $0x200] sm:$0xff]
    %v11158 = vld [vmem:[#allocation24 + $0x208] sm:$0xff]
    %v11159 = vld [vmem:[#allocation24 + $0x210] sm:$0xff]
    %v11160 = vld [vmem:[#allocation24 + $0x218] sm:$0xff]
    %v11161 = vld [vmem:[#allocation24 + $0x220] sm:$0xff]
    %v11162 = vld [vmem:[#allocation24 + $0x228] sm:$0xff]
    %v11163 = vld [vmem:[#allocation24 + $0x230] sm:$0xff]
    %v11164 = vld [vmem:[#allocation24 + $0x238] sm:$0xff]
    %v11165 = vld [vmem:[#allocation24 + $0x240] sm:$0xff]
    %v11166 = vld [vmem:[#allocation24 + $0x248] sm:$0xff]
    %v11167 = vld [vmem:[#allocation24 + $0x250] sm:$0xff]
    %v11168 = vld [vmem:[#allocation24 + $0x258] sm:$0xff]
    %v11169 = vld [vmem:[#allocation24 + $0x260] sm:$0xff]
    %v11170 = vld [vmem:[#allocation24 + $0x268] sm:$0xff]
    %v11171 = vld [vmem:[#allocation24 + $0x270] sm:$0xff]
    %v11172 = vld [vmem:[#allocation24 + $0x278] sm:$0xff]
    %v11173 = vld [vmem:[#allocation24 + $0x280] sm:$0xff]
    %v11174 = vld [vmem:[#allocation24 + $0x288] sm:$0xff]
    %v11175 = vld [vmem:[#allocation24 + $0x290] sm:$0xff]
    %v11176 = vld [vmem:[#allocation24 + $0x298] sm:$0xff]
    %v11177 = vld [vmem:[#allocation24 + $0x2a0] sm:$0xff]
    %v11178 = vld [vmem:[#allocation24 + $0x2a8] sm:$0xff]
    %v11179 = vld [vmem:[#allocation24 + $0x2b0] sm:$0xff]
    %v11180 = vld [vmem:[#allocation24 + $0x2b8] sm:$0xff]
    %v11181 = vld [vmem:[#allocation24 + $0x2c0] sm:$0xff]
    %v11182 = vld [vmem:[#allocation24 + $0x2c8] sm:$0xff]
    %v11183 = vld [vmem:[#allocation24 + $0x2d0] sm:$0xff]
    %v11184 = vld [vmem:[#allocation24 + $0x2d8] sm:$0xff]
    %v11185 = vld [vmem:[#allocation24 + $0x2e0] sm:$0xff]
    %v11186 = vld [vmem:[#allocation24 + $0x2e8] sm:$0xff]
    %v11187 = vld [vmem:[#allocation24 + $0x2f0] sm:$0xff]
    %v11188 = vld [vmem:[#allocation24 + $0x2f8] sm:$0xff]
    %v11189 = vld [vmem:[#allocation24 + $0x300] sm:$0xff]
    %v11190 = vld [vmem:[#allocation24 + $0x308] sm:$0xff]
    %v11191 = vld [vmem:[#allocation24 + $0x310] sm:$0xff]
    %v11192 = vld [vmem:[#allocation24 + $0x318] sm:$0xff]
    %v11193 = vld [vmem:[#allocation24 + $0x320] sm:$0xff]
    %v11194 = vld [vmem:[#allocation24 + $0x328] sm:$0xff]
    %v11195 = vld [vmem:[#allocation24 + $0x330] sm:$0xff]
    %v11196 = vld [vmem:[#allocation24 + $0x338] sm:$0xff]
    %v11197 = vld [vmem:[#allocation24 + $0x340] sm:$0xff]
    %v11198 = vld [vmem:[#allocation24 + $0x348] sm:$0xff]
    %v11199 = vld [vmem:[#allocation24 + $0x350] sm:$0xff]
    %v11200 = vld [vmem:[#allocation24 + $0x358] sm:$0xff]
    %v11201 = vld [vmem:[#allocation24 + $0x360] sm:$0xff]
    %v11202 = vld [vmem:[#allocation24 + $0x368] sm:$0xff]
    %v11203 = vld [vmem:[#allocation24 + $0x370] sm:$0xff]
    %v11204 = vld [vmem:[#allocation24 + $0x378] sm:$0xff]
    %v11205 = vld [vmem:[#allocation24 + $0x380] sm:$0xff]
    %v11206 = vld [vmem:[#allocation24 + $0x388] sm:$0xff]
    %v11207 = vld [vmem:[#allocation24 + $0x390] sm:$0xff]
    %v11208 = vld [vmem:[#allocation24 + $0x398] sm:$0xff]
    %v11209 = vld [vmem:[#allocation24 + $0x3a0] sm:$0xff]
    %v11210 = vld [vmem:[#allocation24 + $0x3a8] sm:$0xff]
    %v11211 = vld [vmem:[#allocation24 + $0x3b0] sm:$0xff]
    %v11212 = vld [vmem:[#allocation24 + $0x3b8] sm:$0xff]
    %v11213 = vld [vmem:[#allocation24 + $0x3c0] sm:$0xff]
    %v11214 = vld [vmem:[#allocation24 + $0x3c8] sm:$0xff]
    %v11215 = vld [vmem:[#allocation24 + $0x3d0] sm:$0xff]
    %v11216 = vld [vmem:[#allocation24 + $0x3d8] sm:$0xff]
    %v11217 = vld [vmem:[#allocation24 + $0x3e0] sm:$0xff]
    %v11218 = vld [vmem:[#allocation24 + $0x3e8] sm:$0xff]
    %v11219 = vld [vmem:[#allocation24 + $0x3f0] sm:$0xff]
    %v11220 = vld [vmem:[#allocation24 + $0x3f8] sm:$0xff]
    %v11221 = vld [vmem:[#allocation24 + $0x400] sm:$0xff]
    %v11222 = vld [vmem:[#allocation24 + $0x408] sm:$0xff]
    %v11223 = vld [vmem:[#allocation24 + $0x410] sm:$0xff]
    %v11224 = vld [vmem:[#allocation24 + $0x418] sm:$0xff]
    %v11225 = vld [vmem:[#allocation24 + $0x420] sm:$0xff]
    %v11226 = vld [vmem:[#allocation24 + $0x428] sm:$0xff]
    %v11227 = vld [vmem:[#allocation24 + $0x430] sm:$0xff]
    %v11228 = vld [vmem:[#allocation24 + $0x438] sm:$0xff]
    %v11229 = vld [vmem:[#allocation24 + $0x440] sm:$0xff]
    %v11230 = vld [vmem:[#allocation24 + $0x448] sm:$0xff]
    %v11231 = vld [vmem:[#allocation24 + $0x450] sm:$0xff]
    %v11232 = vld [vmem:[#allocation24 + $0x458] sm:$0xff]
    %v11233 = vld [vmem:[#allocation24 + $0x460] sm:$0xff]
    %v11234 = vld [vmem:[#allocation24 + $0x468] sm:$0xff]
    %v11235 = vld [vmem:[#allocation24 + $0x470] sm:$0xff]
    %v11236 = vld [vmem:[#allocation24 + $0x478] sm:$0xff]
    %v11237 = vld [vmem:[#allocation24 + $0x480] sm:$0xff]
    %v11238 = vld [vmem:[#allocation24 + $0x488] sm:$0xff]
    %v11239 = vld [vmem:[#allocation24 + $0x490] sm:$0xff]
    %v11240 = vld [vmem:[#allocation24 + $0x498] sm:$0xff]
    %v11241 = vld [vmem:[#allocation24 + $0x4a0] sm:$0xff]
    %v11242 = vld [vmem:[#allocation24 + $0x4a8] sm:$0xff]
    %v11243 = vld [vmem:[#allocation24 + $0x4b0] sm:$0xff]
    %v11244 = vld [vmem:[#allocation24 + $0x4b8] sm:$0xff]
    %v11245 = vld [vmem:[#allocation24 + $0x4c0] sm:$0xff]
    %v11246 = vld [vmem:[#allocation24 + $0x4c8] sm:$0xff]
    %v11247 = vld [vmem:[#allocation24 + $0x4d0] sm:$0xff]
    %v11248 = vld [vmem:[#allocation24 + $0x4d8] sm:$0xff]
    %v11249 = vld [vmem:[#allocation24 + $0x4e0] sm:$0xff]
    %v11250 = vld [vmem:[#allocation24 + $0x4e8] sm:$0xff]
    %v11251 = vld [vmem:[#allocation24 + $0x4f0] sm:$0xff]
    %v11252 = vld [vmem:[#allocation24 + $0x4f8] sm:$0xff]
    %v11253 = vld [vmem:[#allocation24 + $0x500] sm:$0xff]
    %v11254 = vld [vmem:[#allocation24 + $0x508] sm:$0xff]
    %v11255 = vld [vmem:[#allocation24 + $0x510] sm:$0xff]
    %v11256 = vld [vmem:[#allocation24 + $0x518] sm:$0xff]
    %v11257 = vld [vmem:[#allocation24 + $0x520] sm:$0xff]
    %v11258 = vld [vmem:[#allocation24 + $0x528] sm:$0xff]
    %v11259 = vld [vmem:[#allocation24 + $0x530] sm:$0xff]
    %v11260 = vld [vmem:[#allocation24 + $0x538] sm:$0xff]
    %v11261 = vld [vmem:[#allocation24 + $0x540] sm:$0xff]
    %v11262 = vld [vmem:[#allocation24 + $0x548] sm:$0xff]
    %v11263 = vld [vmem:[#allocation24 + $0x550] sm:$0xff]
    %v11264 = vld [vmem:[#allocation24 + $0x558] sm:$0xff]
    %v11265 = vld [vmem:[#allocation24 + $0x560] sm:$0xff]
    %v11266 = vld [vmem:[#allocation24 + $0x568] sm:$0xff]
    %v11267 = vld [vmem:[#allocation24 + $0x570] sm:$0xff]
    %v11268 = vld [vmem:[#allocation24 + $0x578] sm:$0xff]
    %v11269 = vld [vmem:[#allocation24 + $0x580] sm:$0xff]
    %v11270 = vld [vmem:[#allocation24 + $0x588] sm:$0xff]
    %v11271 = vld [vmem:[#allocation24 + $0x590] sm:$0xff]
    %v11272 = vld [vmem:[#allocation24 + $0x598] sm:$0xff]
    %v11273 = vld [vmem:[#allocation24 + $0x5a0] sm:$0xff]
    %v11274 = vld [vmem:[#allocation24 + $0x5a8] sm:$0xff]
    %v11275 = vld [vmem:[#allocation24 + $0x5b0] sm:$0xff]
    %v11276 = vld [vmem:[#allocation24 + $0x5b8] sm:$0xff]
    %v11277 = vld [vmem:[#allocation24 + $0x5c0] sm:$0xff]
    %v11278 = vld [vmem:[#allocation24 + $0x5c8] sm:$0xff]
    %v11279 = vld [vmem:[#allocation24 + $0x5d0] sm:$0xff]
    %v11280 = vld [vmem:[#allocation24 + $0x5d8] sm:$0xff]
    %v11281 = vld [vmem:[#allocation24 + $0x5e0] sm:$0xff]
    %v11282 = vld [vmem:[#allocation24 + $0x5e8] sm:$0xff]
    %v11283 = vld [vmem:[#allocation24 + $0x5f0] sm:$0xff]
    %v11284 = vld [vmem:[#allocation24 + $0x5f8] sm:$0xff]
    %v11285 = vld [vmem:[#allocation24 + $0x600] sm:$0xff]
    %v11286 = vld [vmem:[#allocation24 + $0x608] sm:$0xff]
    %v11287 = vld [vmem:[#allocation24 + $0x610] sm:$0xff]
    %v11288 = vld [vmem:[#allocation24 + $0x618] sm:$0xff]
    %v11289 = vld [vmem:[#allocation24 + $0x620] sm:$0xff]
    %v11290 = vld [vmem:[#allocation24 + $0x628] sm:$0xff]
    %v11291 = vld [vmem:[#allocation24 + $0x630] sm:$0xff]
    %v11292 = vld [vmem:[#allocation24 + $0x638] sm:$0xff]
    %v11293 = vld [vmem:[#allocation24 + $0x640] sm:$0xff]
    %v11294 = vld [vmem:[#allocation24 + $0x648] sm:$0xff]
    %v11295 = vld [vmem:[#allocation24 + $0x650] sm:$0xff]
    %v11296 = vld [vmem:[#allocation24 + $0x658] sm:$0xff]
    %v11297 = vld [vmem:[#allocation24 + $0x660] sm:$0xff]
    %v11298 = vld [vmem:[#allocation24 + $0x668] sm:$0xff]
    %v11299 = vld [vmem:[#allocation24 + $0x670] sm:$0xff]
    %v11300 = vld [vmem:[#allocation24 + $0x678] sm:$0xff]
    %v11301 = vld [vmem:[#allocation24 + $0x680] sm:$0xff]
    %v11302 = vld [vmem:[#allocation24 + $0x688] sm:$0xff]
    %v11303 = vld [vmem:[#allocation24 + $0x690] sm:$0xff]
    %v11304 = vld [vmem:[#allocation24 + $0x698] sm:$0xff]
    %v11305 = vld [vmem:[#allocation24 + $0x6a0] sm:$0xff]
    %v11306 = vld [vmem:[#allocation24 + $0x6a8] sm:$0xff]
    %v11307 = vld [vmem:[#allocation24 + $0x6b0] sm:$0xff]
    %v11308 = vld [vmem:[#allocation24 + $0x6b8] sm:$0xff]
    %v11309 = vld [vmem:[#allocation24 + $0x6c0] sm:$0xff]
    %v11310 = vld [vmem:[#allocation24 + $0x6c8] sm:$0xff]
    %v11311 = vld [vmem:[#allocation24 + $0x6d0] sm:$0xff]
    %v11312 = vld [vmem:[#allocation24 + $0x6d8] sm:$0xff]
    %v11313 = vld [vmem:[#allocation24 + $0x6e0] sm:$0xff]
    %v11314 = vld [vmem:[#allocation24 + $0x6e8] sm:$0xff]
    %v11315 = vld [vmem:[#allocation24 + $0x6f0] sm:$0xff]
    %v11316 = vld [vmem:[#allocation24 + $0x6f8] sm:$0xff]
    %v11317 = vld [vmem:[#allocation24 + $0x700] sm:$0xff]
    %v11318 = vld [vmem:[#allocation24 + $0x708] sm:$0xff]
    %v11319 = vld [vmem:[#allocation24 + $0x710] sm:$0xff]
    %v11320 = vld [vmem:[#allocation24 + $0x718] sm:$0xff]
    %v11321 = vld [vmem:[#allocation24 + $0x720] sm:$0xff]
    %v11322 = vld [vmem:[#allocation24 + $0x728] sm:$0xff]
    %v11323 = vld [vmem:[#allocation24 + $0x730] sm:$0xff]
    %v11324 = vld [vmem:[#allocation24 + $0x738] sm:$0xff]
    %v11325 = vld [vmem:[#allocation24 + $0x740] sm:$0xff]
    %v11326 = vld [vmem:[#allocation24 + $0x748] sm:$0xff]
    %v11327 = vld [vmem:[#allocation24 + $0x750] sm:$0xff]
    %v11328 = vld [vmem:[#allocation24 + $0x758] sm:$0xff]
    %v11329 = vld [vmem:[#allocation24 + $0x760] sm:$0xff]
    %v11330 = vld [vmem:[#allocation24 + $0x768] sm:$0xff]
    %v11331 = vld [vmem:[#allocation24 + $0x770] sm:$0xff]
    %v11332 = vld [vmem:[#allocation24 + $0x778] sm:$0xff]
    %v11333 = vld [vmem:[#allocation24 + $0x780] sm:$0xff]
    %v11334 = vld [vmem:[#allocation24 + $0x788] sm:$0xff]
    %v11335 = vld [vmem:[#allocation24 + $0x790] sm:$0xff]
    %v11336 = vld [vmem:[#allocation24 + $0x798] sm:$0xff]
    %v11337 = vld [vmem:[#allocation24 + $0x7a0] sm:$0xff]
    %v11338 = vld [vmem:[#allocation24 + $0x7a8] sm:$0xff]
    %v11339 = vld [vmem:[#allocation24 + $0x7b0] sm:$0xff]
    %v11340 = vld [vmem:[#allocation24 + $0x7b8] sm:$0xff]
    %v11341 = vld [vmem:[#allocation24 + $0x7c0] sm:$0xff]
    %v11342 = vld [vmem:[#allocation24 + $0x7c8] sm:$0xff]
    %v11343 = vld [vmem:[#allocation24 + $0x7d0] sm:$0xff]
    %v11344 = vld [vmem:[#allocation24 + $0x7d8] sm:$0xff]
    %v11345 = vld [vmem:[#allocation24 + $0x7e0] sm:$0xff]
    %v11346 = vld [vmem:[#allocation24 + $0x7e8] sm:$0xff]
    %v11347 = vld [vmem:[#allocation24 + $0x7f0] sm:$0xff]
    %v11348 = vld [vmem:[#allocation24 + $0x7f8] sm:$0xff]
    %v11349 = vld [vmem:[#allocation26] sm:$0xf]
    %v11351 = vlaneseq
    %v11352 = vshrl.u32 %v11351, 7
    %v11353 = vsub.s32 0, %v11352
    %v11354 = vrot.slane %v11349, %v11353
    %v11355 = vlaneseq
    %v11356 = vshrl.u32 %v11355, 7
    %v11357 = vsub.s32 1, %v11356
    %v11358 = vrot.slane %v11349, %v11357
    %v11359 = vlaneseq
    %v11360 = vshrl.u32 %v11359, 7
    %v11361 = vsub.s32 2, %v11360
    %v11362 = vrot.slane %v11349, %v11361
    %v11363 = vlaneseq
    %v11364 = vshrl.u32 %v11363, 7
    %v11365 = vsub.s32 3, %v11364
    %v11366 = vrot.slane %v11349, %v11365
    %v11627 = vunpack.c.l.b16 %v11093
    %v11628 = vunpack.c.h.b16 %v11093
    %v11629 = vunpack.c.l.b16 %v11094
    %v11630 = vunpack.c.h.b16 %v11094
    %v11631 = vunpack.c.l.b16 %v11095
    %v11632 = vunpack.c.h.b16 %v11095
    %v11633 = vunpack.c.l.b16 %v11096
    %v11634 = vunpack.c.h.b16 %v11096
    %v11635 = vunpack.c.l.b16 %v11097
    %v11636 = vunpack.c.h.b16 %v11097
    %v11637 = vunpack.c.l.b16 %v11098
    %v11638 = vunpack.c.h.b16 %v11098
    %v11639 = vunpack.c.l.b16 %v11099
    %v11640 = vunpack.c.h.b16 %v11099
    %v11641 = vunpack.c.l.b16 %v11100
    %v11642 = vunpack.c.h.b16 %v11100
    %v11643 = vunpack.c.l.b16 %v11101
    %v11644 = vunpack.c.h.b16 %v11101
    %v11645 = vunpack.c.l.b16 %v11102
    %v11646 = vunpack.c.h.b16 %v11102
    %v11647 = vunpack.c.l.b16 %v11103
    %v11648 = vunpack.c.h.b16 %v11103
    %v11649 = vunpack.c.l.b16 %v11104
    %v11650 = vunpack.c.h.b16 %v11104
    %v11651 = vunpack.c.l.b16 %v11105
    %v11652 = vunpack.c.h.b16 %v11105
    %v11653 = vunpack.c.l.b16 %v11106
    %v11654 = vunpack.c.h.b16 %v11106
    %v11655 = vunpack.c.l.b16 %v11107
    %v11656 = vunpack.c.h.b16 %v11107
    %v11657 = vunpack.c.l.b16 %v11108
    %v11658 = vunpack.c.h.b16 %v11108
    %v11659 = vunpack.c.l.b16 %v11109
    %v11660 = vunpack.c.h.b16 %v11109
    %v11661 = vunpack.c.l.b16 %v11110
    %v11662 = vunpack.c.h.b16 %v11110
    %v11663 = vunpack.c.l.b16 %v11111
    %v11664 = vunpack.c.h.b16 %v11111
    %v11665 = vunpack.c.l.b16 %v11112
    %v11666 = vunpack.c.h.b16 %v11112
    %v11667 = vunpack.c.l.b16 %v11113
    %v11668 = vunpack.c.h.b16 %v11113
    %v11669 = vunpack.c.l.b16 %v11114
    %v11670 = vunpack.c.h.b16 %v11114
    %v11671 = vunpack.c.l.b16 %v11115
    %v11672 = vunpack.c.h.b16 %v11115
    %v11673 = vunpack.c.l.b16 %v11116
    %v11674 = vunpack.c.h.b16 %v11116
    %v11675 = vunpack.c.l.b16 %v11117
    %v11676 = vunpack.c.h.b16 %v11117
    %v11677 = vunpack.c.l.b16 %v11118
    %v11678 = vunpack.c.h.b16 %v11118
    %v11679 = vunpack.c.l.b16 %v11119
    %v11680 = vunpack.c.h.b16 %v11119
    %v11681 = vunpack.c.l.b16 %v11120
    %v11682 = vunpack.c.h.b16 %v11120
    %v11683 = vunpack.c.l.b16 %v11121
    %v11684 = vunpack.c.h.b16 %v11121
    %v11685 = vunpack.c.l.b16 %v11122
    %v11686 = vunpack.c.h.b16 %v11122
    %v11687 = vunpack.c.l.b16 %v11123
    %v11688 = vunpack.c.h.b16 %v11123
    %v11689 = vunpack.c.l.b16 %v11124
    %v11690 = vunpack.c.h.b16 %v11124
    %v11691 = vunpack.c.l.b16 %v11125
    %v11692 = vunpack.c.h.b16 %v11125
    %v11693 = vunpack.c.l.b16 %v11126
    %v11694 = vunpack.c.h.b16 %v11126
    %v11695 = vunpack.c.l.b16 %v11127
    %v11696 = vunpack.c.h.b16 %v11127
    %v11697 = vunpack.c.l.b16 %v11128
    %v11698 = vunpack.c.h.b16 %v11128
    %v11699 = vunpack.c.l.b16 %v11129
    %v11700 = vunpack.c.h.b16 %v11129
    %v11701 = vunpack.c.l.b16 %v11130
    %v11702 = vunpack.c.h.b16 %v11130
    %v11703 = vunpack.c.l.b16 %v11131
    %v11704 = vunpack.c.h.b16 %v11131
    %v11705 = vunpack.c.l.b16 %v11132
    %v11706 = vunpack.c.h.b16 %v11132
    %v11707 = vunpack.c.l.b16 %v11133
    %v11708 = vunpack.c.h.b16 %v11133
    %v11709 = vunpack.c.l.b16 %v11134
    %v11710 = vunpack.c.h.b16 %v11134
    %v11711 = vunpack.c.l.b16 %v11135
    %v11712 = vunpack.c.h.b16 %v11135
    %v11713 = vunpack.c.l.b16 %v11136
    %v11714 = vunpack.c.h.b16 %v11136
    %v11715 = vunpack.c.l.b16 %v11137
    %v11716 = vunpack.c.h.b16 %v11137
    %v11717 = vunpack.c.l.b16 %v11138
    %v11718 = vunpack.c.h.b16 %v11138
    %v11719 = vunpack.c.l.b16 %v11139
    %v11720 = vunpack.c.h.b16 %v11139
    %v11721 = vunpack.c.l.b16 %v11140
    %v11722 = vunpack.c.h.b16 %v11140
    %v11723 = vunpack.c.l.b16 %v11141
    %v11724 = vunpack.c.h.b16 %v11141
    %v11725 = vunpack.c.l.b16 %v11142
    %v11726 = vunpack.c.h.b16 %v11142
    %v11727 = vunpack.c.l.b16 %v11143
    %v11728 = vunpack.c.h.b16 %v11143
    %v11729 = vunpack.c.l.b16 %v11144
    %v11730 = vunpack.c.h.b16 %v11144
    %v11731 = vunpack.c.l.b16 %v11145
    %v11732 = vunpack.c.h.b16 %v11145
    %v11733 = vunpack.c.l.b16 %v11146
    %v11734 = vunpack.c.h.b16 %v11146
    %v11735 = vunpack.c.l.b16 %v11147
    %v11736 = vunpack.c.h.b16 %v11147
    %v11737 = vunpack.c.l.b16 %v11148
    %v11738 = vunpack.c.h.b16 %v11148
    %v11739 = vunpack.c.l.b16 %v11149
    %v11740 = vunpack.c.h.b16 %v11149
    %v11741 = vunpack.c.l.b16 %v11150
    %v11742 = vunpack.c.h.b16 %v11150
    %v11743 = vunpack.c.l.b16 %v11151
    %v11744 = vunpack.c.h.b16 %v11151
    %v11745 = vunpack.c.l.b16 %v11152
    %v11746 = vunpack.c.h.b16 %v11152
    %v11747 = vunpack.c.l.b16 %v11153
    %v11748 = vunpack.c.h.b16 %v11153
    %v11749 = vunpack.c.l.b16 %v11154
    %v11750 = vunpack.c.h.b16 %v11154
    %v11751 = vunpack.c.l.b16 %v11155
    %v11752 = vunpack.c.h.b16 %v11155
    %v11753 = vunpack.c.l.b16 %v11156
    %v11754 = vunpack.c.h.b16 %v11156
    %v11755 = vunpack.c.l.b16 %v11157
    %v11756 = vunpack.c.h.b16 %v11157
    %v11757 = vunpack.c.l.b16 %v11158
    %v11758 = vunpack.c.h.b16 %v11158
    %v11759 = vunpack.c.l.b16 %v11159
    %v11760 = vunpack.c.h.b16 %v11159
    %v11761 = vunpack.c.l.b16 %v11160
    %v11762 = vunpack.c.h.b16 %v11160
    %v11763 = vunpack.c.l.b16 %v11161
    %v11764 = vunpack.c.h.b16 %v11161
    %v11765 = vunpack.c.l.b16 %v11162
    %v11766 = vunpack.c.h.b16 %v11162
    %v11767 = vunpack.c.l.b16 %v11163
    %v11768 = vunpack.c.h.b16 %v11163
    %v11769 = vunpack.c.l.b16 %v11164
    %v11770 = vunpack.c.h.b16 %v11164
    %v11771 = vunpack.c.l.b16 %v11165
    %v11772 = vunpack.c.h.b16 %v11165
    %v11773 = vunpack.c.l.b16 %v11166
    %v11774 = vunpack.c.h.b16 %v11166
    %v11775 = vunpack.c.l.b16 %v11167
    %v11776 = vunpack.c.h.b16 %v11167
    %v11777 = vunpack.c.l.b16 %v11168
    %v11778 = vunpack.c.h.b16 %v11168
    %v11779 = vunpack.c.l.b16 %v11169
    %v11780 = vunpack.c.h.b16 %v11169
    %v11781 = vunpack.c.l.b16 %v11170
    %v11782 = vunpack.c.h.b16 %v11170
    %v11783 = vunpack.c.l.b16 %v11171
    %v11784 = vunpack.c.h.b16 %v11171
    %v11785 = vunpack.c.l.b16 %v11172
    %v11786 = vunpack.c.h.b16 %v11172
    %v11787 = vunpack.c.l.b16 %v11173
    %v11788 = vunpack.c.h.b16 %v11173
    %v11789 = vunpack.c.l.b16 %v11174
    %v11790 = vunpack.c.h.b16 %v11174
    %v11791 = vunpack.c.l.b16 %v11175
    %v11792 = vunpack.c.h.b16 %v11175
    %v11793 = vunpack.c.l.b16 %v11176
    %v11794 = vunpack.c.h.b16 %v11176
    %v11795 = vunpack.c.l.b16 %v11177
    %v11796 = vunpack.c.h.b16 %v11177
    %v11797 = vunpack.c.l.b16 %v11178
    %v11798 = vunpack.c.h.b16 %v11178
    %v11799 = vunpack.c.l.b16 %v11179
    %v11800 = vunpack.c.h.b16 %v11179
    %v11801 = vunpack.c.l.b16 %v11180
    %v11802 = vunpack.c.h.b16 %v11180
    %v11803 = vunpack.c.l.b16 %v11181
    %v11804 = vunpack.c.h.b16 %v11181
    %v11805 = vunpack.c.l.b16 %v11182
    %v11806 = vunpack.c.h.b16 %v11182
    %v11807 = vunpack.c.l.b16 %v11183
    %v11808 = vunpack.c.h.b16 %v11183
    %v11809 = vunpack.c.l.b16 %v11184
    %v11810 = vunpack.c.h.b16 %v11184
    %v11811 = vunpack.c.l.b16 %v11185
    %v11812 = vunpack.c.h.b16 %v11185
    %v11813 = vunpack.c.l.b16 %v11186
    %v11814 = vunpack.c.h.b16 %v11186
    %v11815 = vunpack.c.l.b16 %v11187
    %v11816 = vunpack.c.h.b16 %v11187
    %v11817 = vunpack.c.l.b16 %v11188
    %v11818 = vunpack.c.h.b16 %v11188
    %v11819 = vunpack.c.l.b16 %v11189
    %v11820 = vunpack.c.h.b16 %v11189
    %v11821 = vunpack.c.l.b16 %v11190
    %v11822 = vunpack.c.h.b16 %v11190
    %v11823 = vunpack.c.l.b16 %v11191
    %v11824 = vunpack.c.h.b16 %v11191
    %v11825 = vunpack.c.l.b16 %v11192
    %v11826 = vunpack.c.h.b16 %v11192
    %v11827 = vunpack.c.l.b16 %v11193
    %v11828 = vunpack.c.h.b16 %v11193
    %v11829 = vunpack.c.l.b16 %v11194
    %v11830 = vunpack.c.h.b16 %v11194
    %v11831 = vunpack.c.l.b16 %v11195
    %v11832 = vunpack.c.h.b16 %v11195
    %v11833 = vunpack.c.l.b16 %v11196
    %v11834 = vunpack.c.h.b16 %v11196
    %v11835 = vunpack.c.l.b16 %v11197
    %v11836 = vunpack.c.h.b16 %v11197
    %v11837 = vunpack.c.l.b16 %v11198
    %v11838 = vunpack.c.h.b16 %v11198
    %v11839 = vunpack.c.l.b16 %v11199
    %v11840 = vunpack.c.h.b16 %v11199
    %v11841 = vunpack.c.l.b16 %v11200
    %v11842 = vunpack.c.h.b16 %v11200
    %v11843 = vunpack.c.l.b16 %v11201
    %v11844 = vunpack.c.h.b16 %v11201
    %v11845 = vunpack.c.l.b16 %v11202
    %v11846 = vunpack.c.h.b16 %v11202
    %v11847 = vunpack.c.l.b16 %v11203
    %v11848 = vunpack.c.h.b16 %v11203
    %v11849 = vunpack.c.l.b16 %v11204
    %v11850 = vunpack.c.h.b16 %v11204
    %v11851 = vunpack.c.l.b16 %v11205
    %v11852 = vunpack.c.h.b16 %v11205
    %v11853 = vunpack.c.l.b16 %v11206
    %v11854 = vunpack.c.h.b16 %v11206
    %v11855 = vunpack.c.l.b16 %v11207
    %v11856 = vunpack.c.h.b16 %v11207
    %v11857 = vunpack.c.l.b16 %v11208
    %v11858 = vunpack.c.h.b16 %v11208
    %v11859 = vunpack.c.l.b16 %v11209
    %v11860 = vunpack.c.h.b16 %v11209
    %v11861 = vunpack.c.l.b16 %v11210
    %v11862 = vunpack.c.h.b16 %v11210
    %v11863 = vunpack.c.l.b16 %v11211
    %v11864 = vunpack.c.h.b16 %v11211
    %v11865 = vunpack.c.l.b16 %v11212
    %v11866 = vunpack.c.h.b16 %v11212
    %v11867 = vunpack.c.l.b16 %v11213
    %v11868 = vunpack.c.h.b16 %v11213
    %v11869 = vunpack.c.l.b16 %v11214
    %v11870 = vunpack.c.h.b16 %v11214
    %v11871 = vunpack.c.l.b16 %v11215
    %v11872 = vunpack.c.h.b16 %v11215
    %v11873 = vunpack.c.l.b16 %v11216
    %v11874 = vunpack.c.h.b16 %v11216
    %v11875 = vunpack.c.l.b16 %v11217
    %v11876 = vunpack.c.h.b16 %v11217
    %v11877 = vunpack.c.l.b16 %v11218
    %v11878 = vunpack.c.h.b16 %v11218
    %v11879 = vunpack.c.l.b16 %v11219
    %v11880 = vunpack.c.h.b16 %v11219
    %v11881 = vunpack.c.l.b16 %v11220
    %v11882 = vunpack.c.h.b16 %v11220
    %v11883 = vunpack.c.l.b16 %v11221
    %v11884 = vunpack.c.h.b16 %v11221
    %v11885 = vunpack.c.l.b16 %v11222
    %v11886 = vunpack.c.h.b16 %v11222
    %v11887 = vunpack.c.l.b16 %v11223
    %v11888 = vunpack.c.h.b16 %v11223
    %v11889 = vunpack.c.l.b16 %v11224
    %v11890 = vunpack.c.h.b16 %v11224
    %v11891 = vunpack.c.l.b16 %v11225
    %v11892 = vunpack.c.h.b16 %v11225
    %v11893 = vunpack.c.l.b16 %v11226
    %v11894 = vunpack.c.h.b16 %v11226
    %v11895 = vunpack.c.l.b16 %v11227
    %v11896 = vunpack.c.h.b16 %v11227
    %v11897 = vunpack.c.l.b16 %v11228
    %v11898 = vunpack.c.h.b16 %v11228
    %v11899 = vunpack.c.l.b16 %v11229
    %v11900 = vunpack.c.h.b16 %v11229
    %v11901 = vunpack.c.l.b16 %v11230
    %v11902 = vunpack.c.h.b16 %v11230
    %v11903 = vunpack.c.l.b16 %v11231
    %v11904 = vunpack.c.h.b16 %v11231
    %v11905 = vunpack.c.l.b16 %v11232
    %v11906 = vunpack.c.h.b16 %v11232
    %v11907 = vunpack.c.l.b16 %v11233
    %v11908 = vunpack.c.h.b16 %v11233
    %v11909 = vunpack.c.l.b16 %v11234
    %v11910 = vunpack.c.h.b16 %v11234
    %v11911 = vunpack.c.l.b16 %v11235
    %v11912 = vunpack.c.h.b16 %v11235
    %v11913 = vunpack.c.l.b16 %v11236
    %v11914 = vunpack.c.h.b16 %v11236
    %v11915 = vunpack.c.l.b16 %v11237
    %v11916 = vunpack.c.h.b16 %v11237
    %v11917 = vunpack.c.l.b16 %v11238
    %v11918 = vunpack.c.h.b16 %v11238
    %v11919 = vunpack.c.l.b16 %v11239
    %v11920 = vunpack.c.h.b16 %v11239
    %v11921 = vunpack.c.l.b16 %v11240
    %v11922 = vunpack.c.h.b16 %v11240
    %v11923 = vunpack.c.l.b16 %v11241
    %v11924 = vunpack.c.h.b16 %v11241
    %v11925 = vunpack.c.l.b16 %v11242
    %v11926 = vunpack.c.h.b16 %v11242
    %v11927 = vunpack.c.l.b16 %v11243
    %v11928 = vunpack.c.h.b16 %v11243
    %v11929 = vunpack.c.l.b16 %v11244
    %v11930 = vunpack.c.h.b16 %v11244
    %v11931 = vunpack.c.l.b16 %v11245
    %v11932 = vunpack.c.h.b16 %v11245
    %v11933 = vunpack.c.l.b16 %v11246
    %v11934 = vunpack.c.h.b16 %v11246
    %v11935 = vunpack.c.l.b16 %v11247
    %v11936 = vunpack.c.h.b16 %v11247
    %v11937 = vunpack.c.l.b16 %v11248
    %v11938 = vunpack.c.h.b16 %v11248
    %v11939 = vunpack.c.l.b16 %v11249
    %v11940 = vunpack.c.h.b16 %v11249
    %v11941 = vunpack.c.l.b16 %v11250
    %v11942 = vunpack.c.h.b16 %v11250
    %v11943 = vunpack.c.l.b16 %v11251
    %v11944 = vunpack.c.h.b16 %v11251
    %v11945 = vunpack.c.l.b16 %v11252
    %v11946 = vunpack.c.h.b16 %v11252
    %v11947 = vunpack.c.l.b16 %v11253
    %v11948 = vunpack.c.h.b16 %v11253
    %v11949 = vunpack.c.l.b16 %v11254
    %v11950 = vunpack.c.h.b16 %v11254
    %v11951 = vunpack.c.l.b16 %v11255
    %v11952 = vunpack.c.h.b16 %v11255
    %v11953 = vunpack.c.l.b16 %v11256
    %v11954 = vunpack.c.h.b16 %v11256
    %v11955 = vunpack.c.l.b16 %v11257
    %v11956 = vunpack.c.h.b16 %v11257
    %v11957 = vunpack.c.l.b16 %v11258
    %v11958 = vunpack.c.h.b16 %v11258
    %v11959 = vunpack.c.l.b16 %v11259
    %v11960 = vunpack.c.h.b16 %v11259
    %v11961 = vunpack.c.l.b16 %v11260
    %v11962 = vunpack.c.h.b16 %v11260
    %v11963 = vunpack.c.l.b16 %v11261
    %v11964 = vunpack.c.h.b16 %v11261
    %v11965 = vunpack.c.l.b16 %v11262
    %v11966 = vunpack.c.h.b16 %v11262
    %v11967 = vunpack.c.l.b16 %v11263
    %v11968 = vunpack.c.h.b16 %v11263
    %v11969 = vunpack.c.l.b16 %v11264
    %v11970 = vunpack.c.h.b16 %v11264
    %v11971 = vunpack.c.l.b16 %v11265
    %v11972 = vunpack.c.h.b16 %v11265
    %v11973 = vunpack.c.l.b16 %v11266
    %v11974 = vunpack.c.h.b16 %v11266
    %v11975 = vunpack.c.l.b16 %v11267
    %v11976 = vunpack.c.h.b16 %v11267
    %v11977 = vunpack.c.l.b16 %v11268
    %v11978 = vunpack.c.h.b16 %v11268
    %v11979 = vunpack.c.l.b16 %v11269
    %v11980 = vunpack.c.h.b16 %v11269
    %v11981 = vunpack.c.l.b16 %v11270
    %v11982 = vunpack.c.h.b16 %v11270
    %v11983 = vunpack.c.l.b16 %v11271
    %v11984 = vunpack.c.h.b16 %v11271
    %v11985 = vunpack.c.l.b16 %v11272
    %v11986 = vunpack.c.h.b16 %v11272
    %v11987 = vunpack.c.l.b16 %v11273
    %v11988 = vunpack.c.h.b16 %v11273
    %v11989 = vunpack.c.l.b16 %v11274
    %v11990 = vunpack.c.h.b16 %v11274
    %v11991 = vunpack.c.l.b16 %v11275
    %v11992 = vunpack.c.h.b16 %v11275
    %v11993 = vunpack.c.l.b16 %v11276
    %v11994 = vunpack.c.h.b16 %v11276
    %v11995 = vunpack.c.l.b16 %v11277
    %v11996 = vunpack.c.h.b16 %v11277
    %v11997 = vunpack.c.l.b16 %v11278
    %v11998 = vunpack.c.h.b16 %v11278
    %v11999 = vunpack.c.l.b16 %v11279
    %v12000 = vunpack.c.h.b16 %v11279
    %v12001 = vunpack.c.l.b16 %v11280
    %v12002 = vunpack.c.h.b16 %v11280
    %v12003 = vunpack.c.l.b16 %v11281
    %v12004 = vunpack.c.h.b16 %v11281
    %v12005 = vunpack.c.l.b16 %v11282
    %v12006 = vunpack.c.h.b16 %v11282
    %v12007 = vunpack.c.l.b16 %v11283
    %v12008 = vunpack.c.h.b16 %v11283
    %v12009 = vunpack.c.l.b16 %v11284
    %v12010 = vunpack.c.h.b16 %v11284
    %v12011 = vunpack.c.l.b16 %v11285
    %v12012 = vunpack.c.h.b16 %v11285
    %v12013 = vunpack.c.l.b16 %v11286
    %v12014 = vunpack.c.h.b16 %v11286
    %v12015 = vunpack.c.l.b16 %v11287
    %v12016 = vunpack.c.h.b16 %v11287
    %v12017 = vunpack.c.l.b16 %v11288
    %v12018 = vunpack.c.h.b16 %v11288
    %v12019 = vunpack.c.l.b16 %v11289
    %v12020 = vunpack.c.h.b16 %v11289
    %v12021 = vunpack.c.l.b16 %v11290
    %v12022 = vunpack.c.h.b16 %v11290
    %v12023 = vunpack.c.l.b16 %v11291
    %v12024 = vunpack.c.h.b16 %v11291
    %v12025 = vunpack.c.l.b16 %v11292
    %v12026 = vunpack.c.h.b16 %v11292
    %v12027 = vunpack.c.l.b16 %v11293
    %v12028 = vunpack.c.h.b16 %v11293
    %v12029 = vunpack.c.l.b16 %v11294
    %v12030 = vunpack.c.h.b16 %v11294
    %v12031 = vunpack.c.l.b16 %v11295
    %v12032 = vunpack.c.h.b16 %v11295
    %v12033 = vunpack.c.l.b16 %v11296
    %v12034 = vunpack.c.h.b16 %v11296
    %v12035 = vunpack.c.l.b16 %v11297
    %v12036 = vunpack.c.h.b16 %v11297
    %v12037 = vunpack.c.l.b16 %v11298
    %v12038 = vunpack.c.h.b16 %v11298
    %v12039 = vunpack.c.l.b16 %v11299
    %v12040 = vunpack.c.h.b16 %v11299
    %v12041 = vunpack.c.l.b16 %v11300
    %v12042 = vunpack.c.h.b16 %v11300
    %v12043 = vunpack.c.l.b16 %v11301
    %v12044 = vunpack.c.h.b16 %v11301
    %v12045 = vunpack.c.l.b16 %v11302
    %v12046 = vunpack.c.h.b16 %v11302
    %v12047 = vunpack.c.l.b16 %v11303
    %v12048 = vunpack.c.h.b16 %v11303
    %v12049 = vunpack.c.l.b16 %v11304
    %v12050 = vunpack.c.h.b16 %v11304
    %v12051 = vunpack.c.l.b16 %v11305
    %v12052 = vunpack.c.h.b16 %v11305
    %v12053 = vunpack.c.l.b16 %v11306
    %v12054 = vunpack.c.h.b16 %v11306
    %v12055 = vunpack.c.l.b16 %v11307
    %v12056 = vunpack.c.h.b16 %v11307
    %v12057 = vunpack.c.l.b16 %v11308
    %v12058 = vunpack.c.h.b16 %v11308
    %v12059 = vunpack.c.l.b16 %v11309
    %v12060 = vunpack.c.h.b16 %v11309
    %v12061 = vunpack.c.l.b16 %v11310
    %v12062 = vunpack.c.h.b16 %v11310
    %v12063 = vunpack.c.l.b16 %v11311
    %v12064 = vunpack.c.h.b16 %v11311
    %v12065 = vunpack.c.l.b16 %v11312
    %v12066 = vunpack.c.h.b16 %v11312
    %v12067 = vunpack.c.l.b16 %v11313
    %v12068 = vunpack.c.h.b16 %v11313
    %v12069 = vunpack.c.l.b16 %v11314
    %v12070 = vunpack.c.h.b16 %v11314
    %v12071 = vunpack.c.l.b16 %v11315
    %v12072 = vunpack.c.h.b16 %v11315
    %v12073 = vunpack.c.l.b16 %v11316
    %v12074 = vunpack.c.h.b16 %v11316
    %v12075 = vunpack.c.l.b16 %v11317
    %v12076 = vunpack.c.h.b16 %v11317
    %v12077 = vunpack.c.l.b16 %v11318
    %v12078 = vunpack.c.h.b16 %v11318
    %v12079 = vunpack.c.l.b16 %v11319
    %v12080 = vunpack.c.h.b16 %v11319
    %v12081 = vunpack.c.l.b16 %v11320
    %v12082 = vunpack.c.h.b16 %v11320
    %v12083 = vunpack.c.l.b16 %v11321
    %v12084 = vunpack.c.h.b16 %v11321
    %v12085 = vunpack.c.l.b16 %v11322
    %v12086 = vunpack.c.h.b16 %v11322
    %v12087 = vunpack.c.l.b16 %v11323
    %v12088 = vunpack.c.h.b16 %v11323
    %v12089 = vunpack.c.l.b16 %v11324
    %v12090 = vunpack.c.h.b16 %v11324
    %v12091 = vunpack.c.l.b16 %v11325
    %v12092 = vunpack.c.h.b16 %v11325
    %v12093 = vunpack.c.l.b16 %v11326
    %v12094 = vunpack.c.h.b16 %v11326
    %v12095 = vunpack.c.l.b16 %v11327
    %v12096 = vunpack.c.h.b16 %v11327
    %v12097 = vunpack.c.l.b16 %v11328
    %v12098 = vunpack.c.h.b16 %v11328
    %v12099 = vunpack.c.l.b16 %v11329
    %v12100 = vunpack.c.h.b16 %v11329
    %v12101 = vunpack.c.l.b16 %v11330
    %v12102 = vunpack.c.h.b16 %v11330
    %v12103 = vunpack.c.l.b16 %v11331
    %v12104 = vunpack.c.h.b16 %v11331
    %v12105 = vunpack.c.l.b16 %v11332
    %v12106 = vunpack.c.h.b16 %v11332
    %v12107 = vunpack.c.l.b16 %v11333
    %v12108 = vunpack.c.h.b16 %v11333
    %v12109 = vunpack.c.l.b16 %v11334
    %v12110 = vunpack.c.h.b16 %v11334
    %v12111 = vunpack.c.l.b16 %v11335
    %v12112 = vunpack.c.h.b16 %v11335
    %v12113 = vunpack.c.l.b16 %v11336
    %v12114 = vunpack.c.h.b16 %v11336
    %v12115 = vunpack.c.l.b16 %v11337
    %v12116 = vunpack.c.h.b16 %v11337
    %v12117 = vunpack.c.l.b16 %v11338
    %v12118 = vunpack.c.h.b16 %v11338
    %v12119 = vunpack.c.l.b16 %v11339
    %v12120 = vunpack.c.h.b16 %v11339
    %v12121 = vunpack.c.l.b16 %v11340
    %v12122 = vunpack.c.h.b16 %v11340
    %v12123 = vunpack.c.l.b16 %v11341
    %v12124 = vunpack.c.h.b16 %v11341
    %v12125 = vunpack.c.l.b16 %v11342
    %v12126 = vunpack.c.h.b16 %v11342
    %v12127 = vunpack.c.l.b16 %v11343
    %v12128 = vunpack.c.h.b16 %v11343
    %v12129 = vunpack.c.l.b16 %v11344
    %v12130 = vunpack.c.h.b16 %v11344
    %v12131 = vunpack.c.l.b16 %v11345
    %v12132 = vunpack.c.h.b16 %v11345
    %v12133 = vunpack.c.l.b16 %v11346
    %v12134 = vunpack.c.h.b16 %v11346
    %v12135 = vunpack.c.l.b16 %v11347
    %v12136 = vunpack.c.h.b16 %v11347
    %v12137 = vunpack.c.l.b16 %v11348
    %v12138 = vunpack.c.h.b16 %v11348
    %v12139 = vpack.c.b16 %v11631, %v11627
    %v12140 = vpack.c.b16 %v11632, %v11628
    %v12141 = vpack.c.b16 %v11633, %v11629
    %v12142 = vpack.c.b16 %v11634, %v11630
    %v12143 = vpack.c.b16 %v11639, %v11635
    %v12144 = vpack.c.b16 %v11640, %v11636
    %v12145 = vpack.c.b16 %v11641, %v11637
    %v12146 = vpack.c.b16 %v11642, %v11638
    %v12147 = vpack.c.b16 %v11647, %v11643
    %v12148 = vpack.c.b16 %v11648, %v11644
    %v12149 = vpack.c.b16 %v11649, %v11645
    %v12150 = vpack.c.b16 %v11650, %v11646
    %v12151 = vpack.c.b16 %v11655, %v11651
    %v12152 = vpack.c.b16 %v11656, %v11652
    %v12153 = vpack.c.b16 %v11657, %v11653
    %v12154 = vpack.c.b16 %v11658, %v11654
    %v12155 = vpack.c.b16 %v11663, %v11659
    %v12156 = vpack.c.b16 %v11664, %v11660
    %v12157 = vpack.c.b16 %v11665, %v11661
    %v12158 = vpack.c.b16 %v11666, %v11662
    %v12159 = vpack.c.b16 %v11671, %v11667
    %v12160 = vpack.c.b16 %v11672, %v11668
    %v12161 = vpack.c.b16 %v11673, %v11669
    %v12162 = vpack.c.b16 %v11674, %v11670
    %v12163 = vpack.c.b16 %v11679, %v11675
    %v12164 = vpack.c.b16 %v11680, %v11676
    %v12165 = vpack.c.b16 %v11681, %v11677
    %v12166 = vpack.c.b16 %v11682, %v11678
    %v12167 = vpack.c.b16 %v11687, %v11683
    %v12168 = vpack.c.b16 %v11688, %v11684
    %v12169 = vpack.c.b16 %v11689, %v11685
    %v12170 = vpack.c.b16 %v11690, %v11686
    %v12171 = vpack.c.b16 %v11695, %v11691
    %v12172 = vpack.c.b16 %v11696, %v11692
    %v12173 = vpack.c.b16 %v11697, %v11693
    %v12174 = vpack.c.b16 %v11698, %v11694
    %v12175 = vpack.c.b16 %v11703, %v11699
    %v12176 = vpack.c.b16 %v11704, %v11700
    %v12177 = vpack.c.b16 %v11705, %v11701
    %v12178 = vpack.c.b16 %v11706, %v11702
    %v12179 = vpack.c.b16 %v11711, %v11707
    %v12180 = vpack.c.b16 %v11712, %v11708
    %v12181 = vpack.c.b16 %v11713, %v11709
    %v12182 = vpack.c.b16 %v11714, %v11710
    %v12183 = vpack.c.b16 %v11719, %v11715
    %v12184 = vpack.c.b16 %v11720, %v11716
    %v12185 = vpack.c.b16 %v11721, %v11717
    %v12186 = vpack.c.b16 %v11722, %v11718
    %v12187 = vpack.c.b16 %v11727, %v11723
    %v12188 = vpack.c.b16 %v11728, %v11724
    %v12189 = vpack.c.b16 %v11729, %v11725
    %v12190 = vpack.c.b16 %v11730, %v11726
    %v12191 = vpack.c.b16 %v11735, %v11731
    %v12192 = vpack.c.b16 %v11736, %v11732
    %v12193 = vpack.c.b16 %v11737, %v11733
    %v12194 = vpack.c.b16 %v11738, %v11734
    %v12195 = vpack.c.b16 %v11743, %v11739
    %v12196 = vpack.c.b16 %v11744, %v11740
    %v12197 = vpack.c.b16 %v11745, %v11741
    %v12198 = vpack.c.b16 %v11746, %v11742
    %v12199 = vpack.c.b16 %v11751, %v11747
    %v12200 = vpack.c.b16 %v11752, %v11748
    %v12201 = vpack.c.b16 %v11753, %v11749
    %v12202 = vpack.c.b16 %v11754, %v11750
    %v12203 = vpack.c.b16 %v11759, %v11755
    %v12204 = vpack.c.b16 %v11760, %v11756
    %v12205 = vpack.c.b16 %v11761, %v11757
    %v12206 = vpack.c.b16 %v11762, %v11758
    %v12207 = vpack.c.b16 %v11767, %v11763
    %v12208 = vpack.c.b16 %v11768, %v11764
    %v12209 = vpack.c.b16 %v11769, %v11765
    %v12210 = vpack.c.b16 %v11770, %v11766
    %v12211 = vpack.c.b16 %v11775, %v11771
    %v12212 = vpack.c.b16 %v11776, %v11772
    %v12213 = vpack.c.b16 %v11777, %v11773
    %v12214 = vpack.c.b16 %v11778, %v11774
    %v12215 = vpack.c.b16 %v11783, %v11779
    %v12216 = vpack.c.b16 %v11784, %v11780
    %v12217 = vpack.c.b16 %v11785, %v11781
    %v12218 = vpack.c.b16 %v11786, %v11782
    %v12219 = vpack.c.b16 %v11791, %v11787
    %v12220 = vpack.c.b16 %v11792, %v11788
    %v12221 = vpack.c.b16 %v11793, %v11789
    %v12222 = vpack.c.b16 %v11794, %v11790
    %v12223 = vpack.c.b16 %v11799, %v11795
    %v12224 = vpack.c.b16 %v11800, %v11796
    %v12225 = vpack.c.b16 %v11801, %v11797
    %v12226 = vpack.c.b16 %v11802, %v11798
    %v12227 = vpack.c.b16 %v11807, %v11803
    %v12228 = vpack.c.b16 %v11808, %v11804
    %v12229 = vpack.c.b16 %v11809, %v11805
    %v12230 = vpack.c.b16 %v11810, %v11806
    %v12231 = vpack.c.b16 %v11815, %v11811
    %v12232 = vpack.c.b16 %v11816, %v11812
    %v12233 = vpack.c.b16 %v11817, %v11813
    %v12234 = vpack.c.b16 %v11818, %v11814
    %v12235 = vpack.c.b16 %v11823, %v11819
    %v12236 = vpack.c.b16 %v11824, %v11820
    %v12237 = vpack.c.b16 %v11825, %v11821
    %v12238 = vpack.c.b16 %v11826, %v11822
    %v12239 = vpack.c.b16 %v11831, %v11827
    %v12240 = vpack.c.b16 %v11832, %v11828
    %v12241 = vpack.c.b16 %v11833, %v11829
    %v12242 = vpack.c.b16 %v11834, %v11830
    %v12243 = vpack.c.b16 %v11839, %v11835
    %v12244 = vpack.c.b16 %v11840, %v11836
    %v12245 = vpack.c.b16 %v11841, %v11837
    %v12246 = vpack.c.b16 %v11842, %v11838
    %v12247 = vpack.c.b16 %v11847, %v11843
    %v12248 = vpack.c.b16 %v11848, %v11844
    %v12249 = vpack.c.b16 %v11849, %v11845
    %v12250 = vpack.c.b16 %v11850, %v11846
    %v12251 = vpack.c.b16 %v11855, %v11851
    %v12252 = vpack.c.b16 %v11856, %v11852
    %v12253 = vpack.c.b16 %v11857, %v11853
    %v12254 = vpack.c.b16 %v11858, %v11854
    %v12255 = vpack.c.b16 %v11863, %v11859
    %v12256 = vpack.c.b16 %v11864, %v11860
    %v12257 = vpack.c.b16 %v11865, %v11861
    %v12258 = vpack.c.b16 %v11866, %v11862
    %v12259 = vpack.c.b16 %v11871, %v11867
    %v12260 = vpack.c.b16 %v11872, %v11868
    %v12261 = vpack.c.b16 %v11873, %v11869
    %v12262 = vpack.c.b16 %v11874, %v11870
    %v12263 = vpack.c.b16 %v11879, %v11875
    %v12264 = vpack.c.b16 %v11880, %v11876
    %v12265 = vpack.c.b16 %v11881, %v11877
    %v12266 = vpack.c.b16 %v11882, %v11878
    %v12267 = vpack.c.b16 %v11887, %v11883
    %v12268 = vpack.c.b16 %v11888, %v11884
    %v12269 = vpack.c.b16 %v11889, %v11885
    %v12270 = vpack.c.b16 %v11890, %v11886
    %v12271 = vpack.c.b16 %v11895, %v11891
    %v12272 = vpack.c.b16 %v11896, %v11892
    %v12273 = vpack.c.b16 %v11897, %v11893
    %v12274 = vpack.c.b16 %v11898, %v11894
    %v12275 = vpack.c.b16 %v11903, %v11899
    %v12276 = vpack.c.b16 %v11904, %v11900
    %v12277 = vpack.c.b16 %v11905, %v11901
    %v12278 = vpack.c.b16 %v11906, %v11902
    %v12279 = vpack.c.b16 %v11911, %v11907
    %v12280 = vpack.c.b16 %v11912, %v11908
    %v12281 = vpack.c.b16 %v11913, %v11909
    %v12282 = vpack.c.b16 %v11914, %v11910
    %v12283 = vpack.c.b16 %v11919, %v11915
    %v12284 = vpack.c.b16 %v11920, %v11916
    %v12285 = vpack.c.b16 %v11921, %v11917
    %v12286 = vpack.c.b16 %v11922, %v11918
    %v12287 = vpack.c.b16 %v11927, %v11923
    %v12288 = vpack.c.b16 %v11928, %v11924
    %v12289 = vpack.c.b16 %v11929, %v11925
    %v12290 = vpack.c.b16 %v11930, %v11926
    %v12291 = vpack.c.b16 %v11935, %v11931
    %v12292 = vpack.c.b16 %v11936, %v11932
    %v12293 = vpack.c.b16 %v11937, %v11933
    %v12294 = vpack.c.b16 %v11938, %v11934
    %v12295 = vpack.c.b16 %v11943, %v11939
    %v12296 = vpack.c.b16 %v11944, %v11940
    %v12297 = vpack.c.b16 %v11945, %v11941
    %v12298 = vpack.c.b16 %v11946, %v11942
    %v12299 = vpack.c.b16 %v11951, %v11947
    %v12300 = vpack.c.b16 %v11952, %v11948
    %v12301 = vpack.c.b16 %v11953, %v11949
    %v12302 = vpack.c.b16 %v11954, %v11950
    %v12303 = vpack.c.b16 %v11959, %v11955
    %v12304 = vpack.c.b16 %v11960, %v11956
    %v12305 = vpack.c.b16 %v11961, %v11957
    %v12306 = vpack.c.b16 %v11962, %v11958
    %v12307 = vpack.c.b16 %v11967, %v11963
    %v12308 = vpack.c.b16 %v11968, %v11964
    %v12309 = vpack.c.b16 %v11969, %v11965
    %v12310 = vpack.c.b16 %v11970, %v11966
    %v12311 = vpack.c.b16 %v11975, %v11971
    %v12312 = vpack.c.b16 %v11976, %v11972
    %v12313 = vpack.c.b16 %v11977, %v11973
    %v12314 = vpack.c.b16 %v11978, %v11974
    %v12315 = vpack.c.b16 %v11983, %v11979
    %v12316 = vpack.c.b16 %v11984, %v11980
    %v12317 = vpack.c.b16 %v11985, %v11981
    %v12318 = vpack.c.b16 %v11986, %v11982
    %v12319 = vpack.c.b16 %v11991, %v11987
    %v12320 = vpack.c.b16 %v11992, %v11988
    %v12321 = vpack.c.b16 %v11993, %v11989
    %v12322 = vpack.c.b16 %v11994, %v11990
    %v12323 = vpack.c.b16 %v11999, %v11995
    %v12324 = vpack.c.b16 %v12000, %v11996
    %v12325 = vpack.c.b16 %v12001, %v11997
    %v12326 = vpack.c.b16 %v12002, %v11998
    %v12327 = vpack.c.b16 %v12007, %v12003
    %v12328 = vpack.c.b16 %v12008, %v12004
    %v12329 = vpack.c.b16 %v12009, %v12005
    %v12330 = vpack.c.b16 %v12010, %v12006
    %v12331 = vpack.c.b16 %v12015, %v12011
    %v12332 = vpack.c.b16 %v12016, %v12012
    %v12333 = vpack.c.b16 %v12017, %v12013
    %v12334 = vpack.c.b16 %v12018, %v12014
    %v12335 = vpack.c.b16 %v12023, %v12019
    %v12336 = vpack.c.b16 %v12024, %v12020
    %v12337 = vpack.c.b16 %v12025, %v12021
    %v12338 = vpack.c.b16 %v12026, %v12022
    %v12339 = vpack.c.b16 %v12031, %v12027
    %v12340 = vpack.c.b16 %v12032, %v12028
    %v12341 = vpack.c.b16 %v12033, %v12029
    %v12342 = vpack.c.b16 %v12034, %v12030
    %v12343 = vpack.c.b16 %v12039, %v12035
    %v12344 = vpack.c.b16 %v12040, %v12036
    %v12345 = vpack.c.b16 %v12041, %v12037
    %v12346 = vpack.c.b16 %v12042, %v12038
    %v12347 = vpack.c.b16 %v12047, %v12043
    %v12348 = vpack.c.b16 %v12048, %v12044
    %v12349 = vpack.c.b16 %v12049, %v12045
    %v12350 = vpack.c.b16 %v12050, %v12046
    %v12351 = vpack.c.b16 %v12055, %v12051
    %v12352 = vpack.c.b16 %v12056, %v12052
    %v12353 = vpack.c.b16 %v12057, %v12053
    %v12354 = vpack.c.b16 %v12058, %v12054
    %v12355 = vpack.c.b16 %v12063, %v12059
    %v12356 = vpack.c.b16 %v12064, %v12060
    %v12357 = vpack.c.b16 %v12065, %v12061
    %v12358 = vpack.c.b16 %v12066, %v12062
    %v12359 = vpack.c.b16 %v12071, %v12067
    %v12360 = vpack.c.b16 %v12072, %v12068
    %v12361 = vpack.c.b16 %v12073, %v12069
    %v12362 = vpack.c.b16 %v12074, %v12070
    %v12363 = vpack.c.b16 %v12079, %v12075
    %v12364 = vpack.c.b16 %v12080, %v12076
    %v12365 = vpack.c.b16 %v12081, %v12077
    %v12366 = vpack.c.b16 %v12082, %v12078
    %v12367 = vpack.c.b16 %v12087, %v12083
    %v12368 = vpack.c.b16 %v12088, %v12084
    %v12369 = vpack.c.b16 %v12089, %v12085
    %v12370 = vpack.c.b16 %v12090, %v12086
    %v12371 = vpack.c.b16 %v12095, %v12091
    %v12372 = vpack.c.b16 %v12096, %v12092
    %v12373 = vpack.c.b16 %v12097, %v12093
    %v12374 = vpack.c.b16 %v12098, %v12094
    %v12375 = vpack.c.b16 %v12103, %v12099
    %v12376 = vpack.c.b16 %v12104, %v12100
    %v12377 = vpack.c.b16 %v12105, %v12101
    %v12378 = vpack.c.b16 %v12106, %v12102
    %v12379 = vpack.c.b16 %v12111, %v12107
    %v12380 = vpack.c.b16 %v12112, %v12108
    %v12381 = vpack.c.b16 %v12113, %v12109
    %v12382 = vpack.c.b16 %v12114, %v12110
    %v12383 = vpack.c.b16 %v12119, %v12115
    %v12384 = vpack.c.b16 %v12120, %v12116
    %v12385 = vpack.c.b16 %v12121, %v12117
    %v12386 = vpack.c.b16 %v12122, %v12118
    %v12387 = vpack.c.b16 %v12127, %v12123
    %v12388 = vpack.c.b16 %v12128, %v12124
    %v12389 = vpack.c.b16 %v12129, %v12125
    %v12390 = vpack.c.b16 %v12130, %v12126
    %v12391 = vpack.c.b16 %v12135, %v12131
    %v12392 = vpack.c.b16 %v12136, %v12132
    %v12393 = vpack.c.b16 %v12137, %v12133
    %v12394 = vpack.c.b16 %v12138, %v12134
    %12651 = vmatprep.subr.bf16.mxu0 %v12140
    %12652 = vmatpush1.bf16.msra.mxu0 %v12139
    %12653 = vmatprep.subr.bf16.mxu0 %v12144
    %12654 = vmatpush1.bf16.msra.mxu0 %v12143
    %12655 = vmatprep.subr.bf16.mxu0 %v12148
    %12656 = vmatpush1.bf16.msra.mxu0 %v12147
    %12657 = vmatprep.subr.bf16.mxu0 %v12152
    %12658 = vmatpush1.bf16.msra.mxu0 %v12151
    %12659 = vmatprep.subr.bf16.mxu0 %v12156
    %12660 = vmatpush1.bf16.msra.mxu0 %v12155
    %12661 = vmatprep.subr.bf16.mxu0 %v12160
    %12662 = vmatpush1.bf16.msra.mxu0 %v12159
    %12663 = vmatprep.subr.bf16.mxu0 %v12164
    %12664 = vmatpush1.bf16.msra.mxu0 %v12163
    %12665 = vmatprep.subr.bf16.mxu0 %v12168
    %12666 = vmatpush1.bf16.msra.mxu0 %v12167
    %12667 = vmatprep.subr.bf16.mxu0 %v12172
    %12668 = vmatpush1.bf16.msra.mxu0 %v12171
    %12669 = vmatprep.subr.bf16.mxu0 %v12176
    %12670 = vmatpush1.bf16.msra.mxu0 %v12175
    %12671 = vmatprep.subr.bf16.mxu0 %v12180
    %12672 = vmatpush1.bf16.msra.mxu0 %v12179
    %12673 = vmatprep.subr.bf16.mxu0 %v12184
    %12674 = vmatpush1.bf16.msra.mxu0 %v12183
    %12675 = vmatprep.subr.bf16.mxu0 %v12188
    %12676 = vmatpush1.bf16.msra.mxu0 %v12187
    %12677 = vmatprep.subr.bf16.mxu0 %v12192
    %12678 = vmatpush1.bf16.msra.mxu0 %v12191
    %12679 = vmatprep.subr.bf16.mxu0 %v12196
    %12680 = vmatpush1.bf16.msra.mxu0 %v12195
    %12681 = vmatprep.subr.bf16.mxu0 %v12200
    %12682 = vmatpush1.bf16.msra.mxu0 %v12199
    %12683 = vmatprep.mubr.bf16.mxu0 %v11086
    %12684 = vmatmul.mubr.bf16.gmra.mrb[0].mxu0 %v11085
    %v12685 = vpop.f32.mrb[0].mxu0
    %v12686 = vadd.f32 %v11354, %v12685
    %v12687 = vpop.f32.mrb[0].mxu0
    %v12688 = vadd.f32 %v11358, %v12687
    %v12689 = vpop.f32.mrb[0].mxu0
    %v12690 = vpop.f32.mrb[0].mxu0
    %12691 = vdwg.mxu0
    %12692 = vmatprep.subr.bf16.mxu0 %v12204
    %12693 = vmatpush1.bf16.msra.mxu0 %v12203
    %12694 = vmatprep.subr.bf16.mxu0 %v12208
    %12695 = vmatpush1.bf16.msra.mxu0 %v12207
    %12696 = vmatprep.subr.bf16.mxu0 %v12212
    %12697 = vmatpush1.bf16.msra.mxu0 %v12211
    %12698 = vmatprep.subr.bf16.mxu0 %v12216
    %12699 = vmatpush1.bf16.msra.mxu0 %v12215
    %12700 = vmatprep.subr.bf16.mxu0 %v12220
    %12701 = vmatpush1.bf16.msra.mxu0 %v12219
    %12702 = vmatprep.subr.bf16.mxu0 %v12224
    %12703 = vmatpush1.bf16.msra.mxu0 %v12223
    %12704 = vmatprep.subr.bf16.mxu0 %v12228
    %12705 = vmatpush1.bf16.msra.mxu0 %v12227
    %12706 = vmatprep.subr.bf16.mxu0 %v12232
    %12707 = vmatpush1.bf16.msra.mxu0 %v12231
    %12708 = vmatprep.subr.bf16.mxu0 %v12236
    %12709 = vmatpush1.bf16.msra.mxu0 %v12235
    %12710 = vmatprep.subr.bf16.mxu0 %v12240
    %12711 = vmatpush1.bf16.msra.mxu0 %v12239
    %12712 = vmatprep.subr.bf16.mxu0 %v12244
    %12713 = vmatpush1.bf16.msra.mxu0 %v12243
    %12714 = vmatprep.subr.bf16.mxu0 %v12248
    %12715 = vmatpush1.bf16.msra.mxu0 %v12247
    %12716 = vmatprep.subr.bf16.mxu0 %v12252
    %12717 = vmatpush1.bf16.msra.mxu0 %v12251
    %12718 = vmatprep.subr.bf16.mxu0 %v12256
    %12719 = vmatpush1.bf16.msra.mxu0 %v12255
    %12720 = vmatprep.subr.bf16.mxu0 %v12260
    %12721 = vmatpush1.bf16.msra.mxu0 %v12259
    %12722 = vmatprep.subr.bf16.mxu0 %v12264
    %12723 = vmatpush1.bf16.msra.mxu0 %v12263
    %12724 = vmatprep.mubr.bf16.mxu0 %v11088
    %12725 = vmatmul.mubr.bf16.gmra.mrb[0].mxu0 %v11087
    %v12726 = vpop.f32.mrb[0].mxu0
    %v12727 = vadd.f32 %v12686, %v12726
    %v12728 = vpop.f32.mrb[0].mxu0
    %v12729 = vadd.f32 %v12688, %v12728
    %v12730 = vpop.f32.mrb[0].mxu0
    %v12731 = vpop.f32.mrb[0].mxu0
    %12732 = vdwg.mxu0
    %12733 = vmatprep.subr.bf16.mxu0 %v12268
    %12734 = vmatpush1.bf16.msra.mxu0 %v12267
    %12735 = vmatprep.subr.bf16.mxu0 %v12272
    %12736 = vmatpush1.bf16.msra.mxu0 %v12271
    %12737 = vmatprep.subr.bf16.mxu0 %v12276
    %12738 = vmatpush1.bf16.msra.mxu0 %v12275
    %12739 = vmatprep.subr.bf16.mxu0 %v12280
    %12740 = vmatpush1.bf16.msra.mxu0 %v12279
    %12741 = vmatprep.subr.bf16.mxu0 %v12284
    %12742 = vmatpush1.bf16.msra.mxu0 %v12283
    %12743 = vmatprep.subr.bf16.mxu0 %v12288
    %12744 = vmatpush1.bf16.msra.mxu0 %v12287
    %12745 = vmatprep.subr.bf16.mxu0 %v12292
    %12746 = vmatpush1.bf16.msra.mxu0 %v12291
    %12747 = vmatprep.subr.bf16.mxu0 %v12296
    %12748 = vmatpush1.bf16.msra.mxu0 %v12295
    %12749 = vmatprep.subr.bf16.mxu0 %v12300
    %12750 = vmatpush1.bf16.msra.mxu0 %v12299
    %12751 = vmatprep.subr.bf16.mxu0 %v12304
    %12752 = vmatpush1.bf16.msra.mxu0 %v12303
    %12753 = vmatprep.subr.bf16.mxu0 %v12308
    %12754 = vmatpush1.bf16.msra.mxu0 %v12307
    %12755 = vmatprep.subr.bf16.mxu0 %v12312
    %12756 = vmatpush1.bf16.msra.mxu0 %v12311
    %12757 = vmatprep.subr.bf16.mxu0 %v12316
    %12758 = vmatpush1.bf16.msra.mxu0 %v12315
    %12759 = vmatprep.subr.bf16.mxu0 %v12320
    %12760 = vmatpush1.bf16.msra.mxu0 %v12319
    %12761 = vmatprep.subr.bf16.mxu0 %v12324
    %12762 = vmatpush1.bf16.msra.mxu0 %v12323
    %12763 = vmatprep.subr.bf16.mxu0 %v12328
    %12764 = vmatpush1.bf16.msra.mxu0 %v12327
    %12765 = vmatprep.mubr.bf16.mxu0 %v11090
    %12766 = vmatmul.mubr.bf16.gmra.mrb[0].mxu0 %v11089
    %v12767 = vpop.f32.mrb[0].mxu0
    %v12768 = vadd.f32 %v12727, %v12767
    %v12769 = vpop.f32.mrb[0].mxu0
    %v12770 = vadd.f32 %v12729, %v12769
    %v12771 = vpop.f32.mrb[0].mxu0
    %v12772 = vpop.f32.mrb[0].mxu0
    %12773 = vdwg.mxu0
    %12774 = vmatprep.subr.bf16.mxu0 %v12332
    %12775 = vmatpush1.bf16.msra.mxu0 %v12331
    %12776 = vmatprep.subr.bf16.mxu0 %v12336
    %12777 = vmatpush1.bf16.msra.mxu0 %v12335
    %12778 = vmatprep.subr.bf16.mxu0 %v12340
    %12779 = vmatpush1.bf16.msra.mxu0 %v12339
    %12780 = vmatprep.subr.bf16.mxu0 %v12344
    %12781 = vmatpush1.bf16.msra.mxu0 %v12343
    %12782 = vmatprep.subr.bf16.mxu0 %v12348
    %12783 = vmatpush1.bf16.msra.mxu0 %v12347
    %12784 = vmatprep.subr.bf16.mxu0 %v12352
    %12785 = vmatpush1.bf16.msra.mxu0 %v12351
    %12786 = vmatprep.subr.bf16.mxu0 %v12356
    %12787 = vmatpush1.bf16.msra.mxu0 %v12355
    %12788 = vmatprep.subr.bf16.mxu0 %v12360
    %12789 = vmatpush1.bf16.msra.mxu0 %v12359
    %12790 = vmatprep.subr.bf16.mxu0 %v12364
    %12791 = vmatpush1.bf16.msra.mxu0 %v12363
    %12792 = vmatprep.subr.bf16.mxu0 %v12368
    %12793 = vmatpush1.bf16.msra.mxu0 %v12367
    %12794 = vmatprep.subr.bf16.mxu0 %v12372
    %12795 = vmatpush1.bf16.msra.mxu0 %v12371
    %12796 = vmatprep.subr.bf16.mxu0 %v12376
    %12797 = vmatpush1.bf16.msra.mxu0 %v12375
    %12798 = vmatprep.subr.bf16.mxu0 %v12380
    %12799 = vmatpush1.bf16.msra.mxu0 %v12379
    %12800 = vmatprep.subr.bf16.mxu0 %v12384
    %12801 = vmatpush1.bf16.msra.mxu0 %v12383
    %12802 = vmatprep.subr.bf16.mxu0 %v12388
    %12803 = vmatpush1.bf16.msra.mxu0 %v12387
    %12804 = vmatprep.subr.bf16.mxu0 %v12392
    %12805 = vmatpush1.bf16.msra.mxu0 %v12391
    %12806 = vmatprep.mubr.bf16.mxu0 %v11092
    %12807 = vmatmul.mubr.bf16.gmra.mrb[0].mxu0 %v11091
    %v12808 = vpop.f32.mrb[0].mxu0
    %v12809 = vadd.f32 %v12768, %v12808
    %v12810 = vpop.f32.mrb[0].mxu0
    %v12811 = vadd.f32 %v12770, %v12810
    %v12812 = vpop.f32.mrb[0].mxu0
    %v12813 = vpop.f32.mrb[0].mxu0
    %12814 = vdwg.mxu0
    %12815 = vmatprep.subr.bf16.mxu0 %v12142
    %12816 = vmatpush1.bf16.msra.mxu0 %v12141
    %12817 = vmatprep.subr.bf16.mxu0 %v12146
    %12818 = vmatpush1.bf16.msra.mxu0 %v12145
    %12819 = vmatprep.subr.bf16.mxu0 %v12150
    %12820 = vmatpush1.bf16.msra.mxu0 %v12149
    %12821 = vmatprep.subr.bf16.mxu0 %v12154
    %12822 = vmatpush1.bf16.msra.mxu0 %v12153
    %12823 = vmatprep.subr.bf16.mxu0 %v12158
    %12824 = vmatpush1.bf16.msra.mxu0 %v12157
    %12825 = vmatprep.subr.bf16.mxu0 %v12162
    %12826 = vmatpush1.bf16.msra.mxu0 %v12161
    %12827 = vmatprep.subr.bf16.mxu0 %v12166
    %12828 = vmatpush1.bf16.msra.mxu0 %v12165
    %12829 = vmatprep.subr.bf16.mxu0 %v12170
    %12830 = vmatpush1.bf16.msra.mxu0 %v12169
    %12831 = vmatprep.subr.bf16.mxu0 %v12174
    %12832 = vmatpush1.bf16.msra.mxu0 %v12173
    %12833 = vmatprep.subr.bf16.mxu0 %v12178
    %12834 = vmatpush1.bf16.msra.mxu0 %v12177
    %12835 = vmatprep.subr.bf16.mxu0 %v12182
    %12836 = vmatpush1.bf16.msra.mxu0 %v12181
    %12837 = vmatprep.subr.bf16.mxu0 %v12186
    %12838 = vmatpush1.bf16.msra.mxu0 %v12185
    %12839 = vmatprep.subr.bf16.mxu0 %v12190
    %12840 = vmatpush1.bf16.msra.mxu0 %v12189
    %12841 = vmatprep.subr.bf16.mxu0 %v12194
    %12842 = vmatpush1.bf16.msra.mxu0 %v12193
    %12843 = vmatprep.subr.bf16.mxu0 %v12198
    %12844 = vmatpush1.bf16.msra.mxu0 %v12197
    %12845 = vmatprep.subr.bf16.mxu0 %v12202
    %12846 = vmatpush1.bf16.msra.mxu0 %v12201
    %12847 = vmatprep.mubr.bf16.mxu0 %v11086
    %12848 = vmatmul.mubr.bf16.gmra.mrb[0].mxu0 %v11085
    %v12849 = vpop.f32.mrb[0].mxu0
    %v12850 = vadd.f32 %v11362, %v12849
    %v12851 = vpop.f32.mrb[0].mxu0
    %v12852 = vadd.f32 %v11366, %v12851
    %v12853 = vpop.f32.mrb[0].mxu0
    %v12854 = vpop.f32.mrb[0].mxu0
    %12855 = vdwg.mxu0
    %12856 = vmatprep.subr.bf16.mxu0 %v12206
    %12857 = vmatpush1.bf16.msra.mxu0 %v12205
    %12858 = vmatprep.subr.bf16.mxu0 %v12210
    %12859 = vmatpush1.bf16.msra.mxu0 %v12209
    %12860 = vmatprep.subr.bf16.mxu0 %v12214
    %12861 = vmatpush1.bf16.msra.mxu0 %v12213
    %12862 = vmatprep.subr.bf16.mxu0 %v12218
    %12863 = vmatpush1.bf16.msra.mxu0 %v12217
    %12864 = vmatprep.subr.bf16.mxu0 %v12222
    %12865 = vmatpush1.bf16.msra.mxu0 %v12221
    %12866 = vmatprep.subr.bf16.mxu0 %v12226
    %12867 = vmatpush1.bf16.msra.mxu0 %v12225
    %12868 = vmatprep.subr.bf16.mxu0 %v12230
    %12869 = vmatpush1.bf16.msra.mxu0 %v12229
    %12870 = vmatprep.subr.bf16.mxu0 %v12234
    %12871 = vmatpush1.bf16.msra.mxu0 %v12233
    %12872 = vmatprep.subr.bf16.mxu0 %v12238
    %12873 = vmatpush1.bf16.msra.mxu0 %v12237
    %12874 = vmatprep.subr.bf16.mxu0 %v12242
    %12875 = vmatpush1.bf16.msra.mxu0 %v12241
    %12876 = vmatprep.subr.bf16.mxu0 %v12246
    %12877 = vmatpush1.bf16.msra.mxu0 %v12245
    %12878 = vmatprep.subr.bf16.mxu0 %v12250
    %12879 = vmatpush1.bf16.msra.mxu0 %v12249
    %12880 = vmatprep.subr.bf16.mxu0 %v12254
    %12881 = vmatpush1.bf16.msra.mxu0 %v12253
    %12882 = vmatprep.subr.bf16.mxu0 %v12258
    %12883 = vmatpush1.bf16.msra.mxu0 %v12257
    %12884 = vmatprep.subr.bf16.mxu0 %v12262
    %12885 = vmatpush1.bf16.msra.mxu0 %v12261
    %12886 = vmatprep.subr.bf16.mxu0 %v12266
    %12887 = vmatpush1.bf16.msra.mxu0 %v12265
    %12888 = vmatprep.mubr.bf16.mxu0 %v11088
    %12889 = vmatmul.mubr.bf16.gmra.mrb[0].mxu0 %v11087
    %v12890 = vpop.f32.mrb[0].mxu0
    %v12891 = vadd.f32 %v12850, %v12890
    %v12892 = vpop.f32.mrb[0].mxu0
    %v12893 = vadd.f32 %v12852, %v12892
    %v12894 = vpop.f32.mrb[0].mxu0
    %v12895 = vpop.f32.mrb[0].mxu0
    %12896 = vdwg.mxu0
    %12897 = vmatprep.subr.bf16.mxu0 %v12270
    %12898 = vmatpush1.bf16.msra.mxu0 %v12269
    %12899 = vmatprep.subr.bf16.mxu0 %v12274
    %12900 = vmatpush1.bf16.msra.mxu0 %v12273
    %12901 = vmatprep.subr.bf16.mxu0 %v12278
    %12902 = vmatpush1.bf16.msra.mxu0 %v12277
    %12903 = vmatprep.subr.bf16.mxu0 %v12282
    %12904 = vmatpush1.bf16.msra.mxu0 %v12281
    %12905 = vmatprep.subr.bf16.mxu0 %v12286
    %12906 = vmatpush1.bf16.msra.mxu0 %v12285
    %12907 = vmatprep.subr.bf16.mxu0 %v12290
    %12908 = vmatpush1.bf16.msra.mxu0 %v12289
    %12909 = vmatprep.subr.bf16.mxu0 %v12294
    %12910 = vmatpush1.bf16.msra.mxu0 %v12293
    %12911 = vmatprep.subr.bf16.mxu0 %v12298
    %12912 = vmatpush1.bf16.msra.mxu0 %v12297
    %12913 = vmatprep.subr.bf16.mxu0 %v12302
    %12914 = vmatpush1.bf16.msra.mxu0 %v12301
    %12915 = vmatprep.subr.bf16.mxu0 %v12306
    %12916 = vmatpush1.bf16.msra.mxu0 %v12305
    %12917 = vmatprep.subr.bf16.mxu0 %v12310
    %12918 = vmatpush1.bf16.msra.mxu0 %v12309
    %12919 = vmatprep.subr.bf16.mxu0 %v12314
    %12920 = vmatpush1.bf16.msra.mxu0 %v12313
    %12921 = vmatprep.subr.bf16.mxu0 %v12318
    %12922 = vmatpush1.bf16.msra.mxu0 %v12317
    %12923 = vmatprep.subr.bf16.mxu0 %v12322
    %12924 = vmatpush1.bf16.msra.mxu0 %v12321
    %12925 = vmatprep.subr.bf16.mxu0 %v12326
    %12926 = vmatpush1.bf16.msra.mxu0 %v12325
    %12927 = vmatprep.subr.bf16.mxu0 %v12330
    %12928 = vmatpush1.bf16.msra.mxu0 %v12329
    %12929 = vmatprep.mubr.bf16.mxu0 %v11090
    %12930 = vmatmul.mubr.bf16.gmra.mrb[0].mxu0 %v11089
    %v12931 = vpop.f32.mrb[0].mxu0
    %v12932 = vadd.f32 %v12891, %v12931
    %v12933 = vpop.f32.mrb[0].mxu0
    %v12934 = vadd.f32 %v12893, %v12933
    %v12935 = vpop.f32.mrb[0].mxu0
    %v12936 = vpop.f32.mrb[0].mxu0
    %12937 = vdwg.mxu0
    %12938 = vmatprep.subr.bf16.mxu0 %v12334
    %12939 = vmatpush1.bf16.msra.mxu0 %v12333
    %12940 = vmatprep.subr.bf16.mxu0 %v12338
    %12941 = vmatpush1.bf16.msra.mxu0 %v12337
    %12942 = vmatprep.subr.bf16.mxu0 %v12342
    %12943 = vmatpush1.bf16.msra.mxu0 %v12341
    %12944 = vmatprep.subr.bf16.mxu0 %v12346
    %12945 = vmatpush1.bf16.msra.mxu0 %v12345
    %12946 = vmatprep.subr.bf16.mxu0 %v12350
    %12947 = vmatpush1.bf16.msra.mxu0 %v12349
    %12948 = vmatprep.subr.bf16.mxu0 %v12354
    %12949 = vmatpush1.bf16.msra.mxu0 %v12353
    %12950 = vmatprep.subr.bf16.mxu0 %v12358
    %12951 = vmatpush1.bf16.msra.mxu0 %v12357
    %12952 = vmatprep.subr.bf16.mxu0 %v12362
    %12953 = vmatpush1.bf16.msra.mxu0 %v12361
    %12954 = vmatprep.subr.bf16.mxu0 %v12366
    %12955 = vmatpush1.bf16.msra.mxu0 %v12365
    %12956 = vmatprep.subr.bf16.mxu0 %v12370
    %12957 = vmatpush1.bf16.msra.mxu0 %v12369
    %12958 = vmatprep.subr.bf16.mxu0 %v12374
    %12959 = vmatpush1.bf16.msra.mxu0 %v12373
    %12960 = vmatprep.subr.bf16.mxu0 %v12378
    %12961 = vmatpush1.bf16.msra.mxu0 %v12377
    %12962 = vmatprep.subr.bf16.mxu0 %v12382
    %12963 = vmatpush1.bf16.msra.mxu0 %v12381
    %12964 = vmatprep.subr.bf16.mxu0 %v12386
    %12965 = vmatpush1.bf16.msra.mxu0 %v12385
    %12966 = vmatprep.subr.bf16.mxu0 %v12390
    %12967 = vmatpush1.bf16.msra.mxu0 %v12389
    %12968 = vmatprep.subr.bf16.mxu0 %v12394
    %12969 = vmatpush1.bf16.msra.mxu0 %v12393
    %12970 = vmatprep.mubr.bf16.mxu0 %v11092
    %12971 = vmatmul.mubr.bf16.gmra.mrb[0].mxu0 %v11091
    %v12972 = vpop.f32.mrb[0].mxu0
    %v12973 = vadd.f32 %v12932, %v12972
    %v12974 = vpop.f32.mrb[0].mxu0
    %v12975 = vadd.f32 %v12934, %v12974
    %v12976 = vpop.f32.mrb[0].mxu0
    %v12977 = vpop.f32.mrb[0].mxu0
    %12978 = vdwg.mxu0
    %v12979 = vmax.f32 %v12809, 0.0
    %v12980 = vmax.f32 %v12811, 0.0
    %v12981 = vmax.f32 %v12973, 0.0
    %v12982 = vmax.f32 %v12975, 0.0
    %v12983 = vpack.c.bf16 %v12979, %v12979
    %v12984 = vpack.c.bf16 %v12980, %v12980
    %v12985 = vpack.c.bf16 %v12981, %v12981
    %v12986 = vpack.c.bf16 %v12982, %v12982
    %v12987 = vld [vmem:[#allocation27] sm:$0xf]
    %v12988 = vld [vmem:[#allocation27 + $0x4] sm:$0xf]
    %v12989 = vld [vmem:[#allocation27 + $0x8] sm:$0xf]
    %v12990 = vld [vmem:[#allocation27 + $0xc] sm:$0xf]
    %v12991 = vld [vmem:[#allocation27 + $0x10] sm:$0xf]
    %v12992 = vld [vmem:[#allocation27 + $0x14] sm:$0xf]
    %v12993 = vld [vmem:[#allocation27 + $0x18] sm:$0xf]
    %v12994 = vld [vmem:[#allocation27 + $0x1c] sm:$0xf]
    %v12995 = vld [vmem:[#allocation27 + $0x20] sm:$0xf]
    %v12996 = vld [vmem:[#allocation27 + $0x24] sm:$0xf]
    %v12997 = vld [vmem:[#allocation27 + $0x28] sm:$0xf]
    %v12998 = vld [vmem:[#allocation27 + $0x2c] sm:$0xf]
    %v12999 = vld [vmem:[#allocation27 + $0x30] sm:$0xf]
    %v13000 = vld [vmem:[#allocation27 + $0x34] sm:$0xf]
    %v13001 = vld [vmem:[#allocation27 + $0x38] sm:$0xf]
    %v13002 = vld [vmem:[#allocation27 + $0x3c] sm:$0xf]
    %v13003 = vld [vmem:[#allocation27 + $0x40] sm:$0xf]
    %v13004 = vld [vmem:[#allocation27 + $0x44] sm:$0xf]
    %v13005 = vld [vmem:[#allocation27 + $0x48] sm:$0xf]
    %v13006 = vld [vmem:[#allocation27 + $0x4c] sm:$0xf]
    %v13007 = vld [vmem:[#allocation27 + $0x50] sm:$0xf]
    %v13008 = vld [vmem:[#allocation27 + $0x54] sm:$0xf]
    %v13009 = vld [vmem:[#allocation27 + $0x58] sm:$0xf]
    %v13010 = vld [vmem:[#allocation27 + $0x5c] sm:$0xf]
    %v13011 = vld [vmem:[#allocation27 + $0x60] sm:$0xf]
    %v13012 = vld [vmem:[#allocation27 + $0x64] sm:$0xf]
    %v13013 = vld [vmem:[#allocation27 + $0x68] sm:$0xf]
    %v13014 = vld [vmem:[#allocation27 + $0x6c] sm:$0xf]
    %v13015 = vld [vmem:[#allocation27 + $0x70] sm:$0xf]
    %v13016 = vld [vmem:[#allocation27 + $0x74] sm:$0xf]
    %v13017 = vld [vmem:[#allocation27 + $0x78] sm:$0xf]
    %v13018 = vld [vmem:[#allocation27 + $0x7c] sm:$0xf]
    %v13019 = vld [vmem:[#allocation27 + $0x80] sm:$0xf]
    %v13020 = vld [vmem:[#allocation27 + $0x84] sm:$0xf]
    %v13021 = vld [vmem:[#allocation27 + $0x88] sm:$0xf]
    %v13022 = vld [vmem:[#allocation27 + $0x8c] sm:$0xf]
    %v13023 = vld [vmem:[#allocation27 + $0x90] sm:$0xf]
    %v13024 = vld [vmem:[#allocation27 + $0x94] sm:$0xf]
    %v13025 = vld [vmem:[#allocation27 + $0x98] sm:$0xf]
    %v13026 = vld [vmem:[#allocation27 + $0x9c] sm:$0xf]
    %v13027 = vld [vmem:[#allocation27 + $0xa0] sm:$0xf]
    %v13028 = vld [vmem:[#allocation27 + $0xa4] sm:$0xf]
    %v13029 = vld [vmem:[#allocation27 + $0xa8] sm:$0xf]
    %v13030 = vld [vmem:[#allocation27 + $0xac] sm:$0xf]
    %v13031 = vld [vmem:[#allocation27 + $0xb0] sm:$0xf]
    %v13032 = vld [vmem:[#allocation27 + $0xb4] sm:$0xf]
    %v13033 = vld [vmem:[#allocation27 + $0xb8] sm:$0xf]
    %v13034 = vld [vmem:[#allocation27 + $0xbc] sm:$0xf]
    %v13035 = vld [vmem:[#allocation27 + $0xc0] sm:$0xf]
    %v13036 = vld [vmem:[#allocation27 + $0xc4] sm:$0xf]
    %v13037 = vld [vmem:[#allocation27 + $0xc8] sm:$0xf]
    %v13038 = vld [vmem:[#allocation27 + $0xcc] sm:$0xf]
    %v13039 = vld [vmem:[#allocation27 + $0xd0] sm:$0xf]
    %v13040 = vld [vmem:[#allocation27 + $0xd4] sm:$0xf]
    %v13041 = vld [vmem:[#allocation27 + $0xd8] sm:$0xf]
    %v13042 = vld [vmem:[#allocation27 + $0xdc] sm:$0xf]
    %v13043 = vld [vmem:[#allocation27 + $0xe0] sm:$0xf]
    %v13044 = vld [vmem:[#allocation27 + $0xe4] sm:$0xf]
    %v13045 = vld [vmem:[#allocation27 + $0xe8] sm:$0xf]
    %v13046 = vld [vmem:[#allocation27 + $0xec] sm:$0xf]
    %v13047 = vld [vmem:[#allocation27 + $0xf0] sm:$0xf]
    %v13048 = vld [vmem:[#allocation27 + $0xf4] sm:$0xf]
    %v13049 = vld [vmem:[#allocation27 + $0xf8] sm:$0xf]
    %v13050 = vld [vmem:[#allocation27 + $0xfc] sm:$0xf]
    %v13051 = vld [vmem:[#allocation29] sm:$0x1]
    %v13053 = vlaneseq
    %v13054 = vshrl.u32 %v13053, 7
    %v13055 = vsub.s32 0, %v13054
    %v13056 = vrot.slane %v13051, %v13055
    %v13122 = vunpack.c.l.b16 %v12987
    %v13123 = vunpack.c.l.b16 %v12988
    %v13124 = vunpack.c.l.b16 %v12989
    %v13125 = vunpack.c.l.b16 %v12990
    %v13126 = vunpack.c.l.b16 %v12991
    %v13127 = vunpack.c.l.b16 %v12992
    %v13128 = vunpack.c.l.b16 %v12993
    %v13129 = vunpack.c.l.b16 %v12994
    %v13130 = vunpack.c.l.b16 %v12995
    %v13131 = vunpack.c.l.b16 %v12996
    %v13132 = vunpack.c.l.b16 %v12997
    %v13133 = vunpack.c.l.b16 %v12998
    %v13134 = vunpack.c.l.b16 %v12999
    %v13135 = vunpack.c.l.b16 %v13000
    %v13136 = vunpack.c.l.b16 %v13001
    %v13137 = vunpack.c.l.b16 %v13002
    %v13138 = vunpack.c.l.b16 %v13003
    %v13139 = vunpack.c.l.b16 %v13004
    %v13140 = vunpack.c.l.b16 %v13005
    %v13141 = vunpack.c.l.b16 %v13006
    %v13142 = vunpack.c.l.b16 %v13007
    %v13143 = vunpack.c.l.b16 %v13008
    %v13144 = vunpack.c.l.b16 %v13009
    %v13145 = vunpack.c.l.b16 %v13010
    %v13146 = vunpack.c.l.b16 %v13011
    %v13147 = vunpack.c.l.b16 %v13012
    %v13148 = vunpack.c.l.b16 %v13013
    %v13149 = vunpack.c.l.b16 %v13014
    %v13150 = vunpack.c.l.b16 %v13015
    %v13151 = vunpack.c.l.b16 %v13016
    %v13152 = vunpack.c.l.b16 %v13017
    %v13153 = vunpack.c.l.b16 %v13018
    %v13154 = vunpack.c.l.b16 %v13019
    %v13155 = vunpack.c.l.b16 %v13020
    %v13156 = vunpack.c.l.b16 %v13021
    %v13157 = vunpack.c.l.b16 %v13022
    %v13158 = vunpack.c.l.b16 %v13023
    %v13159 = vunpack.c.l.b16 %v13024
    %v13160 = vunpack.c.l.b16 %v13025
    %v13161 = vunpack.c.l.b16 %v13026
    %v13162 = vunpack.c.l.b16 %v13027
    %v13163 = vunpack.c.l.b16 %v13028
    %v13164 = vunpack.c.l.b16 %v13029
    %v13165 = vunpack.c.l.b16 %v13030
    %v13166 = vunpack.c.l.b16 %v13031
    %v13167 = vunpack.c.l.b16 %v13032
    %v13168 = vunpack.c.l.b16 %v13033
    %v13169 = vunpack.c.l.b16 %v13034
    %v13170 = vunpack.c.l.b16 %v13035
    %v13171 = vunpack.c.l.b16 %v13036
    %v13172 = vunpack.c.l.b16 %v13037
    %v13173 = vunpack.c.l.b16 %v13038
    %v13174 = vunpack.c.l.b16 %v13039
    %v13175 = vunpack.c.l.b16 %v13040
    %v13176 = vunpack.c.l.b16 %v13041
    %v13177 = vunpack.c.l.b16 %v13042
    %v13178 = vunpack.c.l.b16 %v13043
    %v13179 = vunpack.c.l.b16 %v13044
    %v13180 = vunpack.c.l.b16 %v13045
    %v13181 = vunpack.c.l.b16 %v13046
    %v13182 = vunpack.c.l.b16 %v13047
    %v13183 = vunpack.c.l.b16 %v13048
    %v13184 = vunpack.c.l.b16 %v13049
    %v13185 = vunpack.c.l.b16 %v13050
    %v13186 = vpack.c.b16 %v13123, %v13122
    %v13187 = vpack.c.b16 %v13125, %v13124
    %v13188 = vpack.c.b16 %v13127, %v13126
    %v13189 = vpack.c.b16 %v13129, %v13128
    %v13190 = vpack.c.b16 %v13131, %v13130
    %v13191 = vpack.c.b16 %v13133, %v13132
    %v13192 = vpack.c.b16 %v13135, %v13134
    %v13193 = vpack.c.b16 %v13137, %v13136
    %v13194 = vpack.c.b16 %v13139, %v13138
    %v13195 = vpack.c.b16 %v13141, %v13140
    %v13196 = vpack.c.b16 %v13143, %v13142
    %v13197 = vpack.c.b16 %v13145, %v13144
    %v13198 = vpack.c.b16 %v13147, %v13146
    %v13199 = vpack.c.b16 %v13149, %v13148
    %v13200 = vpack.c.b16 %v13151, %v13150
    %v13201 = vpack.c.b16 %v13153, %v13152
    %v13202 = vpack.c.b16 %v13155, %v13154
    %v13203 = vpack.c.b16 %v13157, %v13156
    %v13204 = vpack.c.b16 %v13159, %v13158
    %v13205 = vpack.c.b16 %v13161, %v13160
    %v13206 = vpack.c.b16 %v13163, %v13162
    %v13207 = vpack.c.b16 %v13165, %v13164
    %v13208 = vpack.c.b16 %v13167, %v13166
    %v13209 = vpack.c.b16 %v13169, %v13168
    %v13210 = vpack.c.b16 %v13171, %v13170
    %v13211 = vpack.c.b16 %v13173, %v13172
    %v13212 = vpack.c.b16 %v13175, %v13174
    %v13213 = vpack.c.b16 %v13177, %v13176
    %v13214 = vpack.c.b16 %v13179, %v13178
    %v13215 = vpack.c.b16 %v13181, %v13180
    %v13216 = vpack.c.b16 %v13183, %v13182
    %v13217 = vpack.c.b16 %v13185, %v13184
    %13250 = vmatprep.subr.bf16.mxu0 0
    %13251 = vmatpush1.bf16.msra.mxu0 %v13186
    %13252 = vmatprep.subr.bf16.mxu0 0
    %13253 = vmatpush1.bf16.msra.mxu0 %v13187
    %13254 = vmatprep.subr.bf16.mxu0 0
    %13255 = vmatpush1.bf16.msra.mxu0 %v13188
    %13256 = vmatprep.subr.bf16.mxu0 0
    %13257 = vmatpush1.bf16.msra.mxu0 %v13189
    %13258 = vmatprep.subr.bf16.mxu0 0
    %13259 = vmatpush1.bf16.msra.mxu0 %v13190
    %13260 = vmatprep.subr.bf16.mxu0 0
    %13261 = vmatpush1.bf16.msra.mxu0 %v13191
    %13262 = vmatprep.subr.bf16.mxu0 0
    %13263 = vmatpush1.bf16.msra.mxu0 %v13192
    %13264 = vmatprep.subr.bf16.mxu0 0
    %13265 = vmatpush1.bf16.msra.mxu0 %v13193
    %13266 = vmatprep.subr.bf16.mxu0 0
    %13267 = vmatpush1.bf16.msra.mxu0 %v13194
    %13268 = vmatprep.subr.bf16.mxu0 0
    %13269 = vmatpush1.bf16.msra.mxu0 %v13195
    %13270 = vmatprep.subr.bf16.mxu0 0
    %13271 = vmatpush1.bf16.msra.mxu0 %v13196
    %13272 = vmatprep.subr.bf16.mxu0 0
    %13273 = vmatpush1.bf16.msra.mxu0 %v13197
    %13274 = vmatprep.subr.bf16.mxu0 0
    %13275 = vmatpush1.bf16.msra.mxu0 %v13198
    %13276 = vmatprep.subr.bf16.mxu0 0
    %13277 = vmatpush1.bf16.msra.mxu0 %v13199
    %13278 = vmatprep.subr.bf16.mxu0 0
    %13279 = vmatpush1.bf16.msra.mxu0 %v13200
    %13280 = vmatprep.subr.bf16.mxu0 0
    %13281 = vmatpush1.bf16.msra.mxu0 %v13201
    %13282 = vmatprep.mubr.bf16.mxu0 %v12984
    %13283 = vmatmul.mubr.bf16.gmra.mrb[0].mxu0 %v12983
    %v13284 = vpop.f32.mrb[0].mxu0
    %v13285 = vadd.f32 %v13056, %v13284
    %v13286 = vpop.f32.mrb[0].mxu0
    %v13287 = vpop.f32.mrb[0].mxu0
    %v13288 = vpop.f32.mrb[0].mxu0
    %13289 = vdwg.mxu0
    %13290 = vmatprep.subr.bf16.mxu0 0
    %13291 = vmatpush1.bf16.msra.mxu0 %v13202
    %13292 = vmatprep.subr.bf16.mxu0 0
    %13293 = vmatpush1.bf16.msra.mxu0 %v13203
    %13294 = vmatprep.subr.bf16.mxu0 0
    %13295 = vmatpush1.bf16.msra.mxu0 %v13204
    %13296 = vmatprep.subr.bf16.mxu0 0
    %13297 = vmatpush1.bf16.msra.mxu0 %v13205
    %13298 = vmatprep.subr.bf16.mxu0 0
    %13299 = vmatpush1.bf16.msra.mxu0 %v13206
    %13300 = vmatprep.subr.bf16.mxu0 0
    %13301 = vmatpush1.bf16.msra.mxu0 %v13207
    %13302 = vmatprep.subr.bf16.mxu0 0
    %13303 = vmatpush1.bf16.msra.mxu0 %v13208
    %13304 = vmatprep.subr.bf16.mxu0 0
    %13305 = vmatpush1.bf16.msra.mxu0 %v13209
    %13306 = vmatprep.subr.bf16.mxu0 0
    %13307 = vmatpush1.bf16.msra.mxu0 %v13210
    %13308 = vmatprep.subr.bf16.mxu0 0
    %13309 = vmatpush1.bf16.msra.mxu0 %v13211
    %13310 = vmatprep.subr.bf16.mxu0 0
    %13311 = vmatpush1.bf16.msra.mxu0 %v13212
    %13312 = vmatprep.subr.bf16.mxu0 0
    %13313 = vmatpush1.bf16.msra.mxu0 %v13213
    %13314 = vmatprep.subr.bf16.mxu0 0
    %13315 = vmatpush1.bf16.msra.mxu0 %v13214
    %13316 = vmatprep.subr.bf16.mxu0 0
    %13317 = vmatpush1.bf16.msra.mxu0 %v13215
    %13318 = vmatprep.subr.bf16.mxu0 0
    %13319 = vmatpush1.bf16.msra.mxu0 %v13216
    %13320 = vmatprep.subr.bf16.mxu0 0
    %13321 = vmatpush1.bf16.msra.mxu0 %v13217
    %13322 = vmatprep.mubr.bf16.mxu0 %v12986
    %13323 = vmatmul.mubr.bf16.gmra.mrb[0].mxu0 %v12985
    %v13324 = vpop.f32.mrb[0].mxu0
    %v13325 = vadd.f32 %v13285, %v13324
    %v13326 = vpop.f32.mrb[0].mxu0
    %v13327 = vpop.f32.mrb[0].mxu0
    %v13328 = vpop.f32.mrb[0].mxu0
    %13329 = vdwg.mxu0
    %13330 = vst [vmem:[%s19] sm:$0xff] %v13325
    // Predicated region
    $region142: #{il_net_gcn_forward.1} parent=1 // pred_check
      _
    $region143: #{il_net_gcn_forward.1} parent=1 // pred_check_branch
      %13332 = sbr.rel (0) target = $region145
    $region144: #{il_net_gcn_forward.1} parent=1 // pred_region
      _
    $region145: #{il_net_gcn_forward.1} parent=1 // pred_fallthru
      _
    // Predicated region
    $region146: #{il_net_gcn_forward.1} parent=1 // pred_check
      _
    $region147: #{il_net_gcn_forward.1} parent=1 // pred_check_branch
      %13334 = sbr.rel (0) target = $region149
    $region148: #{il_net_gcn_forward.1} parent=1 // pred_region
      _
    $region149: #{il_net_gcn_forward.1} parent=1 // pred_fallthru
      _
    %13335 = vsyncpa [#allocation5], 1
    %13336 = vsyncpa [#allocation7], 1
    %13337 = vsyncpa [#allocation10], 1
    %13338 = vsyncpa [#allocation13], 1
    %13339 = vsyncpa [#allocation16], 1
    %13340 = vsyncpa [#allocation19], 1
    %13341 = vsyncpa [#allocation22], 1
    %13342 = vsyncpa [#allocation25], 1
    %13343 = vsyncpa [#allocation28], 1

</llo_original>
